<compile_context>
chip_gen: v7x
topology: tpu7x:2x2x1
jax: 0.10.0
libtpu: 0.0.40
codegen_flags: <defaults>
</compile_context>

<pallas_src>
import jax
import jax.numpy as jnp
from jax import lax
from jax.experimental import pallas as pl
from jax.experimental.pallas import tpu as pltpu


# ----------------------------------------------------------------------------
# Pallas kernel: out = act((x @ w) * scale + shift)
# ----------------------------------------------------------------------------
def _make_mm_kernel(act):
    def kernel(x_ref, w_ref, sc_ref, sh_ref, o_ref):
        y = jnp.dot(x_ref[...], w_ref[...], preferred_element_type=jnp.float32)
        y = y * sc_ref[...] + sh_ref[...]
        if act == "relu":
            y = jnp.maximum(y, 0.0)
        o_ref[...] = y.astype(o_ref.dtype)
    return kernel


_MM_KERNELS = {a: _make_mm_kernel(a) for a in ("none", "relu")}


def matmul_scale_act(x, w, scale, shift, act="none"):
    """act((x @ w) * scale + shift); scale/shift broadcast over output columns.

    x: (M, K) any float dtype, w: (K, N). Operands are fed to the MXU in bf16,
    accumulation and epilogue in f32. For this model M <= 512, so each operand
    is a single full-array block (no padding, no K grid, no scratch).
    """
    M, K = x.shape
    _, N = w.shape

    xb = x.astype(jnp.bfloat16)
    wb = w.astype(jnp.bfloat16)
    sc = scale.astype(jnp.float32).reshape(1, N)
    sh = shift.astype(jnp.float32).reshape(1, N)

    # Row padding only in corner cases (M < 8 sublanes, or M > 512 -> tile).
    Mp = M
    if M < 8:
        Mp = 8
    elif M > 512:
        Mp = -(-M // 512) * 512
    if Mp != M:
        xb = jnp.pad(xb, ((0, Mp - M), (0, 0)))
    tm = min(Mp, 512)

    out = pl.pallas_call(
        _MM_KERNELS[act],
        out_shape=jax.ShapeDtypeStruct((Mp, N), jnp.float32),
        grid=(Mp // tm,),
        in_specs=[
            pl.BlockSpec((tm, K), lambda i: (i, 0)),
            pl.BlockSpec((K, N), lambda i: (0, 0)),   # weight resident
            pl.BlockSpec((1, N), lambda i: (0, 0)),
            pl.BlockSpec((1, N), lambda i: (0, 0)),
        ],
        out_specs=pl.BlockSpec((tm, N), lambda i: (i, 0)),
        compiler_params=pltpu.CompilerParams(
            dimension_semantics=("parallel",)),
    )(xb, wb, sc, sh)

    return out[:M] if Mp != M else out


# ----------------------------------------------------------------------------
# Layer helpers (XLA glue feeding the Pallas matmul hot path)
# ----------------------------------------------------------------------------
def conv2d(x, w, bias, padding=1, bn=None, act="none"):
    """Stride-1 conv. x: NHWC f32. w: torch layout (O, C, kh, kw).
    Fuses bias + (inference) BatchNorm + activation into the matmul epilogue."""
    N, H, W, C = x.shape
    O, _, kh, kw = w.shape
    if padding:
        x = jnp.pad(x, ((0, 0), (padding, padding), (padding, padding), (0, 0)))
    Hp, Wp = x.shape[1], x.shape[2]
    Ho, Wo = Hp - kh + 1, Wp - kw + 1

    # Patch extraction (fused by XLA under the outer jit); column order is
    # (c, a, b) to match torch's w.reshape(O, C*kh*kw) flattening.
    cols = [x[:, a:a + Ho, b:b + Wo, :] for a in range(kh) for b in range(kw)]
    patches = jnp.stack(cols, axis=-1).reshape(N * Ho * Wo, C * kh * kw)
    w2 = w.reshape(O, C * kh * kw).T

    if bn is not None:
        gamma, beta, mean, var = bn
        inv = gamma * lax.rsqrt(var + 1e-5)
        b0 = bias if bias is not None else jnp.zeros((O,), jnp.float32)
        scale = inv
        shift = beta + (b0 - mean) * inv
    else:
        scale = jnp.ones((O,), jnp.float32)
        shift = bias if bias is not None else jnp.zeros((O,), jnp.float32)

    out = matmul_scale_act(patches, w2, scale, shift, act=act)
    return out.reshape(N, Ho, Wo, O)


def conv_transpose_3x3_s2(x, w, bias):
    """ConvTranspose2d(k=3, stride=2, padding=1, output_padding=1) -> 2H x 2W.
    x: NHWC, w: torch layout (Cin, Cout, 3, 3). Implemented as interior
    zero-dilation + asymmetric pad + ordinary 3x3 conv with the spatially
    flipped, channel-swapped weight; bias is fused as the matmul shift."""
    xd = lax.pad(x, jnp.array(0.0, x.dtype),
                 ((0, 0, 0), (1, 2, 1), (1, 2, 1), (0, 0, 0)))
    wc = jnp.flip(w, axis=(2, 3)).transpose(1, 0, 2, 3)   # (Cout, Cin, 3, 3)
    return conv2d(xd, wc, bias, padding=0, bn=None, act="none")


def maxpool_3x3_s2_p1(x):
    # TODO(synk): max-pool kept as plain JAX reduce_window (glue, not hot path).
    return lax.reduce_window(
        x, -jnp.inf, lax.max,
        (1, 3, 3, 1), (1, 2, 2, 1),
        ((0, 0), (1, 1), (1, 1), (0, 0)))


# ----------------------------------------------------------------------------
# Model blocks
# ----------------------------------------------------------------------------
def down_block(x, p):
    x = conv2d(x, p["conv1_w"], p["conv1_b"], padding=1, bn=p["bn1"], act="relu")
    x = conv2d(x, p["conv2_w"], p["conv2_b"], padding=1, bn=p["bn2"], act="relu")
    return maxpool_3x3_s2_p1(x)


def up_block(x, p):
    x = conv2d(x, p["conv1_w"], p["conv1_b"], padding=1, bn=p["bn1"], act="relu")
    x = conv2d(x, p["conv2_w"], p["conv2_b"], padding=1, bn=p["bn2"], act="relu")
    return conv_transpose_3x3_s2(x, p["tconv_w"], p["tconv_b"])


def unet_forward(x_nchw, P):
    x = jnp.transpose(x_nchw, (0, 2, 3, 1)).astype(jnp.float32)   # NCHW -> NHWC

    c1 = down_block(x, P["down1"])     # H/2,  16
    c2 = down_block(c1, P["down2"])    # H/4,  32
    c3 = down_block(c2, P["down3"])    # H/8,  64
    c4 = down_block(c3, P["down4"])    # H/16, 128

    u1 = up_block(c4, P["up1"])                                    # H/8, 64
    u2 = up_block(jnp.concatenate([u1, c3], axis=-1), P["up2"])    # H/4, 32
    u3 = up_block(jnp.concatenate([u2, c2], axis=-1), P["up3"])    # H/2, 16
    u4 = up_block(jnp.concatenate([u3, c1], axis=-1), P["up4"])    # H,   out_ch

    return jnp.transpose(u4, (0, 3, 1, 2))   # back to NCHW (logits)


# ----------------------------------------------------------------------------
# Deterministic parameter construction (PyTorch layouts)
# ----------------------------------------------------------------------------
class ParamInit:
    def __init__(self, seed):
        self._key = jax.random.PRNGKey(seed)

    def _next(self):
        self._key, k = jax.random.split(self._key)
        return k

    def conv_w(self, shape):            # (O, C, kh, kw) or (Cin, Cout, kh, kw)
        fan_in = shape[1] * shape[2] * shape[3]
        return jax.random.normal(self._next(), shape, jnp.float32) * jnp.sqrt(2.0 / fan_in)

    def bias(self, n):
        return jax.random.normal(self._next(), (n,), jnp.float32) * 0.01

    def bn(self, n):                    # inference-mode BN stats
        gamma = jnp.ones((n,), jnp.float32)
        beta = jnp.zeros((n,), jnp.float32)
        mean = jax.random.normal(self._next(), (n,), jnp.float32) * 0.01
        var = jnp.ones((n,), jnp.float32)
        return (gamma, beta, mean, var)


def make_down_block(init, cin, cout):
    return {
        "conv1_w": init.conv_w((cout, cin, 3, 3)), "conv1_b": init.bias(cout),
        "bn1": init.bn(cout),
        "conv2_w": init.conv_w((cout, cout, 3, 3)), "conv2_b": init.bias(cout),
        "bn2": init.bn(cout),
    }


def make_up_block(init, cin, cout):
    p = make_down_block(init, cin, cout)
    p["tconv_w"] = init.conv_w((cout, cout, 3, 3))   # torch ConvT: (Cin, Cout, kh, kw)
    p["tconv_b"] = init.bias(cout)
    return p


def build_params(in_channels=4, out_channels=4, seed=0):
    init = ParamInit(seed)
    return {
        "down1": make_down_block(init, in_channels, 16),
        "down2": make_down_block(init, 16, 32),
        "down3": make_down_block(init, 32, 64),
        "down4": make_down_block(init, 64, 128),
        "up1": make_up_block(init, 128, 64),
        "up2": make_up_block(init, 64 * 2, 32),
        "up3": make_up_block(init, 32 * 2, 16),
        "up4": make_up_block(init, 16 * 2, out_channels),
    }


if __name__ == "__main__":
    key = jax.random.PRNGKey(0)
    x = jax.random.normal(key, (2, 4, 16, 16), jnp.float32)   # NCHW, like PyTorch
    params = build_params(in_channels=4, out_channels=4, seed=0)

    fwd = jax.jit(unet_forward)
    out = jax.block_until_ready(fwd(x, params))

    assert out.shape == (2, 4, 16, 16), out.shape
    assert bool(jnp.all(jnp.isfinite(out)))
    print("KERNEL_OK")
</pallas_src>

<mosaic_0001>
module attributes {stable_mosaic.version = 11 : i64} {
  func.func @kernel(%arg0: i32, %arg1: memref<512x36xbf16, #tpu.memory_space<vmem>>, %arg2: memref<36x16xbf16, #tpu.memory_space<vmem>>, %arg3: memref<1x16xf32, #tpu.memory_space<vmem>>, %arg4: memref<1x16xf32, #tpu.memory_space<vmem>>, %arg5: memref<512x16xf32, #tpu.memory_space<vmem>>) attributes {dimension_semantics = [#tpu.dimension_semantics<parallel>], iteration_bounds = array<i64: 1>, scalar_prefetch = 0 : i64, scratch_operands = 0 : i64, tpu.core_type = #tpu.core_type<tc>, window_params = [{transform_indices = @transform_0, window_bounds = array<i64: 512, 36>}, {pipeline_mode = #tpu.pipeline_mode<synchronous>, transform_indices = @transform_1, window_bounds = array<i64: 36, 16>}, {pipeline_mode = #tpu.pipeline_mode<synchronous>, transform_indices = @transform_2, window_bounds = array<i64: 1, 16>}, {pipeline_mode = #tpu.pipeline_mode<synchronous>, transform_indices = @transform_3, window_bounds = array<i64: 1, 16>}, {transform_indices = @transform_4, window_bounds = array<i64: 512, 16>}]} {
    %c0 = arith.constant 0 : index
    %c0_0 = arith.constant 0 : index
    %0 = vector.load %arg1[%c0, %c0_0] : memref<512x36xbf16, #tpu.memory_space<vmem>>, vector<512x36xbf16>
    %c0_1 = arith.constant 0 : index
    %c0_2 = arith.constant 0 : index
    %1 = vector.load %arg2[%c0_1, %c0_2] : memref<36x16xbf16, #tpu.memory_space<vmem>>, vector<36x16xbf16>
    %cst = arith.constant dense<0.000000e+00> : vector<512x16xf32>
    %2 = tpu.matmul %0, %1, %cst {dimension_numbers = #tpu.dot_dimension_numbers<[1], [0], [0], [1], [0, 0, 1, 1], [], []>} : vector<512x36xbf16>, vector<36x16xbf16>, vector<512x16xf32> -> vector<512x16xf32>
    %c0_3 = arith.constant 0 : index
    %c0_4 = arith.constant 0 : index
    %3 = vector.load %arg3[%c0_3, %c0_4] : memref<1x16xf32, #tpu.memory_space<vmem>>, vector<1x16xf32>
    %4 = vector.broadcast %3 : vector<1x16xf32> to vector<512x16xf32>
    %5 = arith.mulf %2, %4 : vector<512x16xf32>
    %c0_5 = arith.constant 0 : index
    %c0_6 = arith.constant 0 : index
    %6 = vector.load %arg4[%c0_5, %c0_6] : memref<1x16xf32, #tpu.memory_space<vmem>>, vector<1x16xf32>
    %7 = vector.broadcast %6 : vector<1x16xf32> to vector<512x16xf32>
    %8 = arith.addf %5, %7 : vector<512x16xf32>
    %cst_7 = arith.constant 0.000000e+00 : f32
    %9 = vector.broadcast %cst_7 : f32 to vector<512x16xf32>
    %10 = arith.maximumf %8, %9 : vector<512x16xf32>
    %c0_8 = arith.constant 0 : index
    %c0_9 = arith.constant 0 : index
    %11 = vector.load %arg5[%c0_8, %c0_9] : memref<512x16xf32, #tpu.memory_space<vmem>>, vector<512x16xf32>
    tpu.vector_store %arg5[%c0_8, %c0_9], %10 {strides = array<i32>} : memref<512x16xf32, #tpu.memory_space<vmem>>, vector<512x16xf32>,
    return
  }
  func.func @transform_0(%arg0: i32) -> (i32, i32) {
    %c0_i32 = arith.constant 0 : i32
    %c0_i32_0 = arith.constant 0 : i32
    return %arg0, %c0_i32 : i32, i32
  }
  func.func @transform_1(%arg0: i32) -> (i32, i32) {
    %c0_i32 = arith.constant 0 : i32
    %c0_i32_0 = arith.constant 0 : i32
    %c0_i32_1 = arith.constant 0 : i32
    return %c0_i32, %c0_i32_0 : i32, i32
  }
  func.func @transform_2(%arg0: i32) -> (i32, i32) {
    %c0_i32 = arith.constant 0 : i32
    %c0_i32_0 = arith.constant 0 : i32
    %c0_i32_1 = arith.constant 0 : i32
    return %c0_i32, %c0_i32_0 : i32, i32
  }
  func.func @transform_3(%arg0: i32) -> (i32, i32) {
    %c0_i32 = arith.constant 0 : i32
    %c0_i32_0 = arith.constant 0 : i32
    %c0_i32_1 = arith.constant 0 : i32
    return %c0_i32, %c0_i32_0 : i32, i32
  }
  func.func @transform_4(%arg0: i32) -> (i32, i32) {
    %c0_i32 = arith.constant 0 : i32
    %c0_i32_0 = arith.constant 0 : i32
    return %arg0, %c0_i32 : i32, i32
  }
}

module attributes {stable_mosaic.version = 11 : i64} {
  func.func @kernel(%arg0: i32, %arg1: memref<512x144xbf16, #tpu.memory_space<vmem>>, %arg2: memref<144x16xbf16, #tpu.memory_space<vmem>>, %arg3: memref<1x16xf32, #tpu.memory_space<vmem>>, %arg4: memref<1x16xf32, #tpu.memory_space<vmem>>, %arg5: memref<512x16xf32, #tpu.memory_space<vmem>>) attributes {dimension_semantics = [#tpu.dimension_semantics<parallel>], iteration_bounds = array<i64: 1>, scalar_prefetch = 0 : i64, scratch_operands = 0 : i64, tpu.core_type = #tpu.core_type<tc>, window_params = [{transform_indices = @transform_0, window_bounds = array<i64: 512, 144>}, {pipeline_mode = #tpu.pipeline_mode<synchronous>, transform_indices = @transform_1, window_bounds = array<i64: 144, 16>}, {pipeline_mode = #tpu.pipeline_mode<synchronous>, transform_indices = @transform_2, window_bounds = array<i64: 1, 16>}, {pipeline_mode = #tpu.pipeline_mode<synchronous>, transform_indices = @transform_3, window_bounds = array<i64: 1, 16>}, {transform_indices = @transform_4, window_bounds = array<i64: 512, 16>}]} {
    %c0 = arith.constant 0 : index
    %c0_0 = arith.constant 0 : index
    %0 = vector.load %arg1[%c0, %c0_0] : memref<512x144xbf16, #tpu.memory_space<vmem>>, vector<512x144xbf16>
    %c0_1 = arith.constant 0 : index
    %c0_2 = arith.constant 0 : index
    %1 = vector.load %arg2[%c0_1, %c0_2] : memref<144x16xbf16, #tpu.memory_space<vmem>>, vector<144x16xbf16>
    %cst = arith.constant dense<0.000000e+00> : vector<512x16xf32>
    %2 = tpu.matmul %0, %1, %cst {dimension_numbers = #tpu.dot_dimension_numbers<[1], [0], [0], [1], [0, 0, 1, 1], [], []>} : vector<512x144xbf16>, vector<144x16xbf16>, vector<512x16xf32> -> vector<512x16xf32>
    %c0_3 = arith.constant 0 : index
    %c0_4 = arith.constant 0 : index
    %3 = vector.load %arg3[%c0_3, %c0_4] : memref<1x16xf32, #tpu.memory_space<vmem>>, vector<1x16xf32>
    %4 = vector.broadcast %3 : vector<1x16xf32> to vector<512x16xf32>
    %5 = arith.mulf %2, %4 : vector<512x16xf32>
    %c0_5 = arith.constant 0 : index
    %c0_6 = arith.constant 0 : index
    %6 = vector.load %arg4[%c0_5, %c0_6] : memref<1x16xf32, #tpu.memory_space<vmem>>, vector<1x16xf32>
    %7 = vector.broadcast %6 : vector<1x16xf32> to vector<512x16xf32>
    %8 = arith.addf %5, %7 : vector<512x16xf32>
    %cst_7 = arith.constant 0.000000e+00 : f32
    %9 = vector.broadcast %cst_7 : f32 to vector<512x16xf32>
    %10 = arith.maximumf %8, %9 : vector<512x16xf32>
    %c0_8 = arith.constant 0 : index
    %c0_9 = arith.constant 0 : index
    %11 = vector.load %arg5[%c0_8, %c0_9] : memref<512x16xf32, #tpu.memory_space<vmem>>, vector<512x16xf32>
    tpu.vector_store %arg5[%c0_8, %c0_9], %10 {strides = array<i32>} : memref<512x16xf32, #tpu.memory_space<vmem>>, vector<512x16xf32>,
    return
  }
  func.func @transform_0(%arg0: i32) -> (i32, i32) {
    %c0_i32 = arith.constant 0 : i32
    %c0_i32_0 = arith.constant 0 : i32
    return %arg0, %c0_i32 : i32, i32
  }
  func.func @transform_1(%arg0: i32) -> (i32, i32) {
    %c0_i32 = arith.constant 0 : i32
    %c0_i32_0 = arith.constant 0 : i32
    %c0_i32_1 = arith.constant 0 : i32
    return %c0_i32, %c0_i32_0 : i32, i32
  }
  func.func @transform_2(%arg0: i32) -> (i32, i32) {
    %c0_i32 = arith.constant 0 : i32
    %c0_i32_0 = arith.constant 0 : i32
    %c0_i32_1 = arith.constant 0 : i32
    return %c0_i32, %c0_i32_0 : i32, i32
  }
  func.func @transform_3(%arg0: i32) -> (i32, i32) {
    %c0_i32 = arith.constant 0 : i32
    %c0_i32_0 = arith.constant 0 : i32
    %c0_i32_1 = arith.constant 0 : i32
    return %c0_i32, %c0_i32_0 : i32, i32
  }
  func.func @transform_4(%arg0: i32) -> (i32, i32) {
    %c0_i32 = arith.constant 0 : i32
    %c0_i32_0 = arith.constant 0 : i32
    return %arg0, %c0_i32 : i32, i32
  }
}

module attributes {stable_mosaic.version = 11 : i64} {
  func.func @kernel(%arg0: i32, %arg1: memref<128x144xbf16, #tpu.memory_space<vmem>>, %arg2: memref<144x32xbf16, #tpu.memory_space<vmem>>, %arg3: memref<1x32xf32, #tpu.memory_space<vmem>>, %arg4: memref<1x32xf32, #tpu.memory_space<vmem>>, %arg5: memref<128x32xf32, #tpu.memory_space<vmem>>) attributes {dimension_semantics = [#tpu.dimension_semantics<parallel>], iteration_bounds = array<i64: 1>, scalar_prefetch = 0 : i64, scratch_operands = 0 : i64, tpu.core_type = #tpu.core_type<tc>, window_params = [{transform_indices = @transform_0, window_bounds = array<i64: 128, 144>}, {pipeline_mode = #tpu.pipeline_mode<synchronous>, transform_indices = @transform_1, window_bounds = array<i64: 144, 32>}, {pipeline_mode = #tpu.pipeline_mode<synchronous>, transform_indices = @transform_2, window_bounds = array<i64: 1, 32>}, {pipeline_mode = #tpu.pipeline_mode<synchronous>, transform_indices = @transform_3, window_bounds = array<i64: 1, 32>}, {transform_indices = @transform_4, window_bounds = array<i64: 128, 32>}]} {
    %c0 = arith.constant 0 : index
    %c0_0 = arith.constant 0 : index
    %0 = vector.load %arg1[%c0, %c0_0] : memref<128x144xbf16, #tpu.memory_space<vmem>>, vector<128x144xbf16>
    %c0_1 = arith.constant 0 : index
    %c0_2 = arith.constant 0 : index
    %1 = vector.load %arg2[%c0_1, %c0_2] : memref<144x32xbf16, #tpu.memory_space<vmem>>, vector<144x32xbf16>
    %cst = arith.constant dense<0.000000e+00> : vector<128x32xf32>
    %2 = tpu.matmul %0, %1, %cst {dimension_numbers = #tpu.dot_dimension_numbers<[1], [0], [0], [1], [0, 0, 1, 1], [], []>} : vector<128x144xbf16>, vector<144x32xbf16>, vector<128x32xf32> -> vector<128x32xf32>
    %c0_3 = arith.constant 0 : index
    %c0_4 = arith.constant 0 : index
    %3 = vector.load %arg3[%c0_3, %c0_4] : memref<1x32xf32, #tpu.memory_space<vmem>>, vector<1x32xf32>
    %4 = vector.broadcast %3 : vector<1x32xf32> to vector<128x32xf32>
    %5 = arith.mulf %2, %4 : vector<128x32xf32>
    %c0_5 = arith.constant 0 : index
    %c0_6 = arith.constant 0 : index
    %6 = vector.load %arg4[%c0_5, %c0_6] : memref<1x32xf32, #tpu.memory_space<vmem>>, vector<1x32xf32>
    %7 = vector.broadcast %6 : vector<1x32xf32> to vector<128x32xf32>
    %8 = arith.addf %5, %7 : vector<128x32xf32>
    %cst_7 = arith.constant 0.000000e+00 : f32
    %9 = vector.broadcast %cst_7 : f32 to vector<128x32xf32>
    %10 = arith.maximumf %8, %9 : vector<128x32xf32>
    %c0_8 = arith.constant 0 : index
    %c0_9 = arith.constant 0 : index
    %11 = vector.load %arg5[%c0_8, %c0_9] : memref<128x32xf32, #tpu.memory_space<vmem>>, vector<128x32xf32>
    tpu.vector_store %arg5[%c0_8, %c0_9], %10 {strides = array<i32>} : memref<128x32xf32, #tpu.memory_space<vmem>>, vector<128x32xf32>,
    return
  }
  func.func @transform_0(%arg0: i32) -> (i32, i32) {
    %c0_i32 = arith.constant 0 : i32
    %c0_i32_0 = arith.constant 0 : i32
    return %arg0, %c0_i32 : i32, i32
  }
  func.func @transform_1(%arg0: i32) -> (i32, i32) {
    %c0_i32 = arith.constant 0 : i32
    %c0_i32_0 = arith.constant 0 : i32
    %c0_i32_1 = arith.constant 0 : i32
    return %c0_i32, %c0_i32_0 : i32, i32
  }
  func.func @transform_2(%arg0: i32) -> (i32, i32) {
    %c0_i32 = arith.constant 0 : i32
    %c0_i32_0 = arith.constant 0 : i32
    %c0_i32_1 = arith.constant 0 : i32
    return %c0_i32, %c0_i32_0 : i32, i32
  }
  func.func @transform_3(%arg0: i32) -> (i32, i32) {
    %c0_i32 = arith.constant 0 : i32
    %c0_i32_0 = arith.constant 0 : i32
    %c0_i32_1 = arith.constant 0 : i32
    return %c0_i32, %c0_i32_0 : i32, i32
  }
  func.func @transform_4(%arg0: i32) -> (i32, i32) {
    %c0_i32 = arith.constant 0 : i32
    %c0_i32_0 = arith.constant 0 : i32
    return %arg0, %c0_i32 : i32, i32
  }
}

module attributes {stable_mosaic.version = 11 : i64} {
  func.func @kernel(%arg0: i32, %arg1: memref<128x288xbf16, #tpu.memory_space<vmem>>, %arg2: memref<288x32xbf16, #tpu.memory_space<vmem>>, %arg3: memref<1x32xf32, #tpu.memory_space<vmem>>, %arg4: memref<1x32xf32, #tpu.memory_space<vmem>>, %arg5: memref<128x32xf32, #tpu.memory_space<vmem>>) attributes {dimension_semantics = [#tpu.dimension_semantics<parallel>], iteration_bounds = array<i64: 1>, scalar_prefetch = 0 : i64, scratch_operands = 0 : i64, tpu.core_type = #tpu.core_type<tc>, window_params = [{transform_indices = @transform_0, window_bounds = array<i64: 128, 288>}, {pipeline_mode = #tpu.pipeline_mode<synchronous>, transform_indices = @transform_1, window_bounds = array<i64: 288, 32>}, {pipeline_mode = #tpu.pipeline_mode<synchronous>, transform_indices = @transform_2, window_bounds = array<i64: 1, 32>}, {pipeline_mode = #tpu.pipeline_mode<synchronous>, transform_indices = @transform_3, window_bounds = array<i64: 1, 32>}, {transform_indices = @transform_4, window_bounds = array<i64: 128, 32>}]} {
    %c0 = arith.constant 0 : index
    %c0_0 = arith.constant 0 : index
    %0 = vector.load %arg1[%c0, %c0_0] : memref<128x288xbf16, #tpu.memory_space<vmem>>, vector<128x288xbf16>
    %c0_1 = arith.constant 0 : index
    %c0_2 = arith.constant 0 : index
    %1 = vector.load %arg2[%c0_1, %c0_2] : memref<288x32xbf16, #tpu.memory_space<vmem>>, vector<288x32xbf16>
    %cst = arith.constant dense<0.000000e+00> : vector<128x32xf32>
    %2 = tpu.matmul %0, %1, %cst {dimension_numbers = #tpu.dot_dimension_numbers<[1], [0], [0], [1], [0, 0, 1, 1], [], []>} : vector<128x288xbf16>, vector<288x32xbf16>, vector<128x32xf32> -> vector<128x32xf32>
    %c0_3 = arith.constant 0 : index
    %c0_4 = arith.constant 0 : index
    %3 = vector.load %arg3[%c0_3, %c0_4] : memref<1x32xf32, #tpu.memory_space<vmem>>, vector<1x32xf32>
    %4 = vector.broadcast %3 : vector<1x32xf32> to vector<128x32xf32>
    %5 = arith.mulf %2, %4 : vector<128x32xf32>
    %c0_5 = arith.constant 0 : index
    %c0_6 = arith.constant 0 : index
    %6 = vector.load %arg4[%c0_5, %c0_6] : memref<1x32xf32, #tpu.memory_space<vmem>>, vector<1x32xf32>
    %7 = vector.broadcast %6 : vector<1x32xf32> to vector<128x32xf32>
    %8 = arith.addf %5, %7 : vector<128x32xf32>
    %cst_7 = arith.constant 0.000000e+00 : f32
    %9 = vector.broadcast %cst_7 : f32 to vector<128x32xf32>
    %10 = arith.maximumf %8, %9 : vector<128x32xf32>
    %c0_8 = arith.constant 0 : index
    %c0_9 = arith.constant 0 : index
    %11 = vector.load %arg5[%c0_8, %c0_9] : memref<128x32xf32, #tpu.memory_space<vmem>>, vector<128x32xf32>
    tpu.vector_store %arg5[%c0_8, %c0_9], %10 {strides = array<i32>} : memref<128x32xf32, #tpu.memory_space<vmem>>, vector<128x32xf32>,
    return
  }
  func.func @transform_0(%arg0: i32) -> (i32, i32) {
    %c0_i32 = arith.constant 0 : i32
    %c0_i32_0 = arith.constant 0 : i32
    return %arg0, %c0_i32 : i32, i32
  }
  func.func @transform_1(%arg0: i32) -> (i32, i32) {
    %c0_i32 = arith.constant 0 : i32
    %c0_i32_0 = arith.constant 0 : i32
    %c0_i32_1 = arith.constant 0 : i32
    return %c0_i32, %c0_i32_0 : i32, i32
  }
  func.func @transform_2(%arg0: i32) -> (i32, i32) {
    %c0_i32 = arith.constant 0 : i32
    %c0_i32_0 = arith.constant 0 : i32
    %c0_i32_1 = arith.constant 0 : i32
    return %c0_i32, %c0_i32_0 : i32, i32
  }
  func.func @transform_3(%arg0: i32) -> (i32, i32) {
    %c0_i32 = arith.constant 0 : i32
    %c0_i32_0 = arith.constant 0 : i32
    %c0_i32_1 = arith.constant 0 : i32
    return %c0_i32, %c0_i32_0 : i32, i32
  }
  func.func @transform_4(%arg0: i32) -> (i32, i32) {
    %c0_i32 = arith.constant 0 : i32
    %c0_i32_0 = arith.constant 0 : i32
    return %arg0, %c0_i32 : i32, i32
  }
}

module attributes {stable_mosaic.version = 11 : i64} {
  func.func @kernel(%arg0: i32, %arg1: memref<32x288xbf16, #tpu.memory_space<vmem>>, %arg2: memref<288x64xbf16, #tpu.memory_space<vmem>>, %arg3: memref<1x64xf32, #tpu.memory_space<vmem>>, %arg4: memref<1x64xf32, #tpu.memory_space<vmem>>, %arg5: memref<32x64xf32, #tpu.memory_space<vmem>>) attributes {dimension_semantics = [#tpu.dimension_semantics<parallel>], iteration_bounds = array<i64: 1>, scalar_prefetch = 0 : i64, scratch_operands = 0 : i64, tpu.core_type = #tpu.core_type<tc>, window_params = [{transform_indices = @transform_0, window_bounds = array<i64: 32, 288>}, {pipeline_mode = #tpu.pipeline_mode<synchronous>, transform_indices = @transform_1, window_bounds = array<i64: 288, 64>}, {pipeline_mode = #tpu.pipeline_mode<synchronous>, transform_indices = @transform_2, window_bounds = array<i64: 1, 64>}, {pipeline_mode = #tpu.pipeline_mode<synchronous>, transform_indices = @transform_3, window_bounds = array<i64: 1, 64>}, {transform_indices = @transform_4, window_bounds = array<i64: 32, 64>}]} {
    %c0 = arith.constant 0 : index
    %c0_0 = arith.constant 0 : index
    %0 = vector.load %arg1[%c0, %c0_0] : memref<32x288xbf16, #tpu.memory_space<vmem>>, vector<32x288xbf16>
    %c0_1 = arith.constant 0 : index
    %c0_2 = arith.constant 0 : index
    %1 = vector.load %arg2[%c0_1, %c0_2] : memref<288x64xbf16, #tpu.memory_space<vmem>>, vector<288x64xbf16>
    %cst = arith.constant dense<0.000000e+00> : vector<32x64xf32>
    %2 = tpu.matmul %0, %1, %cst {dimension_numbers = #tpu.dot_dimension_numbers<[1], [0], [0], [1], [0, 0, 1, 1], [], []>} : vector<32x288xbf16>, vector<288x64xbf16>, vector<32x64xf32> -> vector<32x64xf32>
    %c0_3 = arith.constant 0 : index
    %c0_4 = arith.constant 0 : index
    %3 = vector.load %arg3[%c0_3, %c0_4] : memref<1x64xf32, #tpu.memory_space<vmem>>, vector<1x64xf32>
    %4 = vector.broadcast %3 : vector<1x64xf32> to vector<32x64xf32>
    %5 = arith.mulf %2, %4 : vector<32x64xf32>
    %c0_5 = arith.constant 0 : index
    %c0_6 = arith.constant 0 : index
    %6 = vector.load %arg4[%c0_5, %c0_6] : memref<1x64xf32, #tpu.memory_space<vmem>>, vector<1x64xf32>
    %7 = vector.broadcast %6 : vector<1x64xf32> to vector<32x64xf32>
    %8 = arith.addf %5, %7 : vector<32x64xf32>
    %cst_7 = arith.constant 0.000000e+00 : f32
    %9 = vector.broadcast %cst_7 : f32 to vector<32x64xf32>
    %10 = arith.maximumf %8, %9 : vector<32x64xf32>
    %c0_8 = arith.constant 0 : index
    %c0_9 = arith.constant 0 : index
    %11 = vector.load %arg5[%c0_8, %c0_9] : memref<32x64xf32, #tpu.memory_space<vmem>>, vector<32x64xf32>
    tpu.vector_store %arg5[%c0_8, %c0_9], %10 {strides = array<i32>} : memref<32x64xf32, #tpu.memory_space<vmem>>, vector<32x64xf32>,
    return
  }
  func.func @transform_0(%arg0: i32) -> (i32, i32) {
    %c0_i32 = arith.constant 0 : i32
    %c0_i32_0 = arith.constant 0 : i32
    return %arg0, %c0_i32 : i32, i32
  }
  func.func @transform_1(%arg0: i32) -> (i32, i32) {
    %c0_i32 = arith.constant 0 : i32
    %c0_i32_0 = arith.constant 0 : i32
    %c0_i32_1 = arith.constant 0 : i32
    return %c0_i32, %c0_i32_0 : i32, i32
  }
  func.func @transform_2(%arg0: i32) -> (i32, i32) {
    %c0_i32 = arith.constant 0 : i32
    %c0_i32_0 = arith.constant 0 : i32
    %c0_i32_1 = arith.constant 0 : i32
    return %c0_i32, %c0_i32_0 : i32, i32
  }
  func.func @transform_3(%arg0: i32) -> (i32, i32) {
    %c0_i32 = arith.constant 0 : i32
    %c0_i32_0 = arith.constant 0 : i32
    %c0_i32_1 = arith.constant 0 : i32
    return %c0_i32, %c0_i32_0 : i32, i32
  }
  func.func @transform_4(%arg0: i32) -> (i32, i32) {
    %c0_i32 = arith.constant 0 : i32
    %c0_i32_0 = arith.constant 0 : i32
    return %arg0, %c0_i32 : i32, i32
  }
}

module attributes {stable_mosaic.version = 11 : i64} {
  func.func @kernel(%arg0: i32, %arg1: memref<32x576xbf16, #tpu.memory_space<vmem>>, %arg2: memref<576x64xbf16, #tpu.memory_space<vmem>>, %arg3: memref<1x64xf32, #tpu.memory_space<vmem>>, %arg4: memref<1x64xf32, #tpu.memory_space<vmem>>, %arg5: memref<32x64xf32, #tpu.memory_space<vmem>>) attributes {dimension_semantics = [#tpu.dimension_semantics<parallel>], iteration_bounds = array<i64: 1>, scalar_prefetch = 0 : i64, scratch_operands = 0 : i64, tpu.core_type = #tpu.core_type<tc>, window_params = [{transform_indices = @transform_0, window_bounds = array<i64: 32, 576>}, {pipeline_mode = #tpu.pipeline_mode<synchronous>, transform_indices = @transform_1, window_bounds = array<i64: 576, 64>}, {pipeline_mode = #tpu.pipeline_mode<synchronous>, transform_indices = @transform_2, window_bounds = array<i64: 1, 64>}, {pipeline_mode = #tpu.pipeline_mode<synchronous>, transform_indices = @transform_3, window_bounds = array<i64: 1, 64>}, {transform_indices = @transform_4, window_bounds = array<i64: 32, 64>}]} {
    %c0 = arith.constant 0 : index
    %c0_0 = arith.constant 0 : index
    %0 = vector.load %arg1[%c0, %c0_0] : memref<32x576xbf16, #tpu.memory_space<vmem>>, vector<32x576xbf16>
    %c0_1 = arith.constant 0 : index
    %c0_2 = arith.constant 0 : index
    %1 = vector.load %arg2[%c0_1, %c0_2] : memref<576x64xbf16, #tpu.memory_space<vmem>>, vector<576x64xbf16>
    %cst = arith.constant dense<0.000000e+00> : vector<32x64xf32>
    %2 = tpu.matmul %0, %1, %cst {dimension_numbers = #tpu.dot_dimension_numbers<[1], [0], [0], [1], [0, 0, 1, 1], [], []>} : vector<32x576xbf16>, vector<576x64xbf16>, vector<32x64xf32> -> vector<32x64xf32>
    %c0_3 = arith.constant 0 : index
    %c0_4 = arith.constant 0 : index
    %3 = vector.load %arg3[%c0_3, %c0_4] : memref<1x64xf32, #tpu.memory_space<vmem>>, vector<1x64xf32>
    %4 = vector.broadcast %3 : vector<1x64xf32> to vector<32x64xf32>
    %5 = arith.mulf %2, %4 : vector<32x64xf32>
    %c0_5 = arith.constant 0 : index
    %c0_6 = arith.constant 0 : index
    %6 = vector.load %arg4[%c0_5, %c0_6] : memref<1x64xf32, #tpu.memory_space<vmem>>, vector<1x64xf32>
    %7 = vector.broadcast %6 : vector<1x64xf32> to vector<32x64xf32>
    %8 = arith.addf %5, %7 : vector<32x64xf32>
    %cst_7 = arith.constant 0.000000e+00 : f32
    %9 = vector.broadcast %cst_7 : f32 to vector<32x64xf32>
    %10 = arith.maximumf %8, %9 : vector<32x64xf32>
    %c0_8 = arith.constant 0 : index
    %c0_9 = arith.constant 0 : index
    %11 = vector.load %arg5[%c0_8, %c0_9] : memref<32x64xf32, #tpu.memory_space<vmem>>, vector<32x64xf32>
    tpu.vector_store %arg5[%c0_8, %c0_9], %10 {strides = array<i32>} : memref<32x64xf32, #tpu.memory_space<vmem>>, vector<32x64xf32>,
    return
  }
  func.func @transform_0(%arg0: i32) -> (i32, i32) {
    %c0_i32 = arith.constant 0 : i32
    %c0_i32_0 = arith.constant 0 : i32
    return %arg0, %c0_i32 : i32, i32
  }
  func.func @transform_1(%arg0: i32) -> (i32, i32) {
    %c0_i32 = arith.constant 0 : i32
    %c0_i32_0 = arith.constant 0 : i32
    %c0_i32_1 = arith.constant 0 : i32
    return %c0_i32, %c0_i32_0 : i32, i32
  }
  func.func @transform_2(%arg0: i32) -> (i32, i32) {
    %c0_i32 = arith.constant 0 : i32
    %c0_i32_0 = arith.constant 0 : i32
    %c0_i32_1 = arith.constant 0 : i32
    return %c0_i32, %c0_i32_0 : i32, i32
  }
  func.func @transform_3(%arg0: i32) -> (i32, i32) {
    %c0_i32 = arith.constant 0 : i32
    %c0_i32_0 = arith.constant 0 : i32
    %c0_i32_1 = arith.constant 0 : i32
    return %c0_i32, %c0_i32_0 : i32, i32
  }
  func.func @transform_4(%arg0: i32) -> (i32, i32) {
    %c0_i32 = arith.constant 0 : i32
    %c0_i32_0 = arith.constant 0 : i32
    return %arg0, %c0_i32 : i32, i32
  }
}

module attributes {stable_mosaic.version = 11 : i64} {
  func.func @kernel(%arg0: i32, %arg1: memref<8x576xbf16, #tpu.memory_space<vmem>>, %arg2: memref<576x128xbf16, #tpu.memory_space<vmem>>, %arg3: memref<1x128xf32, #tpu.memory_space<vmem>>, %arg4: memref<1x128xf32, #tpu.memory_space<vmem>>, %arg5: memref<8x128xf32, #tpu.memory_space<vmem>>) attributes {dimension_semantics = [#tpu.dimension_semantics<parallel>], iteration_bounds = array<i64: 1>, scalar_prefetch = 0 : i64, scratch_operands = 0 : i64, tpu.core_type = #tpu.core_type<tc>, window_params = [{transform_indices = @transform_0, window_bounds = array<i64: 8, 576>}, {pipeline_mode = #tpu.pipeline_mode<synchronous>, transform_indices = @transform_1, window_bounds = array<i64: 576, 128>}, {pipeline_mode = #tpu.pipeline_mode<synchronous>, transform_indices = @transform_2, window_bounds = array<i64: 1, 128>}, {pipeline_mode = #tpu.pipeline_mode<synchronous>, transform_indices = @transform_3, window_bounds = array<i64: 1, 128>}, {transform_indices = @transform_4, window_bounds = array<i64: 8, 128>}]} {
    %c0 = arith.constant 0 : index
    %c0_0 = arith.constant 0 : index
    %0 = vector.load %arg1[%c0, %c0_0] : memref<8x576xbf16, #tpu.memory_space<vmem>>, vector<8x576xbf16>
    %c0_1 = arith.constant 0 : index
    %c0_2 = arith.constant 0 : index
    %1 = vector.load %arg2[%c0_1, %c0_2] : memref<576x128xbf16, #tpu.memory_space<vmem>>, vector<576x128xbf16>
    %cst = arith.constant dense<0.000000e+00> : vector<8x128xf32>
    %2 = tpu.matmul %0, %1, %cst {dimension_numbers = #tpu.dot_dimension_numbers<[1], [0], [0], [1], [0, 0, 1, 1], [], []>} : vector<8x576xbf16>, vector<576x128xbf16>, vector<8x128xf32> -> vector<8x128xf32>
    %c0_3 = arith.constant 0 : index
    %c0_4 = arith.constant 0 : index
    %3 = vector.load %arg3[%c0_3, %c0_4] : memref<1x128xf32, #tpu.memory_space<vmem>>, vector<1x128xf32>
    %4 = vector.broadcast %3 : vector<1x128xf32> to vector<8x128xf32>
    %5 = arith.mulf %2, %4 : vector<8x128xf32>
    %c0_5 = arith.constant 0 : index
    %c0_6 = arith.constant 0 : index
    %6 = vector.load %arg4[%c0_5, %c0_6] : memref<1x128xf32, #tpu.memory_space<vmem>>, vector<1x128xf32>
    %7 = vector.broadcast %6 : vector<1x128xf32> to vector<8x128xf32>
    %8 = arith.addf %5, %7 : vector<8x128xf32>
    %cst_7 = arith.constant 0.000000e+00 : f32
    %9 = vector.broadcast %cst_7 : f32 to vector<8x128xf32>
    %10 = arith.maximumf %8, %9 : vector<8x128xf32>
    %c0_8 = arith.constant 0 : index
    %c0_9 = arith.constant 0 : index
    %11 = vector.load %arg5[%c0_8, %c0_9] : memref<8x128xf32, #tpu.memory_space<vmem>>, vector<8x128xf32>
    tpu.vector_store %arg5[%c0_8, %c0_9], %10 {strides = array<i32>} : memref<8x128xf32, #tpu.memory_space<vmem>>, vector<8x128xf32>,
    return
  }
  func.func @transform_0(%arg0: i32) -> (i32, i32) {
    %c0_i32 = arith.constant 0 : i32
    %c0_i32_0 = arith.constant 0 : i32
    return %arg0, %c0_i32 : i32, i32
  }
  func.func @transform_1(%arg0: i32) -> (i32, i32) {
    %c0_i32 = arith.constant 0 : i32
    %c0_i32_0 = arith.constant 0 : i32
    %c0_i32_1 = arith.constant 0 : i32
    return %c0_i32, %c0_i32_0 : i32, i32
  }
  func.func @transform_2(%arg0: i32) -> (i32, i32) {
    %c0_i32 = arith.constant 0 : i32
    %c0_i32_0 = arith.constant 0 : i32
    %c0_i32_1 = arith.constant 0 : i32
    return %c0_i32, %c0_i32_0 : i32, i32
  }
  func.func @transform_3(%arg0: i32) -> (i32, i32) {
    %c0_i32 = arith.constant 0 : i32
    %c0_i32_0 = arith.constant 0 : i32
    %c0_i32_1 = arith.constant 0 : i32
    return %c0_i32, %c0_i32_0 : i32, i32
  }
  func.func @transform_4(%arg0: i32) -> (i32, i32) {
    %c0_i32 = arith.constant 0 : i32
    %c0_i32_0 = arith.constant 0 : i32
    return %arg0, %c0_i32 : i32, i32
  }
}

module attributes {stable_mosaic.version = 11 : i64} {
  func.func @kernel(%arg0: i32, %arg1: memref<8x1152xbf16, #tpu.memory_space<vmem>>, %arg2: memref<1152x128xbf16, #tpu.memory_space<vmem>>, %arg3: memref<1x128xf32, #tpu.memory_space<vmem>>, %arg4: memref<1x128xf32, #tpu.memory_space<vmem>>, %arg5: memref<8x128xf32, #tpu.memory_space<vmem>>) attributes {dimension_semantics = [#tpu.dimension_semantics<parallel>], iteration_bounds = array<i64: 1>, scalar_prefetch = 0 : i64, scratch_operands = 0 : i64, tpu.core_type = #tpu.core_type<tc>, window_params = [{transform_indices = @transform_0, window_bounds = array<i64: 8, 1152>}, {pipeline_mode = #tpu.pipeline_mode<synchronous>, transform_indices = @transform_1, window_bounds = array<i64: 1152, 128>}, {pipeline_mode = #tpu.pipeline_mode<synchronous>, transform_indices = @transform_2, window_bounds = array<i64: 1, 128>}, {pipeline_mode = #tpu.pipeline_mode<synchronous>, transform_indices = @transform_3, window_bounds = array<i64: 1, 128>}, {transform_indices = @transform_4, window_bounds = array<i64: 8, 128>}]} {
    %c0 = arith.constant 0 : index
    %c0_0 = arith.constant 0 : index
    %0 = vector.load %arg1[%c0, %c0_0] : memref<8x1152xbf16, #tpu.memory_space<vmem>>, vector<8x1152xbf16>
    %c0_1 = arith.constant 0 : index
    %c0_2 = arith.constant 0 : index
    %1 = vector.load %arg2[%c0_1, %c0_2] : memref<1152x128xbf16, #tpu.memory_space<vmem>>, vector<1152x128xbf16>
    %cst = arith.constant dense<0.000000e+00> : vector<8x128xf32>
    %2 = tpu.matmul %0, %1, %cst {dimension_numbers = #tpu.dot_dimension_numbers<[1], [0], [0], [1], [0, 0, 1, 1], [], []>} : vector<8x1152xbf16>, vector<1152x128xbf16>, vector<8x128xf32> -> vector<8x128xf32>
    %c0_3 = arith.constant 0 : index
    %c0_4 = arith.constant 0 : index
    %3 = vector.load %arg3[%c0_3, %c0_4] : memref<1x128xf32, #tpu.memory_space<vmem>>, vector<1x128xf32>
    %4 = vector.broadcast %3 : vector<1x128xf32> to vector<8x128xf32>
    %5 = arith.mulf %2, %4 : vector<8x128xf32>
    %c0_5 = arith.constant 0 : index
    %c0_6 = arith.constant 0 : index
    %6 = vector.load %arg4[%c0_5, %c0_6] : memref<1x128xf32, #tpu.memory_space<vmem>>, vector<1x128xf32>
    %7 = vector.broadcast %6 : vector<1x128xf32> to vector<8x128xf32>
    %8 = arith.addf %5, %7 : vector<8x128xf32>
    %cst_7 = arith.constant 0.000000e+00 : f32
    %9 = vector.broadcast %cst_7 : f32 to vector<8x128xf32>
    %10 = arith.maximumf %8, %9 : vector<8x128xf32>
    %c0_8 = arith.constant 0 : index
    %c0_9 = arith.constant 0 : index
    %11 = vector.load %arg5[%c0_8, %c0_9] : memref<8x128xf32, #tpu.memory_space<vmem>>, vector<8x128xf32>
    tpu.vector_store %arg5[%c0_8, %c0_9], %10 {strides = array<i32>} : memref<8x128xf32, #tpu.memory_space<vmem>>, vector<8x128xf32>,
    return
  }
  func.func @transform_0(%arg0: i32) -> (i32, i32) {
    %c0_i32 = arith.constant 0 : i32
    %c0_i32_0 = arith.constant 0 : i32
    return %arg0, %c0_i32 : i32, i32
  }
  func.func @transform_1(%arg0: i32) -> (i32, i32) {
    %c0_i32 = arith.constant 0 : i32
    %c0_i32_0 = arith.constant 0 : i32
    %c0_i32_1 = arith.constant 0 : i32
    return %c0_i32, %c0_i32_0 : i32, i32
  }
  func.func @transform_2(%arg0: i32) -> (i32, i32) {
    %c0_i32 = arith.constant 0 : i32
    %c0_i32_0 = arith.constant 0 : i32
    %c0_i32_1 = arith.constant 0 : i32
    return %c0_i32, %c0_i32_0 : i32, i32
  }
  func.func @transform_3(%arg0: i32) -> (i32, i32) {
    %c0_i32 = arith.constant 0 : i32
    %c0_i32_0 = arith.constant 0 : i32
    %c0_i32_1 = arith.constant 0 : i32
    return %c0_i32, %c0_i32_0 : i32, i32
  }
  func.func @transform_4(%arg0: i32) -> (i32, i32) {
    %c0_i32 = arith.constant 0 : i32
    %c0_i32_0 = arith.constant 0 : i32
    return %arg0, %c0_i32 : i32, i32
  }
}

module attributes {stable_mosaic.version = 11 : i64} {
  func.func @kernel(%arg0: i32, %arg1: memref<8x1152xbf16, #tpu.memory_space<vmem>>, %arg2: memref<1152x64xbf16, #tpu.memory_space<vmem>>, %arg3: memref<1x64xf32, #tpu.memory_space<vmem>>, %arg4: memref<1x64xf32, #tpu.memory_space<vmem>>, %arg5: memref<8x64xf32, #tpu.memory_space<vmem>>) attributes {dimension_semantics = [#tpu.dimension_semantics<parallel>], iteration_bounds = array<i64: 1>, scalar_prefetch = 0 : i64, scratch_operands = 0 : i64, tpu.core_type = #tpu.core_type<tc>, window_params = [{transform_indices = @transform_0, window_bounds = array<i64: 8, 1152>}, {pipeline_mode = #tpu.pipeline_mode<synchronous>, transform_indices = @transform_1, window_bounds = array<i64: 1152, 64>}, {pipeline_mode = #tpu.pipeline_mode<synchronous>, transform_indices = @transform_2, window_bounds = array<i64: 1, 64>}, {pipeline_mode = #tpu.pipeline_mode<synchronous>, transform_indices = @transform_3, window_bounds = array<i64: 1, 64>}, {transform_indices = @transform_4, window_bounds = array<i64: 8, 64>}]} {
    %c0 = arith.constant 0 : index
    %c0_0 = arith.constant 0 : index
    %0 = vector.load %arg1[%c0, %c0_0] : memref<8x1152xbf16, #tpu.memory_space<vmem>>, vector<8x1152xbf16>
    %c0_1 = arith.constant 0 : index
    %c0_2 = arith.constant 0 : index
    %1 = vector.load %arg2[%c0_1, %c0_2] : memref<1152x64xbf16, #tpu.memory_space<vmem>>, vector<1152x64xbf16>
    %cst = arith.constant dense<0.000000e+00> : vector<8x64xf32>
    %2 = tpu.matmul %0, %1, %cst {dimension_numbers = #tpu.dot_dimension_numbers<[1], [0], [0], [1], [0, 0, 1, 1], [], []>} : vector<8x1152xbf16>, vector<1152x64xbf16>, vector<8x64xf32> -> vector<8x64xf32>
    %c0_3 = arith.constant 0 : index
    %c0_4 = arith.constant 0 : index
    %3 = vector.load %arg3[%c0_3, %c0_4] : memref<1x64xf32, #tpu.memory_space<vmem>>, vector<1x64xf32>
    %4 = vector.broadcast %3 : vector<1x64xf32> to vector<8x64xf32>
    %5 = arith.mulf %2, %4 : vector<8x64xf32>
    %c0_5 = arith.constant 0 : index
    %c0_6 = arith.constant 0 : index
    %6 = vector.load %arg4[%c0_5, %c0_6] : memref<1x64xf32, #tpu.memory_space<vmem>>, vector<1x64xf32>
    %7 = vector.broadcast %6 : vector<1x64xf32> to vector<8x64xf32>
    %8 = arith.addf %5, %7 : vector<8x64xf32>
    %cst_7 = arith.constant 0.000000e+00 : f32
    %9 = vector.broadcast %cst_7 : f32 to vector<8x64xf32>
    %10 = arith.maximumf %8, %9 : vector<8x64xf32>
    %c0_8 = arith.constant 0 : index
    %c0_9 = arith.constant 0 : index
    %11 = vector.load %arg5[%c0_8, %c0_9] : memref<8x64xf32, #tpu.memory_space<vmem>>, vector<8x64xf32>
    tpu.vector_store %arg5[%c0_8, %c0_9], %10 {strides = array<i32>} : memref<8x64xf32, #tpu.memory_space<vmem>>, vector<8x64xf32>,
    return
  }
  func.func @transform_0(%arg0: i32) -> (i32, i32) {
    %c0_i32 = arith.constant 0 : i32
    %c0_i32_0 = arith.constant 0 : i32
    return %arg0, %c0_i32 : i32, i32
  }
  func.func @transform_1(%arg0: i32) -> (i32, i32) {
    %c0_i32 = arith.constant 0 : i32
    %c0_i32_0 = arith.constant 0 : i32
    %c0_i32_1 = arith.constant 0 : i32
    return %c0_i32, %c0_i32_0 : i32, i32
  }
  func.func @transform_2(%arg0: i32) -> (i32, i32) {
    %c0_i32 = arith.constant 0 : i32
    %c0_i32_0 = arith.constant 0 : i32
    %c0_i32_1 = arith.constant 0 : i32
    return %c0_i32, %c0_i32_0 : i32, i32
  }
  func.func @transform_3(%arg0: i32) -> (i32, i32) {
    %c0_i32 = arith.constant 0 : i32
    %c0_i32_0 = arith.constant 0 : i32
    %c0_i32_1 = arith.constant 0 : i32
    return %c0_i32, %c0_i32_0 : i32, i32
  }
  func.func @transform_4(%arg0: i32) -> (i32, i32) {
    %c0_i32 = arith.constant 0 : i32
    %c0_i32_0 = arith.constant 0 : i32
    return %arg0, %c0_i32 : i32, i32
  }
}

module attributes {stable_mosaic.version = 11 : i64} {
  func.func @kernel(%arg0: i32, %arg1: memref<8x576xbf16, #tpu.memory_space<vmem>>, %arg2: memref<576x64xbf16, #tpu.memory_space<vmem>>, %arg3: memref<1x64xf32, #tpu.memory_space<vmem>>, %arg4: memref<1x64xf32, #tpu.memory_space<vmem>>, %arg5: memref<8x64xf32, #tpu.memory_space<vmem>>) attributes {dimension_semantics = [#tpu.dimension_semantics<parallel>], iteration_bounds = array<i64: 1>, scalar_prefetch = 0 : i64, scratch_operands = 0 : i64, tpu.core_type = #tpu.core_type<tc>, window_params = [{transform_indices = @transform_0, window_bounds = array<i64: 8, 576>}, {pipeline_mode = #tpu.pipeline_mode<synchronous>, transform_indices = @transform_1, window_bounds = array<i64: 576, 64>}, {pipeline_mode = #tpu.pipeline_mode<synchronous>, transform_indices = @transform_2, window_bounds = array<i64: 1, 64>}, {pipeline_mode = #tpu.pipeline_mode<synchronous>, transform_indices = @transform_3, window_bounds = array<i64: 1, 64>}, {transform_indices = @transform_4, window_bounds = array<i64: 8, 64>}]} {
    %c0 = arith.constant 0 : index
    %c0_0 = arith.constant 0 : index
    %0 = vector.load %arg1[%c0, %c0_0] : memref<8x576xbf16, #tpu.memory_space<vmem>>, vector<8x576xbf16>
    %c0_1 = arith.constant 0 : index
    %c0_2 = arith.constant 0 : index
    %1 = vector.load %arg2[%c0_1, %c0_2] : memref<576x64xbf16, #tpu.memory_space<vmem>>, vector<576x64xbf16>
    %cst = arith.constant dense<0.000000e+00> : vector<8x64xf32>
    %2 = tpu.matmul %0, %1, %cst {dimension_numbers = #tpu.dot_dimension_numbers<[1], [0], [0], [1], [0, 0, 1, 1], [], []>} : vector<8x576xbf16>, vector<576x64xbf16>, vector<8x64xf32> -> vector<8x64xf32>
    %c0_3 = arith.constant 0 : index
    %c0_4 = arith.constant 0 : index
    %3 = vector.load %arg3[%c0_3, %c0_4] : memref<1x64xf32, #tpu.memory_space<vmem>>, vector<1x64xf32>
    %4 = vector.broadcast %3 : vector<1x64xf32> to vector<8x64xf32>
    %5 = arith.mulf %2, %4 : vector<8x64xf32>
    %c0_5 = arith.constant 0 : index
    %c0_6 = arith.constant 0 : index
    %6 = vector.load %arg4[%c0_5, %c0_6] : memref<1x64xf32, #tpu.memory_space<vmem>>, vector<1x64xf32>
    %7 = vector.broadcast %6 : vector<1x64xf32> to vector<8x64xf32>
    %8 = arith.addf %5, %7 : vector<8x64xf32>
    %cst_7 = arith.constant 0.000000e+00 : f32
    %9 = vector.broadcast %cst_7 : f32 to vector<8x64xf32>
    %10 = arith.maximumf %8, %9 : vector<8x64xf32>
    %c0_8 = arith.constant 0 : index
    %c0_9 = arith.constant 0 : index
    %11 = vector.load %arg5[%c0_8, %c0_9] : memref<8x64xf32, #tpu.memory_space<vmem>>, vector<8x64xf32>
    tpu.vector_store %arg5[%c0_8, %c0_9], %10 {strides = array<i32>} : memref<8x64xf32, #tpu.memory_space<vmem>>, vector<8x64xf32>,
    return
  }
  func.func @transform_0(%arg0: i32) -> (i32, i32) {
    %c0_i32 = arith.constant 0 : i32
    %c0_i32_0 = arith.constant 0 : i32
    return %arg0, %c0_i32 : i32, i32
  }
  func.func @transform_1(%arg0: i32) -> (i32, i32) {
    %c0_i32 = arith.constant 0 : i32
    %c0_i32_0 = arith.constant 0 : i32
    %c0_i32_1 = arith.constant 0 : i32
    return %c0_i32, %c0_i32_0 : i32, i32
  }
  func.func @transform_2(%arg0: i32) -> (i32, i32) {
    %c0_i32 = arith.constant 0 : i32
    %c0_i32_0 = arith.constant 0 : i32
    %c0_i32_1 = arith.constant 0 : i32
    return %c0_i32, %c0_i32_0 : i32, i32
  }
  func.func @transform_3(%arg0: i32) -> (i32, i32) {
    %c0_i32 = arith.constant 0 : i32
    %c0_i32_0 = arith.constant 0 : i32
    %c0_i32_1 = arith.constant 0 : i32
    return %c0_i32, %c0_i32_0 : i32, i32
  }
  func.func @transform_4(%arg0: i32) -> (i32, i32) {
    %c0_i32 = arith.constant 0 : i32
    %c0_i32_0 = arith.constant 0 : i32
    return %arg0, %c0_i32 : i32, i32
  }
}

module attributes {stable_mosaic.version = 11 : i64} {
  func.func @kernel(%arg0: i32, %arg1: memref<8x576xbf16, #tpu.memory_space<vmem>>, %arg2: memref<576x64xbf16, #tpu.memory_space<vmem>>, %arg3: memref<1x64xf32, #tpu.memory_space<vmem>>, %arg4: memref<1x64xf32, #tpu.memory_space<vmem>>, %arg5: memref<8x64xf32, #tpu.memory_space<vmem>>) attributes {dimension_semantics = [#tpu.dimension_semantics<parallel>], iteration_bounds = array<i64: 1>, scalar_prefetch = 0 : i64, scratch_operands = 0 : i64, tpu.core_type = #tpu.core_type<tc>, window_params = [{transform_indices = @transform_0, window_bounds = array<i64: 8, 576>}, {pipeline_mode = #tpu.pipeline_mode<synchronous>, transform_indices = @transform_1, window_bounds = array<i64: 576, 64>}, {pipeline_mode = #tpu.pipeline_mode<synchronous>, transform_indices = @transform_2, window_bounds = array<i64: 1, 64>}, {pipeline_mode = #tpu.pipeline_mode<synchronous>, transform_indices = @transform_3, window_bounds = array<i64: 1, 64>}, {transform_indices = @transform_4, window_bounds = array<i64: 8, 64>}]} {
    %c0 = arith.constant 0 : index
    %c0_0 = arith.constant 0 : index
    %0 = vector.load %arg1[%c0, %c0_0] : memref<8x576xbf16, #tpu.memory_space<vmem>>, vector<8x576xbf16>
    %c0_1 = arith.constant 0 : index
    %c0_2 = arith.constant 0 : index
    %1 = vector.load %arg2[%c0_1, %c0_2] : memref<576x64xbf16, #tpu.memory_space<vmem>>, vector<576x64xbf16>
    %cst = arith.constant dense<0.000000e+00> : vector<8x64xf32>
    %2 = tpu.matmul %0, %1, %cst {dimension_numbers = #tpu.dot_dimension_numbers<[1], [0], [0], [1], [0, 0, 1, 1], [], []>} : vector<8x576xbf16>, vector<576x64xbf16>, vector<8x64xf32> -> vector<8x64xf32>
    %c0_3 = arith.constant 0 : index
    %c0_4 = arith.constant 0 : index
    %3 = vector.load %arg3[%c0_3, %c0_4] : memref<1x64xf32, #tpu.memory_space<vmem>>, vector<1x64xf32>
    %4 = vector.broadcast %3 : vector<1x64xf32> to vector<8x64xf32>
    %5 = arith.mulf %2, %4 : vector<8x64xf32>
    %c0_5 = arith.constant 0 : index
    %c0_6 = arith.constant 0 : index
    %6 = vector.load %arg4[%c0_5, %c0_6] : memref<1x64xf32, #tpu.memory_space<vmem>>, vector<1x64xf32>
    %7 = vector.broadcast %6 : vector<1x64xf32> to vector<8x64xf32>
    %8 = arith.addf %5, %7 : vector<8x64xf32>
    %c0_7 = arith.constant 0 : index
    %c0_8 = arith.constant 0 : index
    %9 = vector.load %arg5[%c0_7, %c0_8] : memref<8x64xf32, #tpu.memory_space<vmem>>, vector<8x64xf32>
    tpu.vector_store %arg5[%c0_7, %c0_8], %8 {strides = array<i32>} : memref<8x64xf32, #tpu.memory_space<vmem>>, vector<8x64xf32>,
    return
  }
  func.func @transform_0(%arg0: i32) -> (i32, i32) {
    %c0_i32 = arith.constant 0 : i32
    %c0_i32_0 = arith.constant 0 : i32
    return %arg0, %c0_i32 : i32, i32
  }
  func.func @transform_1(%arg0: i32) -> (i32, i32) {
    %c0_i32 = arith.constant 0 : i32
    %c0_i32_0 = arith.constant 0 : i32
    %c0_i32_1 = arith.constant 0 : i32
    return %c0_i32, %c0_i32_0 : i32, i32
  }
  func.func @transform_2(%arg0: i32) -> (i32, i32) {
    %c0_i32 = arith.constant 0 : i32
    %c0_i32_0 = arith.constant 0 : i32
    %c0_i32_1 = arith.constant 0 : i32
    return %c0_i32, %c0_i32_0 : i32, i32
  }
  func.func @transform_3(%arg0: i32) -> (i32, i32) {
    %c0_i32 = arith.constant 0 : i32
    %c0_i32_0 = arith.constant 0 : i32
    %c0_i32_1 = arith.constant 0 : i32
    return %c0_i32, %c0_i32_0 : i32, i32
  }
  func.func @transform_4(%arg0: i32) -> (i32, i32) {
    %c0_i32 = arith.constant 0 : i32
    %c0_i32_0 = arith.constant 0 : i32
    return %arg0, %c0_i32 : i32, i32
  }
}

module attributes {stable_mosaic.version = 11 : i64} {
  func.func @kernel(%arg0: i32, %arg1: memref<8x1152xbf16, #tpu.memory_space<vmem>>, %arg2: memref<1152x32xbf16, #tpu.memory_space<vmem>>, %arg3: memref<1x32xf32, #tpu.memory_space<vmem>>, %arg4: memref<1x32xf32, #tpu.memory_space<vmem>>, %arg5: memref<8x32xf32, #tpu.memory_space<vmem>>) attributes {dimension_semantics = [#tpu.dimension_semantics<parallel>], iteration_bounds = array<i64: 1>, scalar_prefetch = 0 : i64, scratch_operands = 0 : i64, tpu.core_type = #tpu.core_type<tc>, window_params = [{transform_indices = @transform_0, window_bounds = array<i64: 8, 1152>}, {pipeline_mode = #tpu.pipeline_mode<synchronous>, transform_indices = @transform_1, window_bounds = array<i64: 1152, 32>}, {pipeline_mode = #tpu.pipeline_mode<synchronous>, transform_indices = @transform_2, window_bounds = array<i64: 1, 32>}, {pipeline_mode = #tpu.pipeline_mode<synchronous>, transform_indices = @transform_3, window_bounds = array<i64: 1, 32>}, {transform_indices = @transform_4, window_bounds = array<i64: 8, 32>}]} {
    %c0 = arith.constant 0 : index
    %c0_0 = arith.constant 0 : index
    %0 = vector.load %arg1[%c0, %c0_0] : memref<8x1152xbf16, #tpu.memory_space<vmem>>, vector<8x1152xbf16>
    %c0_1 = arith.constant 0 : index
    %c0_2 = arith.constant 0 : index
    %1 = vector.load %arg2[%c0_1, %c0_2] : memref<1152x32xbf16, #tpu.memory_space<vmem>>, vector<1152x32xbf16>
    %cst = arith.constant dense<0.000000e+00> : vector<8x32xf32>
    %2 = tpu.matmul %0, %1, %cst {dimension_numbers = #tpu.dot_dimension_numbers<[1], [0], [0], [1], [0, 0, 1, 1], [], []>} : vector<8x1152xbf16>, vector<1152x32xbf16>, vector<8x32xf32> -> vector<8x32xf32>
    %c0_3 = arith.constant 0 : index
    %c0_4 = arith.constant 0 : index
    %3 = vector.load %arg3[%c0_3, %c0_4] : memref<1x32xf32, #tpu.memory_space<vmem>>, vector<1x32xf32>
    %4 = vector.broadcast %3 : vector<1x32xf32> to vector<8x32xf32>
    %5 = arith.mulf %2, %4 : vector<8x32xf32>
    %c0_5 = arith.constant 0 : index
    %c0_6 = arith.constant 0 : index
    %6 = vector.load %arg4[%c0_5, %c0_6] : memref<1x32xf32, #tpu.memory_space<vmem>>, vector<1x32xf32>
    %7 = vector.broadcast %6 : vector<1x32xf32> to vector<8x32xf32>
    %8 = arith.addf %5, %7 : vector<8x32xf32>
    %cst_7 = arith.constant 0.000000e+00 : f32
    %9 = vector.broadcast %cst_7 : f32 to vector<8x32xf32>
    %10 = arith.maximumf %8, %9 : vector<8x32xf32>
    %c0_8 = arith.constant 0 : index
    %c0_9 = arith.constant 0 : index
    %11 = vector.load %arg5[%c0_8, %c0_9] : memref<8x32xf32, #tpu.memory_space<vmem>>, vector<8x32xf32>
    tpu.vector_store %arg5[%c0_8, %c0_9], %10 {strides = array<i32>} : memref<8x32xf32, #tpu.memory_space<vmem>>, vector<8x32xf32>,
    return
  }
  func.func @transform_0(%arg0: i32) -> (i32, i32) {
    %c0_i32 = arith.constant 0 : i32
    %c0_i32_0 = arith.constant 0 : i32
    return %arg0, %c0_i32 : i32, i32
  }
  func.func @transform_1(%arg0: i32) -> (i32, i32) {
    %c0_i32 = arith.constant 0 : i32
    %c0_i32_0 = arith.constant 0 : i32
    %c0_i32_1 = arith.constant 0 : i32
    return %c0_i32, %c0_i32_0 : i32, i32
  }
  func.func @transform_2(%arg0: i32) -> (i32, i32) {
    %c0_i32 = arith.constant 0 : i32
    %c0_i32_0 = arith.constant 0 : i32
    %c0_i32_1 = arith.constant 0 : i32
    return %c0_i32, %c0_i32_0 : i32, i32
  }
  func.func @transform_3(%arg0: i32) -> (i32, i32) {
    %c0_i32 = arith.constant 0 : i32
    %c0_i32_0 = arith.constant 0 : i32
    %c0_i32_1 = arith.constant 0 : i32
    return %c0_i32, %c0_i32_0 : i32, i32
  }
  func.func @transform_4(%arg0: i32) -> (i32, i32) {
    %c0_i32 = arith.constant 0 : i32
    %c0_i32_0 = arith.constant 0 : i32
    return %arg0, %c0_i32 : i32, i32
  }
}

module attributes {stable_mosaic.version = 11 : i64} {
  func.func @kernel(%arg0: i32, %arg1: memref<8x288xbf16, #tpu.memory_space<vmem>>, %arg2: memref<288x32xbf16, #tpu.memory_space<vmem>>, %arg3: memref<1x32xf32, #tpu.memory_space<vmem>>, %arg4: memref<1x32xf32, #tpu.memory_space<vmem>>, %arg5: memref<8x32xf32, #tpu.memory_space<vmem>>) attributes {dimension_semantics = [#tpu.dimension_semantics<parallel>], iteration_bounds = array<i64: 1>, scalar_prefetch = 0 : i64, scratch_operands = 0 : i64, tpu.core_type = #tpu.core_type<tc>, window_params = [{transform_indices = @transform_0, window_bounds = array<i64: 8, 288>}, {pipeline_mode = #tpu.pipeline_mode<synchronous>, transform_indices = @transform_1, window_bounds = array<i64: 288, 32>}, {pipeline_mode = #tpu.pipeline_mode<synchronous>, transform_indices = @transform_2, window_bounds = array<i64: 1, 32>}, {pipeline_mode = #tpu.pipeline_mode<synchronous>, transform_indices = @transform_3, window_bounds = array<i64: 1, 32>}, {transform_indices = @transform_4, window_bounds = array<i64: 8, 32>}]} {
    %c0 = arith.constant 0 : index
    %c0_0 = arith.constant 0 : index
    %0 = vector.load %arg1[%c0, %c0_0] : memref<8x288xbf16, #tpu.memory_space<vmem>>, vector<8x288xbf16>
    %c0_1 = arith.constant 0 : index
    %c0_2 = arith.constant 0 : index
    %1 = vector.load %arg2[%c0_1, %c0_2] : memref<288x32xbf16, #tpu.memory_space<vmem>>, vector<288x32xbf16>
    %cst = arith.constant dense<0.000000e+00> : vector<8x32xf32>
    %2 = tpu.matmul %0, %1, %cst {dimension_numbers = #tpu.dot_dimension_numbers<[1], [0], [0], [1], [0, 0, 1, 1], [], []>} : vector<8x288xbf16>, vector<288x32xbf16>, vector<8x32xf32> -> vector<8x32xf32>
    %c0_3 = arith.constant 0 : index
    %c0_4 = arith.constant 0 : index
    %3 = vector.load %arg3[%c0_3, %c0_4] : memref<1x32xf32, #tpu.memory_space<vmem>>, vector<1x32xf32>
    %4 = vector.broadcast %3 : vector<1x32xf32> to vector<8x32xf32>
    %5 = arith.mulf %2, %4 : vector<8x32xf32>
    %c0_5 = arith.constant 0 : index
    %c0_6 = arith.constant 0 : index
    %6 = vector.load %arg4[%c0_5, %c0_6] : memref<1x32xf32, #tpu.memory_space<vmem>>, vector<1x32xf32>
    %7 = vector.broadcast %6 : vector<1x32xf32> to vector<8x32xf32>
    %8 = arith.addf %5, %7 : vector<8x32xf32>
    %cst_7 = arith.constant 0.000000e+00 : f32
    %9 = vector.broadcast %cst_7 : f32 to vector<8x32xf32>
    %10 = arith.maximumf %8, %9 : vector<8x32xf32>
    %c0_8 = arith.constant 0 : index
    %c0_9 = arith.constant 0 : index
    %11 = vector.load %arg5[%c0_8, %c0_9] : memref<8x32xf32, #tpu.memory_space<vmem>>, vector<8x32xf32>
    tpu.vector_store %arg5[%c0_8, %c0_9], %10 {strides = array<i32>} : memref<8x32xf32, #tpu.memory_space<vmem>>, vector<8x32xf32>,
    return
  }
  func.func @transform_0(%arg0: i32) -> (i32, i32) {
    %c0_i32 = arith.constant 0 : i32
    %c0_i32_0 = arith.constant 0 : i32
    return %arg0, %c0_i32 : i32, i32
  }
  func.func @transform_1(%arg0: i32) -> (i32, i32) {
    %c0_i32 = arith.constant 0 : i32
    %c0_i32_0 = arith.constant 0 : i32
    %c0_i32_1 = arith.constant 0 : i32
    return %c0_i32, %c0_i32_0 : i32, i32
  }
  func.func @transform_2(%arg0: i32) -> (i32, i32) {
    %c0_i32 = arith.constant 0 : i32
    %c0_i32_0 = arith.constant 0 : i32
    %c0_i32_1 = arith.constant 0 : i32
    return %c0_i32, %c0_i32_0 : i32, i32
  }
  func.func @transform_3(%arg0: i32) -> (i32, i32) {
    %c0_i32 = arith.constant 0 : i32
    %c0_i32_0 = arith.constant 0 : i32
    %c0_i32_1 = arith.constant 0 : i32
    return %c0_i32, %c0_i32_0 : i32, i32
  }
  func.func @transform_4(%arg0: i32) -> (i32, i32) {
    %c0_i32 = arith.constant 0 : i32
    %c0_i32_0 = arith.constant 0 : i32
    return %arg0, %c0_i32 : i32, i32
  }
}

module attributes {stable_mosaic.version = 11 : i64} {
  func.func @kernel(%arg0: i32, %arg1: memref<32x288xbf16, #tpu.memory_space<vmem>>, %arg2: memref<288x32xbf16, #tpu.memory_space<vmem>>, %arg3: memref<1x32xf32, #tpu.memory_space<vmem>>, %arg4: memref<1x32xf32, #tpu.memory_space<vmem>>, %arg5: memref<32x32xf32, #tpu.memory_space<vmem>>) attributes {dimension_semantics = [#tpu.dimension_semantics<parallel>], iteration_bounds = array<i64: 1>, scalar_prefetch = 0 : i64, scratch_operands = 0 : i64, tpu.core_type = #tpu.core_type<tc>, window_params = [{transform_indices = @transform_0, window_bounds = array<i64: 32, 288>}, {pipeline_mode = #tpu.pipeline_mode<synchronous>, transform_indices = @transform_1, window_bounds = array<i64: 288, 32>}, {pipeline_mode = #tpu.pipeline_mode<synchronous>, transform_indices = @transform_2, window_bounds = array<i64: 1, 32>}, {pipeline_mode = #tpu.pipeline_mode<synchronous>, transform_indices = @transform_3, window_bounds = array<i64: 1, 32>}, {transform_indices = @transform_4, window_bounds = array<i64: 32, 32>}]} {
    %c0 = arith.constant 0 : index
    %c0_0 = arith.constant 0 : index
    %0 = vector.load %arg1[%c0, %c0_0] : memref<32x288xbf16, #tpu.memory_space<vmem>>, vector<32x288xbf16>
    %c0_1 = arith.constant 0 : index
    %c0_2 = arith.constant 0 : index
    %1 = vector.load %arg2[%c0_1, %c0_2] : memref<288x32xbf16, #tpu.memory_space<vmem>>, vector<288x32xbf16>
    %cst = arith.constant dense<0.000000e+00> : vector<32x32xf32>
    %2 = tpu.matmul %0, %1, %cst {dimension_numbers = #tpu.dot_dimension_numbers<[1], [0], [0], [1], [0, 0, 1, 1], [], []>} : vector<32x288xbf16>, vector<288x32xbf16>, vector<32x32xf32> -> vector<32x32xf32>
    %c0_3 = arith.constant 0 : index
    %c0_4 = arith.constant 0 : index
    %3 = vector.load %arg3[%c0_3, %c0_4] : memref<1x32xf32, #tpu.memory_space<vmem>>, vector<1x32xf32>
    %4 = vector.broadcast %3 : vector<1x32xf32> to vector<32x32xf32>
    %5 = arith.mulf %2, %4 : vector<32x32xf32>
    %c0_5 = arith.constant 0 : index
    %c0_6 = arith.constant 0 : index
    %6 = vector.load %arg4[%c0_5, %c0_6] : memref<1x32xf32, #tpu.memory_space<vmem>>, vector<1x32xf32>
    %7 = vector.broadcast %6 : vector<1x32xf32> to vector<32x32xf32>
    %8 = arith.addf %5, %7 : vector<32x32xf32>
    %c0_7 = arith.constant 0 : index
    %c0_8 = arith.constant 0 : index
    %9 = vector.load %arg5[%c0_7, %c0_8] : memref<32x32xf32, #tpu.memory_space<vmem>>, vector<32x32xf32>
    tpu.vector_store %arg5[%c0_7, %c0_8], %8 {strides = array<i32>} : memref<32x32xf32, #tpu.memory_space<vmem>>, vector<32x32xf32>,
    return
  }
  func.func @transform_0(%arg0: i32) -> (i32, i32) {
    %c0_i32 = arith.constant 0 : i32
    %c0_i32_0 = arith.constant 0 : i32
    return %arg0, %c0_i32 : i32, i32
  }
  func.func @transform_1(%arg0: i32) -> (i32, i32) {
    %c0_i32 = arith.constant 0 : i32
    %c0_i32_0 = arith.constant 0 : i32
    %c0_i32_1 = arith.constant 0 : i32
    return %c0_i32, %c0_i32_0 : i32, i32
  }
  func.func @transform_2(%arg0: i32) -> (i32, i32) {
    %c0_i32 = arith.constant 0 : i32
    %c0_i32_0 = arith.constant 0 : i32
    %c0_i32_1 = arith.constant 0 : i32
    return %c0_i32, %c0_i32_0 : i32, i32
  }
  func.func @transform_3(%arg0: i32) -> (i32, i32) {
    %c0_i32 = arith.constant 0 : i32
    %c0_i32_0 = arith.constant 0 : i32
    %c0_i32_1 = arith.constant 0 : i32
    return %c0_i32, %c0_i32_0 : i32, i32
  }
  func.func @transform_4(%arg0: i32) -> (i32, i32) {
    %c0_i32 = arith.constant 0 : i32
    %c0_i32_0 = arith.constant 0 : i32
    return %arg0, %c0_i32 : i32, i32
  }
}

module attributes {stable_mosaic.version = 11 : i64} {
  func.func @kernel(%arg0: i32, %arg1: memref<32x576xbf16, #tpu.memory_space<vmem>>, %arg2: memref<576x16xbf16, #tpu.memory_space<vmem>>, %arg3: memref<1x16xf32, #tpu.memory_space<vmem>>, %arg4: memref<1x16xf32, #tpu.memory_space<vmem>>, %arg5: memref<32x16xf32, #tpu.memory_space<vmem>>) attributes {dimension_semantics = [#tpu.dimension_semantics<parallel>], iteration_bounds = array<i64: 1>, scalar_prefetch = 0 : i64, scratch_operands = 0 : i64, tpu.core_type = #tpu.core_type<tc>, window_params = [{transform_indices = @transform_0, window_bounds = array<i64: 32, 576>}, {pipeline_mode = #tpu.pipeline_mode<synchronous>, transform_indices = @transform_1, window_bounds = array<i64: 576, 16>}, {pipeline_mode = #tpu.pipeline_mode<synchronous>, transform_indices = @transform_2, window_bounds = array<i64: 1, 16>}, {pipeline_mode = #tpu.pipeline_mode<synchronous>, transform_indices = @transform_3, window_bounds = array<i64: 1, 16>}, {transform_indices = @transform_4, window_bounds = array<i64: 32, 16>}]} {
    %c0 = arith.constant 0 : index
    %c0_0 = arith.constant 0 : index
    %0 = vector.load %arg1[%c0, %c0_0] : memref<32x576xbf16, #tpu.memory_space<vmem>>, vector<32x576xbf16>
    %c0_1 = arith.constant 0 : index
    %c0_2 = arith.constant 0 : index
    %1 = vector.load %arg2[%c0_1, %c0_2] : memref<576x16xbf16, #tpu.memory_space<vmem>>, vector<576x16xbf16>
    %cst = arith.constant dense<0.000000e+00> : vector<32x16xf32>
    %2 = tpu.matmul %0, %1, %cst {dimension_numbers = #tpu.dot_dimension_numbers<[1], [0], [0], [1], [0, 0, 1, 1], [], []>} : vector<32x576xbf16>, vector<576x16xbf16>, vector<32x16xf32> -> vector<32x16xf32>
    %c0_3 = arith.constant 0 : index
    %c0_4 = arith.constant 0 : index
    %3 = vector.load %arg3[%c0_3, %c0_4] : memref<1x16xf32, #tpu.memory_space<vmem>>, vector<1x16xf32>
    %4 = vector.broadcast %3 : vector<1x16xf32> to vector<32x16xf32>
    %5 = arith.mulf %2, %4 : vector<32x16xf32>
    %c0_5 = arith.constant 0 : index
    %c0_6 = arith.constant 0 : index
    %6 = vector.load %arg4[%c0_5, %c0_6] : memref<1x16xf32, #tpu.memory_space<vmem>>, vector<1x16xf32>
    %7 = vector.broadcast %6 : vector<1x16xf32> to vector<32x16xf32>
    %8 = arith.addf %5, %7 : vector<32x16xf32>
    %cst_7 = arith.constant 0.000000e+00 : f32
    %9 = vector.broadcast %cst_7 : f32 to vector<32x16xf32>
    %10 = arith.maximumf %8, %9 : vector<32x16xf32>
    %c0_8 = arith.constant 0 : index
    %c0_9 = arith.constant 0 : index
    %11 = vector.load %arg5[%c0_8, %c0_9] : memref<32x16xf32, #tpu.memory_space<vmem>>, vector<32x16xf32>
    tpu.vector_store %arg5[%c0_8, %c0_9], %10 {strides = array<i32>} : memref<32x16xf32, #tpu.memory_space<vmem>>, vector<32x16xf32>,
    return
  }
  func.func @transform_0(%arg0: i32) -> (i32, i32) {
    %c0_i32 = arith.constant 0 : i32
    %c0_i32_0 = arith.constant 0 : i32
    return %arg0, %c0_i32 : i32, i32
  }
  func.func @transform_1(%arg0: i32) -> (i32, i32) {
    %c0_i32 = arith.constant 0 : i32
    %c0_i32_0 = arith.constant 0 : i32
    %c0_i32_1 = arith.constant 0 : i32
    return %c0_i32, %c0_i32_0 : i32, i32
  }
  func.func @transform_2(%arg0: i32) -> (i32, i32) {
    %c0_i32 = arith.constant 0 : i32
    %c0_i32_0 = arith.constant 0 : i32
    %c0_i32_1 = arith.constant 0 : i32
    return %c0_i32, %c0_i32_0 : i32, i32
  }
  func.func @transform_3(%arg0: i32) -> (i32, i32) {
    %c0_i32 = arith.constant 0 : i32
    %c0_i32_0 = arith.constant 0 : i32
    %c0_i32_1 = arith.constant 0 : i32
    return %c0_i32, %c0_i32_0 : i32, i32
  }
  func.func @transform_4(%arg0: i32) -> (i32, i32) {
    %c0_i32 = arith.constant 0 : i32
    %c0_i32_0 = arith.constant 0 : i32
    return %arg0, %c0_i32 : i32, i32
  }
}

module attributes {stable_mosaic.version = 11 : i64} {
  func.func @kernel(%arg0: i32, %arg1: memref<32x144xbf16, #tpu.memory_space<vmem>>, %arg2: memref<144x16xbf16, #tpu.memory_space<vmem>>, %arg3: memref<1x16xf32, #tpu.memory_space<vmem>>, %arg4: memref<1x16xf32, #tpu.memory_space<vmem>>, %arg5: memref<32x16xf32, #tpu.memory_space<vmem>>) attributes {dimension_semantics = [#tpu.dimension_semantics<parallel>], iteration_bounds = array<i64: 1>, scalar_prefetch = 0 : i64, scratch_operands = 0 : i64, tpu.core_type = #tpu.core_type<tc>, window_params = [{transform_indices = @transform_0, window_bounds = array<i64: 32, 144>}, {pipeline_mode = #tpu.pipeline_mode<synchronous>, transform_indices = @transform_1, window_bounds = array<i64: 144, 16>}, {pipeline_mode = #tpu.pipeline_mode<synchronous>, transform_indices = @transform_2, window_bounds = array<i64: 1, 16>}, {pipeline_mode = #tpu.pipeline_mode<synchronous>, transform_indices = @transform_3, window_bounds = array<i64: 1, 16>}, {transform_indices = @transform_4, window_bounds = array<i64: 32, 16>}]} {
    %c0 = arith.constant 0 : index
    %c0_0 = arith.constant 0 : index
    %0 = vector.load %arg1[%c0, %c0_0] : memref<32x144xbf16, #tpu.memory_space<vmem>>, vector<32x144xbf16>
    %c0_1 = arith.constant 0 : index
    %c0_2 = arith.constant 0 : index
    %1 = vector.load %arg2[%c0_1, %c0_2] : memref<144x16xbf16, #tpu.memory_space<vmem>>, vector<144x16xbf16>
    %cst = arith.constant dense<0.000000e+00> : vector<32x16xf32>
    %2 = tpu.matmul %0, %1, %cst {dimension_numbers = #tpu.dot_dimension_numbers<[1], [0], [0], [1], [0, 0, 1, 1], [], []>} : vector<32x144xbf16>, vector<144x16xbf16>, vector<32x16xf32> -> vector<32x16xf32>
    %c0_3 = arith.constant 0 : index
    %c0_4 = arith.constant 0 : index
    %3 = vector.load %arg3[%c0_3, %c0_4] : memref<1x16xf32, #tpu.memory_space<vmem>>, vector<1x16xf32>
    %4 = vector.broadcast %3 : vector<1x16xf32> to vector<32x16xf32>
    %5 = arith.mulf %2, %4 : vector<32x16xf32>
    %c0_5 = arith.constant 0 : index
    %c0_6 = arith.constant 0 : index
    %6 = vector.load %arg4[%c0_5, %c0_6] : memref<1x16xf32, #tpu.memory_space<vmem>>, vector<1x16xf32>
    %7 = vector.broadcast %6 : vector<1x16xf32> to vector<32x16xf32>
    %8 = arith.addf %5, %7 : vector<32x16xf32>
    %cst_7 = arith.constant 0.000000e+00 : f32
    %9 = vector.broadcast %cst_7 : f32 to vector<32x16xf32>
    %10 = arith.maximumf %8, %9 : vector<32x16xf32>
    %c0_8 = arith.constant 0 : index
    %c0_9 = arith.constant 0 : index
    %11 = vector.load %arg5[%c0_8, %c0_9] : memref<32x16xf32, #tpu.memory_space<vmem>>, vector<32x16xf32>
    tpu.vector_store %arg5[%c0_8, %c0_9], %10 {strides = array<i32>} : memref<32x16xf32, #tpu.memory_space<vmem>>, vector<32x16xf32>,
    return
  }
  func.func @transform_0(%arg0: i32) -> (i32, i32) {
    %c0_i32 = arith.constant 0 : i32
    %c0_i32_0 = arith.constant 0 : i32
    return %arg0, %c0_i32 : i32, i32
  }
  func.func @transform_1(%arg0: i32) -> (i32, i32) {
    %c0_i32 = arith.constant 0 : i32
    %c0_i32_0 = arith.constant 0 : i32
    %c0_i32_1 = arith.constant 0 : i32
    return %c0_i32, %c0_i32_0 : i32, i32
  }
  func.func @transform_2(%arg0: i32) -> (i32, i32) {
    %c0_i32 = arith.constant 0 : i32
    %c0_i32_0 = arith.constant 0 : i32
    %c0_i32_1 = arith.constant 0 : i32
    return %c0_i32, %c0_i32_0 : i32, i32
  }
  func.func @transform_3(%arg0: i32) -> (i32, i32) {
    %c0_i32 = arith.constant 0 : i32
    %c0_i32_0 = arith.constant 0 : i32
    %c0_i32_1 = arith.constant 0 : i32
    return %c0_i32, %c0_i32_0 : i32, i32
  }
  func.func @transform_4(%arg0: i32) -> (i32, i32) {
    %c0_i32 = arith.constant 0 : i32
    %c0_i32_0 = arith.constant 0 : i32
    return %arg0, %c0_i32 : i32, i32
  }
}

module attributes {stable_mosaic.version = 11 : i64} {
  func.func @kernel(%arg0: i32, %arg1: memref<128x144xbf16, #tpu.memory_space<vmem>>, %arg2: memref<144x16xbf16, #tpu.memory_space<vmem>>, %arg3: memref<1x16xf32, #tpu.memory_space<vmem>>, %arg4: memref<1x16xf32, #tpu.memory_space<vmem>>, %arg5: memref<128x16xf32, #tpu.memory_space<vmem>>) attributes {dimension_semantics = [#tpu.dimension_semantics<parallel>], iteration_bounds = array<i64: 1>, scalar_prefetch = 0 : i64, scratch_operands = 0 : i64, tpu.core_type = #tpu.core_type<tc>, window_params = [{transform_indices = @transform_0, window_bounds = array<i64: 128, 144>}, {pipeline_mode = #tpu.pipeline_mode<synchronous>, transform_indices = @transform_1, window_bounds = array<i64: 144, 16>}, {pipeline_mode = #tpu.pipeline_mode<synchronous>, transform_indices = @transform_2, window_bounds = array<i64: 1, 16>}, {pipeline_mode = #tpu.pipeline_mode<synchronous>, transform_indices = @transform_3, window_bounds = array<i64: 1, 16>}, {transform_indices = @transform_4, window_bounds = array<i64: 128, 16>}]} {
    %c0 = arith.constant 0 : index
    %c0_0 = arith.constant 0 : index
    %0 = vector.load %arg1[%c0, %c0_0] : memref<128x144xbf16, #tpu.memory_space<vmem>>, vector<128x144xbf16>
    %c0_1 = arith.constant 0 : index
    %c0_2 = arith.constant 0 : index
    %1 = vector.load %arg2[%c0_1, %c0_2] : memref<144x16xbf16, #tpu.memory_space<vmem>>, vector<144x16xbf16>
    %cst = arith.constant dense<0.000000e+00> : vector<128x16xf32>
    %2 = tpu.matmul %0, %1, %cst {dimension_numbers = #tpu.dot_dimension_numbers<[1], [0], [0], [1], [0, 0, 1, 1], [], []>} : vector<128x144xbf16>, vector<144x16xbf16>, vector<128x16xf32> -> vector<128x16xf32>
    %c0_3 = arith.constant 0 : index
    %c0_4 = arith.constant 0 : index
    %3 = vector.load %arg3[%c0_3, %c0_4] : memref<1x16xf32, #tpu.memory_space<vmem>>, vector<1x16xf32>
    %4 = vector.broadcast %3 : vector<1x16xf32> to vector<128x16xf32>
    %5 = arith.mulf %2, %4 : vector<128x16xf32>
    %c0_5 = arith.constant 0 : index
    %c0_6 = arith.constant 0 : index
    %6 = vector.load %arg4[%c0_5, %c0_6] : memref<1x16xf32, #tpu.memory_space<vmem>>, vector<1x16xf32>
    %7 = vector.broadcast %6 : vector<1x16xf32> to vector<128x16xf32>
    %8 = arith.addf %5, %7 : vector<128x16xf32>
    %c0_7 = arith.constant 0 : index
    %c0_8 = arith.constant 0 : index
    %9 = vector.load %arg5[%c0_7, %c0_8] : memref<128x16xf32, #tpu.memory_space<vmem>>, vector<128x16xf32>
    tpu.vector_store %arg5[%c0_7, %c0_8], %8 {strides = array<i32>} : memref<128x16xf32, #tpu.memory_space<vmem>>, vector<128x16xf32>,
    return
  }
  func.func @transform_0(%arg0: i32) -> (i32, i32) {
    %c0_i32 = arith.constant 0 : i32
    %c0_i32_0 = arith.constant 0 : i32
    return %arg0, %c0_i32 : i32, i32
  }
  func.func @transform_1(%arg0: i32) -> (i32, i32) {
    %c0_i32 = arith.constant 0 : i32
    %c0_i32_0 = arith.constant 0 : i32
    %c0_i32_1 = arith.constant 0 : i32
    return %c0_i32, %c0_i32_0 : i32, i32
  }
  func.func @transform_2(%arg0: i32) -> (i32, i32) {
    %c0_i32 = arith.constant 0 : i32
    %c0_i32_0 = arith.constant 0 : i32
    %c0_i32_1 = arith.constant 0 : i32
    return %c0_i32, %c0_i32_0 : i32, i32
  }
  func.func @transform_3(%arg0: i32) -> (i32, i32) {
    %c0_i32 = arith.constant 0 : i32
    %c0_i32_0 = arith.constant 0 : i32
    %c0_i32_1 = arith.constant 0 : i32
    return %c0_i32, %c0_i32_0 : i32, i32
  }
  func.func @transform_4(%arg0: i32) -> (i32, i32) {
    %c0_i32 = arith.constant 0 : i32
    %c0_i32_0 = arith.constant 0 : i32
    return %arg0, %c0_i32 : i32, i32
  }
}

module attributes {stable_mosaic.version = 11 : i64} {
  func.func @kernel(%arg0: i32, %arg1: memref<128x288xbf16, #tpu.memory_space<vmem>>, %arg2: memref<288x4xbf16, #tpu.memory_space<vmem>>, %arg3: memref<1x4xf32, #tpu.memory_space<vmem>>, %arg4: memref<1x4xf32, #tpu.memory_space<vmem>>, %arg5: memref<128x4xf32, #tpu.memory_space<vmem>>) attributes {dimension_semantics = [#tpu.dimension_semantics<parallel>], iteration_bounds = array<i64: 1>, scalar_prefetch = 0 : i64, scratch_operands = 0 : i64, tpu.core_type = #tpu.core_type<tc>, window_params = [{transform_indices = @transform_0, window_bounds = array<i64: 128, 288>}, {pipeline_mode = #tpu.pipeline_mode<synchronous>, transform_indices = @transform_1, window_bounds = array<i64: 288, 4>}, {pipeline_mode = #tpu.pipeline_mode<synchronous>, transform_indices = @transform_2, window_bounds = array<i64: 1, 4>}, {pipeline_mode = #tpu.pipeline_mode<synchronous>, transform_indices = @transform_3, window_bounds = array<i64: 1, 4>}, {transform_indices = @transform_4, window_bounds = array<i64: 128, 4>}]} {
    %c0 = arith.constant 0 : index
    %c0_0 = arith.constant 0 : index
    %0 = vector.load %arg1[%c0, %c0_0] : memref<128x288xbf16, #tpu.memory_space<vmem>>, vector<128x288xbf16>
    %c0_1 = arith.constant 0 : index
    %c0_2 = arith.constant 0 : index
    %1 = vector.load %arg2[%c0_1, %c0_2] : memref<288x4xbf16, #tpu.memory_space<vmem>>, vector<288x4xbf16>
    %cst = arith.constant dense<0.000000e+00> : vector<128x4xf32>
    %2 = tpu.matmul %0, %1, %cst {dimension_numbers = #tpu.dot_dimension_numbers<[1], [0], [0], [1], [0, 0, 1, 1], [], []>} : vector<128x288xbf16>, vector<288x4xbf16>, vector<128x4xf32> -> vector<128x4xf32>
    %c0_3 = arith.constant 0 : index
    %c0_4 = arith.constant 0 : index
    %3 = vector.load %arg3[%c0_3, %c0_4] : memref<1x4xf32, #tpu.memory_space<vmem>>, vector<1x4xf32>
    %4 = vector.broadcast %3 : vector<1x4xf32> to vector<128x4xf32>
    %5 = arith.mulf %2, %4 : vector<128x4xf32>
    %c0_5 = arith.constant 0 : index
    %c0_6 = arith.constant 0 : index
    %6 = vector.load %arg4[%c0_5, %c0_6] : memref<1x4xf32, #tpu.memory_space<vmem>>, vector<1x4xf32>
    %7 = vector.broadcast %6 : vector<1x4xf32> to vector<128x4xf32>
    %8 = arith.addf %5, %7 : vector<128x4xf32>
    %cst_7 = arith.constant 0.000000e+00 : f32
    %9 = vector.broadcast %cst_7 : f32 to vector<128x4xf32>
    %10 = arith.maximumf %8, %9 : vector<128x4xf32>
    %c0_8 = arith.constant 0 : index
    %c0_9 = arith.constant 0 : index
    %11 = vector.load %arg5[%c0_8, %c0_9] : memref<128x4xf32, #tpu.memory_space<vmem>>, vector<128x4xf32>
    tpu.vector_store %arg5[%c0_8, %c0_9], %10 {strides = array<i32>} : memref<128x4xf32, #tpu.memory_space<vmem>>, vector<128x4xf32>,
    return
  }
  func.func @transform_0(%arg0: i32) -> (i32, i32) {
    %c0_i32 = arith.constant 0 : i32
    %c0_i32_0 = arith.constant 0 : i32
    return %arg0, %c0_i32 : i32, i32
  }
  func.func @transform_1(%arg0: i32) -> (i32, i32) {
    %c0_i32 = arith.constant 0 : i32
    %c0_i32_0 = arith.constant 0 : i32
    %c0_i32_1 = arith.constant 0 : i32
    return %c0_i32, %c0_i32_0 : i32, i32
  }
  func.func @transform_2(%arg0: i32) -> (i32, i32) {
    %c0_i32 = arith.constant 0 : i32
    %c0_i32_0 = arith.constant 0 : i32
    %c0_i32_1 = arith.constant 0 : i32
    return %c0_i32, %c0_i32_0 : i32, i32
  }
  func.func @transform_3(%arg0: i32) -> (i32, i32) {
    %c0_i32 = arith.constant 0 : i32
    %c0_i32_0 = arith.constant 0 : i32
    %c0_i32_1 = arith.constant 0 : i32
    return %c0_i32, %c0_i32_0 : i32, i32
  }
  func.func @transform_4(%arg0: i32) -> (i32, i32) {
    %c0_i32 = arith.constant 0 : i32
    %c0_i32_0 = arith.constant 0 : i32
    return %arg0, %c0_i32 : i32, i32
  }
}

module attributes {stable_mosaic.version = 11 : i64} {
  func.func @kernel(%arg0: i32, %arg1: memref<128x36xbf16, #tpu.memory_space<vmem>>, %arg2: memref<36x4xbf16, #tpu.memory_space<vmem>>, %arg3: memref<1x4xf32, #tpu.memory_space<vmem>>, %arg4: memref<1x4xf32, #tpu.memory_space<vmem>>, %arg5: memref<128x4xf32, #tpu.memory_space<vmem>>) attributes {dimension_semantics = [#tpu.dimension_semantics<parallel>], iteration_bounds = array<i64: 1>, scalar_prefetch = 0 : i64, scratch_operands = 0 : i64, tpu.core_type = #tpu.core_type<tc>, window_params = [{transform_indices = @transform_0, window_bounds = array<i64: 128, 36>}, {pipeline_mode = #tpu.pipeline_mode<synchronous>, transform_indices = @transform_1, window_bounds = array<i64: 36, 4>}, {pipeline_mode = #tpu.pipeline_mode<synchronous>, transform_indices = @transform_2, window_bounds = array<i64: 1, 4>}, {pipeline_mode = #tpu.pipeline_mode<synchronous>, transform_indices = @transform_3, window_bounds = array<i64: 1, 4>}, {transform_indices = @transform_4, window_bounds = array<i64: 128, 4>}]} {
    %c0 = arith.constant 0 : index
    %c0_0 = arith.constant 0 : index
    %0 = vector.load %arg1[%c0, %c0_0] : memref<128x36xbf16, #tpu.memory_space<vmem>>, vector<128x36xbf16>
    %c0_1 = arith.constant 0 : index
    %c0_2 = arith.constant 0 : index
    %1 = vector.load %arg2[%c0_1, %c0_2] : memref<36x4xbf16, #tpu.memory_space<vmem>>, vector<36x4xbf16>
    %cst = arith.constant dense<0.000000e+00> : vector<128x4xf32>
    %2 = tpu.matmul %0, %1, %cst {dimension_numbers = #tpu.dot_dimension_numbers<[1], [0], [0], [1], [0, 0, 1, 1], [], []>} : vector<128x36xbf16>, vector<36x4xbf16>, vector<128x4xf32> -> vector<128x4xf32>
    %c0_3 = arith.constant 0 : index
    %c0_4 = arith.constant 0 : index
    %3 = vector.load %arg3[%c0_3, %c0_4] : memref<1x4xf32, #tpu.memory_space<vmem>>, vector<1x4xf32>
    %4 = vector.broadcast %3 : vector<1x4xf32> to vector<128x4xf32>
    %5 = arith.mulf %2, %4 : vector<128x4xf32>
    %c0_5 = arith.constant 0 : index
    %c0_6 = arith.constant 0 : index
    %6 = vector.load %arg4[%c0_5, %c0_6] : memref<1x4xf32, #tpu.memory_space<vmem>>, vector<1x4xf32>
    %7 = vector.broadcast %6 : vector<1x4xf32> to vector<128x4xf32>
    %8 = arith.addf %5, %7 : vector<128x4xf32>
    %cst_7 = arith.constant 0.000000e+00 : f32
    %9 = vector.broadcast %cst_7 : f32 to vector<128x4xf32>
    %10 = arith.maximumf %8, %9 : vector<128x4xf32>
    %c0_8 = arith.constant 0 : index
    %c0_9 = arith.constant 0 : index
    %11 = vector.load %arg5[%c0_8, %c0_9] : memref<128x4xf32, #tpu.memory_space<vmem>>, vector<128x4xf32>
    tpu.vector_store %arg5[%c0_8, %c0_9], %10 {strides = array<i32>} : memref<128x4xf32, #tpu.memory_space<vmem>>, vector<128x4xf32>,
    return
  }
  func.func @transform_0(%arg0: i32) -> (i32, i32) {
    %c0_i32 = arith.constant 0 : i32
    %c0_i32_0 = arith.constant 0 : i32
    return %arg0, %c0_i32 : i32, i32
  }
  func.func @transform_1(%arg0: i32) -> (i32, i32) {
    %c0_i32 = arith.constant 0 : i32
    %c0_i32_0 = arith.constant 0 : i32
    %c0_i32_1 = arith.constant 0 : i32
    return %c0_i32, %c0_i32_0 : i32, i32
  }
  func.func @transform_2(%arg0: i32) -> (i32, i32) {
    %c0_i32 = arith.constant 0 : i32
    %c0_i32_0 = arith.constant 0 : i32
    %c0_i32_1 = arith.constant 0 : i32
    return %c0_i32, %c0_i32_0 : i32, i32
  }
  func.func @transform_3(%arg0: i32) -> (i32, i32) {
    %c0_i32 = arith.constant 0 : i32
    %c0_i32_0 = arith.constant 0 : i32
    %c0_i32_1 = arith.constant 0 : i32
    return %c0_i32, %c0_i32_0 : i32, i32
  }
  func.func @transform_4(%arg0: i32) -> (i32, i32) {
    %c0_i32 = arith.constant 0 : i32
    %c0_i32_0 = arith.constant 0 : i32
    return %arg0, %c0_i32 : i32, i32
  }
}

module attributes {stable_mosaic.version = 11 : i64} {
  func.func @kernel(%arg0: i32, %arg1: memref<512x36xbf16, #tpu.memory_space<vmem>>, %arg2: memref<36x4xbf16, #tpu.memory_space<vmem>>, %arg3: memref<1x4xf32, #tpu.memory_space<vmem>>, %arg4: memref<1x4xf32, #tpu.memory_space<vmem>>, %arg5: memref<512x4xf32, #tpu.memory_space<vmem>>) attributes {dimension_semantics = [#tpu.dimension_semantics<parallel>], iteration_bounds = array<i64: 1>, scalar_prefetch = 0 : i64, scratch_operands = 0 : i64, tpu.core_type = #tpu.core_type<tc>, window_params = [{transform_indices = @transform_0, window_bounds = array<i64: 512, 36>}, {pipeline_mode = #tpu.pipeline_mode<synchronous>, transform_indices = @transform_1, window_bounds = array<i64: 36, 4>}, {pipeline_mode = #tpu.pipeline_mode<synchronous>, transform_indices = @transform_2, window_bounds = array<i64: 1, 4>}, {pipeline_mode = #tpu.pipeline_mode<synchronous>, transform_indices = @transform_3, window_bounds = array<i64: 1, 4>}, {transform_indices = @transform_4, window_bounds = array<i64: 512, 4>}]} {
    %c0 = arith.constant 0 : index
    %c0_0 = arith.constant 0 : index
    %0 = vector.load %arg1[%c0, %c0_0] : memref<512x36xbf16, #tpu.memory_space<vmem>>, vector<512x36xbf16>
    %c0_1 = arith.constant 0 : index
    %c0_2 = arith.constant 0 : index
    %1 = vector.load %arg2[%c0_1, %c0_2] : memref<36x4xbf16, #tpu.memory_space<vmem>>, vector<36x4xbf16>
    %cst = arith.constant dense<0.000000e+00> : vector<512x4xf32>
    %2 = tpu.matmul %0, %1, %cst {dimension_numbers = #tpu.dot_dimension_numbers<[1], [0], [0], [1], [0, 0, 1, 1], [], []>} : vector<512x36xbf16>, vector<36x4xbf16>, vector<512x4xf32> -> vector<512x4xf32>
    %c0_3 = arith.constant 0 : index
    %c0_4 = arith.constant 0 : index
    %3 = vector.load %arg3[%c0_3, %c0_4] : memref<1x4xf32, #tpu.memory_space<vmem>>, vector<1x4xf32>
    %4 = vector.broadcast %3 : vector<1x4xf32> to vector<512x4xf32>
    %5 = arith.mulf %2, %4 : vector<512x4xf32>
    %c0_5 = arith.constant 0 : index
    %c0_6 = arith.constant 0 : index
    %6 = vector.load %arg4[%c0_5, %c0_6] : memref<1x4xf32, #tpu.memory_space<vmem>>, vector<1x4xf32>
    %7 = vector.broadcast %6 : vector<1x4xf32> to vector<512x4xf32>
    %8 = arith.addf %5, %7 : vector<512x4xf32>
    %c0_7 = arith.constant 0 : index
    %c0_8 = arith.constant 0 : index
    %9 = vector.load %arg5[%c0_7, %c0_8] : memref<512x4xf32, #tpu.memory_space<vmem>>, vector<512x4xf32>
    tpu.vector_store %arg5[%c0_7, %c0_8], %8 {strides = array<i32>} : memref<512x4xf32, #tpu.memory_space<vmem>>, vector<512x4xf32>,
    return
  }
  func.func @transform_0(%arg0: i32) -> (i32, i32) {
    %c0_i32 = arith.constant 0 : i32
    %c0_i32_0 = arith.constant 0 : i32
    return %arg0, %c0_i32 : i32, i32
  }
  func.func @transform_1(%arg0: i32) -> (i32, i32) {
    %c0_i32 = arith.constant 0 : i32
    %c0_i32_0 = arith.constant 0 : i32
    %c0_i32_1 = arith.constant 0 : i32
    return %c0_i32, %c0_i32_0 : i32, i32
  }
  func.func @transform_2(%arg0: i32) -> (i32, i32) {
    %c0_i32 = arith.constant 0 : i32
    %c0_i32_0 = arith.constant 0 : i32
    %c0_i32_1 = arith.constant 0 : i32
    return %c0_i32, %c0_i32_0 : i32, i32
  }
  func.func @transform_3(%arg0: i32) -> (i32, i32) {
    %c0_i32 = arith.constant 0 : i32
    %c0_i32_0 = arith.constant 0 : i32
    %c0_i32_1 = arith.constant 0 : i32
    return %c0_i32, %c0_i32_0 : i32, i32
  }
  func.func @transform_4(%arg0: i32) -> (i32, i32) {
    %c0_i32 = arith.constant 0 : i32
    %c0_i32_0 = arith.constant 0 : i32
    return %arg0, %c0_i32 : i32, i32
  }
}

</mosaic_0001>

<llo_original>
// kernel: unet_forward.20
$region0: #{unet_forward.20}
  #allocation0 [shape = 'u32[]', space=smem, size = 0x4, offset = 0x4, fixed_abs, tag = 'smem constant byte address 0x4 - core index']
  #allocation1 [shape = 'u32[144,128]{1,0:T(1,128)}', space=vmem, size = 0x12000, scoped, tag = 'internal scratch']
  %s0 = inlined_call_operand.vmem [shape: bf16[512,36], index: 0, kind: input, shape index: {}]
  %s1 = inlined_call_operand.vmem [shape: bf16[36,16], index: 1, kind: input, shape index: {}]
  %s2 = inlined_call_operand.vmem [shape: f32[1,16], index: 2, kind: input, shape index: {}]
  %s3 = inlined_call_operand.vmem [shape: f32[1,16], index: 3, kind: input, shape index: {}]
  %s4 = inlined_call_operand.vmem [shape: f32[512,16], index: 4, kind: output, shape index: {}]
  %s5 = sld [smem:[#allocation0]]
  $region26: #{unet_forward.20} parent=0
    _
  %s7 = ssub.s32 1, %s5
  %s8 = scalar_select 0, %s7, %s5
  // Predicated region
  $region2: #{unet_forward.20} parent=0 // pred_check
    _
  $region3: #{unet_forward.20} parent=0 // pred_check_branch
    %10 = sbr.rel (0) target = $region5
  $region4: #{unet_forward.20} parent=0 // pred_region
    _
  $region5: #{unet_forward.20} parent=0 // pred_fallthru
    _
  // Predicated region
  $region6: #{unet_forward.20} parent=0 // pred_check
    _
  $region7: #{unet_forward.20} parent=0 // pred_check_branch
    %12 = sbr.rel (0) target = $region9
  $region8: #{unet_forward.20} parent=0 // pred_region
    _
  $region9: #{unet_forward.20} parent=0 // pred_fallthru
    _
  // Predicated region
  $region10: #{unet_forward.20} parent=0 // pred_check
    _
  $region11: #{unet_forward.20} parent=0 // pred_check_branch
    %14 = sbr.rel (0) target = $region13
  $region12: #{unet_forward.20} parent=0 // pred_region
    _
  $region13: #{unet_forward.20} parent=0 // pred_fallthru
    _
  // Predicated region
  $region14: #{unet_forward.20} parent=0 // pred_check
    _
  $region15: #{unet_forward.20} parent=0 // pred_check_branch
    %16 = sbr.rel (0) target = $region17
  $region16: #{unet_forward.20} parent=0 // pred_region
    _
  $region17: #{unet_forward.20} parent=0 // pred_fallthru
    _
  %v18 = vld [vmem:[%s0] sm:$0xf]
  %v19 = vld [vmem:[%s0 + $0x4] sm:$0xf]
  %v20 = vld [vmem:[%s0 + $0x8] sm:$0xf]
  %v21 = vld [vmem:[%s0 + $0xc] sm:$0xf]
  %v22 = vld [vmem:[%s0 + $0x10] sm:$0xf]
  %v23 = vld [vmem:[%s0 + $0x14] sm:$0xf]
  %v24 = vld [vmem:[%s0 + $0x18] sm:$0xf]
  %v25 = vld [vmem:[%s0 + $0x1c] sm:$0xf]
  %v26 = vld [vmem:[%s0 + $0x20] sm:$0xf]
  %v27 = vld [vmem:[%s0 + $0x24] sm:$0xf]
  %v28 = vld [vmem:[%s0 + $0x28] sm:$0xf]
  %v29 = vld [vmem:[%s0 + $0x2c] sm:$0xf]
  %v30 = vld [vmem:[%s0 + $0x30] sm:$0xf]
  %v31 = vld [vmem:[%s0 + $0x34] sm:$0xf]
  %v32 = vld [vmem:[%s0 + $0x38] sm:$0xf]
  %v33 = vld [vmem:[%s0 + $0x3c] sm:$0xf]
  %v34 = vld [vmem:[%s0 + $0x40] sm:$0xf]
  %v35 = vld [vmem:[%s0 + $0x44] sm:$0xf]
  %v36 = vld [vmem:[%s0 + $0x48] sm:$0xf]
  %v37 = vld [vmem:[%s0 + $0x4c] sm:$0xf]
  %v38 = vld [vmem:[%s0 + $0x50] sm:$0xf]
  %v39 = vld [vmem:[%s0 + $0x54] sm:$0xf]
  %v40 = vld [vmem:[%s0 + $0x58] sm:$0xf]
  %v41 = vld [vmem:[%s0 + $0x5c] sm:$0xf]
  %v42 = vld [vmem:[%s0 + $0x60] sm:$0xf]
  %v43 = vld [vmem:[%s0 + $0x64] sm:$0xf]
  %v44 = vld [vmem:[%s0 + $0x68] sm:$0xf]
  %v45 = vld [vmem:[%s0 + $0x6c] sm:$0xf]
  %v46 = vld [vmem:[%s0 + $0x70] sm:$0xf]
  %v47 = vld [vmem:[%s0 + $0x74] sm:$0xf]
  %v48 = vld [vmem:[%s0 + $0x78] sm:$0xf]
  %v49 = vld [vmem:[%s0 + $0x7c] sm:$0xf]
  %v50 = vld [vmem:[%s0 + $0x80] sm:$0xf]
  %v51 = vld [vmem:[%s0 + $0x84] sm:$0xf]
  %v52 = vld [vmem:[%s0 + $0x88] sm:$0xf]
  %v53 = vld [vmem:[%s0 + $0x8c] sm:$0xf]
  %v54 = vld [vmem:[%s0 + $0x90] sm:$0xf]
  %v55 = vld [vmem:[%s0 + $0x94] sm:$0xf]
  %v56 = vld [vmem:[%s0 + $0x98] sm:$0xf]
  %v57 = vld [vmem:[%s0 + $0x9c] sm:$0xf]
  %v58 = vld [vmem:[%s0 + $0xa0] sm:$0xf]
  %v59 = vld [vmem:[%s0 + $0xa4] sm:$0xf]
  %v60 = vld [vmem:[%s0 + $0xa8] sm:$0xf]
  %v61 = vld [vmem:[%s0 + $0xac] sm:$0xf]
  %v62 = vld [vmem:[%s0 + $0xb0] sm:$0xf]
  %v63 = vld [vmem:[%s0 + $0xb4] sm:$0xf]
  %v64 = vld [vmem:[%s0 + $0xb8] sm:$0xf]
  %v65 = vld [vmem:[%s0 + $0xbc] sm:$0xf]
  %v66 = vld [vmem:[%s0 + $0xc0] sm:$0xf]
  %v67 = vld [vmem:[%s0 + $0xc4] sm:$0xf]
  %v68 = vld [vmem:[%s0 + $0xc8] sm:$0xf]
  %v69 = vld [vmem:[%s0 + $0xcc] sm:$0xf]
  %v70 = vld [vmem:[%s0 + $0xd0] sm:$0xf]
  %v71 = vld [vmem:[%s0 + $0xd4] sm:$0xf]
  %v72 = vld [vmem:[%s0 + $0xd8] sm:$0xf]
  %v73 = vld [vmem:[%s0 + $0xdc] sm:$0xf]
  %v74 = vld [vmem:[%s0 + $0xe0] sm:$0xf]
  %v75 = vld [vmem:[%s0 + $0xe4] sm:$0xf]
  %v76 = vld [vmem:[%s0 + $0xe8] sm:$0xf]
  %v77 = vld [vmem:[%s0 + $0xec] sm:$0xf]
  %v78 = vld [vmem:[%s0 + $0xf0] sm:$0xf]
  %v79 = vld [vmem:[%s0 + $0xf4] sm:$0xf]
  %v80 = vld [vmem:[%s0 + $0xf8] sm:$0xf]
  %v81 = vld [vmem:[%s0 + $0xfc] sm:$0xf]
  %v82 = vld [vmem:[%s1] sm:$0xf]
  %v83 = vld [vmem:[%s1 + $0x4] sm:$0xf]
  %v84 = vld [vmem:[%s1 + $0x8] sm:$0xf]
  %v85 = vld [vmem:[%s1 + $0xc] sm:$0xf]
  %v86 = vld [vmem:[%s1 + $0x10] sm:$0x3]
  %v151 = vunpack.c.l.b16 %v18
  %v152 = vunpack.c.l.b16 %v19
  %v153 = vunpack.c.l.b16 %v20
  %v154 = vunpack.c.l.b16 %v21
  %v155 = vunpack.c.l.b16 %v22
  %v156 = vunpack.c.l.b16 %v23
  %v157 = vunpack.c.l.b16 %v24
  %v158 = vunpack.c.l.b16 %v25
  %v159 = vunpack.c.l.b16 %v26
  %v160 = vunpack.c.l.b16 %v27
  %v161 = vunpack.c.l.b16 %v28
  %v162 = vunpack.c.l.b16 %v29
  %v163 = vunpack.c.l.b16 %v30
  %v164 = vunpack.c.l.b16 %v31
  %v165 = vunpack.c.l.b16 %v32
  %v166 = vunpack.c.l.b16 %v33
  %v167 = vunpack.c.l.b16 %v34
  %v168 = vunpack.c.l.b16 %v35
  %v169 = vunpack.c.l.b16 %v36
  %v170 = vunpack.c.l.b16 %v37
  %v171 = vunpack.c.l.b16 %v38
  %v172 = vunpack.c.l.b16 %v39
  %v173 = vunpack.c.l.b16 %v40
  %v174 = vunpack.c.l.b16 %v41
  %v175 = vunpack.c.l.b16 %v42
  %v176 = vunpack.c.l.b16 %v43
  %v177 = vunpack.c.l.b16 %v44
  %v178 = vunpack.c.l.b16 %v45
  %v179 = vunpack.c.l.b16 %v46
  %v180 = vunpack.c.l.b16 %v47
  %v181 = vunpack.c.l.b16 %v48
  %v182 = vunpack.c.l.b16 %v49
  %v183 = vunpack.c.l.b16 %v50
  %v184 = vunpack.c.l.b16 %v51
  %v185 = vunpack.c.l.b16 %v52
  %v186 = vunpack.c.l.b16 %v53
  %v187 = vunpack.c.l.b16 %v54
  %v188 = vunpack.c.l.b16 %v55
  %v189 = vunpack.c.l.b16 %v56
  %v190 = vunpack.c.l.b16 %v57
  %v191 = vunpack.c.l.b16 %v58
  %v192 = vunpack.c.l.b16 %v59
  %v193 = vunpack.c.l.b16 %v60
  %v194 = vunpack.c.l.b16 %v61
  %v195 = vunpack.c.l.b16 %v62
  %v196 = vunpack.c.l.b16 %v63
  %v197 = vunpack.c.l.b16 %v64
  %v198 = vunpack.c.l.b16 %v65
  %v199 = vunpack.c.l.b16 %v66
  %v200 = vunpack.c.l.b16 %v67
  %v201 = vunpack.c.l.b16 %v68
  %v202 = vunpack.c.l.b16 %v69
  %v203 = vunpack.c.l.b16 %v70
  %v204 = vunpack.c.l.b16 %v71
  %v205 = vunpack.c.l.b16 %v72
  %v206 = vunpack.c.l.b16 %v73
  %v207 = vunpack.c.l.b16 %v74
  %v208 = vunpack.c.l.b16 %v75
  %v209 = vunpack.c.l.b16 %v76
  %v210 = vunpack.c.l.b16 %v77
  %v211 = vunpack.c.l.b16 %v78
  %v212 = vunpack.c.l.b16 %v79
  %v213 = vunpack.c.l.b16 %v80
  %v214 = vunpack.c.l.b16 %v81
  %v215 = vpack.c.b16 %v152, %v151
  %v216 = vpack.c.b16 %v154, %v153
  %v217 = vpack.c.b16 %v156, %v155
  %v218 = vpack.c.b16 %v158, %v157
  %v219 = vpack.c.b16 %v160, %v159
  %v220 = vpack.c.b16 %v162, %v161
  %v221 = vpack.c.b16 %v164, %v163
  %v222 = vpack.c.b16 %v166, %v165
  %v223 = vpack.c.b16 %v168, %v167
  %v224 = vpack.c.b16 %v170, %v169
  %v225 = vpack.c.b16 %v172, %v171
  %v226 = vpack.c.b16 %v174, %v173
  %v227 = vpack.c.b16 %v176, %v175
  %v228 = vpack.c.b16 %v178, %v177
  %v229 = vpack.c.b16 %v180, %v179
  %v230 = vpack.c.b16 %v182, %v181
  %v231 = vpack.c.b16 %v184, %v183
  %v232 = vpack.c.b16 %v186, %v185
  %v233 = vpack.c.b16 %v188, %v187
  %v234 = vpack.c.b16 %v190, %v189
  %v235 = vpack.c.b16 %v192, %v191
  %v236 = vpack.c.b16 %v194, %v193
  %v237 = vpack.c.b16 %v196, %v195
  %v238 = vpack.c.b16 %v198, %v197
  %v239 = vpack.c.b16 %v200, %v199
  %v240 = vpack.c.b16 %v202, %v201
  %v241 = vpack.c.b16 %v204, %v203
  %v242 = vpack.c.b16 %v206, %v205
  %v243 = vpack.c.b16 %v208, %v207
  %v244 = vpack.c.b16 %v210, %v209
  %v245 = vpack.c.b16 %v212, %v211
  %v246 = vpack.c.b16 %v214, %v213
  %v252 = vunpack.c.l.b16 %v82
  %v253 = vunpack.c.l.b16 %v83
  %v254 = vunpack.c.l.b16 %v84
  %v255 = vunpack.c.l.b16 %v85
  %v256 = vunpack.c.l.b16 %v86
  %v257 = vpack.c.b16 %v253, %v252
  %v258 = vpack.c.b16 %v255, %v254
  %v259 = vpack.c.b16 %v256, %v256
  %vm262 = vcmask 293888
  %v264 = vsel %vm262, %v215, 0
  %v267 = vsel %vm262, %v216, 0
  %v270 = vsel %vm262, %v217, 0
  %v273 = vsel %vm262, %v218, 0
  %v276 = vsel %vm262, %v219, 0
  %v279 = vsel %vm262, %v220, 0
  %v282 = vsel %vm262, %v221, 0
  %v285 = vsel %vm262, %v222, 0
  %v288 = vsel %vm262, %v223, 0
  %v291 = vsel %vm262, %v224, 0
  %v294 = vsel %vm262, %v225, 0
  %v297 = vsel %vm262, %v226, 0
  %v300 = vsel %vm262, %v227, 0
  %v303 = vsel %vm262, %v228, 0
  %v306 = vsel %vm262, %v229, 0
  %v309 = vsel %vm262, %v230, 0
  %v312 = vsel %vm262, %v231, 0
  %v315 = vsel %vm262, %v232, 0
  %v318 = vsel %vm262, %v233, 0
  %v321 = vsel %vm262, %v234, 0
  %v324 = vsel %vm262, %v235, 0
  %v327 = vsel %vm262, %v236, 0
  %v330 = vsel %vm262, %v237, 0
  %v333 = vsel %vm262, %v238, 0
  %v336 = vsel %vm262, %v239, 0
  %v339 = vsel %vm262, %v240, 0
  %v342 = vsel %vm262, %v241, 0
  %v345 = vsel %vm262, %v242, 0
  %v348 = vsel %vm262, %v243, 0
  %v351 = vsel %vm262, %v244, 0
  %v354 = vsel %vm262, %v245, 0
  %v357 = vsel %vm262, %v246, 0
  %vm359 = vcmask 1041408
  %v361 = vsel %vm359, %v259, 0
  %363 = vmatprep.subr.bf16.mxu0 0
  %364 = vmatpush1.bf16.msra.mxu0 %v257
  %365 = vmatprep.subr.bf16.mxu0 0
  %366 = vmatpush1.bf16.msra.mxu0 %v258
  %367 = vmatprep.subr.bf16.mxu0 0
  %368 = vmatpush1.bf16.msra.mxu0 %v361
  %369 = vmatprep.subr.bf16.mxu0 0
  %370 = vmatpush1.bf16.msra.mxu0 0
  %371 = vmatprep.subr.bf16.mxu0 0
  %372 = vmatpush1.bf16.msra.mxu0 0
  %373 = vmatprep.subr.bf16.mxu0 0
  %374 = vmatpush1.bf16.msra.mxu0 0
  %375 = vmatprep.subr.bf16.mxu0 0
  %376 = vmatpush1.bf16.msra.mxu0 0
  %377 = vmatprep.subr.bf16.mxu0 0
  %378 = vmatpush1.bf16.msra.mxu0 0
  %379 = vmatprep.subr.bf16.mxu0 0
  %380 = vmatpush1.bf16.msra.mxu0 0
  %381 = vmatprep.subr.bf16.mxu0 0
  %382 = vmatpush1.bf16.msra.mxu0 0
  %383 = vmatprep.subr.bf16.mxu0 0
  %384 = vmatpush1.bf16.msra.mxu0 0
  %385 = vmatprep.subr.bf16.mxu0 0
  %386 = vmatpush1.bf16.msra.mxu0 0
  %387 = vmatprep.subr.bf16.mxu0 0
  %388 = vmatpush1.bf16.msra.mxu0 0
  %389 = vmatprep.subr.bf16.mxu0 0
  %390 = vmatpush1.bf16.msra.mxu0 0
  %391 = vmatprep.subr.bf16.mxu0 0
  %392 = vmatpush1.bf16.msra.mxu0 0
  %393 = vmatprep.subr.bf16.mxu0 0
  %394 = vmatpush1.bf16.msra.mxu0 0
  %395 = vmatprep.mubr.bf16.mxu0 0
  %396 = vmatmul.mubr.bf16.gmra.mrb[0].mxu0 %v264
  %v397 = vpop.f32.mrb[0].mxu0
  %v398 = vadd.f32 0.0, %v397
  %v399 = vpop.f32.mrb[0].mxu0
  %v400 = vpop.f32.mrb[0].mxu0
  %v401 = vadd.f32 0.0, %v400
  %v402 = vpop.f32.mrb[0].mxu0
  %403 = vmatprep.mubr.bf16.mxu0 0
  %404 = vmatmul.mubr.bf16.gmra.mrb[0].mxu0 %v267
  %v405 = vpop.f32.mrb[0].mxu0
  %v406 = vadd.f32 0.0, %v405
  %v407 = vpop.f32.mrb[0].mxu0
  %v408 = vpop.f32.mrb[0].mxu0
  %v409 = vadd.f32 0.0, %v408
  %v410 = vpop.f32.mrb[0].mxu0
  %411 = vmatprep.mubr.bf16.mxu0 0
  %412 = vmatmul.mubr.bf16.gmra.mrb[0].mxu0 %v270
  %v413 = vpop.f32.mrb[0].mxu0
  %v414 = vadd.f32 0.0, %v413
  %v415 = vpop.f32.mrb[0].mxu0
  %v416 = vpop.f32.mrb[0].mxu0
  %v417 = vadd.f32 0.0, %v416
  %v418 = vpop.f32.mrb[0].mxu0
  %419 = vmatprep.mubr.bf16.mxu0 0
  %420 = vmatmul.mubr.bf16.gmra.mrb[0].mxu0 %v273
  %v421 = vpop.f32.mrb[0].mxu0
  %v422 = vadd.f32 0.0, %v421
  %v423 = vpop.f32.mrb[0].mxu0
  %v424 = vpop.f32.mrb[0].mxu0
  %v425 = vadd.f32 0.0, %v424
  %v426 = vpop.f32.mrb[0].mxu0
  %427 = vmatprep.mubr.bf16.mxu0 0
  %428 = vmatmul.mubr.bf16.gmra.mrb[0].mxu0 %v276
  %v429 = vpop.f32.mrb[0].mxu0
  %v430 = vadd.f32 0.0, %v429
  %v431 = vpop.f32.mrb[0].mxu0
  %v432 = vpop.f32.mrb[0].mxu0
  %v433 = vadd.f32 0.0, %v432
  %v434 = vpop.f32.mrb[0].mxu0
  %435 = vmatprep.mubr.bf16.mxu0 0
  %436 = vmatmul.mubr.bf16.gmra.mrb[0].mxu0 %v279
  %v437 = vpop.f32.mrb[0].mxu0
  %v438 = vadd.f32 0.0, %v437
  %v439 = vpop.f32.mrb[0].mxu0
  %v440 = vpop.f32.mrb[0].mxu0
  %v441 = vadd.f32 0.0, %v440
  %v442 = vpop.f32.mrb[0].mxu0
  %443 = vmatprep.mubr.bf16.mxu0 0
  %444 = vmatmul.mubr.bf16.gmra.mrb[0].mxu0 %v282
  %v445 = vpop.f32.mrb[0].mxu0
  %v446 = vadd.f32 0.0, %v445
  %v447 = vpop.f32.mrb[0].mxu0
  %v448 = vpop.f32.mrb[0].mxu0
  %v449 = vadd.f32 0.0, %v448
  %v450 = vpop.f32.mrb[0].mxu0
  %451 = vmatprep.mubr.bf16.mxu0 0
  %452 = vmatmul.mubr.bf16.gmra.mrb[0].mxu0 %v285
  %v453 = vpop.f32.mrb[0].mxu0
  %v454 = vadd.f32 0.0, %v453
  %v455 = vpop.f32.mrb[0].mxu0
  %v456 = vpop.f32.mrb[0].mxu0
  %v457 = vadd.f32 0.0, %v456
  %v458 = vpop.f32.mrb[0].mxu0
  %459 = vmatprep.mubr.bf16.mxu0 0
  %460 = vmatmul.mubr.bf16.gmra.mrb[0].mxu0 %v288
  %v461 = vpop.f32.mrb[0].mxu0
  %v462 = vadd.f32 0.0, %v461
  %v463 = vpop.f32.mrb[0].mxu0
  %v464 = vpop.f32.mrb[0].mxu0
  %v465 = vadd.f32 0.0, %v464
  %v466 = vpop.f32.mrb[0].mxu0
  %467 = vmatprep.mubr.bf16.mxu0 0
  %468 = vmatmul.mubr.bf16.gmra.mrb[0].mxu0 %v291
  %v469 = vpop.f32.mrb[0].mxu0
  %v470 = vadd.f32 0.0, %v469
  %v471 = vpop.f32.mrb[0].mxu0
  %v472 = vpop.f32.mrb[0].mxu0
  %v473 = vadd.f32 0.0, %v472
  %v474 = vpop.f32.mrb[0].mxu0
  %475 = vmatprep.mubr.bf16.mxu0 0
  %476 = vmatmul.mubr.bf16.gmra.mrb[0].mxu0 %v294
  %v477 = vpop.f32.mrb[0].mxu0
  %v478 = vadd.f32 0.0, %v477
  %v479 = vpop.f32.mrb[0].mxu0
  %v480 = vpop.f32.mrb[0].mxu0
  %v481 = vadd.f32 0.0, %v480
  %v482 = vpop.f32.mrb[0].mxu0
  %483 = vmatprep.mubr.bf16.mxu0 0
  %484 = vmatmul.mubr.bf16.gmra.mrb[0].mxu0 %v297
  %v485 = vpop.f32.mrb[0].mxu0
  %v486 = vadd.f32 0.0, %v485
  %v487 = vpop.f32.mrb[0].mxu0
  %v488 = vpop.f32.mrb[0].mxu0
  %v489 = vadd.f32 0.0, %v488
  %v490 = vpop.f32.mrb[0].mxu0
  %491 = vmatprep.mubr.bf16.mxu0 0
  %492 = vmatmul.mubr.bf16.gmra.mrb[0].mxu0 %v300
  %v493 = vpop.f32.mrb[0].mxu0
  %v494 = vadd.f32 0.0, %v493
  %v495 = vpop.f32.mrb[0].mxu0
  %v496 = vpop.f32.mrb[0].mxu0
  %v497 = vadd.f32 0.0, %v496
  %v498 = vpop.f32.mrb[0].mxu0
  %499 = vmatprep.mubr.bf16.mxu0 0
  %500 = vmatmul.mubr.bf16.gmra.mrb[0].mxu0 %v303
  %v501 = vpop.f32.mrb[0].mxu0
  %v502 = vadd.f32 0.0, %v501
  %v503 = vpop.f32.mrb[0].mxu0
  %v504 = vpop.f32.mrb[0].mxu0
  %v505 = vadd.f32 0.0, %v504
  %v506 = vpop.f32.mrb[0].mxu0
  %507 = vmatprep.mubr.bf16.mxu0 0
  %508 = vmatmul.mubr.bf16.gmra.mrb[0].mxu0 %v306
  %v509 = vpop.f32.mrb[0].mxu0
  %v510 = vadd.f32 0.0, %v509
  %v511 = vpop.f32.mrb[0].mxu0
  %v512 = vpop.f32.mrb[0].mxu0
  %v513 = vadd.f32 0.0, %v512
  %v514 = vpop.f32.mrb[0].mxu0
  %515 = vmatprep.mubr.bf16.mxu0 0
  %516 = vmatmul.mubr.bf16.gmra.mrb[0].mxu0 %v309
  %v517 = vpop.f32.mrb[0].mxu0
  %v518 = vadd.f32 0.0, %v517
  %v519 = vpop.f32.mrb[0].mxu0
  %v520 = vpop.f32.mrb[0].mxu0
  %v521 = vadd.f32 0.0, %v520
  %v522 = vpop.f32.mrb[0].mxu0
  %523 = vmatprep.mubr.bf16.mxu0 0
  %524 = vmatmul.mubr.bf16.gmra.mrb[0].mxu0 %v312
  %v525 = vpop.f32.mrb[0].mxu0
  %v526 = vadd.f32 0.0, %v525
  %v527 = vpop.f32.mrb[0].mxu0
  %v528 = vpop.f32.mrb[0].mxu0
  %v529 = vadd.f32 0.0, %v528
  %v530 = vpop.f32.mrb[0].mxu0
  %531 = vmatprep.mubr.bf16.mxu0 0
  %532 = vmatmul.mubr.bf16.gmra.mrb[0].mxu0 %v315
  %v533 = vpop.f32.mrb[0].mxu0
  %v534 = vadd.f32 0.0, %v533
  %v535 = vpop.f32.mrb[0].mxu0
  %v536 = vpop.f32.mrb[0].mxu0
  %v537 = vadd.f32 0.0, %v536
  %v538 = vpop.f32.mrb[0].mxu0
  %539 = vmatprep.mubr.bf16.mxu0 0
  %540 = vmatmul.mubr.bf16.gmra.mrb[0].mxu0 %v318
  %v541 = vpop.f32.mrb[0].mxu0
  %v542 = vadd.f32 0.0, %v541
  %v543 = vpop.f32.mrb[0].mxu0
  %v544 = vpop.f32.mrb[0].mxu0
  %v545 = vadd.f32 0.0, %v544
  %v546 = vpop.f32.mrb[0].mxu0
  %547 = vmatprep.mubr.bf16.mxu0 0
  %548 = vmatmul.mubr.bf16.gmra.mrb[0].mxu0 %v321
  %v549 = vpop.f32.mrb[0].mxu0
  %v550 = vadd.f32 0.0, %v549
  %v551 = vpop.f32.mrb[0].mxu0
  %v552 = vpop.f32.mrb[0].mxu0
  %v553 = vadd.f32 0.0, %v552
  %v554 = vpop.f32.mrb[0].mxu0
  %555 = vmatprep.mubr.bf16.mxu0 0
  %556 = vmatmul.mubr.bf16.gmra.mrb[0].mxu0 %v324
  %v557 = vpop.f32.mrb[0].mxu0
  %v558 = vadd.f32 0.0, %v557
  %v559 = vpop.f32.mrb[0].mxu0
  %v560 = vpop.f32.mrb[0].mxu0
  %v561 = vadd.f32 0.0, %v560
  %v562 = vpop.f32.mrb[0].mxu0
  %563 = vmatprep.mubr.bf16.mxu0 0
  %564 = vmatmul.mubr.bf16.gmra.mrb[0].mxu0 %v327
  %v565 = vpop.f32.mrb[0].mxu0
  %v566 = vadd.f32 0.0, %v565
  %v567 = vpop.f32.mrb[0].mxu0
  %v568 = vpop.f32.mrb[0].mxu0
  %v569 = vadd.f32 0.0, %v568
  %v570 = vpop.f32.mrb[0].mxu0
  %571 = vmatprep.mubr.bf16.mxu0 0
  %572 = vmatmul.mubr.bf16.gmra.mrb[0].mxu0 %v330
  %v573 = vpop.f32.mrb[0].mxu0
  %v574 = vadd.f32 0.0, %v573
  %v575 = vpop.f32.mrb[0].mxu0
  %v576 = vpop.f32.mrb[0].mxu0
  %v577 = vadd.f32 0.0, %v576
  %v578 = vpop.f32.mrb[0].mxu0
  %579 = vmatprep.mubr.bf16.mxu0 0
  %580 = vmatmul.mubr.bf16.gmra.mrb[0].mxu0 %v333
  %v581 = vpop.f32.mrb[0].mxu0
  %v582 = vadd.f32 0.0, %v581
  %v583 = vpop.f32.mrb[0].mxu0
  %v584 = vpop.f32.mrb[0].mxu0
  %v585 = vadd.f32 0.0, %v584
  %v586 = vpop.f32.mrb[0].mxu0
  %587 = vmatprep.mubr.bf16.mxu0 0
  %588 = vmatmul.mubr.bf16.gmra.mrb[0].mxu0 %v336
  %v589 = vpop.f32.mrb[0].mxu0
  %v590 = vadd.f32 0.0, %v589
  %v591 = vpop.f32.mrb[0].mxu0
  %v592 = vpop.f32.mrb[0].mxu0
  %v593 = vadd.f32 0.0, %v592
  %v594 = vpop.f32.mrb[0].mxu0
  %595 = vmatprep.mubr.bf16.mxu0 0
  %596 = vmatmul.mubr.bf16.gmra.mrb[0].mxu0 %v339
  %v597 = vpop.f32.mrb[0].mxu0
  %v598 = vadd.f32 0.0, %v597
  %v599 = vpop.f32.mrb[0].mxu0
  %v600 = vpop.f32.mrb[0].mxu0
  %v601 = vadd.f32 0.0, %v600
  %v602 = vpop.f32.mrb[0].mxu0
  %603 = vmatprep.mubr.bf16.mxu0 0
  %604 = vmatmul.mubr.bf16.gmra.mrb[0].mxu0 %v342
  %v605 = vpop.f32.mrb[0].mxu0
  %v606 = vadd.f32 0.0, %v605
  %v607 = vpop.f32.mrb[0].mxu0
  %v608 = vpop.f32.mrb[0].mxu0
  %v609 = vadd.f32 0.0, %v608
  %v610 = vpop.f32.mrb[0].mxu0
  %611 = vmatprep.mubr.bf16.mxu0 0
  %612 = vmatmul.mubr.bf16.gmra.mrb[0].mxu0 %v345
  %v613 = vpop.f32.mrb[0].mxu0
  %v614 = vadd.f32 0.0, %v613
  %v615 = vpop.f32.mrb[0].mxu0
  %v616 = vpop.f32.mrb[0].mxu0
  %v617 = vadd.f32 0.0, %v616
  %v618 = vpop.f32.mrb[0].mxu0
  %619 = vmatprep.mubr.bf16.mxu0 0
  %620 = vmatmul.mubr.bf16.gmra.mrb[0].mxu0 %v348
  %v621 = vpop.f32.mrb[0].mxu0
  %v622 = vadd.f32 0.0, %v621
  %v623 = vpop.f32.mrb[0].mxu0
  %v624 = vpop.f32.mrb[0].mxu0
  %v625 = vadd.f32 0.0, %v624
  %v626 = vpop.f32.mrb[0].mxu0
  %627 = vmatprep.mubr.bf16.mxu0 0
  %628 = vmatmul.mubr.bf16.gmra.mrb[0].mxu0 %v351
  %v629 = vpop.f32.mrb[0].mxu0
  %v630 = vadd.f32 0.0, %v629
  %v631 = vpop.f32.mrb[0].mxu0
  %v632 = vpop.f32.mrb[0].mxu0
  %v633 = vadd.f32 0.0, %v632
  %v634 = vpop.f32.mrb[0].mxu0
  %635 = vmatprep.mubr.bf16.mxu0 0
  %636 = vmatmul.mubr.bf16.gmra.mrb[0].mxu0 %v354
  %v637 = vpop.f32.mrb[0].mxu0
  %v638 = vadd.f32 0.0, %v637
  %v639 = vpop.f32.mrb[0].mxu0
  %v640 = vpop.f32.mrb[0].mxu0
  %v641 = vadd.f32 0.0, %v640
  %v642 = vpop.f32.mrb[0].mxu0
  %643 = vmatprep.mubr.bf16.mxu0 0
  %644 = vmatmul.mubr.bf16.gmra.mrb[0].mxu0 %v357
  %v645 = vpop.f32.mrb[0].mxu0
  %v646 = vadd.f32 0.0, %v645
  %v647 = vpop.f32.mrb[0].mxu0
  %v648 = vpop.f32.mrb[0].mxu0
  %v649 = vadd.f32 0.0, %v648
  %v650 = vpop.f32.mrb[0].mxu0
  %651 = vdwg.mxu0
  %v652 = vld [vmem:[%s2] sm:$0x1]
  %v654 = vlaneseq
  %v655 = vshrl.u32 %v654, 7
  %v656 = vsub.s32 0, %v655
  %v657 = vrot.slane %v652, %v656
  %v659 = vmul.f32 %v398, %v657
  %v660 = vmul.f32 %v401, %v657
  %v661 = vmul.f32 %v406, %v657
  %v662 = vmul.f32 %v409, %v657
  %v663 = vmul.f32 %v414, %v657
  %v664 = vmul.f32 %v417, %v657
  %v665 = vmul.f32 %v422, %v657
  %v666 = vmul.f32 %v425, %v657
  %v667 = vmul.f32 %v430, %v657
  %v668 = vmul.f32 %v433, %v657
  %v669 = vmul.f32 %v438, %v657
  %v670 = vmul.f32 %v441, %v657
  %v671 = vmul.f32 %v446, %v657
  %v672 = vmul.f32 %v449, %v657
  %v673 = vmul.f32 %v454, %v657
  %v674 = vmul.f32 %v457, %v657
  %v675 = vmul.f32 %v462, %v657
  %v676 = vmul.f32 %v465, %v657
  %v677 = vmul.f32 %v470, %v657
  %v678 = vmul.f32 %v473, %v657
  %v679 = vmul.f32 %v478, %v657
  %v680 = vmul.f32 %v481, %v657
  %v681 = vmul.f32 %v486, %v657
  %v682 = vmul.f32 %v489, %v657
  %v683 = vmul.f32 %v494, %v657
  %v684 = vmul.f32 %v497, %v657
  %v685 = vmul.f32 %v502, %v657
  %v686 = vmul.f32 %v505, %v657
  %v687 = vmul.f32 %v510, %v657
  %v688 = vmul.f32 %v513, %v657
  %v689 = vmul.f32 %v518, %v657
  %v690 = vmul.f32 %v521, %v657
  %v691 = vmul.f32 %v526, %v657
  %v692 = vmul.f32 %v529, %v657
  %v693 = vmul.f32 %v534, %v657
  %v694 = vmul.f32 %v537, %v657
  %v695 = vmul.f32 %v542, %v657
  %v696 = vmul.f32 %v545, %v657
  %v697 = vmul.f32 %v550, %v657
  %v698 = vmul.f32 %v553, %v657
  %v699 = vmul.f32 %v558, %v657
  %v700 = vmul.f32 %v561, %v657
  %v701 = vmul.f32 %v566, %v657
  %v702 = vmul.f32 %v569, %v657
  %v703 = vmul.f32 %v574, %v657
  %v704 = vmul.f32 %v577, %v657
  %v705 = vmul.f32 %v582, %v657
  %v706 = vmul.f32 %v585, %v657
  %v707 = vmul.f32 %v590, %v657
  %v708 = vmul.f32 %v593, %v657
  %v709 = vmul.f32 %v598, %v657
  %v710 = vmul.f32 %v601, %v657
  %v711 = vmul.f32 %v606, %v657
  %v712 = vmul.f32 %v609, %v657
  %v713 = vmul.f32 %v614, %v657
  %v714 = vmul.f32 %v617, %v657
  %v715 = vmul.f32 %v622, %v657
  %v716 = vmul.f32 %v625, %v657
  %v717 = vmul.f32 %v630, %v657
  %v718 = vmul.f32 %v633, %v657
  %v719 = vmul.f32 %v638, %v657
  %v720 = vmul.f32 %v641, %v657
  %v721 = vmul.f32 %v646, %v657
  %v722 = vmul.f32 %v649, %v657
  %v723 = vld [vmem:[%s3] sm:$0x1]
  %v725 = vlaneseq
  %v726 = vshrl.u32 %v725, 7
  %v727 = vsub.s32 0, %v726
  %v728 = vrot.slane %v723, %v727
  %v730 = vadd.f32 %v659, %v728
  %v731 = vadd.f32 %v660, %v728
  %v732 = vadd.f32 %v661, %v728
  %v733 = vadd.f32 %v662, %v728
  %v734 = vadd.f32 %v663, %v728
  %v735 = vadd.f32 %v664, %v728
  %v736 = vadd.f32 %v665, %v728
  %v737 = vadd.f32 %v666, %v728
  %v738 = vadd.f32 %v667, %v728
  %v739 = vadd.f32 %v668, %v728
  %v740 = vadd.f32 %v669, %v728
  %v741 = vadd.f32 %v670, %v728
  %v742 = vadd.f32 %v671, %v728
  %v743 = vadd.f32 %v672, %v728
  %v744 = vadd.f32 %v673, %v728
  %v745 = vadd.f32 %v674, %v728
  %v746 = vadd.f32 %v675, %v728
  %v747 = vadd.f32 %v676, %v728
  %v748 = vadd.f32 %v677, %v728
  %v749 = vadd.f32 %v678, %v728
  %v750 = vadd.f32 %v679, %v728
  %v751 = vadd.f32 %v680, %v728
  %v752 = vadd.f32 %v681, %v728
  %v753 = vadd.f32 %v682, %v728
  %v754 = vadd.f32 %v683, %v728
  %v755 = vadd.f32 %v684, %v728
  %v756 = vadd.f32 %v685, %v728
  %v757 = vadd.f32 %v686, %v728
  %v758 = vadd.f32 %v687, %v728
  %v759 = vadd.f32 %v688, %v728
  %v760 = vadd.f32 %v689, %v728
  %v761 = vadd.f32 %v690, %v728
  %v762 = vadd.f32 %v691, %v728
  %v763 = vadd.f32 %v692, %v728
  %v764 = vadd.f32 %v693, %v728
  %v765 = vadd.f32 %v694, %v728
  %v766 = vadd.f32 %v695, %v728
  %v767 = vadd.f32 %v696, %v728
  %v768 = vadd.f32 %v697, %v728
  %v769 = vadd.f32 %v698, %v728
  %v770 = vadd.f32 %v699, %v728
  %v771 = vadd.f32 %v700, %v728
  %v772 = vadd.f32 %v701, %v728
  %v773 = vadd.f32 %v702, %v728
  %v774 = vadd.f32 %v703, %v728
  %v775 = vadd.f32 %v704, %v728
  %v776 = vadd.f32 %v705, %v728
  %v777 = vadd.f32 %v706, %v728
  %v778 = vadd.f32 %v707, %v728
  %v779 = vadd.f32 %v708, %v728
  %v780 = vadd.f32 %v709, %v728
  %v781 = vadd.f32 %v710, %v728
  %v782 = vadd.f32 %v711, %v728
  %v783 = vadd.f32 %v712, %v728
  %v784 = vadd.f32 %v713, %v728
  %v785 = vadd.f32 %v714, %v728
  %v786 = vadd.f32 %v715, %v728
  %v787 = vadd.f32 %v716, %v728
  %v788 = vadd.f32 %v717, %v728
  %v789 = vadd.f32 %v718, %v728
  %v790 = vadd.f32 %v719, %v728
  %v791 = vadd.f32 %v720, %v728
  %v792 = vadd.f32 %v721, %v728
  %v793 = vadd.f32 %v722, %v728
  %v794 = vmax.f32 %v730, 0.0
  %v795 = vmax.f32 %v731, 0.0
  %v796 = vmax.f32 %v732, 0.0
  %v797 = vmax.f32 %v733, 0.0
  %v798 = vmax.f32 %v734, 0.0
  %v799 = vmax.f32 %v735, 0.0
  %v800 = vmax.f32 %v736, 0.0
  %v801 = vmax.f32 %v737, 0.0
  %v802 = vmax.f32 %v738, 0.0
  %v803 = vmax.f32 %v739, 0.0
  %v804 = vmax.f32 %v740, 0.0
  %v805 = vmax.f32 %v741, 0.0
  %v806 = vmax.f32 %v742, 0.0
  %v807 = vmax.f32 %v743, 0.0
  %v808 = vmax.f32 %v744, 0.0
  %v809 = vmax.f32 %v745, 0.0
  %v810 = vmax.f32 %v746, 0.0
  %v811 = vmax.f32 %v747, 0.0
  %v812 = vmax.f32 %v748, 0.0
  %v813 = vmax.f32 %v749, 0.0
  %v814 = vmax.f32 %v750, 0.0
  %v815 = vmax.f32 %v751, 0.0
  %v816 = vmax.f32 %v752, 0.0
  %v817 = vmax.f32 %v753, 0.0
  %v818 = vmax.f32 %v754, 0.0
  %v819 = vmax.f32 %v755, 0.0
  %v820 = vmax.f32 %v756, 0.0
  %v821 = vmax.f32 %v757, 0.0
  %v822 = vmax.f32 %v758, 0.0
  %v823 = vmax.f32 %v759, 0.0
  %v824 = vmax.f32 %v760, 0.0
  %v825 = vmax.f32 %v761, 0.0
  %v826 = vmax.f32 %v762, 0.0
  %v827 = vmax.f32 %v763, 0.0
  %v828 = vmax.f32 %v764, 0.0
  %v829 = vmax.f32 %v765, 0.0
  %v830 = vmax.f32 %v766, 0.0
  %v831 = vmax.f32 %v767, 0.0
  %v832 = vmax.f32 %v768, 0.0
  %v833 = vmax.f32 %v769, 0.0
  %v834 = vmax.f32 %v770, 0.0
  %v835 = vmax.f32 %v771, 0.0
  %v836 = vmax.f32 %v772, 0.0
  %v837 = vmax.f32 %v773, 0.0
  %v838 = vmax.f32 %v774, 0.0
  %v839 = vmax.f32 %v775, 0.0
  %v840 = vmax.f32 %v776, 0.0
  %v841 = vmax.f32 %v777, 0.0
  %v842 = vmax.f32 %v778, 0.0
  %v843 = vmax.f32 %v779, 0.0
  %v844 = vmax.f32 %v780, 0.0
  %v845 = vmax.f32 %v781, 0.0
  %v846 = vmax.f32 %v782, 0.0
  %v847 = vmax.f32 %v783, 0.0
  %v848 = vmax.f32 %v784, 0.0
  %v849 = vmax.f32 %v785, 0.0
  %v850 = vmax.f32 %v786, 0.0
  %v851 = vmax.f32 %v787, 0.0
  %v852 = vmax.f32 %v788, 0.0
  %v853 = vmax.f32 %v789, 0.0
  %v854 = vmax.f32 %v790, 0.0
  %v855 = vmax.f32 %v791, 0.0
  %v856 = vmax.f32 %v792, 0.0
  %v857 = vmax.f32 %v793, 0.0
  %vm858 = vcmask 130048
  %859 = vst.msk [vmem:[%s4] sm:$0xff] %vm858, %v794
  %860 = vst.msk [vmem:[%s4 + $0x8] sm:$0xff] %vm858, %v795
  %861 = vst.msk [vmem:[%s4 + $0x10] sm:$0xff] %vm858, %v796
  %862 = vst.msk [vmem:[%s4 + $0x18] sm:$0xff] %vm858, %v797
  %863 = vst.msk [vmem:[%s4 + $0x20] sm:$0xff] %vm858, %v798
  %864 = vst.msk [vmem:[%s4 + $0x28] sm:$0xff] %vm858, %v799
  %865 = vst.msk [vmem:[%s4 + $0x30] sm:$0xff] %vm858, %v800
  %866 = vst.msk [vmem:[%s4 + $0x38] sm:$0xff] %vm858, %v801
  %867 = vst.msk [vmem:[%s4 + $0x40] sm:$0xff] %vm858, %v802
  %868 = vst.msk [vmem:[%s4 + $0x48] sm:$0xff] %vm858, %v803
  %869 = vst.msk [vmem:[%s4 + $0x50] sm:$0xff] %vm858, %v804
  %870 = vst.msk [vmem:[%s4 + $0x58] sm:$0xff] %vm858, %v805
  %871 = vst.msk [vmem:[%s4 + $0x60] sm:$0xff] %vm858, %v806
  %872 = vst.msk [vmem:[%s4 + $0x68] sm:$0xff] %vm858, %v807
  %873 = vst.msk [vmem:[%s4 + $0x70] sm:$0xff] %vm858, %v808
  %874 = vst.msk [vmem:[%s4 + $0x78] sm:$0xff] %vm858, %v809
  %875 = vst.msk [vmem:[%s4 + $0x80] sm:$0xff] %vm858, %v810
  %876 = vst.msk [vmem:[%s4 + $0x88] sm:$0xff] %vm858, %v811
  %877 = vst.msk [vmem:[%s4 + $0x90] sm:$0xff] %vm858, %v812
  %878 = vst.msk [vmem:[%s4 + $0x98] sm:$0xff] %vm858, %v813
  %879 = vst.msk [vmem:[%s4 + $0xa0] sm:$0xff] %vm858, %v814
  %880 = vst.msk [vmem:[%s4 + $0xa8] sm:$0xff] %vm858, %v815
  %881 = vst.msk [vmem:[%s4 + $0xb0] sm:$0xff] %vm858, %v816
  %882 = vst.msk [vmem:[%s4 + $0xb8] sm:$0xff] %vm858, %v817
  %883 = vst.msk [vmem:[%s4 + $0xc0] sm:$0xff] %vm858, %v818
  %884 = vst.msk [vmem:[%s4 + $0xc8] sm:$0xff] %vm858, %v819
  %885 = vst.msk [vmem:[%s4 + $0xd0] sm:$0xff] %vm858, %v820
  %886 = vst.msk [vmem:[%s4 + $0xd8] sm:$0xff] %vm858, %v821
  %887 = vst.msk [vmem:[%s4 + $0xe0] sm:$0xff] %vm858, %v822
  %888 = vst.msk [vmem:[%s4 + $0xe8] sm:$0xff] %vm858, %v823
  %889 = vst.msk [vmem:[%s4 + $0xf0] sm:$0xff] %vm858, %v824
  %890 = vst.msk [vmem:[%s4 + $0xf8] sm:$0xff] %vm858, %v825
  %891 = vst.msk [vmem:[%s4 + $0x100] sm:$0xff] %vm858, %v826
  %892 = vst.msk [vmem:[%s4 + $0x108] sm:$0xff] %vm858, %v827
  %893 = vst.msk [vmem:[%s4 + $0x110] sm:$0xff] %vm858, %v828
  %894 = vst.msk [vmem:[%s4 + $0x118] sm:$0xff] %vm858, %v829
  %895 = vst.msk [vmem:[%s4 + $0x120] sm:$0xff] %vm858, %v830
  %896 = vst.msk [vmem:[%s4 + $0x128] sm:$0xff] %vm858, %v831
  %897 = vst.msk [vmem:[%s4 + $0x130] sm:$0xff] %vm858, %v832
  %898 = vst.msk [vmem:[%s4 + $0x138] sm:$0xff] %vm858, %v833
  %899 = vst.msk [vmem:[%s4 + $0x140] sm:$0xff] %vm858, %v834
  %900 = vst.msk [vmem:[%s4 + $0x148] sm:$0xff] %vm858, %v835
  %901 = vst.msk [vmem:[%s4 + $0x150] sm:$0xff] %vm858, %v836
  %902 = vst.msk [vmem:[%s4 + $0x158] sm:$0xff] %vm858, %v837
  %903 = vst.msk [vmem:[%s4 + $0x160] sm:$0xff] %vm858, %v838
  %904 = vst.msk [vmem:[%s4 + $0x168] sm:$0xff] %vm858, %v839
  %905 = vst.msk [vmem:[%s4 + $0x170] sm:$0xff] %vm858, %v840
  %906 = vst.msk [vmem:[%s4 + $0x178] sm:$0xff] %vm858, %v841
  %907 = vst.msk [vmem:[%s4 + $0x180] sm:$0xff] %vm858, %v842
  %908 = vst.msk [vmem:[%s4 + $0x188] sm:$0xff] %vm858, %v843
  %909 = vst.msk [vmem:[%s4 + $0x190] sm:$0xff] %vm858, %v844
  %910 = vst.msk [vmem:[%s4 + $0x198] sm:$0xff] %vm858, %v845
  %911 = vst.msk [vmem:[%s4 + $0x1a0] sm:$0xff] %vm858, %v846
  %912 = vst.msk [vmem:[%s4 + $0x1a8] sm:$0xff] %vm858, %v847
  %913 = vst.msk [vmem:[%s4 + $0x1b0] sm:$0xff] %vm858, %v848
  %914 = vst.msk [vmem:[%s4 + $0x1b8] sm:$0xff] %vm858, %v849
  %915 = vst.msk [vmem:[%s4 + $0x1c0] sm:$0xff] %vm858, %v850
  %916 = vst.msk [vmem:[%s4 + $0x1c8] sm:$0xff] %vm858, %v851
  %917 = vst.msk [vmem:[%s4 + $0x1d0] sm:$0xff] %vm858, %v852
  %918 = vst.msk [vmem:[%s4 + $0x1d8] sm:$0xff] %vm858, %v853
  %919 = vst.msk [vmem:[%s4 + $0x1e0] sm:$0xff] %vm858, %v854
  %920 = vst.msk [vmem:[%s4 + $0x1e8] sm:$0xff] %vm858, %v855
  %921 = vst.msk [vmem:[%s4 + $0x1f0] sm:$0xff] %vm858, %v856
  %922 = vst.msk [vmem:[%s4 + $0x1f8] sm:$0xff] %vm858, %v857
  // Predicated region
  $region18: #{unet_forward.20} parent=0 // pred_check
    _
  $region19: #{unet_forward.20} parent=0 // pred_check_branch
    %924 = sbr.rel (0) target = $region21
  $region20: #{unet_forward.20} parent=0 // pred_region
    _
  $region21: #{unet_forward.20} parent=0 // pred_fallthru
    _
  // Predicated region
  $region22: #{unet_forward.20} parent=0 // pred_check
    _
  $region23: #{unet_forward.20} parent=0 // pred_check_branch
    %926 = sbr.rel (0) target = $region25
  $region24: #{unet_forward.20} parent=0 // pred_region
    _
  $region25: #{unet_forward.20} parent=0 // pred_fallthru
    _

// kernel: unet_forward.21
$region0: #{unet_forward.21}
  #allocation0 [shape = 'u32[]', space=smem, size = 0x4, offset = 0x4, fixed_abs, tag = 'smem constant byte address 0x4 - core index']
  #allocation1 [shape = 'u32[144,128]{1,0:T(1,128)}', space=vmem, size = 0x12000, scoped, tag = 'internal scratch']
  %s0 = inlined_call_operand.vmem [shape: bf16[512,144], index: 0, kind: input, shape index: {}]
  %s1 = inlined_call_operand.vmem [shape: bf16[144,16], index: 1, kind: input, shape index: {}]
  %s2 = inlined_call_operand.vmem [shape: f32[1,16], index: 2, kind: input, shape index: {}]
  %s3 = inlined_call_operand.vmem [shape: f32[1,16], index: 3, kind: input, shape index: {}]
  %s4 = inlined_call_operand.vmem [shape: f32[512,16], index: 4, kind: output, shape index: {}]
  %s5 = sld [smem:[#allocation0]]
  $region26: #{unet_forward.21} parent=0
    _
  %s7 = ssub.s32 1, %s5
  %s8 = scalar_select 0, %s7, %s5
  // Predicated region
  $region2: #{unet_forward.21} parent=0 // pred_check
    _
  $region3: #{unet_forward.21} parent=0 // pred_check_branch
    %10 = sbr.rel (0) target = $region5
  $region4: #{unet_forward.21} parent=0 // pred_region
    _
  $region5: #{unet_forward.21} parent=0 // pred_fallthru
    _
  // Predicated region
  $region6: #{unet_forward.21} parent=0 // pred_check
    _
  $region7: #{unet_forward.21} parent=0 // pred_check_branch
    %12 = sbr.rel (0) target = $region9
  $region8: #{unet_forward.21} parent=0 // pred_region
    _
  $region9: #{unet_forward.21} parent=0 // pred_fallthru
    _
  // Predicated region
  $region10: #{unet_forward.21} parent=0 // pred_check
    _
  $region11: #{unet_forward.21} parent=0 // pred_check_branch
    %14 = sbr.rel (0) target = $region13
  $region12: #{unet_forward.21} parent=0 // pred_region
    _
  $region13: #{unet_forward.21} parent=0 // pred_fallthru
    _
  // Predicated region
  $region14: #{unet_forward.21} parent=0 // pred_check
    _
  $region15: #{unet_forward.21} parent=0 // pred_check_branch
    %16 = sbr.rel (0) target = $region17
  $region16: #{unet_forward.21} parent=0 // pred_region
    _
  $region17: #{unet_forward.21} parent=0 // pred_fallthru
    _
  %v18 = vld [vmem:[%s0] sm:$0xff]
  %v19 = vld [vmem:[%s0 + $0x8] sm:$0xff]
  %v20 = vld [vmem:[%s0 + $0x10] sm:$0xff]
  %v21 = vld [vmem:[%s0 + $0x18] sm:$0xff]
  %v22 = vld [vmem:[%s0 + $0x20] sm:$0xff]
  %v23 = vld [vmem:[%s0 + $0x28] sm:$0xff]
  %v24 = vld [vmem:[%s0 + $0x30] sm:$0xff]
  %v25 = vld [vmem:[%s0 + $0x38] sm:$0xff]
  %v26 = vld [vmem:[%s0 + $0x40] sm:$0xff]
  %v27 = vld [vmem:[%s0 + $0x48] sm:$0xff]
  %v28 = vld [vmem:[%s0 + $0x50] sm:$0xff]
  %v29 = vld [vmem:[%s0 + $0x58] sm:$0xff]
  %v30 = vld [vmem:[%s0 + $0x60] sm:$0xff]
  %v31 = vld [vmem:[%s0 + $0x68] sm:$0xff]
  %v32 = vld [vmem:[%s0 + $0x70] sm:$0xff]
  %v33 = vld [vmem:[%s0 + $0x78] sm:$0xff]
  %v34 = vld [vmem:[%s0 + $0x80] sm:$0xff]
  %v35 = vld [vmem:[%s0 + $0x88] sm:$0xff]
  %v36 = vld [vmem:[%s0 + $0x90] sm:$0xff]
  %v37 = vld [vmem:[%s0 + $0x98] sm:$0xff]
  %v38 = vld [vmem:[%s0 + $0xa0] sm:$0xff]
  %v39 = vld [vmem:[%s0 + $0xa8] sm:$0xff]
  %v40 = vld [vmem:[%s0 + $0xb0] sm:$0xff]
  %v41 = vld [vmem:[%s0 + $0xb8] sm:$0xff]
  %v42 = vld [vmem:[%s0 + $0xc0] sm:$0xff]
  %v43 = vld [vmem:[%s0 + $0xc8] sm:$0xff]
  %v44 = vld [vmem:[%s0 + $0xd0] sm:$0xff]
  %v45 = vld [vmem:[%s0 + $0xd8] sm:$0xff]
  %v46 = vld [vmem:[%s0 + $0xe0] sm:$0xff]
  %v47 = vld [vmem:[%s0 + $0xe8] sm:$0xff]
  %v48 = vld [vmem:[%s0 + $0xf0] sm:$0xff]
  %v49 = vld [vmem:[%s0 + $0xf8] sm:$0xff]
  %v50 = vld [vmem:[%s0 + $0x100] sm:$0xff]
  %v51 = vld [vmem:[%s0 + $0x108] sm:$0xff]
  %v52 = vld [vmem:[%s0 + $0x110] sm:$0xff]
  %v53 = vld [vmem:[%s0 + $0x118] sm:$0xff]
  %v54 = vld [vmem:[%s0 + $0x120] sm:$0xff]
  %v55 = vld [vmem:[%s0 + $0x128] sm:$0xff]
  %v56 = vld [vmem:[%s0 + $0x130] sm:$0xff]
  %v57 = vld [vmem:[%s0 + $0x138] sm:$0xff]
  %v58 = vld [vmem:[%s0 + $0x140] sm:$0xff]
  %v59 = vld [vmem:[%s0 + $0x148] sm:$0xff]
  %v60 = vld [vmem:[%s0 + $0x150] sm:$0xff]
  %v61 = vld [vmem:[%s0 + $0x158] sm:$0xff]
  %v62 = vld [vmem:[%s0 + $0x160] sm:$0xff]
  %v63 = vld [vmem:[%s0 + $0x168] sm:$0xff]
  %v64 = vld [vmem:[%s0 + $0x170] sm:$0xff]
  %v65 = vld [vmem:[%s0 + $0x178] sm:$0xff]
  %v66 = vld [vmem:[%s0 + $0x180] sm:$0xff]
  %v67 = vld [vmem:[%s0 + $0x188] sm:$0xff]
  %v68 = vld [vmem:[%s0 + $0x190] sm:$0xff]
  %v69 = vld [vmem:[%s0 + $0x198] sm:$0xff]
  %v70 = vld [vmem:[%s0 + $0x1a0] sm:$0xff]
  %v71 = vld [vmem:[%s0 + $0x1a8] sm:$0xff]
  %v72 = vld [vmem:[%s0 + $0x1b0] sm:$0xff]
  %v73 = vld [vmem:[%s0 + $0x1b8] sm:$0xff]
  %v74 = vld [vmem:[%s0 + $0x1c0] sm:$0xff]
  %v75 = vld [vmem:[%s0 + $0x1c8] sm:$0xff]
  %v76 = vld [vmem:[%s0 + $0x1d0] sm:$0xff]
  %v77 = vld [vmem:[%s0 + $0x1d8] sm:$0xff]
  %v78 = vld [vmem:[%s0 + $0x1e0] sm:$0xff]
  %v79 = vld [vmem:[%s0 + $0x1e8] sm:$0xff]
  %v80 = vld [vmem:[%s0 + $0x1f0] sm:$0xff]
  %v81 = vld [vmem:[%s0 + $0x1f8] sm:$0xff]
  %v82 = vld [vmem:[%s1] sm:$0xf]
  %v83 = vld [vmem:[%s1 + $0x4] sm:$0xf]
  %v84 = vld [vmem:[%s1 + $0x8] sm:$0xf]
  %v85 = vld [vmem:[%s1 + $0xc] sm:$0xf]
  %v86 = vld [vmem:[%s1 + $0x10] sm:$0xf]
  %v87 = vld [vmem:[%s1 + $0x14] sm:$0xf]
  %v88 = vld [vmem:[%s1 + $0x18] sm:$0xf]
  %v89 = vld [vmem:[%s1 + $0x1c] sm:$0xf]
  %v90 = vld [vmem:[%s1 + $0x20] sm:$0xf]
  %v91 = vld [vmem:[%s1 + $0x24] sm:$0xf]
  %v92 = vld [vmem:[%s1 + $0x28] sm:$0xf]
  %v93 = vld [vmem:[%s1 + $0x2c] sm:$0xf]
  %v94 = vld [vmem:[%s1 + $0x30] sm:$0xf]
  %v95 = vld [vmem:[%s1 + $0x34] sm:$0xf]
  %v96 = vld [vmem:[%s1 + $0x38] sm:$0xf]
  %v97 = vld [vmem:[%s1 + $0x3c] sm:$0xf]
  %v98 = vld [vmem:[%s1 + $0x40] sm:$0xf]
  %v99 = vld [vmem:[%s1 + $0x44] sm:$0xf]
  %v164 = vunpack.c.l.b16 %v18
  %v165 = vunpack.c.h.b16 %v18
  %v166 = vunpack.c.l.b16 %v19
  %v167 = vunpack.c.h.b16 %v19
  %v168 = vunpack.c.l.b16 %v20
  %v169 = vunpack.c.h.b16 %v20
  %v170 = vunpack.c.l.b16 %v21
  %v171 = vunpack.c.h.b16 %v21
  %v172 = vunpack.c.l.b16 %v22
  %v173 = vunpack.c.h.b16 %v22
  %v174 = vunpack.c.l.b16 %v23
  %v175 = vunpack.c.h.b16 %v23
  %v176 = vunpack.c.l.b16 %v24
  %v177 = vunpack.c.h.b16 %v24
  %v178 = vunpack.c.l.b16 %v25
  %v179 = vunpack.c.h.b16 %v25
  %v180 = vunpack.c.l.b16 %v26
  %v181 = vunpack.c.h.b16 %v26
  %v182 = vunpack.c.l.b16 %v27
  %v183 = vunpack.c.h.b16 %v27
  %v184 = vunpack.c.l.b16 %v28
  %v185 = vunpack.c.h.b16 %v28
  %v186 = vunpack.c.l.b16 %v29
  %v187 = vunpack.c.h.b16 %v29
  %v188 = vunpack.c.l.b16 %v30
  %v189 = vunpack.c.h.b16 %v30
  %v190 = vunpack.c.l.b16 %v31
  %v191 = vunpack.c.h.b16 %v31
  %v192 = vunpack.c.l.b16 %v32
  %v193 = vunpack.c.h.b16 %v32
  %v194 = vunpack.c.l.b16 %v33
  %v195 = vunpack.c.h.b16 %v33
  %v196 = vunpack.c.l.b16 %v34
  %v197 = vunpack.c.h.b16 %v34
  %v198 = vunpack.c.l.b16 %v35
  %v199 = vunpack.c.h.b16 %v35
  %v200 = vunpack.c.l.b16 %v36
  %v201 = vunpack.c.h.b16 %v36
  %v202 = vunpack.c.l.b16 %v37
  %v203 = vunpack.c.h.b16 %v37
  %v204 = vunpack.c.l.b16 %v38
  %v205 = vunpack.c.h.b16 %v38
  %v206 = vunpack.c.l.b16 %v39
  %v207 = vunpack.c.h.b16 %v39
  %v208 = vunpack.c.l.b16 %v40
  %v209 = vunpack.c.h.b16 %v40
  %v210 = vunpack.c.l.b16 %v41
  %v211 = vunpack.c.h.b16 %v41
  %v212 = vunpack.c.l.b16 %v42
  %v213 = vunpack.c.h.b16 %v42
  %v214 = vunpack.c.l.b16 %v43
  %v215 = vunpack.c.h.b16 %v43
  %v216 = vunpack.c.l.b16 %v44
  %v217 = vunpack.c.h.b16 %v44
  %v218 = vunpack.c.l.b16 %v45
  %v219 = vunpack.c.h.b16 %v45
  %v220 = vunpack.c.l.b16 %v46
  %v221 = vunpack.c.h.b16 %v46
  %v222 = vunpack.c.l.b16 %v47
  %v223 = vunpack.c.h.b16 %v47
  %v224 = vunpack.c.l.b16 %v48
  %v225 = vunpack.c.h.b16 %v48
  %v226 = vunpack.c.l.b16 %v49
  %v227 = vunpack.c.h.b16 %v49
  %v228 = vunpack.c.l.b16 %v50
  %v229 = vunpack.c.h.b16 %v50
  %v230 = vunpack.c.l.b16 %v51
  %v231 = vunpack.c.h.b16 %v51
  %v232 = vunpack.c.l.b16 %v52
  %v233 = vunpack.c.h.b16 %v52
  %v234 = vunpack.c.l.b16 %v53
  %v235 = vunpack.c.h.b16 %v53
  %v236 = vunpack.c.l.b16 %v54
  %v237 = vunpack.c.h.b16 %v54
  %v238 = vunpack.c.l.b16 %v55
  %v239 = vunpack.c.h.b16 %v55
  %v240 = vunpack.c.l.b16 %v56
  %v241 = vunpack.c.h.b16 %v56
  %v242 = vunpack.c.l.b16 %v57
  %v243 = vunpack.c.h.b16 %v57
  %v244 = vunpack.c.l.b16 %v58
  %v245 = vunpack.c.h.b16 %v58
  %v246 = vunpack.c.l.b16 %v59
  %v247 = vunpack.c.h.b16 %v59
  %v248 = vunpack.c.l.b16 %v60
  %v249 = vunpack.c.h.b16 %v60
  %v250 = vunpack.c.l.b16 %v61
  %v251 = vunpack.c.h.b16 %v61
  %v252 = vunpack.c.l.b16 %v62
  %v253 = vunpack.c.h.b16 %v62
  %v254 = vunpack.c.l.b16 %v63
  %v255 = vunpack.c.h.b16 %v63
  %v256 = vunpack.c.l.b16 %v64
  %v257 = vunpack.c.h.b16 %v64
  %v258 = vunpack.c.l.b16 %v65
  %v259 = vunpack.c.h.b16 %v65
  %v260 = vunpack.c.l.b16 %v66
  %v261 = vunpack.c.h.b16 %v66
  %v262 = vunpack.c.l.b16 %v67
  %v263 = vunpack.c.h.b16 %v67
  %v264 = vunpack.c.l.b16 %v68
  %v265 = vunpack.c.h.b16 %v68
  %v266 = vunpack.c.l.b16 %v69
  %v267 = vunpack.c.h.b16 %v69
  %v268 = vunpack.c.l.b16 %v70
  %v269 = vunpack.c.h.b16 %v70
  %v270 = vunpack.c.l.b16 %v71
  %v271 = vunpack.c.h.b16 %v71
  %v272 = vunpack.c.l.b16 %v72
  %v273 = vunpack.c.h.b16 %v72
  %v274 = vunpack.c.l.b16 %v73
  %v275 = vunpack.c.h.b16 %v73
  %v276 = vunpack.c.l.b16 %v74
  %v277 = vunpack.c.h.b16 %v74
  %v278 = vunpack.c.l.b16 %v75
  %v279 = vunpack.c.h.b16 %v75
  %v280 = vunpack.c.l.b16 %v76
  %v281 = vunpack.c.h.b16 %v76
  %v282 = vunpack.c.l.b16 %v77
  %v283 = vunpack.c.h.b16 %v77
  %v284 = vunpack.c.l.b16 %v78
  %v285 = vunpack.c.h.b16 %v78
  %v286 = vunpack.c.l.b16 %v79
  %v287 = vunpack.c.h.b16 %v79
  %v288 = vunpack.c.l.b16 %v80
  %v289 = vunpack.c.h.b16 %v80
  %v290 = vunpack.c.l.b16 %v81
  %v291 = vunpack.c.h.b16 %v81
  %v292 = vpack.c.b16 %v166, %v164
  %v293 = vpack.c.b16 %v167, %v165
  %v294 = vpack.c.b16 %v170, %v168
  %v295 = vpack.c.b16 %v171, %v169
  %v296 = vpack.c.b16 %v174, %v172
  %v297 = vpack.c.b16 %v175, %v173
  %v298 = vpack.c.b16 %v178, %v176
  %v299 = vpack.c.b16 %v179, %v177
  %v300 = vpack.c.b16 %v182, %v180
  %v301 = vpack.c.b16 %v183, %v181
  %v302 = vpack.c.b16 %v186, %v184
  %v303 = vpack.c.b16 %v187, %v185
  %v304 = vpack.c.b16 %v190, %v188
  %v305 = vpack.c.b16 %v191, %v189
  %v306 = vpack.c.b16 %v194, %v192
  %v307 = vpack.c.b16 %v195, %v193
  %v308 = vpack.c.b16 %v198, %v196
  %v309 = vpack.c.b16 %v199, %v197
  %v310 = vpack.c.b16 %v202, %v200
  %v311 = vpack.c.b16 %v203, %v201
  %v312 = vpack.c.b16 %v206, %v204
  %v313 = vpack.c.b16 %v207, %v205
  %v314 = vpack.c.b16 %v210, %v208
  %v315 = vpack.c.b16 %v211, %v209
  %v316 = vpack.c.b16 %v214, %v212
  %v317 = vpack.c.b16 %v215, %v213
  %v318 = vpack.c.b16 %v218, %v216
  %v319 = vpack.c.b16 %v219, %v217
  %v320 = vpack.c.b16 %v222, %v220
  %v321 = vpack.c.b16 %v223, %v221
  %v322 = vpack.c.b16 %v226, %v224
  %v323 = vpack.c.b16 %v227, %v225
  %v324 = vpack.c.b16 %v230, %v228
  %v325 = vpack.c.b16 %v231, %v229
  %v326 = vpack.c.b16 %v234, %v232
  %v327 = vpack.c.b16 %v235, %v233
  %v328 = vpack.c.b16 %v238, %v236
  %v329 = vpack.c.b16 %v239, %v237
  %v330 = vpack.c.b16 %v242, %v240
  %v331 = vpack.c.b16 %v243, %v241
  %v332 = vpack.c.b16 %v246, %v244
  %v333 = vpack.c.b16 %v247, %v245
  %v334 = vpack.c.b16 %v250, %v248
  %v335 = vpack.c.b16 %v251, %v249
  %v336 = vpack.c.b16 %v254, %v252
  %v337 = vpack.c.b16 %v255, %v253
  %v338 = vpack.c.b16 %v258, %v256
  %v339 = vpack.c.b16 %v259, %v257
  %v340 = vpack.c.b16 %v262, %v260
  %v341 = vpack.c.b16 %v263, %v261
  %v342 = vpack.c.b16 %v266, %v264
  %v343 = vpack.c.b16 %v267, %v265
  %v344 = vpack.c.b16 %v270, %v268
  %v345 = vpack.c.b16 %v271, %v269
  %v346 = vpack.c.b16 %v274, %v272
  %v347 = vpack.c.b16 %v275, %v273
  %v348 = vpack.c.b16 %v278, %v276
  %v349 = vpack.c.b16 %v279, %v277
  %v350 = vpack.c.b16 %v282, %v280
  %v351 = vpack.c.b16 %v283, %v281
  %v352 = vpack.c.b16 %v286, %v284
  %v353 = vpack.c.b16 %v287, %v285
  %v354 = vpack.c.b16 %v290, %v288
  %v355 = vpack.c.b16 %v291, %v289
  %v406 = vunpack.c.l.b16 %v82
  %v407 = vunpack.c.l.b16 %v83
  %v408 = vunpack.c.l.b16 %v84
  %v409 = vunpack.c.l.b16 %v85
  %v410 = vunpack.c.l.b16 %v86
  %v411 = vunpack.c.l.b16 %v87
  %v412 = vunpack.c.l.b16 %v88
  %v413 = vunpack.c.l.b16 %v89
  %v414 = vunpack.c.l.b16 %v90
  %v415 = vunpack.c.l.b16 %v91
  %v416 = vunpack.c.l.b16 %v92
  %v417 = vunpack.c.l.b16 %v93
  %v418 = vunpack.c.l.b16 %v94
  %v419 = vunpack.c.l.b16 %v95
  %v420 = vunpack.c.l.b16 %v96
  %v421 = vunpack.c.l.b16 %v97
  %v422 = vunpack.c.l.b16 %v98
  %v423 = vunpack.c.l.b16 %v99
  %v424 = vpack.c.b16 %v407, %v406
  %v425 = vpack.c.b16 %v409, %v408
  %v426 = vpack.c.b16 %v411, %v410
  %v427 = vpack.c.b16 %v413, %v412
  %v428 = vpack.c.b16 %v415, %v414
  %v429 = vpack.c.b16 %v417, %v416
  %v430 = vpack.c.b16 %v419, %v418
  %v431 = vpack.c.b16 %v421, %v420
  %v432 = vpack.c.b16 %v423, %v422
  %vm442 = vcmask 130048
  %v444 = vsel %vm442, %v293, 0
  %v447 = vsel %vm442, %v295, 0
  %v450 = vsel %vm442, %v297, 0
  %v453 = vsel %vm442, %v299, 0
  %v456 = vsel %vm442, %v301, 0
  %v459 = vsel %vm442, %v303, 0
  %v462 = vsel %vm442, %v305, 0
  %v465 = vsel %vm442, %v307, 0
  %v468 = vsel %vm442, %v309, 0
  %v471 = vsel %vm442, %v311, 0
  %v474 = vsel %vm442, %v313, 0
  %v477 = vsel %vm442, %v315, 0
  %v480 = vsel %vm442, %v317, 0
  %v483 = vsel %vm442, %v319, 0
  %v486 = vsel %vm442, %v321, 0
  %v489 = vsel %vm442, %v323, 0
  %v492 = vsel %vm442, %v325, 0
  %v495 = vsel %vm442, %v327, 0
  %v498 = vsel %vm442, %v329, 0
  %v501 = vsel %vm442, %v331, 0
  %v504 = vsel %vm442, %v333, 0
  %v507 = vsel %vm442, %v335, 0
  %v510 = vsel %vm442, %v337, 0
  %v513 = vsel %vm442, %v339, 0
  %v516 = vsel %vm442, %v341, 0
  %v519 = vsel %vm442, %v343, 0
  %v522 = vsel %vm442, %v345, 0
  %v525 = vsel %vm442, %v347, 0
  %v528 = vsel %vm442, %v349, 0
  %v531 = vsel %vm442, %v351, 0
  %v534 = vsel %vm442, %v353, 0
  %v537 = vsel %vm442, %v355, 0
  %539 = vmatprep.subr.bf16.mxu0 0
  %540 = vmatpush1.bf16.msra.mxu0 %v424
  %541 = vmatprep.subr.bf16.mxu0 0
  %542 = vmatpush1.bf16.msra.mxu0 %v425
  %543 = vmatprep.subr.bf16.mxu0 0
  %544 = vmatpush1.bf16.msra.mxu0 %v426
  %545 = vmatprep.subr.bf16.mxu0 0
  %546 = vmatpush1.bf16.msra.mxu0 %v427
  %547 = vmatprep.subr.bf16.mxu0 0
  %548 = vmatpush1.bf16.msra.mxu0 %v428
  %549 = vmatprep.subr.bf16.mxu0 0
  %550 = vmatpush1.bf16.msra.mxu0 %v429
  %551 = vmatprep.subr.bf16.mxu0 0
  %552 = vmatpush1.bf16.msra.mxu0 %v430
  %553 = vmatprep.subr.bf16.mxu0 0
  %554 = vmatpush1.bf16.msra.mxu0 %v431
  %555 = vmatprep.subr.bf16.mxu0 0
  %556 = vmatpush1.bf16.msra.mxu0 %v432
  %557 = vmatprep.subr.bf16.mxu0 0
  %558 = vmatpush1.bf16.msra.mxu0 0
  %559 = vmatprep.subr.bf16.mxu0 0
  %560 = vmatpush1.bf16.msra.mxu0 0
  %561 = vmatprep.subr.bf16.mxu0 0
  %562 = vmatpush1.bf16.msra.mxu0 0
  %563 = vmatprep.subr.bf16.mxu0 0
  %564 = vmatpush1.bf16.msra.mxu0 0
  %565 = vmatprep.subr.bf16.mxu0 0
  %566 = vmatpush1.bf16.msra.mxu0 0
  %567 = vmatprep.subr.bf16.mxu0 0
  %568 = vmatpush1.bf16.msra.mxu0 0
  %569 = vmatprep.subr.bf16.mxu0 0
  %570 = vmatpush1.bf16.msra.mxu0 0
  %571 = vmatprep.mubr.bf16.mxu0 %v444
  %572 = vmatmul.mubr.bf16.gmra.mrb[0].mxu0 %v292
  %v573 = vpop.f32.mrb[0].mxu0
  %v574 = vadd.f32 0.0, %v573
  %v575 = vpop.f32.mrb[0].mxu0
  %v576 = vpop.f32.mrb[0].mxu0
  %v577 = vadd.f32 0.0, %v576
  %v578 = vpop.f32.mrb[0].mxu0
  %579 = vmatprep.mubr.bf16.mxu0 %v447
  %580 = vmatmul.mubr.bf16.gmra.mrb[0].mxu0 %v294
  %v581 = vpop.f32.mrb[0].mxu0
  %v582 = vadd.f32 0.0, %v581
  %v583 = vpop.f32.mrb[0].mxu0
  %v584 = vpop.f32.mrb[0].mxu0
  %v585 = vadd.f32 0.0, %v584
  %v586 = vpop.f32.mrb[0].mxu0
  %587 = vmatprep.mubr.bf16.mxu0 %v450
  %588 = vmatmul.mubr.bf16.gmra.mrb[0].mxu0 %v296
  %v589 = vpop.f32.mrb[0].mxu0
  %v590 = vadd.f32 0.0, %v589
  %v591 = vpop.f32.mrb[0].mxu0
  %v592 = vpop.f32.mrb[0].mxu0
  %v593 = vadd.f32 0.0, %v592
  %v594 = vpop.f32.mrb[0].mxu0
  %595 = vmatprep.mubr.bf16.mxu0 %v453
  %596 = vmatmul.mubr.bf16.gmra.mrb[0].mxu0 %v298
  %v597 = vpop.f32.mrb[0].mxu0
  %v598 = vadd.f32 0.0, %v597
  %v599 = vpop.f32.mrb[0].mxu0
  %v600 = vpop.f32.mrb[0].mxu0
  %v601 = vadd.f32 0.0, %v600
  %v602 = vpop.f32.mrb[0].mxu0
  %603 = vmatprep.mubr.bf16.mxu0 %v456
  %604 = vmatmul.mubr.bf16.gmra.mrb[0].mxu0 %v300
  %v605 = vpop.f32.mrb[0].mxu0
  %v606 = vadd.f32 0.0, %v605
  %v607 = vpop.f32.mrb[0].mxu0
  %v608 = vpop.f32.mrb[0].mxu0
  %v609 = vadd.f32 0.0, %v608
  %v610 = vpop.f32.mrb[0].mxu0
  %611 = vmatprep.mubr.bf16.mxu0 %v459
  %612 = vmatmul.mubr.bf16.gmra.mrb[0].mxu0 %v302
  %v613 = vpop.f32.mrb[0].mxu0
  %v614 = vadd.f32 0.0, %v613
  %v615 = vpop.f32.mrb[0].mxu0
  %v616 = vpop.f32.mrb[0].mxu0
  %v617 = vadd.f32 0.0, %v616
  %v618 = vpop.f32.mrb[0].mxu0
  %619 = vmatprep.mubr.bf16.mxu0 %v462
  %620 = vmatmul.mubr.bf16.gmra.mrb[0].mxu0 %v304
  %v621 = vpop.f32.mrb[0].mxu0
  %v622 = vadd.f32 0.0, %v621
  %v623 = vpop.f32.mrb[0].mxu0
  %v624 = vpop.f32.mrb[0].mxu0
  %v625 = vadd.f32 0.0, %v624
  %v626 = vpop.f32.mrb[0].mxu0
  %627 = vmatprep.mubr.bf16.mxu0 %v465
  %628 = vmatmul.mubr.bf16.gmra.mrb[0].mxu0 %v306
  %v629 = vpop.f32.mrb[0].mxu0
  %v630 = vadd.f32 0.0, %v629
  %v631 = vpop.f32.mrb[0].mxu0
  %v632 = vpop.f32.mrb[0].mxu0
  %v633 = vadd.f32 0.0, %v632
  %v634 = vpop.f32.mrb[0].mxu0
  %635 = vmatprep.mubr.bf16.mxu0 %v468
  %636 = vmatmul.mubr.bf16.gmra.mrb[0].mxu0 %v308
  %v637 = vpop.f32.mrb[0].mxu0
  %v638 = vadd.f32 0.0, %v637
  %v639 = vpop.f32.mrb[0].mxu0
  %v640 = vpop.f32.mrb[0].mxu0
  %v641 = vadd.f32 0.0, %v640
  %v642 = vpop.f32.mrb[0].mxu0
  %643 = vmatprep.mubr.bf16.mxu0 %v471
  %644 = vmatmul.mubr.bf16.gmra.mrb[0].mxu0 %v310
  %v645 = vpop.f32.mrb[0].mxu0
  %v646 = vadd.f32 0.0, %v645
  %v647 = vpop.f32.mrb[0].mxu0
  %v648 = vpop.f32.mrb[0].mxu0
  %v649 = vadd.f32 0.0, %v648
  %v650 = vpop.f32.mrb[0].mxu0
  %651 = vmatprep.mubr.bf16.mxu0 %v474
  %652 = vmatmul.mubr.bf16.gmra.mrb[0].mxu0 %v312
  %v653 = vpop.f32.mrb[0].mxu0
  %v654 = vadd.f32 0.0, %v653
  %v655 = vpop.f32.mrb[0].mxu0
  %v656 = vpop.f32.mrb[0].mxu0
  %v657 = vadd.f32 0.0, %v656
  %v658 = vpop.f32.mrb[0].mxu0
  %659 = vmatprep.mubr.bf16.mxu0 %v477
  %660 = vmatmul.mubr.bf16.gmra.mrb[0].mxu0 %v314
  %v661 = vpop.f32.mrb[0].mxu0
  %v662 = vadd.f32 0.0, %v661
  %v663 = vpop.f32.mrb[0].mxu0
  %v664 = vpop.f32.mrb[0].mxu0
  %v665 = vadd.f32 0.0, %v664
  %v666 = vpop.f32.mrb[0].mxu0
  %667 = vmatprep.mubr.bf16.mxu0 %v480
  %668 = vmatmul.mubr.bf16.gmra.mrb[0].mxu0 %v316
  %v669 = vpop.f32.mrb[0].mxu0
  %v670 = vadd.f32 0.0, %v669
  %v671 = vpop.f32.mrb[0].mxu0
  %v672 = vpop.f32.mrb[0].mxu0
  %v673 = vadd.f32 0.0, %v672
  %v674 = vpop.f32.mrb[0].mxu0
  %675 = vmatprep.mubr.bf16.mxu0 %v483
  %676 = vmatmul.mubr.bf16.gmra.mrb[0].mxu0 %v318
  %v677 = vpop.f32.mrb[0].mxu0
  %v678 = vadd.f32 0.0, %v677
  %v679 = vpop.f32.mrb[0].mxu0
  %v680 = vpop.f32.mrb[0].mxu0
  %v681 = vadd.f32 0.0, %v680
  %v682 = vpop.f32.mrb[0].mxu0
  %683 = vmatprep.mubr.bf16.mxu0 %v486
  %684 = vmatmul.mubr.bf16.gmra.mrb[0].mxu0 %v320
  %v685 = vpop.f32.mrb[0].mxu0
  %v686 = vadd.f32 0.0, %v685
  %v687 = vpop.f32.mrb[0].mxu0
  %v688 = vpop.f32.mrb[0].mxu0
  %v689 = vadd.f32 0.0, %v688
  %v690 = vpop.f32.mrb[0].mxu0
  %691 = vmatprep.mubr.bf16.mxu0 %v489
  %692 = vmatmul.mubr.bf16.gmra.mrb[0].mxu0 %v322
  %v693 = vpop.f32.mrb[0].mxu0
  %v694 = vadd.f32 0.0, %v693
  %v695 = vpop.f32.mrb[0].mxu0
  %v696 = vpop.f32.mrb[0].mxu0
  %v697 = vadd.f32 0.0, %v696
  %v698 = vpop.f32.mrb[0].mxu0
  %699 = vmatprep.mubr.bf16.mxu0 %v492
  %700 = vmatmul.mubr.bf16.gmra.mrb[0].mxu0 %v324
  %v701 = vpop.f32.mrb[0].mxu0
  %v702 = vadd.f32 0.0, %v701
  %v703 = vpop.f32.mrb[0].mxu0
  %v704 = vpop.f32.mrb[0].mxu0
  %v705 = vadd.f32 0.0, %v704
  %v706 = vpop.f32.mrb[0].mxu0
  %707 = vmatprep.mubr.bf16.mxu0 %v495
  %708 = vmatmul.mubr.bf16.gmra.mrb[0].mxu0 %v326
  %v709 = vpop.f32.mrb[0].mxu0
  %v710 = vadd.f32 0.0, %v709
  %v711 = vpop.f32.mrb[0].mxu0
  %v712 = vpop.f32.mrb[0].mxu0
  %v713 = vadd.f32 0.0, %v712
  %v714 = vpop.f32.mrb[0].mxu0
  %715 = vmatprep.mubr.bf16.mxu0 %v498
  %716 = vmatmul.mubr.bf16.gmra.mrb[0].mxu0 %v328
  %v717 = vpop.f32.mrb[0].mxu0
  %v718 = vadd.f32 0.0, %v717
  %v719 = vpop.f32.mrb[0].mxu0
  %v720 = vpop.f32.mrb[0].mxu0
  %v721 = vadd.f32 0.0, %v720
  %v722 = vpop.f32.mrb[0].mxu0
  %723 = vmatprep.mubr.bf16.mxu0 %v501
  %724 = vmatmul.mubr.bf16.gmra.mrb[0].mxu0 %v330
  %v725 = vpop.f32.mrb[0].mxu0
  %v726 = vadd.f32 0.0, %v725
  %v727 = vpop.f32.mrb[0].mxu0
  %v728 = vpop.f32.mrb[0].mxu0
  %v729 = vadd.f32 0.0, %v728
  %v730 = vpop.f32.mrb[0].mxu0
  %731 = vmatprep.mubr.bf16.mxu0 %v504
  %732 = vmatmul.mubr.bf16.gmra.mrb[0].mxu0 %v332
  %v733 = vpop.f32.mrb[0].mxu0
  %v734 = vadd.f32 0.0, %v733
  %v735 = vpop.f32.mrb[0].mxu0
  %v736 = vpop.f32.mrb[0].mxu0
  %v737 = vadd.f32 0.0, %v736
  %v738 = vpop.f32.mrb[0].mxu0
  %739 = vmatprep.mubr.bf16.mxu0 %v507
  %740 = vmatmul.mubr.bf16.gmra.mrb[0].mxu0 %v334
  %v741 = vpop.f32.mrb[0].mxu0
  %v742 = vadd.f32 0.0, %v741
  %v743 = vpop.f32.mrb[0].mxu0
  %v744 = vpop.f32.mrb[0].mxu0
  %v745 = vadd.f32 0.0, %v744
  %v746 = vpop.f32.mrb[0].mxu0
  %747 = vmatprep.mubr.bf16.mxu0 %v510
  %748 = vmatmul.mubr.bf16.gmra.mrb[0].mxu0 %v336
  %v749 = vpop.f32.mrb[0].mxu0
  %v750 = vadd.f32 0.0, %v749
  %v751 = vpop.f32.mrb[0].mxu0
  %v752 = vpop.f32.mrb[0].mxu0
  %v753 = vadd.f32 0.0, %v752
  %v754 = vpop.f32.mrb[0].mxu0
  %755 = vmatprep.mubr.bf16.mxu0 %v513
  %756 = vmatmul.mubr.bf16.gmra.mrb[0].mxu0 %v338
  %v757 = vpop.f32.mrb[0].mxu0
  %v758 = vadd.f32 0.0, %v757
  %v759 = vpop.f32.mrb[0].mxu0
  %v760 = vpop.f32.mrb[0].mxu0
  %v761 = vadd.f32 0.0, %v760
  %v762 = vpop.f32.mrb[0].mxu0
  %763 = vmatprep.mubr.bf16.mxu0 %v516
  %764 = vmatmul.mubr.bf16.gmra.mrb[0].mxu0 %v340
  %v765 = vpop.f32.mrb[0].mxu0
  %v766 = vadd.f32 0.0, %v765
  %v767 = vpop.f32.mrb[0].mxu0
  %v768 = vpop.f32.mrb[0].mxu0
  %v769 = vadd.f32 0.0, %v768
  %v770 = vpop.f32.mrb[0].mxu0
  %771 = vmatprep.mubr.bf16.mxu0 %v519
  %772 = vmatmul.mubr.bf16.gmra.mrb[0].mxu0 %v342
  %v773 = vpop.f32.mrb[0].mxu0
  %v774 = vadd.f32 0.0, %v773
  %v775 = vpop.f32.mrb[0].mxu0
  %v776 = vpop.f32.mrb[0].mxu0
  %v777 = vadd.f32 0.0, %v776
  %v778 = vpop.f32.mrb[0].mxu0
  %779 = vmatprep.mubr.bf16.mxu0 %v522
  %780 = vmatmul.mubr.bf16.gmra.mrb[0].mxu0 %v344
  %v781 = vpop.f32.mrb[0].mxu0
  %v782 = vadd.f32 0.0, %v781
  %v783 = vpop.f32.mrb[0].mxu0
  %v784 = vpop.f32.mrb[0].mxu0
  %v785 = vadd.f32 0.0, %v784
  %v786 = vpop.f32.mrb[0].mxu0
  %787 = vmatprep.mubr.bf16.mxu0 %v525
  %788 = vmatmul.mubr.bf16.gmra.mrb[0].mxu0 %v346
  %v789 = vpop.f32.mrb[0].mxu0
  %v790 = vadd.f32 0.0, %v789
  %v791 = vpop.f32.mrb[0].mxu0
  %v792 = vpop.f32.mrb[0].mxu0
  %v793 = vadd.f32 0.0, %v792
  %v794 = vpop.f32.mrb[0].mxu0
  %795 = vmatprep.mubr.bf16.mxu0 %v528
  %796 = vmatmul.mubr.bf16.gmra.mrb[0].mxu0 %v348
  %v797 = vpop.f32.mrb[0].mxu0
  %v798 = vadd.f32 0.0, %v797
  %v799 = vpop.f32.mrb[0].mxu0
  %v800 = vpop.f32.mrb[0].mxu0
  %v801 = vadd.f32 0.0, %v800
  %v802 = vpop.f32.mrb[0].mxu0
  %803 = vmatprep.mubr.bf16.mxu0 %v531
  %804 = vmatmul.mubr.bf16.gmra.mrb[0].mxu0 %v350
  %v805 = vpop.f32.mrb[0].mxu0
  %v806 = vadd.f32 0.0, %v805
  %v807 = vpop.f32.mrb[0].mxu0
  %v808 = vpop.f32.mrb[0].mxu0
  %v809 = vadd.f32 0.0, %v808
  %v810 = vpop.f32.mrb[0].mxu0
  %811 = vmatprep.mubr.bf16.mxu0 %v534
  %812 = vmatmul.mubr.bf16.gmra.mrb[0].mxu0 %v352
  %v813 = vpop.f32.mrb[0].mxu0
  %v814 = vadd.f32 0.0, %v813
  %v815 = vpop.f32.mrb[0].mxu0
  %v816 = vpop.f32.mrb[0].mxu0
  %v817 = vadd.f32 0.0, %v816
  %v818 = vpop.f32.mrb[0].mxu0
  %819 = vmatprep.mubr.bf16.mxu0 %v537
  %820 = vmatmul.mubr.bf16.gmra.mrb[0].mxu0 %v354
  %v821 = vpop.f32.mrb[0].mxu0
  %v822 = vadd.f32 0.0, %v821
  %v823 = vpop.f32.mrb[0].mxu0
  %v824 = vpop.f32.mrb[0].mxu0
  %v825 = vadd.f32 0.0, %v824
  %v826 = vpop.f32.mrb[0].mxu0
  %827 = vdwg.mxu0
  %v828 = vld [vmem:[%s2] sm:$0x1]
  %v830 = vlaneseq
  %v831 = vshrl.u32 %v830, 7
  %v832 = vsub.s32 0, %v831
  %v833 = vrot.slane %v828, %v832
  %v835 = vmul.f32 %v574, %v833
  %v836 = vmul.f32 %v577, %v833
  %v837 = vmul.f32 %v582, %v833
  %v838 = vmul.f32 %v585, %v833
  %v839 = vmul.f32 %v590, %v833
  %v840 = vmul.f32 %v593, %v833
  %v841 = vmul.f32 %v598, %v833
  %v842 = vmul.f32 %v601, %v833
  %v843 = vmul.f32 %v606, %v833
  %v844 = vmul.f32 %v609, %v833
  %v845 = vmul.f32 %v614, %v833
  %v846 = vmul.f32 %v617, %v833
  %v847 = vmul.f32 %v622, %v833
  %v848 = vmul.f32 %v625, %v833
  %v849 = vmul.f32 %v630, %v833
  %v850 = vmul.f32 %v633, %v833
  %v851 = vmul.f32 %v638, %v833
  %v852 = vmul.f32 %v641, %v833
  %v853 = vmul.f32 %v646, %v833
  %v854 = vmul.f32 %v649, %v833
  %v855 = vmul.f32 %v654, %v833
  %v856 = vmul.f32 %v657, %v833
  %v857 = vmul.f32 %v662, %v833
  %v858 = vmul.f32 %v665, %v833
  %v859 = vmul.f32 %v670, %v833
  %v860 = vmul.f32 %v673, %v833
  %v861 = vmul.f32 %v678, %v833
  %v862 = vmul.f32 %v681, %v833
  %v863 = vmul.f32 %v686, %v833
  %v864 = vmul.f32 %v689, %v833
  %v865 = vmul.f32 %v694, %v833
  %v866 = vmul.f32 %v697, %v833
  %v867 = vmul.f32 %v702, %v833
  %v868 = vmul.f32 %v705, %v833
  %v869 = vmul.f32 %v710, %v833
  %v870 = vmul.f32 %v713, %v833
  %v871 = vmul.f32 %v718, %v833
  %v872 = vmul.f32 %v721, %v833
  %v873 = vmul.f32 %v726, %v833
  %v874 = vmul.f32 %v729, %v833
  %v875 = vmul.f32 %v734, %v833
  %v876 = vmul.f32 %v737, %v833
  %v877 = vmul.f32 %v742, %v833
  %v878 = vmul.f32 %v745, %v833
  %v879 = vmul.f32 %v750, %v833
  %v880 = vmul.f32 %v753, %v833
  %v881 = vmul.f32 %v758, %v833
  %v882 = vmul.f32 %v761, %v833
  %v883 = vmul.f32 %v766, %v833
  %v884 = vmul.f32 %v769, %v833
  %v885 = vmul.f32 %v774, %v833
  %v886 = vmul.f32 %v777, %v833
  %v887 = vmul.f32 %v782, %v833
  %v888 = vmul.f32 %v785, %v833
  %v889 = vmul.f32 %v790, %v833
  %v890 = vmul.f32 %v793, %v833
  %v891 = vmul.f32 %v798, %v833
  %v892 = vmul.f32 %v801, %v833
  %v893 = vmul.f32 %v806, %v833
  %v894 = vmul.f32 %v809, %v833
  %v895 = vmul.f32 %v814, %v833
  %v896 = vmul.f32 %v817, %v833
  %v897 = vmul.f32 %v822, %v833
  %v898 = vmul.f32 %v825, %v833
  %v899 = vld [vmem:[%s3] sm:$0x1]
  %v901 = vlaneseq
  %v902 = vshrl.u32 %v901, 7
  %v903 = vsub.s32 0, %v902
  %v904 = vrot.slane %v899, %v903
  %v906 = vadd.f32 %v835, %v904
  %v907 = vadd.f32 %v836, %v904
  %v908 = vadd.f32 %v837, %v904
  %v909 = vadd.f32 %v838, %v904
  %v910 = vadd.f32 %v839, %v904
  %v911 = vadd.f32 %v840, %v904
  %v912 = vadd.f32 %v841, %v904
  %v913 = vadd.f32 %v842, %v904
  %v914 = vadd.f32 %v843, %v904
  %v915 = vadd.f32 %v844, %v904
  %v916 = vadd.f32 %v845, %v904
  %v917 = vadd.f32 %v846, %v904
  %v918 = vadd.f32 %v847, %v904
  %v919 = vadd.f32 %v848, %v904
  %v920 = vadd.f32 %v849, %v904
  %v921 = vadd.f32 %v850, %v904
  %v922 = vadd.f32 %v851, %v904
  %v923 = vadd.f32 %v852, %v904
  %v924 = vadd.f32 %v853, %v904
  %v925 = vadd.f32 %v854, %v904
  %v926 = vadd.f32 %v855, %v904
  %v927 = vadd.f32 %v856, %v904
  %v928 = vadd.f32 %v857, %v904
  %v929 = vadd.f32 %v858, %v904
  %v930 = vadd.f32 %v859, %v904
  %v931 = vadd.f32 %v860, %v904
  %v932 = vadd.f32 %v861, %v904
  %v933 = vadd.f32 %v862, %v904
  %v934 = vadd.f32 %v863, %v904
  %v935 = vadd.f32 %v864, %v904
  %v936 = vadd.f32 %v865, %v904
  %v937 = vadd.f32 %v866, %v904
  %v938 = vadd.f32 %v867, %v904
  %v939 = vadd.f32 %v868, %v904
  %v940 = vadd.f32 %v869, %v904
  %v941 = vadd.f32 %v870, %v904
  %v942 = vadd.f32 %v871, %v904
  %v943 = vadd.f32 %v872, %v904
  %v944 = vadd.f32 %v873, %v904
  %v945 = vadd.f32 %v874, %v904
  %v946 = vadd.f32 %v875, %v904
  %v947 = vadd.f32 %v876, %v904
  %v948 = vadd.f32 %v877, %v904
  %v949 = vadd.f32 %v878, %v904
  %v950 = vadd.f32 %v879, %v904
  %v951 = vadd.f32 %v880, %v904
  %v952 = vadd.f32 %v881, %v904
  %v953 = vadd.f32 %v882, %v904
  %v954 = vadd.f32 %v883, %v904
  %v955 = vadd.f32 %v884, %v904
  %v956 = vadd.f32 %v885, %v904
  %v957 = vadd.f32 %v886, %v904
  %v958 = vadd.f32 %v887, %v904
  %v959 = vadd.f32 %v888, %v904
  %v960 = vadd.f32 %v889, %v904
  %v961 = vadd.f32 %v890, %v904
  %v962 = vadd.f32 %v891, %v904
  %v963 = vadd.f32 %v892, %v904
  %v964 = vadd.f32 %v893, %v904
  %v965 = vadd.f32 %v894, %v904
  %v966 = vadd.f32 %v895, %v904
  %v967 = vadd.f32 %v896, %v904
  %v968 = vadd.f32 %v897, %v904
  %v969 = vadd.f32 %v898, %v904
  %v970 = vmax.f32 %v906, 0.0
  %v971 = vmax.f32 %v907, 0.0
  %v972 = vmax.f32 %v908, 0.0
  %v973 = vmax.f32 %v909, 0.0
  %v974 = vmax.f32 %v910, 0.0
  %v975 = vmax.f32 %v911, 0.0
  %v976 = vmax.f32 %v912, 0.0
  %v977 = vmax.f32 %v913, 0.0
  %v978 = vmax.f32 %v914, 0.0
  %v979 = vmax.f32 %v915, 0.0
  %v980 = vmax.f32 %v916, 0.0
  %v981 = vmax.f32 %v917, 0.0
  %v982 = vmax.f32 %v918, 0.0
  %v983 = vmax.f32 %v919, 0.0
  %v984 = vmax.f32 %v920, 0.0
  %v985 = vmax.f32 %v921, 0.0
  %v986 = vmax.f32 %v922, 0.0
  %v987 = vmax.f32 %v923, 0.0
  %v988 = vmax.f32 %v924, 0.0
  %v989 = vmax.f32 %v925, 0.0
  %v990 = vmax.f32 %v926, 0.0
  %v991 = vmax.f32 %v927, 0.0
  %v992 = vmax.f32 %v928, 0.0
  %v993 = vmax.f32 %v929, 0.0
  %v994 = vmax.f32 %v930, 0.0
  %v995 = vmax.f32 %v931, 0.0
  %v996 = vmax.f32 %v932, 0.0
  %v997 = vmax.f32 %v933, 0.0
  %v998 = vmax.f32 %v934, 0.0
  %v999 = vmax.f32 %v935, 0.0
  %v1000 = vmax.f32 %v936, 0.0
  %v1001 = vmax.f32 %v937, 0.0
  %v1002 = vmax.f32 %v938, 0.0
  %v1003 = vmax.f32 %v939, 0.0
  %v1004 = vmax.f32 %v940, 0.0
  %v1005 = vmax.f32 %v941, 0.0
  %v1006 = vmax.f32 %v942, 0.0
  %v1007 = vmax.f32 %v943, 0.0
  %v1008 = vmax.f32 %v944, 0.0
  %v1009 = vmax.f32 %v945, 0.0
  %v1010 = vmax.f32 %v946, 0.0
  %v1011 = vmax.f32 %v947, 0.0
  %v1012 = vmax.f32 %v948, 0.0
  %v1013 = vmax.f32 %v949, 0.0
  %v1014 = vmax.f32 %v950, 0.0
  %v1015 = vmax.f32 %v951, 0.0
  %v1016 = vmax.f32 %v952, 0.0
  %v1017 = vmax.f32 %v953, 0.0
  %v1018 = vmax.f32 %v954, 0.0
  %v1019 = vmax.f32 %v955, 0.0
  %v1020 = vmax.f32 %v956, 0.0
  %v1021 = vmax.f32 %v957, 0.0
  %v1022 = vmax.f32 %v958, 0.0
  %v1023 = vmax.f32 %v959, 0.0
  %v1024 = vmax.f32 %v960, 0.0
  %v1025 = vmax.f32 %v961, 0.0
  %v1026 = vmax.f32 %v962, 0.0
  %v1027 = vmax.f32 %v963, 0.0
  %v1028 = vmax.f32 %v964, 0.0
  %v1029 = vmax.f32 %v965, 0.0
  %v1030 = vmax.f32 %v966, 0.0
  %v1031 = vmax.f32 %v967, 0.0
  %v1032 = vmax.f32 %v968, 0.0
  %v1033 = vmax.f32 %v969, 0.0
  %1034 = vst.msk [vmem:[%s4] sm:$0xff] %vm442, %v970
  %1035 = vst.msk [vmem:[%s4 + $0x8] sm:$0xff] %vm442, %v971
  %1036 = vst.msk [vmem:[%s4 + $0x10] sm:$0xff] %vm442, %v972
  %1037 = vst.msk [vmem:[%s4 + $0x18] sm:$0xff] %vm442, %v973
  %1038 = vst.msk [vmem:[%s4 + $0x20] sm:$0xff] %vm442, %v974
  %1039 = vst.msk [vmem:[%s4 + $0x28] sm:$0xff] %vm442, %v975
  %1040 = vst.msk [vmem:[%s4 + $0x30] sm:$0xff] %vm442, %v976
  %1041 = vst.msk [vmem:[%s4 + $0x38] sm:$0xff] %vm442, %v977
  %1042 = vst.msk [vmem:[%s4 + $0x40] sm:$0xff] %vm442, %v978
  %1043 = vst.msk [vmem:[%s4 + $0x48] sm:$0xff] %vm442, %v979
  %1044 = vst.msk [vmem:[%s4 + $0x50] sm:$0xff] %vm442, %v980
  %1045 = vst.msk [vmem:[%s4 + $0x58] sm:$0xff] %vm442, %v981
  %1046 = vst.msk [vmem:[%s4 + $0x60] sm:$0xff] %vm442, %v982
  %1047 = vst.msk [vmem:[%s4 + $0x68] sm:$0xff] %vm442, %v983
  %1048 = vst.msk [vmem:[%s4 + $0x70] sm:$0xff] %vm442, %v984
  %1049 = vst.msk [vmem:[%s4 + $0x78] sm:$0xff] %vm442, %v985
  %1050 = vst.msk [vmem:[%s4 + $0x80] sm:$0xff] %vm442, %v986
  %1051 = vst.msk [vmem:[%s4 + $0x88] sm:$0xff] %vm442, %v987
  %1052 = vst.msk [vmem:[%s4 + $0x90] sm:$0xff] %vm442, %v988
  %1053 = vst.msk [vmem:[%s4 + $0x98] sm:$0xff] %vm442, %v989
  %1054 = vst.msk [vmem:[%s4 + $0xa0] sm:$0xff] %vm442, %v990
  %1055 = vst.msk [vmem:[%s4 + $0xa8] sm:$0xff] %vm442, %v991
  %1056 = vst.msk [vmem:[%s4 + $0xb0] sm:$0xff] %vm442, %v992
  %1057 = vst.msk [vmem:[%s4 + $0xb8] sm:$0xff] %vm442, %v993
  %1058 = vst.msk [vmem:[%s4 + $0xc0] sm:$0xff] %vm442, %v994
  %1059 = vst.msk [vmem:[%s4 + $0xc8] sm:$0xff] %vm442, %v995
  %1060 = vst.msk [vmem:[%s4 + $0xd0] sm:$0xff] %vm442, %v996
  %1061 = vst.msk [vmem:[%s4 + $0xd8] sm:$0xff] %vm442, %v997
  %1062 = vst.msk [vmem:[%s4 + $0xe0] sm:$0xff] %vm442, %v998
  %1063 = vst.msk [vmem:[%s4 + $0xe8] sm:$0xff] %vm442, %v999
  %1064 = vst.msk [vmem:[%s4 + $0xf0] sm:$0xff] %vm442, %v1000
  %1065 = vst.msk [vmem:[%s4 + $0xf8] sm:$0xff] %vm442, %v1001
  %1066 = vst.msk [vmem:[%s4 + $0x100] sm:$0xff] %vm442, %v1002
  %1067 = vst.msk [vmem:[%s4 + $0x108] sm:$0xff] %vm442, %v1003
  %1068 = vst.msk [vmem:[%s4 + $0x110] sm:$0xff] %vm442, %v1004
  %1069 = vst.msk [vmem:[%s4 + $0x118] sm:$0xff] %vm442, %v1005
  %1070 = vst.msk [vmem:[%s4 + $0x120] sm:$0xff] %vm442, %v1006
  %1071 = vst.msk [vmem:[%s4 + $0x128] sm:$0xff] %vm442, %v1007
  %1072 = vst.msk [vmem:[%s4 + $0x130] sm:$0xff] %vm442, %v1008
  %1073 = vst.msk [vmem:[%s4 + $0x138] sm:$0xff] %vm442, %v1009
  %1074 = vst.msk [vmem:[%s4 + $0x140] sm:$0xff] %vm442, %v1010
  %1075 = vst.msk [vmem:[%s4 + $0x148] sm:$0xff] %vm442, %v1011
  %1076 = vst.msk [vmem:[%s4 + $0x150] sm:$0xff] %vm442, %v1012
  %1077 = vst.msk [vmem:[%s4 + $0x158] sm:$0xff] %vm442, %v1013
  %1078 = vst.msk [vmem:[%s4 + $0x160] sm:$0xff] %vm442, %v1014
  %1079 = vst.msk [vmem:[%s4 + $0x168] sm:$0xff] %vm442, %v1015
  %1080 = vst.msk [vmem:[%s4 + $0x170] sm:$0xff] %vm442, %v1016
  %1081 = vst.msk [vmem:[%s4 + $0x178] sm:$0xff] %vm442, %v1017
  %1082 = vst.msk [vmem:[%s4 + $0x180] sm:$0xff] %vm442, %v1018
  %1083 = vst.msk [vmem:[%s4 + $0x188] sm:$0xff] %vm442, %v1019
  %1084 = vst.msk [vmem:[%s4 + $0x190] sm:$0xff] %vm442, %v1020
  %1085 = vst.msk [vmem:[%s4 + $0x198] sm:$0xff] %vm442, %v1021
  %1086 = vst.msk [vmem:[%s4 + $0x1a0] sm:$0xff] %vm442, %v1022
  %1087 = vst.msk [vmem:[%s4 + $0x1a8] sm:$0xff] %vm442, %v1023
  %1088 = vst.msk [vmem:[%s4 + $0x1b0] sm:$0xff] %vm442, %v1024
  %1089 = vst.msk [vmem:[%s4 + $0x1b8] sm:$0xff] %vm442, %v1025
  %1090 = vst.msk [vmem:[%s4 + $0x1c0] sm:$0xff] %vm442, %v1026
  %1091 = vst.msk [vmem:[%s4 + $0x1c8] sm:$0xff] %vm442, %v1027
  %1092 = vst.msk [vmem:[%s4 + $0x1d0] sm:$0xff] %vm442, %v1028
  %1093 = vst.msk [vmem:[%s4 + $0x1d8] sm:$0xff] %vm442, %v1029
  %1094 = vst.msk [vmem:[%s4 + $0x1e0] sm:$0xff] %vm442, %v1030
  %1095 = vst.msk [vmem:[%s4 + $0x1e8] sm:$0xff] %vm442, %v1031
  %1096 = vst.msk [vmem:[%s4 + $0x1f0] sm:$0xff] %vm442, %v1032
  %1097 = vst.msk [vmem:[%s4 + $0x1f8] sm:$0xff] %vm442, %v1033
  // Predicated region
  $region18: #{unet_forward.21} parent=0 // pred_check
    _
  $region19: #{unet_forward.21} parent=0 // pred_check_branch
    %1099 = sbr.rel (0) target = $region21
  $region20: #{unet_forward.21} parent=0 // pred_region
    _
  $region21: #{unet_forward.21} parent=0 // pred_fallthru
    _
  // Predicated region
  $region22: #{unet_forward.21} parent=0 // pred_check
    _
  $region23: #{unet_forward.21} parent=0 // pred_check_branch
    %1101 = sbr.rel (0) target = $region25
  $region24: #{unet_forward.21} parent=0 // pred_region
    _
  $region25: #{unet_forward.21} parent=0 // pred_fallthru
    _

// kernel: unet_forward.22
$region0: #{unet_forward.22}
  #allocation0 [shape = 'u32[]', space=smem, size = 0x4, offset = 0x4, fixed_abs, tag = 'smem constant byte address 0x4 - core index']
  #allocation1 [shape = 'u32[144,128]{1,0:T(1,128)}', space=vmem, size = 0x12000, scoped, tag = 'internal scratch']
  %s0 = inlined_call_operand.vmem [shape: bf16[128,144], index: 0, kind: input, shape index: {}]
  %s1 = inlined_call_operand.vmem [shape: bf16[144,32], index: 1, kind: input, shape index: {}]
  %s2 = inlined_call_operand.vmem [shape: f32[1,32], index: 2, kind: input, shape index: {}]
  %s3 = inlined_call_operand.vmem [shape: f32[1,32], index: 3, kind: input, shape index: {}]
  %s4 = inlined_call_operand.vmem [shape: f32[128,32], index: 4, kind: output, shape index: {}]
  %s5 = sld [smem:[#allocation0]]
  $region26: #{unet_forward.22} parent=0
    _
  %s7 = ssub.s32 1, %s5
  %s8 = scalar_select 0, %s7, %s5
  // Predicated region
  $region2: #{unet_forward.22} parent=0 // pred_check
    _
  $region3: #{unet_forward.22} parent=0 // pred_check_branch
    %10 = sbr.rel (0) target = $region5
  $region4: #{unet_forward.22} parent=0 // pred_region
    _
  $region5: #{unet_forward.22} parent=0 // pred_fallthru
    _
  // Predicated region
  $region6: #{unet_forward.22} parent=0 // pred_check
    _
  $region7: #{unet_forward.22} parent=0 // pred_check_branch
    %12 = sbr.rel (0) target = $region9
  $region8: #{unet_forward.22} parent=0 // pred_region
    _
  $region9: #{unet_forward.22} parent=0 // pred_fallthru
    _
  // Predicated region
  $region10: #{unet_forward.22} parent=0 // pred_check
    _
  $region11: #{unet_forward.22} parent=0 // pred_check_branch
    %14 = sbr.rel (0) target = $region13
  $region12: #{unet_forward.22} parent=0 // pred_region
    _
  $region13: #{unet_forward.22} parent=0 // pred_fallthru
    _
  // Predicated region
  $region14: #{unet_forward.22} parent=0 // pred_check
    _
  $region15: #{unet_forward.22} parent=0 // pred_check_branch
    %16 = sbr.rel (0) target = $region17
  $region16: #{unet_forward.22} parent=0 // pred_region
    _
  $region17: #{unet_forward.22} parent=0 // pred_fallthru
    _
  %v18 = vld [vmem:[%s0] sm:$0xff]
  %v19 = vld [vmem:[%s0 + $0x8] sm:$0xff]
  %v20 = vld [vmem:[%s0 + $0x10] sm:$0xff]
  %v21 = vld [vmem:[%s0 + $0x18] sm:$0xff]
  %v22 = vld [vmem:[%s0 + $0x20] sm:$0xff]
  %v23 = vld [vmem:[%s0 + $0x28] sm:$0xff]
  %v24 = vld [vmem:[%s0 + $0x30] sm:$0xff]
  %v25 = vld [vmem:[%s0 + $0x38] sm:$0xff]
  %v26 = vld [vmem:[%s0 + $0x40] sm:$0xff]
  %v27 = vld [vmem:[%s0 + $0x48] sm:$0xff]
  %v28 = vld [vmem:[%s0 + $0x50] sm:$0xff]
  %v29 = vld [vmem:[%s0 + $0x58] sm:$0xff]
  %v30 = vld [vmem:[%s0 + $0x60] sm:$0xff]
  %v31 = vld [vmem:[%s0 + $0x68] sm:$0xff]
  %v32 = vld [vmem:[%s0 + $0x70] sm:$0xff]
  %v33 = vld [vmem:[%s0 + $0x78] sm:$0xff]
  %v34 = vld [vmem:[%s1] sm:$0xf]
  %v35 = vld [vmem:[%s1 + $0x4] sm:$0xf]
  %v36 = vld [vmem:[%s1 + $0x8] sm:$0xf]
  %v37 = vld [vmem:[%s1 + $0xc] sm:$0xf]
  %v38 = vld [vmem:[%s1 + $0x10] sm:$0xf]
  %v39 = vld [vmem:[%s1 + $0x14] sm:$0xf]
  %v40 = vld [vmem:[%s1 + $0x18] sm:$0xf]
  %v41 = vld [vmem:[%s1 + $0x1c] sm:$0xf]
  %v42 = vld [vmem:[%s1 + $0x20] sm:$0xf]
  %v43 = vld [vmem:[%s1 + $0x24] sm:$0xf]
  %v44 = vld [vmem:[%s1 + $0x28] sm:$0xf]
  %v45 = vld [vmem:[%s1 + $0x2c] sm:$0xf]
  %v46 = vld [vmem:[%s1 + $0x30] sm:$0xf]
  %v47 = vld [vmem:[%s1 + $0x34] sm:$0xf]
  %v48 = vld [vmem:[%s1 + $0x38] sm:$0xf]
  %v49 = vld [vmem:[%s1 + $0x3c] sm:$0xf]
  %v50 = vld [vmem:[%s1 + $0x40] sm:$0xf]
  %v51 = vld [vmem:[%s1 + $0x44] sm:$0xf]
  %v68 = vunpack.c.l.b16 %v18
  %v69 = vunpack.c.h.b16 %v18
  %v70 = vunpack.c.l.b16 %v19
  %v71 = vunpack.c.h.b16 %v19
  %v72 = vunpack.c.l.b16 %v20
  %v73 = vunpack.c.h.b16 %v20
  %v74 = vunpack.c.l.b16 %v21
  %v75 = vunpack.c.h.b16 %v21
  %v76 = vunpack.c.l.b16 %v22
  %v77 = vunpack.c.h.b16 %v22
  %v78 = vunpack.c.l.b16 %v23
  %v79 = vunpack.c.h.b16 %v23
  %v80 = vunpack.c.l.b16 %v24
  %v81 = vunpack.c.h.b16 %v24
  %v82 = vunpack.c.l.b16 %v25
  %v83 = vunpack.c.h.b16 %v25
  %v84 = vunpack.c.l.b16 %v26
  %v85 = vunpack.c.h.b16 %v26
  %v86 = vunpack.c.l.b16 %v27
  %v87 = vunpack.c.h.b16 %v27
  %v88 = vunpack.c.l.b16 %v28
  %v89 = vunpack.c.h.b16 %v28
  %v90 = vunpack.c.l.b16 %v29
  %v91 = vunpack.c.h.b16 %v29
  %v92 = vunpack.c.l.b16 %v30
  %v93 = vunpack.c.h.b16 %v30
  %v94 = vunpack.c.l.b16 %v31
  %v95 = vunpack.c.h.b16 %v31
  %v96 = vunpack.c.l.b16 %v32
  %v97 = vunpack.c.h.b16 %v32
  %v98 = vunpack.c.l.b16 %v33
  %v99 = vunpack.c.h.b16 %v33
  %v100 = vpack.c.b16 %v70, %v68
  %v101 = vpack.c.b16 %v71, %v69
  %v102 = vpack.c.b16 %v74, %v72
  %v103 = vpack.c.b16 %v75, %v73
  %v104 = vpack.c.b16 %v78, %v76
  %v105 = vpack.c.b16 %v79, %v77
  %v106 = vpack.c.b16 %v82, %v80
  %v107 = vpack.c.b16 %v83, %v81
  %v108 = vpack.c.b16 %v86, %v84
  %v109 = vpack.c.b16 %v87, %v85
  %v110 = vpack.c.b16 %v90, %v88
  %v111 = vpack.c.b16 %v91, %v89
  %v112 = vpack.c.b16 %v94, %v92
  %v113 = vpack.c.b16 %v95, %v93
  %v114 = vpack.c.b16 %v98, %v96
  %v115 = vpack.c.b16 %v99, %v97
  %v142 = vunpack.c.l.b16 %v34
  %v143 = vunpack.c.l.b16 %v35
  %v144 = vunpack.c.l.b16 %v36
  %v145 = vunpack.c.l.b16 %v37
  %v146 = vunpack.c.l.b16 %v38
  %v147 = vunpack.c.l.b16 %v39
  %v148 = vunpack.c.l.b16 %v40
  %v149 = vunpack.c.l.b16 %v41
  %v150 = vunpack.c.l.b16 %v42
  %v151 = vunpack.c.l.b16 %v43
  %v152 = vunpack.c.l.b16 %v44
  %v153 = vunpack.c.l.b16 %v45
  %v154 = vunpack.c.l.b16 %v46
  %v155 = vunpack.c.l.b16 %v47
  %v156 = vunpack.c.l.b16 %v48
  %v157 = vunpack.c.l.b16 %v49
  %v158 = vunpack.c.l.b16 %v50
  %v159 = vunpack.c.l.b16 %v51
  %v160 = vpack.c.b16 %v143, %v142
  %v161 = vpack.c.b16 %v145, %v144
  %v162 = vpack.c.b16 %v147, %v146
  %v163 = vpack.c.b16 %v149, %v148
  %v164 = vpack.c.b16 %v151, %v150
  %v165 = vpack.c.b16 %v153, %v152
  %v166 = vpack.c.b16 %v155, %v154
  %v167 = vpack.c.b16 %v157, %v156
  %v168 = vpack.c.b16 %v159, %v158
  %vm178 = vcmask 130048
  %v180 = vsel %vm178, %v101, 0
  %v183 = vsel %vm178, %v103, 0
  %v186 = vsel %vm178, %v105, 0
  %v189 = vsel %vm178, %v107, 0
  %v192 = vsel %vm178, %v109, 0
  %v195 = vsel %vm178, %v111, 0
  %v198 = vsel %vm178, %v113, 0
  %v201 = vsel %vm178, %v115, 0
  %203 = vmatprep.subr.bf16.mxu0 0
  %204 = vmatpush1.bf16.msra.mxu0 %v160
  %205 = vmatprep.subr.bf16.mxu0 0
  %206 = vmatpush1.bf16.msra.mxu0 %v161
  %207 = vmatprep.subr.bf16.mxu0 0
  %208 = vmatpush1.bf16.msra.mxu0 %v162
  %209 = vmatprep.subr.bf16.mxu0 0
  %210 = vmatpush1.bf16.msra.mxu0 %v163
  %211 = vmatprep.subr.bf16.mxu0 0
  %212 = vmatpush1.bf16.msra.mxu0 %v164
  %213 = vmatprep.subr.bf16.mxu0 0
  %214 = vmatpush1.bf16.msra.mxu0 %v165
  %215 = vmatprep.subr.bf16.mxu0 0
  %216 = vmatpush1.bf16.msra.mxu0 %v166
  %217 = vmatprep.subr.bf16.mxu0 0
  %218 = vmatpush1.bf16.msra.mxu0 %v167
  %219 = vmatprep.subr.bf16.mxu0 0
  %220 = vmatpush1.bf16.msra.mxu0 %v168
  %221 = vmatprep.subr.bf16.mxu0 0
  %222 = vmatpush1.bf16.msra.mxu0 0
  %223 = vmatprep.subr.bf16.mxu0 0
  %224 = vmatpush1.bf16.msra.mxu0 0
  %225 = vmatprep.subr.bf16.mxu0 0
  %226 = vmatpush1.bf16.msra.mxu0 0
  %227 = vmatprep.subr.bf16.mxu0 0
  %228 = vmatpush1.bf16.msra.mxu0 0
  %229 = vmatprep.subr.bf16.mxu0 0
  %230 = vmatpush1.bf16.msra.mxu0 0
  %231 = vmatprep.subr.bf16.mxu0 0
  %232 = vmatpush1.bf16.msra.mxu0 0
  %233 = vmatprep.subr.bf16.mxu0 0
  %234 = vmatpush1.bf16.msra.mxu0 0
  %235 = vmatprep.mubr.bf16.mxu0 %v180
  %236 = vmatmul.mubr.bf16.gmra.mrb[0].mxu0 %v100
  %v237 = vpop.f32.mrb[0].mxu0
  %v238 = vadd.f32 0.0, %v237
  %v239 = vpop.f32.mrb[0].mxu0
  %v240 = vpop.f32.mrb[0].mxu0
  %v241 = vadd.f32 0.0, %v240
  %v242 = vpop.f32.mrb[0].mxu0
  %243 = vmatprep.mubr.bf16.mxu0 %v183
  %244 = vmatmul.mubr.bf16.gmra.mrb[0].mxu0 %v102
  %v245 = vpop.f32.mrb[0].mxu0
  %v246 = vadd.f32 0.0, %v245
  %v247 = vpop.f32.mrb[0].mxu0
  %v248 = vpop.f32.mrb[0].mxu0
  %v249 = vadd.f32 0.0, %v248
  %v250 = vpop.f32.mrb[0].mxu0
  %251 = vmatprep.mubr.bf16.mxu0 %v186
  %252 = vmatmul.mubr.bf16.gmra.mrb[0].mxu0 %v104
  %v253 = vpop.f32.mrb[0].mxu0
  %v254 = vadd.f32 0.0, %v253
  %v255 = vpop.f32.mrb[0].mxu0
  %v256 = vpop.f32.mrb[0].mxu0
  %v257 = vadd.f32 0.0, %v256
  %v258 = vpop.f32.mrb[0].mxu0
  %259 = vmatprep.mubr.bf16.mxu0 %v189
  %260 = vmatmul.mubr.bf16.gmra.mrb[0].mxu0 %v106
  %v261 = vpop.f32.mrb[0].mxu0
  %v262 = vadd.f32 0.0, %v261
  %v263 = vpop.f32.mrb[0].mxu0
  %v264 = vpop.f32.mrb[0].mxu0
  %v265 = vadd.f32 0.0, %v264
  %v266 = vpop.f32.mrb[0].mxu0
  %267 = vmatprep.mubr.bf16.mxu0 %v192
  %268 = vmatmul.mubr.bf16.gmra.mrb[0].mxu0 %v108
  %v269 = vpop.f32.mrb[0].mxu0
  %v270 = vadd.f32 0.0, %v269
  %v271 = vpop.f32.mrb[0].mxu0
  %v272 = vpop.f32.mrb[0].mxu0
  %v273 = vadd.f32 0.0, %v272
  %v274 = vpop.f32.mrb[0].mxu0
  %275 = vmatprep.mubr.bf16.mxu0 %v195
  %276 = vmatmul.mubr.bf16.gmra.mrb[0].mxu0 %v110
  %v277 = vpop.f32.mrb[0].mxu0
  %v278 = vadd.f32 0.0, %v277
  %v279 = vpop.f32.mrb[0].mxu0
  %v280 = vpop.f32.mrb[0].mxu0
  %v281 = vadd.f32 0.0, %v280
  %v282 = vpop.f32.mrb[0].mxu0
  %283 = vmatprep.mubr.bf16.mxu0 %v198
  %284 = vmatmul.mubr.bf16.gmra.mrb[0].mxu0 %v112
  %v285 = vpop.f32.mrb[0].mxu0
  %v286 = vadd.f32 0.0, %v285
  %v287 = vpop.f32.mrb[0].mxu0
  %v288 = vpop.f32.mrb[0].mxu0
  %v289 = vadd.f32 0.0, %v288
  %v290 = vpop.f32.mrb[0].mxu0
  %291 = vmatprep.mubr.bf16.mxu0 %v201
  %292 = vmatmul.mubr.bf16.gmra.mrb[0].mxu0 %v114
  %v293 = vpop.f32.mrb[0].mxu0
  %v294 = vadd.f32 0.0, %v293
  %v295 = vpop.f32.mrb[0].mxu0
  %v296 = vpop.f32.mrb[0].mxu0
  %v297 = vadd.f32 0.0, %v296
  %v298 = vpop.f32.mrb[0].mxu0
  %299 = vdwg.mxu0
  %v300 = vld [vmem:[%s2] sm:$0x1]
  %v302 = vlaneseq
  %v303 = vshrl.u32 %v302, 7
  %v304 = vsub.s32 0, %v303
  %v305 = vrot.slane %v300, %v304
  %v307 = vmul.f32 %v238, %v305
  %v308 = vmul.f32 %v241, %v305
  %v309 = vmul.f32 %v246, %v305
  %v310 = vmul.f32 %v249, %v305
  %v311 = vmul.f32 %v254, %v305
  %v312 = vmul.f32 %v257, %v305
  %v313 = vmul.f32 %v262, %v305
  %v314 = vmul.f32 %v265, %v305
  %v315 = vmul.f32 %v270, %v305
  %v316 = vmul.f32 %v273, %v305
  %v317 = vmul.f32 %v278, %v305
  %v318 = vmul.f32 %v281, %v305
  %v319 = vmul.f32 %v286, %v305
  %v320 = vmul.f32 %v289, %v305
  %v321 = vmul.f32 %v294, %v305
  %v322 = vmul.f32 %v297, %v305
  %v323 = vld [vmem:[%s3] sm:$0x1]
  %v325 = vlaneseq
  %v326 = vshrl.u32 %v325, 7
  %v327 = vsub.s32 0, %v326
  %v328 = vrot.slane %v323, %v327
  %v330 = vadd.f32 %v307, %v328
  %v331 = vadd.f32 %v308, %v328
  %v332 = vadd.f32 %v309, %v328
  %v333 = vadd.f32 %v310, %v328
  %v334 = vadd.f32 %v311, %v328
  %v335 = vadd.f32 %v312, %v328
  %v336 = vadd.f32 %v313, %v328
  %v337 = vadd.f32 %v314, %v328
  %v338 = vadd.f32 %v315, %v328
  %v339 = vadd.f32 %v316, %v328
  %v340 = vadd.f32 %v317, %v328
  %v341 = vadd.f32 %v318, %v328
  %v342 = vadd.f32 %v319, %v328
  %v343 = vadd.f32 %v320, %v328
  %v344 = vadd.f32 %v321, %v328
  %v345 = vadd.f32 %v322, %v328
  %v346 = vmax.f32 %v330, 0.0
  %v347 = vmax.f32 %v331, 0.0
  %v348 = vmax.f32 %v332, 0.0
  %v349 = vmax.f32 %v333, 0.0
  %v350 = vmax.f32 %v334, 0.0
  %v351 = vmax.f32 %v335, 0.0
  %v352 = vmax.f32 %v336, 0.0
  %v353 = vmax.f32 %v337, 0.0
  %v354 = vmax.f32 %v338, 0.0
  %v355 = vmax.f32 %v339, 0.0
  %v356 = vmax.f32 %v340, 0.0
  %v357 = vmax.f32 %v341, 0.0
  %v358 = vmax.f32 %v342, 0.0
  %v359 = vmax.f32 %v343, 0.0
  %v360 = vmax.f32 %v344, 0.0
  %v361 = vmax.f32 %v345, 0.0
  %vm362 = vcmask 261120
  %363 = vst.msk [vmem:[%s4] sm:$0xff] %vm362, %v346
  %364 = vst.msk [vmem:[%s4 + $0x8] sm:$0xff] %vm362, %v347
  %365 = vst.msk [vmem:[%s4 + $0x10] sm:$0xff] %vm362, %v348
  %366 = vst.msk [vmem:[%s4 + $0x18] sm:$0xff] %vm362, %v349
  %367 = vst.msk [vmem:[%s4 + $0x20] sm:$0xff] %vm362, %v350
  %368 = vst.msk [vmem:[%s4 + $0x28] sm:$0xff] %vm362, %v351
  %369 = vst.msk [vmem:[%s4 + $0x30] sm:$0xff] %vm362, %v352
  %370 = vst.msk [vmem:[%s4 + $0x38] sm:$0xff] %vm362, %v353
  %371 = vst.msk [vmem:[%s4 + $0x40] sm:$0xff] %vm362, %v354
  %372 = vst.msk [vmem:[%s4 + $0x48] sm:$0xff] %vm362, %v355
  %373 = vst.msk [vmem:[%s4 + $0x50] sm:$0xff] %vm362, %v356
  %374 = vst.msk [vmem:[%s4 + $0x58] sm:$0xff] %vm362, %v357
  %375 = vst.msk [vmem:[%s4 + $0x60] sm:$0xff] %vm362, %v358
  %376 = vst.msk [vmem:[%s4 + $0x68] sm:$0xff] %vm362, %v359
  %377 = vst.msk [vmem:[%s4 + $0x70] sm:$0xff] %vm362, %v360
  %378 = vst.msk [vmem:[%s4 + $0x78] sm:$0xff] %vm362, %v361
  // Predicated region
  $region18: #{unet_forward.22} parent=0 // pred_check
    _
  $region19: #{unet_forward.22} parent=0 // pred_check_branch
    %380 = sbr.rel (0) target = $region21
  $region20: #{unet_forward.22} parent=0 // pred_region
    _
  $region21: #{unet_forward.22} parent=0 // pred_fallthru
    _
  // Predicated region
  $region22: #{unet_forward.22} parent=0 // pred_check
    _
  $region23: #{unet_forward.22} parent=0 // pred_check_branch
    %382 = sbr.rel (0) target = $region25
  $region24: #{unet_forward.22} parent=0 // pred_region
    _
  $region25: #{unet_forward.22} parent=0 // pred_fallthru
    _

// kernel: unet_forward.23
$region0: #{unet_forward.23}
  #allocation0 [shape = 'u32[]', space=smem, size = 0x4, offset = 0x4, fixed_abs, tag = 'smem constant byte address 0x4 - core index']
  #allocation1 [shape = 'u32[144,128]{1,0:T(1,128)}', space=vmem, size = 0x12000, scoped, tag = 'internal scratch']
  %s0 = inlined_call_operand.vmem [shape: bf16[128,288], index: 0, kind: input, shape index: {}]
  %s1 = inlined_call_operand.vmem [shape: bf16[288,32], index: 1, kind: input, shape index: {}]
  %s2 = inlined_call_operand.vmem [shape: f32[1,32], index: 2, kind: input, shape index: {}]
  %s3 = inlined_call_operand.vmem [shape: f32[1,32], index: 3, kind: input, shape index: {}]
  %s4 = inlined_call_operand.vmem [shape: f32[128,32], index: 4, kind: output, shape index: {}]
  %s5 = sld [smem:[#allocation0]]
  $region26: #{unet_forward.23} parent=0
    _
  %s7 = ssub.s32 1, %s5
  %s8 = scalar_select 0, %s7, %s5
  // Predicated region
  $region2: #{unet_forward.23} parent=0 // pred_check
    _
  $region3: #{unet_forward.23} parent=0 // pred_check_branch
    %10 = sbr.rel (0) target = $region5
  $region4: #{unet_forward.23} parent=0 // pred_region
    _
  $region5: #{unet_forward.23} parent=0 // pred_fallthru
    _
  // Predicated region
  $region6: #{unet_forward.23} parent=0 // pred_check
    _
  $region7: #{unet_forward.23} parent=0 // pred_check_branch
    %12 = sbr.rel (0) target = $region9
  $region8: #{unet_forward.23} parent=0 // pred_region
    _
  $region9: #{unet_forward.23} parent=0 // pred_fallthru
    _
  // Predicated region
  $region10: #{unet_forward.23} parent=0 // pred_check
    _
  $region11: #{unet_forward.23} parent=0 // pred_check_branch
    %14 = sbr.rel (0) target = $region13
  $region12: #{unet_forward.23} parent=0 // pred_region
    _
  $region13: #{unet_forward.23} parent=0 // pred_fallthru
    _
  // Predicated region
  $region14: #{unet_forward.23} parent=0 // pred_check
    _
  $region15: #{unet_forward.23} parent=0 // pred_check_branch
    %16 = sbr.rel (0) target = $region17
  $region16: #{unet_forward.23} parent=0 // pred_region
    _
  $region17: #{unet_forward.23} parent=0 // pred_fallthru
    _
  %v18 = vld [vmem:[%s0] sm:$0xff]
  %v19 = vld [vmem:[%s0 + $0x8] sm:$0xf]
  %v20 = vld [vmem:[%s0 + $0xc] sm:$0xff]
  %v21 = vld [vmem:[%s0 + $0x14] sm:$0xf]
  %v22 = vld [vmem:[%s0 + $0x18] sm:$0xff]
  %v23 = vld [vmem:[%s0 + $0x20] sm:$0xf]
  %v24 = vld [vmem:[%s0 + $0x24] sm:$0xff]
  %v25 = vld [vmem:[%s0 + $0x2c] sm:$0xf]
  %v26 = vld [vmem:[%s0 + $0x30] sm:$0xff]
  %v27 = vld [vmem:[%s0 + $0x38] sm:$0xf]
  %v28 = vld [vmem:[%s0 + $0x3c] sm:$0xff]
  %v29 = vld [vmem:[%s0 + $0x44] sm:$0xf]
  %v30 = vld [vmem:[%s0 + $0x48] sm:$0xff]
  %v31 = vld [vmem:[%s0 + $0x50] sm:$0xf]
  %v32 = vld [vmem:[%s0 + $0x54] sm:$0xff]
  %v33 = vld [vmem:[%s0 + $0x5c] sm:$0xf]
  %v34 = vld [vmem:[%s0 + $0x60] sm:$0xff]
  %v35 = vld [vmem:[%s0 + $0x68] sm:$0xf]
  %v36 = vld [vmem:[%s0 + $0x6c] sm:$0xff]
  %v37 = vld [vmem:[%s0 + $0x74] sm:$0xf]
  %v38 = vld [vmem:[%s0 + $0x78] sm:$0xff]
  %v39 = vld [vmem:[%s0 + $0x80] sm:$0xf]
  %v40 = vld [vmem:[%s0 + $0x84] sm:$0xff]
  %v41 = vld [vmem:[%s0 + $0x8c] sm:$0xf]
  %v42 = vld [vmem:[%s0 + $0x90] sm:$0xff]
  %v43 = vld [vmem:[%s0 + $0x98] sm:$0xf]
  %v44 = vld [vmem:[%s0 + $0x9c] sm:$0xff]
  %v45 = vld [vmem:[%s0 + $0xa4] sm:$0xf]
  %v46 = vld [vmem:[%s0 + $0xa8] sm:$0xff]
  %v47 = vld [vmem:[%s0 + $0xb0] sm:$0xf]
  %v48 = vld [vmem:[%s0 + $0xb4] sm:$0xff]
  %v49 = vld [vmem:[%s0 + $0xbc] sm:$0xf]
  %v50 = vld [vmem:[%s1] sm:$0xf]
  %v51 = vld [vmem:[%s1 + $0x4] sm:$0xf]
  %v52 = vld [vmem:[%s1 + $0x8] sm:$0xf]
  %v53 = vld [vmem:[%s1 + $0xc] sm:$0xf]
  %v54 = vld [vmem:[%s1 + $0x10] sm:$0xf]
  %v55 = vld [vmem:[%s1 + $0x14] sm:$0xf]
  %v56 = vld [vmem:[%s1 + $0x18] sm:$0xf]
  %v57 = vld [vmem:[%s1 + $0x1c] sm:$0xf]
  %v58 = vld [vmem:[%s1 + $0x20] sm:$0xf]
  %v59 = vld [vmem:[%s1 + $0x24] sm:$0xf]
  %v60 = vld [vmem:[%s1 + $0x28] sm:$0xf]
  %v61 = vld [vmem:[%s1 + $0x2c] sm:$0xf]
  %v62 = vld [vmem:[%s1 + $0x30] sm:$0xf]
  %v63 = vld [vmem:[%s1 + $0x34] sm:$0xf]
  %v64 = vld [vmem:[%s1 + $0x38] sm:$0xf]
  %v65 = vld [vmem:[%s1 + $0x3c] sm:$0xf]
  %v66 = vld [vmem:[%s1 + $0x40] sm:$0xf]
  %v67 = vld [vmem:[%s1 + $0x44] sm:$0xf]
  %v68 = vld [vmem:[%s1 + $0x48] sm:$0xf]
  %v69 = vld [vmem:[%s1 + $0x4c] sm:$0xf]
  %v70 = vld [vmem:[%s1 + $0x50] sm:$0xf]
  %v71 = vld [vmem:[%s1 + $0x54] sm:$0xf]
  %v72 = vld [vmem:[%s1 + $0x58] sm:$0xf]
  %v73 = vld [vmem:[%s1 + $0x5c] sm:$0xf]
  %v74 = vld [vmem:[%s1 + $0x60] sm:$0xf]
  %v75 = vld [vmem:[%s1 + $0x64] sm:$0xf]
  %v76 = vld [vmem:[%s1 + $0x68] sm:$0xf]
  %v77 = vld [vmem:[%s1 + $0x6c] sm:$0xf]
  %v78 = vld [vmem:[%s1 + $0x70] sm:$0xf]
  %v79 = vld [vmem:[%s1 + $0x74] sm:$0xf]
  %v80 = vld [vmem:[%s1 + $0x78] sm:$0xf]
  %v81 = vld [vmem:[%s1 + $0x7c] sm:$0xf]
  %v82 = vld [vmem:[%s1 + $0x80] sm:$0xf]
  %v83 = vld [vmem:[%s1 + $0x84] sm:$0xf]
  %v84 = vld [vmem:[%s1 + $0x88] sm:$0xf]
  %v85 = vld [vmem:[%s1 + $0x8c] sm:$0xf]
  %v118 = vunpack.c.l.b16 %v18
  %v119 = vunpack.c.h.b16 %v18
  %v120 = vunpack.c.l.b16 %v19
  %v121 = vunpack.c.l.b16 %v20
  %v122 = vunpack.c.h.b16 %v20
  %v123 = vunpack.c.l.b16 %v21
  %v124 = vunpack.c.l.b16 %v22
  %v125 = vunpack.c.h.b16 %v22
  %v126 = vunpack.c.l.b16 %v23
  %v127 = vunpack.c.l.b16 %v24
  %v128 = vunpack.c.h.b16 %v24
  %v129 = vunpack.c.l.b16 %v25
  %v130 = vunpack.c.l.b16 %v26
  %v131 = vunpack.c.h.b16 %v26
  %v132 = vunpack.c.l.b16 %v27
  %v133 = vunpack.c.l.b16 %v28
  %v134 = vunpack.c.h.b16 %v28
  %v135 = vunpack.c.l.b16 %v29
  %v136 = vunpack.c.l.b16 %v30
  %v137 = vunpack.c.h.b16 %v30
  %v138 = vunpack.c.l.b16 %v31
  %v139 = vunpack.c.l.b16 %v32
  %v140 = vunpack.c.h.b16 %v32
  %v141 = vunpack.c.l.b16 %v33
  %v142 = vunpack.c.l.b16 %v34
  %v143 = vunpack.c.h.b16 %v34
  %v144 = vunpack.c.l.b16 %v35
  %v145 = vunpack.c.l.b16 %v36
  %v146 = vunpack.c.h.b16 %v36
  %v147 = vunpack.c.l.b16 %v37
  %v148 = vunpack.c.l.b16 %v38
  %v149 = vunpack.c.h.b16 %v38
  %v150 = vunpack.c.l.b16 %v39
  %v151 = vunpack.c.l.b16 %v40
  %v152 = vunpack.c.h.b16 %v40
  %v153 = vunpack.c.l.b16 %v41
  %v154 = vunpack.c.l.b16 %v42
  %v155 = vunpack.c.h.b16 %v42
  %v156 = vunpack.c.l.b16 %v43
  %v157 = vunpack.c.l.b16 %v44
  %v158 = vunpack.c.h.b16 %v44
  %v159 = vunpack.c.l.b16 %v45
  %v160 = vunpack.c.l.b16 %v46
  %v161 = vunpack.c.h.b16 %v46
  %v162 = vunpack.c.l.b16 %v47
  %v163 = vunpack.c.l.b16 %v48
  %v164 = vunpack.c.h.b16 %v48
  %v165 = vunpack.c.l.b16 %v49
  %v166 = vpack.c.b16 %v121, %v118
  %v167 = vpack.c.b16 %v122, %v119
  %v168 = vpack.c.b16 %v123, %v120
  %v169 = vpack.c.b16 %v127, %v124
  %v170 = vpack.c.b16 %v128, %v125
  %v171 = vpack.c.b16 %v129, %v126
  %v172 = vpack.c.b16 %v133, %v130
  %v173 = vpack.c.b16 %v134, %v131
  %v174 = vpack.c.b16 %v135, %v132
  %v175 = vpack.c.b16 %v139, %v136
  %v176 = vpack.c.b16 %v140, %v137
  %v177 = vpack.c.b16 %v141, %v138
  %v178 = vpack.c.b16 %v145, %v142
  %v179 = vpack.c.b16 %v146, %v143
  %v180 = vpack.c.b16 %v147, %v144
  %v181 = vpack.c.b16 %v151, %v148
  %v182 = vpack.c.b16 %v152, %v149
  %v183 = vpack.c.b16 %v153, %v150
  %v184 = vpack.c.b16 %v157, %v154
  %v185 = vpack.c.b16 %v158, %v155
  %v186 = vpack.c.b16 %v159, %v156
  %v187 = vpack.c.b16 %v163, %v160
  %v188 = vpack.c.b16 %v164, %v161
  %v189 = vpack.c.b16 %v165, %v162
  %v242 = vunpack.c.l.b16 %v50
  %v243 = vunpack.c.l.b16 %v51
  %v244 = vunpack.c.l.b16 %v52
  %v245 = vunpack.c.l.b16 %v53
  %v246 = vunpack.c.l.b16 %v54
  %v247 = vunpack.c.l.b16 %v55
  %v248 = vunpack.c.l.b16 %v56
  %v249 = vunpack.c.l.b16 %v57
  %v250 = vunpack.c.l.b16 %v58
  %v251 = vunpack.c.l.b16 %v59
  %v252 = vunpack.c.l.b16 %v60
  %v253 = vunpack.c.l.b16 %v61
  %v254 = vunpack.c.l.b16 %v62
  %v255 = vunpack.c.l.b16 %v63
  %v256 = vunpack.c.l.b16 %v64
  %v257 = vunpack.c.l.b16 %v65
  %v258 = vunpack.c.l.b16 %v66
  %v259 = vunpack.c.l.b16 %v67
  %v260 = vunpack.c.l.b16 %v68
  %v261 = vunpack.c.l.b16 %v69
  %v262 = vunpack.c.l.b16 %v70
  %v263 = vunpack.c.l.b16 %v71
  %v264 = vunpack.c.l.b16 %v72
  %v265 = vunpack.c.l.b16 %v73
  %v266 = vunpack.c.l.b16 %v74
  %v267 = vunpack.c.l.b16 %v75
  %v268 = vunpack.c.l.b16 %v76
  %v269 = vunpack.c.l.b16 %v77
  %v270 = vunpack.c.l.b16 %v78
  %v271 = vunpack.c.l.b16 %v79
  %v272 = vunpack.c.l.b16 %v80
  %v273 = vunpack.c.l.b16 %v81
  %v274 = vunpack.c.l.b16 %v82
  %v275 = vunpack.c.l.b16 %v83
  %v276 = vunpack.c.l.b16 %v84
  %v277 = vunpack.c.l.b16 %v85
  %v278 = vpack.c.b16 %v243, %v242
  %v279 = vpack.c.b16 %v245, %v244
  %v280 = vpack.c.b16 %v247, %v246
  %v281 = vpack.c.b16 %v249, %v248
  %v282 = vpack.c.b16 %v251, %v250
  %v283 = vpack.c.b16 %v253, %v252
  %v284 = vpack.c.b16 %v255, %v254
  %v285 = vpack.c.b16 %v257, %v256
  %v286 = vpack.c.b16 %v259, %v258
  %v287 = vpack.c.b16 %v261, %v260
  %v288 = vpack.c.b16 %v263, %v262
  %v289 = vpack.c.b16 %v265, %v264
  %v290 = vpack.c.b16 %v267, %v266
  %v291 = vpack.c.b16 %v269, %v268
  %v292 = vpack.c.b16 %v271, %v270
  %v293 = vpack.c.b16 %v273, %v272
  %v294 = vpack.c.b16 %v275, %v274
  %v295 = vpack.c.b16 %v277, %v276
  %vm314 = vcmask 261120
  %v316 = vsel %vm314, %v168, 0
  %v319 = vsel %vm314, %v171, 0
  %v322 = vsel %vm314, %v174, 0
  %v325 = vsel %vm314, %v177, 0
  %v328 = vsel %vm314, %v180, 0
  %v331 = vsel %vm314, %v183, 0
  %v334 = vsel %vm314, %v186, 0
  %v337 = vsel %vm314, %v189, 0
  %339 = vmatprep.subr.bf16.mxu0 0
  %340 = vmatpush1.bf16.msra.mxu0 %v278
  %341 = vmatprep.subr.bf16.mxu0 0
  %342 = vmatpush1.bf16.msra.mxu0 %v279
  %343 = vmatprep.subr.bf16.mxu0 0
  %344 = vmatpush1.bf16.msra.mxu0 %v280
  %345 = vmatprep.subr.bf16.mxu0 0
  %346 = vmatpush1.bf16.msra.mxu0 %v281
  %347 = vmatprep.subr.bf16.mxu0 0
  %348 = vmatpush1.bf16.msra.mxu0 %v282
  %349 = vmatprep.subr.bf16.mxu0 0
  %350 = vmatpush1.bf16.msra.mxu0 %v283
  %351 = vmatprep.subr.bf16.mxu0 0
  %352 = vmatpush1.bf16.msra.mxu0 %v284
  %353 = vmatprep.subr.bf16.mxu0 0
  %354 = vmatpush1.bf16.msra.mxu0 %v285
  %355 = vmatprep.subr.bf16.mxu0 0
  %356 = vmatpush1.bf16.msra.mxu0 %v286
  %357 = vmatprep.subr.bf16.mxu0 0
  %358 = vmatpush1.bf16.msra.mxu0 %v287
  %359 = vmatprep.subr.bf16.mxu0 0
  %360 = vmatpush1.bf16.msra.mxu0 %v288
  %361 = vmatprep.subr.bf16.mxu0 0
  %362 = vmatpush1.bf16.msra.mxu0 %v289
  %363 = vmatprep.subr.bf16.mxu0 0
  %364 = vmatpush1.bf16.msra.mxu0 %v290
  %365 = vmatprep.subr.bf16.mxu0 0
  %366 = vmatpush1.bf16.msra.mxu0 %v291
  %367 = vmatprep.subr.bf16.mxu0 0
  %368 = vmatpush1.bf16.msra.mxu0 %v292
  %369 = vmatprep.subr.bf16.mxu0 0
  %370 = vmatpush1.bf16.msra.mxu0 %v293
  %371 = vmatprep.mubr.bf16.mxu0 %v167
  %372 = vmatmul.mubr.bf16.gmra.mrb[0].mxu0 %v166
  %v373 = vpop.f32.mrb[0].mxu0
  %v374 = vadd.f32 0.0, %v373
  %v375 = vpop.f32.mrb[0].mxu0
  %v376 = vpop.f32.mrb[0].mxu0
  %v377 = vadd.f32 0.0, %v376
  %v378 = vpop.f32.mrb[0].mxu0
  %379 = vmatprep.mubr.bf16.mxu0 %v170
  %380 = vmatmul.mubr.bf16.gmra.mrb[0].mxu0 %v169
  %v381 = vpop.f32.mrb[0].mxu0
  %v382 = vadd.f32 0.0, %v381
  %v383 = vpop.f32.mrb[0].mxu0
  %v384 = vpop.f32.mrb[0].mxu0
  %v385 = vadd.f32 0.0, %v384
  %v386 = vpop.f32.mrb[0].mxu0
  %387 = vmatprep.mubr.bf16.mxu0 %v173
  %388 = vmatmul.mubr.bf16.gmra.mrb[0].mxu0 %v172
  %v389 = vpop.f32.mrb[0].mxu0
  %v390 = vadd.f32 0.0, %v389
  %v391 = vpop.f32.mrb[0].mxu0
  %v392 = vpop.f32.mrb[0].mxu0
  %v393 = vadd.f32 0.0, %v392
  %v394 = vpop.f32.mrb[0].mxu0
  %395 = vmatprep.mubr.bf16.mxu0 %v176
  %396 = vmatmul.mubr.bf16.gmra.mrb[0].mxu0 %v175
  %v397 = vpop.f32.mrb[0].mxu0
  %v398 = vadd.f32 0.0, %v397
  %v399 = vpop.f32.mrb[0].mxu0
  %v400 = vpop.f32.mrb[0].mxu0
  %v401 = vadd.f32 0.0, %v400
  %v402 = vpop.f32.mrb[0].mxu0
  %403 = vmatprep.mubr.bf16.mxu0 %v179
  %404 = vmatmul.mubr.bf16.gmra.mrb[0].mxu0 %v178
  %v405 = vpop.f32.mrb[0].mxu0
  %v406 = vadd.f32 0.0, %v405
  %v407 = vpop.f32.mrb[0].mxu0
  %v408 = vpop.f32.mrb[0].mxu0
  %v409 = vadd.f32 0.0, %v408
  %v410 = vpop.f32.mrb[0].mxu0
  %411 = vmatprep.mubr.bf16.mxu0 %v182
  %412 = vmatmul.mubr.bf16.gmra.mrb[0].mxu0 %v181
  %v413 = vpop.f32.mrb[0].mxu0
  %v414 = vadd.f32 0.0, %v413
  %v415 = vpop.f32.mrb[0].mxu0
  %v416 = vpop.f32.mrb[0].mxu0
  %v417 = vadd.f32 0.0, %v416
  %v418 = vpop.f32.mrb[0].mxu0
  %419 = vmatprep.mubr.bf16.mxu0 %v185
  %420 = vmatmul.mubr.bf16.gmra.mrb[0].mxu0 %v184
  %v421 = vpop.f32.mrb[0].mxu0
  %v422 = vadd.f32 0.0, %v421
  %v423 = vpop.f32.mrb[0].mxu0
  %v424 = vpop.f32.mrb[0].mxu0
  %v425 = vadd.f32 0.0, %v424
  %v426 = vpop.f32.mrb[0].mxu0
  %427 = vmatprep.mubr.bf16.mxu0 %v188
  %428 = vmatmul.mubr.bf16.gmra.mrb[0].mxu0 %v187
  %v429 = vpop.f32.mrb[0].mxu0
  %v430 = vadd.f32 0.0, %v429
  %v431 = vpop.f32.mrb[0].mxu0
  %v432 = vpop.f32.mrb[0].mxu0
  %v433 = vadd.f32 0.0, %v432
  %v434 = vpop.f32.mrb[0].mxu0
  %435 = vdwg.mxu0
  %436 = vmatprep.subr.bf16.mxu0 0
  %437 = vmatpush1.bf16.msra.mxu0 %v294
  %438 = vmatprep.subr.bf16.mxu0 0
  %439 = vmatpush1.bf16.msra.mxu0 %v295
  %440 = vmatprep.subr.bf16.mxu0 0
  %441 = vmatpush1.bf16.msra.mxu0 0
  %442 = vmatprep.subr.bf16.mxu0 0
  %443 = vmatpush1.bf16.msra.mxu0 0
  %444 = vmatprep.subr.bf16.mxu0 0
  %445 = vmatpush1.bf16.msra.mxu0 0
  %446 = vmatprep.subr.bf16.mxu0 0
  %447 = vmatpush1.bf16.msra.mxu0 0
  %448 = vmatprep.subr.bf16.mxu0 0
  %449 = vmatpush1.bf16.msra.mxu0 0
  %450 = vmatprep.subr.bf16.mxu0 0
  %451 = vmatpush1.bf16.msra.mxu0 0
  %452 = vmatprep.subr.bf16.mxu0 0
  %453 = vmatpush1.bf16.msra.mxu0 0
  %454 = vmatprep.subr.bf16.mxu0 0
  %455 = vmatpush1.bf16.msra.mxu0 0
  %456 = vmatprep.subr.bf16.mxu0 0
  %457 = vmatpush1.bf16.msra.mxu0 0
  %458 = vmatprep.subr.bf16.mxu0 0
  %459 = vmatpush1.bf16.msra.mxu0 0
  %460 = vmatprep.subr.bf16.mxu0 0
  %461 = vmatpush1.bf16.msra.mxu0 0
  %462 = vmatprep.subr.bf16.mxu0 0
  %463 = vmatpush1.bf16.msra.mxu0 0
  %464 = vmatprep.subr.bf16.mxu0 0
  %465 = vmatpush1.bf16.msra.mxu0 0
  %466 = vmatprep.subr.bf16.mxu0 0
  %467 = vmatpush1.bf16.msra.mxu0 0
  %468 = vmatprep.mubr.bf16.mxu0 0
  %469 = vmatmul.mubr.bf16.gmra.mrb[0].mxu0 %v316
  %v470 = vpop.f32.mrb[0].mxu0
  %v471 = vadd.f32 %v374, %v470
  %v472 = vpop.f32.mrb[0].mxu0
  %v473 = vpop.f32.mrb[0].mxu0
  %v474 = vadd.f32 %v377, %v473
  %v475 = vpop.f32.mrb[0].mxu0
  %476 = vmatprep.mubr.bf16.mxu0 0
  %477 = vmatmul.mubr.bf16.gmra.mrb[0].mxu0 %v319
  %v478 = vpop.f32.mrb[0].mxu0
  %v479 = vadd.f32 %v382, %v478
  %v480 = vpop.f32.mrb[0].mxu0
  %v481 = vpop.f32.mrb[0].mxu0
  %v482 = vadd.f32 %v385, %v481
  %v483 = vpop.f32.mrb[0].mxu0
  %484 = vmatprep.mubr.bf16.mxu0 0
  %485 = vmatmul.mubr.bf16.gmra.mrb[0].mxu0 %v322
  %v486 = vpop.f32.mrb[0].mxu0
  %v487 = vadd.f32 %v390, %v486
  %v488 = vpop.f32.mrb[0].mxu0
  %v489 = vpop.f32.mrb[0].mxu0
  %v490 = vadd.f32 %v393, %v489
  %v491 = vpop.f32.mrb[0].mxu0
  %492 = vmatprep.mubr.bf16.mxu0 0
  %493 = vmatmul.mubr.bf16.gmra.mrb[0].mxu0 %v325
  %v494 = vpop.f32.mrb[0].mxu0
  %v495 = vadd.f32 %v398, %v494
  %v496 = vpop.f32.mrb[0].mxu0
  %v497 = vpop.f32.mrb[0].mxu0
  %v498 = vadd.f32 %v401, %v497
  %v499 = vpop.f32.mrb[0].mxu0
  %500 = vmatprep.mubr.bf16.mxu0 0
  %501 = vmatmul.mubr.bf16.gmra.mrb[0].mxu0 %v328
  %v502 = vpop.f32.mrb[0].mxu0
  %v503 = vadd.f32 %v406, %v502
  %v504 = vpop.f32.mrb[0].mxu0
  %v505 = vpop.f32.mrb[0].mxu0
  %v506 = vadd.f32 %v409, %v505
  %v507 = vpop.f32.mrb[0].mxu0
  %508 = vmatprep.mubr.bf16.mxu0 0
  %509 = vmatmul.mubr.bf16.gmra.mrb[0].mxu0 %v331
  %v510 = vpop.f32.mrb[0].mxu0
  %v511 = vadd.f32 %v414, %v510
  %v512 = vpop.f32.mrb[0].mxu0
  %v513 = vpop.f32.mrb[0].mxu0
  %v514 = vadd.f32 %v417, %v513
  %v515 = vpop.f32.mrb[0].mxu0
  %516 = vmatprep.mubr.bf16.mxu0 0
  %517 = vmatmul.mubr.bf16.gmra.mrb[0].mxu0 %v334
  %v518 = vpop.f32.mrb[0].mxu0
  %v519 = vadd.f32 %v422, %v518
  %v520 = vpop.f32.mrb[0].mxu0
  %v521 = vpop.f32.mrb[0].mxu0
  %v522 = vadd.f32 %v425, %v521
  %v523 = vpop.f32.mrb[0].mxu0
  %524 = vmatprep.mubr.bf16.mxu0 0
  %525 = vmatmul.mubr.bf16.gmra.mrb[0].mxu0 %v337
  %v526 = vpop.f32.mrb[0].mxu0
  %v527 = vadd.f32 %v430, %v526
  %v528 = vpop.f32.mrb[0].mxu0
  %v529 = vpop.f32.mrb[0].mxu0
  %v530 = vadd.f32 %v433, %v529
  %v531 = vpop.f32.mrb[0].mxu0
  %532 = vdwg.mxu0
  %v533 = vld [vmem:[%s2] sm:$0x1]
  %v535 = vlaneseq
  %v536 = vshrl.u32 %v535, 7
  %v537 = vsub.s32 0, %v536
  %v538 = vrot.slane %v533, %v537
  %v540 = vmul.f32 %v471, %v538
  %v541 = vmul.f32 %v474, %v538
  %v542 = vmul.f32 %v479, %v538
  %v543 = vmul.f32 %v482, %v538
  %v544 = vmul.f32 %v487, %v538
  %v545 = vmul.f32 %v490, %v538
  %v546 = vmul.f32 %v495, %v538
  %v547 = vmul.f32 %v498, %v538
  %v548 = vmul.f32 %v503, %v538
  %v549 = vmul.f32 %v506, %v538
  %v550 = vmul.f32 %v511, %v538
  %v551 = vmul.f32 %v514, %v538
  %v552 = vmul.f32 %v519, %v538
  %v553 = vmul.f32 %v522, %v538
  %v554 = vmul.f32 %v527, %v538
  %v555 = vmul.f32 %v530, %v538
  %v556 = vld [vmem:[%s3] sm:$0x1]
  %v558 = vlaneseq
  %v559 = vshrl.u32 %v558, 7
  %v560 = vsub.s32 0, %v559
  %v561 = vrot.slane %v556, %v560
  %v563 = vadd.f32 %v540, %v561
  %v564 = vadd.f32 %v541, %v561
  %v565 = vadd.f32 %v542, %v561
  %v566 = vadd.f32 %v543, %v561
  %v567 = vadd.f32 %v544, %v561
  %v568 = vadd.f32 %v545, %v561
  %v569 = vadd.f32 %v546, %v561
  %v570 = vadd.f32 %v547, %v561
  %v571 = vadd.f32 %v548, %v561
  %v572 = vadd.f32 %v549, %v561
  %v573 = vadd.f32 %v550, %v561
  %v574 = vadd.f32 %v551, %v561
  %v575 = vadd.f32 %v552, %v561
  %v576 = vadd.f32 %v553, %v561
  %v577 = vadd.f32 %v554, %v561
  %v578 = vadd.f32 %v555, %v561
  %v579 = vmax.f32 %v563, 0.0
  %v580 = vmax.f32 %v564, 0.0
  %v581 = vmax.f32 %v565, 0.0
  %v582 = vmax.f32 %v566, 0.0
  %v583 = vmax.f32 %v567, 0.0
  %v584 = vmax.f32 %v568, 0.0
  %v585 = vmax.f32 %v569, 0.0
  %v586 = vmax.f32 %v570, 0.0
  %v587 = vmax.f32 %v571, 0.0
  %v588 = vmax.f32 %v572, 0.0
  %v589 = vmax.f32 %v573, 0.0
  %v590 = vmax.f32 %v574, 0.0
  %v591 = vmax.f32 %v575, 0.0
  %v592 = vmax.f32 %v576, 0.0
  %v593 = vmax.f32 %v577, 0.0
  %v594 = vmax.f32 %v578, 0.0
  %595 = vst.msk [vmem:[%s4] sm:$0xff] %vm314, %v579
  %596 = vst.msk [vmem:[%s4 + $0x8] sm:$0xff] %vm314, %v580
  %597 = vst.msk [vmem:[%s4 + $0x10] sm:$0xff] %vm314, %v581
  %598 = vst.msk [vmem:[%s4 + $0x18] sm:$0xff] %vm314, %v582
  %599 = vst.msk [vmem:[%s4 + $0x20] sm:$0xff] %vm314, %v583
  %600 = vst.msk [vmem:[%s4 + $0x28] sm:$0xff] %vm314, %v584
  %601 = vst.msk [vmem:[%s4 + $0x30] sm:$0xff] %vm314, %v585
  %602 = vst.msk [vmem:[%s4 + $0x38] sm:$0xff] %vm314, %v586
  %603 = vst.msk [vmem:[%s4 + $0x40] sm:$0xff] %vm314, %v587
  %604 = vst.msk [vmem:[%s4 + $0x48] sm:$0xff] %vm314, %v588
  %605 = vst.msk [vmem:[%s4 + $0x50] sm:$0xff] %vm314, %v589
  %606 = vst.msk [vmem:[%s4 + $0x58] sm:$0xff] %vm314, %v590
  %607 = vst.msk [vmem:[%s4 + $0x60] sm:$0xff] %vm314, %v591
  %608 = vst.msk [vmem:[%s4 + $0x68] sm:$0xff] %vm314, %v592
  %609 = vst.msk [vmem:[%s4 + $0x70] sm:$0xff] %vm314, %v593
  %610 = vst.msk [vmem:[%s4 + $0x78] sm:$0xff] %vm314, %v594
  // Predicated region
  $region18: #{unet_forward.23} parent=0 // pred_check
    _
  $region19: #{unet_forward.23} parent=0 // pred_check_branch
    %612 = sbr.rel (0) target = $region21
  $region20: #{unet_forward.23} parent=0 // pred_region
    _
  $region21: #{unet_forward.23} parent=0 // pred_fallthru
    _
  // Predicated region
  $region22: #{unet_forward.23} parent=0 // pred_check
    _
  $region23: #{unet_forward.23} parent=0 // pred_check_branch
    %614 = sbr.rel (0) target = $region25
  $region24: #{unet_forward.23} parent=0 // pred_region
    _
  $region25: #{unet_forward.23} parent=0 // pred_fallthru
    _

// kernel: unet_forward.24
$region0: #{unet_forward.24}
  #allocation0 [shape = 'u32[]', space=smem, size = 0x4, offset = 0x4, fixed_abs, tag = 'smem constant byte address 0x4 - core index']
  #allocation1 [shape = 'u32[144,128]{1,0:T(1,128)}', space=vmem, size = 0x12000, scoped, tag = 'internal scratch']
  %s0 = inlined_call_operand.vmem [shape: bf16[32,288], index: 0, kind: input, shape index: {}]
  %s1 = inlined_call_operand.vmem [shape: bf16[288,64], index: 1, kind: input, shape index: {}]
  %s2 = inlined_call_operand.vmem [shape: f32[1,64], index: 2, kind: input, shape index: {}]
  %s3 = inlined_call_operand.vmem [shape: f32[1,64], index: 3, kind: input, shape index: {}]
  %s4 = inlined_call_operand.vmem [shape: f32[32,64], index: 4, kind: output, shape index: {}]
  %s5 = sld [smem:[#allocation0]]
  $region26: #{unet_forward.24} parent=0
    _
  %s7 = ssub.s32 1, %s5
  %s8 = scalar_select 0, %s7, %s5
  // Predicated region
  $region2: #{unet_forward.24} parent=0 // pred_check
    _
  $region3: #{unet_forward.24} parent=0 // pred_check_branch
    %10 = sbr.rel (0) target = $region5
  $region4: #{unet_forward.24} parent=0 // pred_region
    _
  $region5: #{unet_forward.24} parent=0 // pred_fallthru
    _
  // Predicated region
  $region6: #{unet_forward.24} parent=0 // pred_check
    _
  $region7: #{unet_forward.24} parent=0 // pred_check_branch
    %12 = sbr.rel (0) target = $region9
  $region8: #{unet_forward.24} parent=0 // pred_region
    _
  $region9: #{unet_forward.24} parent=0 // pred_fallthru
    _
  // Predicated region
  $region10: #{unet_forward.24} parent=0 // pred_check
    _
  $region11: #{unet_forward.24} parent=0 // pred_check_branch
    %14 = sbr.rel (0) target = $region13
  $region12: #{unet_forward.24} parent=0 // pred_region
    _
  $region13: #{unet_forward.24} parent=0 // pred_fallthru
    _
  // Predicated region
  $region14: #{unet_forward.24} parent=0 // pred_check
    _
  $region15: #{unet_forward.24} parent=0 // pred_check_branch
    %16 = sbr.rel (0) target = $region17
  $region16: #{unet_forward.24} parent=0 // pred_region
    _
  $region17: #{unet_forward.24} parent=0 // pred_fallthru
    _
  %v18 = vld [vmem:[%s0] sm:$0xff]
  %v19 = vld [vmem:[%s0 + $0x8] sm:$0xf]
  %v20 = vld [vmem:[%s0 + $0xc] sm:$0xff]
  %v21 = vld [vmem:[%s0 + $0x14] sm:$0xf]
  %v22 = vld [vmem:[%s0 + $0x18] sm:$0xff]
  %v23 = vld [vmem:[%s0 + $0x20] sm:$0xf]
  %v24 = vld [vmem:[%s0 + $0x24] sm:$0xff]
  %v25 = vld [vmem:[%s0 + $0x2c] sm:$0xf]
  %v26 = vld [vmem:[%s1] sm:$0xf]
  %v27 = vld [vmem:[%s1 + $0x4] sm:$0xf]
  %v28 = vld [vmem:[%s1 + $0x8] sm:$0xf]
  %v29 = vld [vmem:[%s1 + $0xc] sm:$0xf]
  %v30 = vld [vmem:[%s1 + $0x10] sm:$0xf]
  %v31 = vld [vmem:[%s1 + $0x14] sm:$0xf]
  %v32 = vld [vmem:[%s1 + $0x18] sm:$0xf]
  %v33 = vld [vmem:[%s1 + $0x1c] sm:$0xf]
  %v34 = vld [vmem:[%s1 + $0x20] sm:$0xf]
  %v35 = vld [vmem:[%s1 + $0x24] sm:$0xf]
  %v36 = vld [vmem:[%s1 + $0x28] sm:$0xf]
  %v37 = vld [vmem:[%s1 + $0x2c] sm:$0xf]
  %v38 = vld [vmem:[%s1 + $0x30] sm:$0xf]
  %v39 = vld [vmem:[%s1 + $0x34] sm:$0xf]
  %v40 = vld [vmem:[%s1 + $0x38] sm:$0xf]
  %v41 = vld [vmem:[%s1 + $0x3c] sm:$0xf]
  %v42 = vld [vmem:[%s1 + $0x40] sm:$0xf]
  %v43 = vld [vmem:[%s1 + $0x44] sm:$0xf]
  %v44 = vld [vmem:[%s1 + $0x48] sm:$0xf]
  %v45 = vld [vmem:[%s1 + $0x4c] sm:$0xf]
  %v46 = vld [vmem:[%s1 + $0x50] sm:$0xf]
  %v47 = vld [vmem:[%s1 + $0x54] sm:$0xf]
  %v48 = vld [vmem:[%s1 + $0x58] sm:$0xf]
  %v49 = vld [vmem:[%s1 + $0x5c] sm:$0xf]
  %v50 = vld [vmem:[%s1 + $0x60] sm:$0xf]
  %v51 = vld [vmem:[%s1 + $0x64] sm:$0xf]
  %v52 = vld [vmem:[%s1 + $0x68] sm:$0xf]
  %v53 = vld [vmem:[%s1 + $0x6c] sm:$0xf]
  %v54 = vld [vmem:[%s1 + $0x70] sm:$0xf]
  %v55 = vld [vmem:[%s1 + $0x74] sm:$0xf]
  %v56 = vld [vmem:[%s1 + $0x78] sm:$0xf]
  %v57 = vld [vmem:[%s1 + $0x7c] sm:$0xf]
  %v58 = vld [vmem:[%s1 + $0x80] sm:$0xf]
  %v59 = vld [vmem:[%s1 + $0x84] sm:$0xf]
  %v60 = vld [vmem:[%s1 + $0x88] sm:$0xf]
  %v61 = vld [vmem:[%s1 + $0x8c] sm:$0xf]
  %v70 = vunpack.c.l.b16 %v18
  %v71 = vunpack.c.h.b16 %v18
  %v72 = vunpack.c.l.b16 %v19
  %v73 = vunpack.c.l.b16 %v20
  %v74 = vunpack.c.h.b16 %v20
  %v75 = vunpack.c.l.b16 %v21
  %v76 = vunpack.c.l.b16 %v22
  %v77 = vunpack.c.h.b16 %v22
  %v78 = vunpack.c.l.b16 %v23
  %v79 = vunpack.c.l.b16 %v24
  %v80 = vunpack.c.h.b16 %v24
  %v81 = vunpack.c.l.b16 %v25
  %v82 = vpack.c.b16 %v73, %v70
  %v83 = vpack.c.b16 %v74, %v71
  %v84 = vpack.c.b16 %v75, %v72
  %v85 = vpack.c.b16 %v79, %v76
  %v86 = vpack.c.b16 %v80, %v77
  %v87 = vpack.c.b16 %v81, %v78
  %v128 = vunpack.c.l.b16 %v26
  %v129 = vunpack.c.l.b16 %v27
  %v130 = vunpack.c.l.b16 %v28
  %v131 = vunpack.c.l.b16 %v29
  %v132 = vunpack.c.l.b16 %v30
  %v133 = vunpack.c.l.b16 %v31
  %v134 = vunpack.c.l.b16 %v32
  %v135 = vunpack.c.l.b16 %v33
  %v136 = vunpack.c.l.b16 %v34
  %v137 = vunpack.c.l.b16 %v35
  %v138 = vunpack.c.l.b16 %v36
  %v139 = vunpack.c.l.b16 %v37
  %v140 = vunpack.c.l.b16 %v38
  %v141 = vunpack.c.l.b16 %v39
  %v142 = vunpack.c.l.b16 %v40
  %v143 = vunpack.c.l.b16 %v41
  %v144 = vunpack.c.l.b16 %v42
  %v145 = vunpack.c.l.b16 %v43
  %v146 = vunpack.c.l.b16 %v44
  %v147 = vunpack.c.l.b16 %v45
  %v148 = vunpack.c.l.b16 %v46
  %v149 = vunpack.c.l.b16 %v47
  %v150 = vunpack.c.l.b16 %v48
  %v151 = vunpack.c.l.b16 %v49
  %v152 = vunpack.c.l.b16 %v50
  %v153 = vunpack.c.l.b16 %v51
  %v154 = vunpack.c.l.b16 %v52
  %v155 = vunpack.c.l.b16 %v53
  %v156 = vunpack.c.l.b16 %v54
  %v157 = vunpack.c.l.b16 %v55
  %v158 = vunpack.c.l.b16 %v56
  %v159 = vunpack.c.l.b16 %v57
  %v160 = vunpack.c.l.b16 %v58
  %v161 = vunpack.c.l.b16 %v59
  %v162 = vunpack.c.l.b16 %v60
  %v163 = vunpack.c.l.b16 %v61
  %v164 = vpack.c.b16 %v129, %v128
  %v165 = vpack.c.b16 %v131, %v130
  %v166 = vpack.c.b16 %v133, %v132
  %v167 = vpack.c.b16 %v135, %v134
  %v168 = vpack.c.b16 %v137, %v136
  %v169 = vpack.c.b16 %v139, %v138
  %v170 = vpack.c.b16 %v141, %v140
  %v171 = vpack.c.b16 %v143, %v142
  %v172 = vpack.c.b16 %v145, %v144
  %v173 = vpack.c.b16 %v147, %v146
  %v174 = vpack.c.b16 %v149, %v148
  %v175 = vpack.c.b16 %v151, %v150
  %v176 = vpack.c.b16 %v153, %v152
  %v177 = vpack.c.b16 %v155, %v154
  %v178 = vpack.c.b16 %v157, %v156
  %v179 = vpack.c.b16 %v159, %v158
  %v180 = vpack.c.b16 %v161, %v160
  %v181 = vpack.c.b16 %v163, %v162
  %vm200 = vcmask 261120
  %v202 = vsel %vm200, %v84, 0
  %v205 = vsel %vm200, %v87, 0
  %207 = vmatprep.subr.bf16.mxu0 0
  %208 = vmatpush1.bf16.msra.mxu0 %v164
  %209 = vmatprep.subr.bf16.mxu0 0
  %210 = vmatpush1.bf16.msra.mxu0 %v165
  %211 = vmatprep.subr.bf16.mxu0 0
  %212 = vmatpush1.bf16.msra.mxu0 %v166
  %213 = vmatprep.subr.bf16.mxu0 0
  %214 = vmatpush1.bf16.msra.mxu0 %v167
  %215 = vmatprep.subr.bf16.mxu0 0
  %216 = vmatpush1.bf16.msra.mxu0 %v168
  %217 = vmatprep.subr.bf16.mxu0 0
  %218 = vmatpush1.bf16.msra.mxu0 %v169
  %219 = vmatprep.subr.bf16.mxu0 0
  %220 = vmatpush1.bf16.msra.mxu0 %v170
  %221 = vmatprep.subr.bf16.mxu0 0
  %222 = vmatpush1.bf16.msra.mxu0 %v171
  %223 = vmatprep.subr.bf16.mxu0 0
  %224 = vmatpush1.bf16.msra.mxu0 %v172
  %225 = vmatprep.subr.bf16.mxu0 0
  %226 = vmatpush1.bf16.msra.mxu0 %v173
  %227 = vmatprep.subr.bf16.mxu0 0
  %228 = vmatpush1.bf16.msra.mxu0 %v174
  %229 = vmatprep.subr.bf16.mxu0 0
  %230 = vmatpush1.bf16.msra.mxu0 %v175
  %231 = vmatprep.subr.bf16.mxu0 0
  %232 = vmatpush1.bf16.msra.mxu0 %v176
  %233 = vmatprep.subr.bf16.mxu0 0
  %234 = vmatpush1.bf16.msra.mxu0 %v177
  %235 = vmatprep.subr.bf16.mxu0 0
  %236 = vmatpush1.bf16.msra.mxu0 %v178
  %237 = vmatprep.subr.bf16.mxu0 0
  %238 = vmatpush1.bf16.msra.mxu0 %v179
  %239 = vmatprep.mubr.bf16.mxu0 %v83
  %240 = vmatmul.mubr.bf16.gmra.mrb[0].mxu0 %v82
  %v241 = vpop.f32.mrb[0].mxu0
  %v242 = vadd.f32 0.0, %v241
  %v243 = vpop.f32.mrb[0].mxu0
  %v244 = vpop.f32.mrb[0].mxu0
  %v245 = vadd.f32 0.0, %v244
  %v246 = vpop.f32.mrb[0].mxu0
  %247 = vmatprep.mubr.bf16.mxu0 %v86
  %248 = vmatmul.mubr.bf16.gmra.mrb[0].mxu0 %v85
  %v249 = vpop.f32.mrb[0].mxu0
  %v250 = vadd.f32 0.0, %v249
  %v251 = vpop.f32.mrb[0].mxu0
  %v252 = vpop.f32.mrb[0].mxu0
  %v253 = vadd.f32 0.0, %v252
  %v254 = vpop.f32.mrb[0].mxu0
  %255 = vdwg.mxu0
  %256 = vmatprep.subr.bf16.mxu0 0
  %257 = vmatpush1.bf16.msra.mxu0 %v180
  %258 = vmatprep.subr.bf16.mxu0 0
  %259 = vmatpush1.bf16.msra.mxu0 %v181
  %260 = vmatprep.subr.bf16.mxu0 0
  %261 = vmatpush1.bf16.msra.mxu0 0
  %262 = vmatprep.subr.bf16.mxu0 0
  %263 = vmatpush1.bf16.msra.mxu0 0
  %264 = vmatprep.subr.bf16.mxu0 0
  %265 = vmatpush1.bf16.msra.mxu0 0
  %266 = vmatprep.subr.bf16.mxu0 0
  %267 = vmatpush1.bf16.msra.mxu0 0
  %268 = vmatprep.subr.bf16.mxu0 0
  %269 = vmatpush1.bf16.msra.mxu0 0
  %270 = vmatprep.subr.bf16.mxu0 0
  %271 = vmatpush1.bf16.msra.mxu0 0
  %272 = vmatprep.subr.bf16.mxu0 0
  %273 = vmatpush1.bf16.msra.mxu0 0
  %274 = vmatprep.subr.bf16.mxu0 0
  %275 = vmatpush1.bf16.msra.mxu0 0
  %276 = vmatprep.subr.bf16.mxu0 0
  %277 = vmatpush1.bf16.msra.mxu0 0
  %278 = vmatprep.subr.bf16.mxu0 0
  %279 = vmatpush1.bf16.msra.mxu0 0
  %280 = vmatprep.subr.bf16.mxu0 0
  %281 = vmatpush1.bf16.msra.mxu0 0
  %282 = vmatprep.subr.bf16.mxu0 0
  %283 = vmatpush1.bf16.msra.mxu0 0
  %284 = vmatprep.subr.bf16.mxu0 0
  %285 = vmatpush1.bf16.msra.mxu0 0
  %286 = vmatprep.subr.bf16.mxu0 0
  %287 = vmatpush1.bf16.msra.mxu0 0
  %288 = vmatprep.mubr.bf16.mxu0 0
  %289 = vmatmul.mubr.bf16.gmra.mrb[0].mxu0 %v202
  %v290 = vpop.f32.mrb[0].mxu0
  %v291 = vadd.f32 %v242, %v290
  %v292 = vpop.f32.mrb[0].mxu0
  %v293 = vpop.f32.mrb[0].mxu0
  %v294 = vadd.f32 %v245, %v293
  %v295 = vpop.f32.mrb[0].mxu0
  %296 = vmatprep.mubr.bf16.mxu0 0
  %297 = vmatmul.mubr.bf16.gmra.mrb[0].mxu0 %v205
  %v298 = vpop.f32.mrb[0].mxu0
  %v299 = vadd.f32 %v250, %v298
  %v300 = vpop.f32.mrb[0].mxu0
  %v301 = vpop.f32.mrb[0].mxu0
  %v302 = vadd.f32 %v253, %v301
  %v303 = vpop.f32.mrb[0].mxu0
  %304 = vdwg.mxu0
  %v305 = vld [vmem:[%s2] sm:$0x1]
  %v307 = vlaneseq
  %v308 = vshrl.u32 %v307, 7
  %v309 = vsub.s32 0, %v308
  %v310 = vrot.slane %v305, %v309
  %v312 = vmul.f32 %v291, %v310
  %v313 = vmul.f32 %v294, %v310
  %v314 = vmul.f32 %v299, %v310
  %v315 = vmul.f32 %v302, %v310
  %v316 = vld [vmem:[%s3] sm:$0x1]
  %v318 = vlaneseq
  %v319 = vshrl.u32 %v318, 7
  %v320 = vsub.s32 0, %v319
  %v321 = vrot.slane %v316, %v320
  %v323 = vadd.f32 %v312, %v321
  %v324 = vadd.f32 %v313, %v321
  %v325 = vadd.f32 %v314, %v321
  %v326 = vadd.f32 %v315, %v321
  %v327 = vmax.f32 %v323, 0.0
  %v328 = vmax.f32 %v324, 0.0
  %v329 = vmax.f32 %v325, 0.0
  %v330 = vmax.f32 %v326, 0.0
  %vm331 = vcmask 523264
  %332 = vst.msk [vmem:[%s4] sm:$0xff] %vm331, %v327
  %333 = vst.msk [vmem:[%s4 + $0x8] sm:$0xff] %vm331, %v328
  %334 = vst.msk [vmem:[%s4 + $0x10] sm:$0xff] %vm331, %v329
  %335 = vst.msk [vmem:[%s4 + $0x18] sm:$0xff] %vm331, %v330
  // Predicated region
  $region18: #{unet_forward.24} parent=0 // pred_check
    _
  $region19: #{unet_forward.24} parent=0 // pred_check_branch
    %337 = sbr.rel (0) target = $region21
  $region20: #{unet_forward.24} parent=0 // pred_region
    _
  $region21: #{unet_forward.24} parent=0 // pred_fallthru
    _
  // Predicated region
  $region22: #{unet_forward.24} parent=0 // pred_check
    _
  $region23: #{unet_forward.24} parent=0 // pred_check_branch
    %339 = sbr.rel (0) target = $region25
  $region24: #{unet_forward.24} parent=0 // pred_region
    _
  $region25: #{unet_forward.24} parent=0 // pred_fallthru
    _

// kernel: unet_forward.25
$region0: #{unet_forward.25}
  #allocation0 [shape = 'u32[]', space=smem, size = 0x4, offset = 0x4, fixed_abs, tag = 'smem constant byte address 0x4 - core index']
  #allocation1 [shape = 'u32[144,128]{1,0:T(1,128)}', space=vmem, size = 0x12000, scoped, tag = 'internal scratch']
  %s0 = inlined_call_operand.vmem [shape: bf16[32,576], index: 0, kind: input, shape index: {}]
  %s1 = inlined_call_operand.vmem [shape: bf16[576,64], index: 1, kind: input, shape index: {}]
  %s2 = inlined_call_operand.vmem [shape: f32[1,64], index: 2, kind: input, shape index: {}]
  %s3 = inlined_call_operand.vmem [shape: f32[1,64], index: 3, kind: input, shape index: {}]
  %s4 = inlined_call_operand.vmem [shape: f32[32,64], index: 4, kind: output, shape index: {}]
  %s5 = sld [smem:[#allocation0]]
  $region26: #{unet_forward.25} parent=0
    _
  %s7 = ssub.s32 1, %s5
  %s8 = scalar_select 0, %s7, %s5
  // Predicated region
  $region2: #{unet_forward.25} parent=0 // pred_check
    _
  $region3: #{unet_forward.25} parent=0 // pred_check_branch
    %10 = sbr.rel (0) target = $region5
  $region4: #{unet_forward.25} parent=0 // pred_region
    _
  $region5: #{unet_forward.25} parent=0 // pred_fallthru
    _
  // Predicated region
  $region6: #{unet_forward.25} parent=0 // pred_check
    _
  $region7: #{unet_forward.25} parent=0 // pred_check_branch
    %12 = sbr.rel (0) target = $region9
  $region8: #{unet_forward.25} parent=0 // pred_region
    _
  $region9: #{unet_forward.25} parent=0 // pred_fallthru
    _
  // Predicated region
  $region10: #{unet_forward.25} parent=0 // pred_check
    _
  $region11: #{unet_forward.25} parent=0 // pred_check_branch
    %14 = sbr.rel (0) target = $region13
  $region12: #{unet_forward.25} parent=0 // pred_region
    _
  $region13: #{unet_forward.25} parent=0 // pred_fallthru
    _
  // Predicated region
  $region14: #{unet_forward.25} parent=0 // pred_check
    _
  $region15: #{unet_forward.25} parent=0 // pred_check_branch
    %16 = sbr.rel (0) target = $region17
  $region16: #{unet_forward.25} parent=0 // pred_region
    _
  $region17: #{unet_forward.25} parent=0 // pred_fallthru
    _
  %v18 = vld [vmem:[%s0] sm:$0xff]
  %v19 = vld [vmem:[%s0 + $0x8] sm:$0xff]
  %v20 = vld [vmem:[%s0 + $0x10] sm:$0xf]
  %v21 = vld [vmem:[%s0 + $0x14] sm:$0xff]
  %v22 = vld [vmem:[%s0 + $0x1c] sm:$0xff]
  %v23 = vld [vmem:[%s0 + $0x24] sm:$0xf]
  %v24 = vld [vmem:[%s0 + $0x28] sm:$0xff]
  %v25 = vld [vmem:[%s0 + $0x30] sm:$0xff]
  %v26 = vld [vmem:[%s0 + $0x38] sm:$0xf]
  %v27 = vld [vmem:[%s0 + $0x3c] sm:$0xff]
  %v28 = vld [vmem:[%s0 + $0x44] sm:$0xff]
  %v29 = vld [vmem:[%s0 + $0x4c] sm:$0xf]
  %v30 = vld [vmem:[%s1] sm:$0xf]
  %v31 = vld [vmem:[%s1 + $0x4] sm:$0xf]
  %v32 = vld [vmem:[%s1 + $0x8] sm:$0xf]
  %v33 = vld [vmem:[%s1 + $0xc] sm:$0xf]
  %v34 = vld [vmem:[%s1 + $0x10] sm:$0xf]
  %v35 = vld [vmem:[%s1 + $0x14] sm:$0xf]
  %v36 = vld [vmem:[%s1 + $0x18] sm:$0xf]
  %v37 = vld [vmem:[%s1 + $0x1c] sm:$0xf]
  %v38 = vld [vmem:[%s1 + $0x20] sm:$0xf]
  %v39 = vld [vmem:[%s1 + $0x24] sm:$0xf]
  %v40 = vld [vmem:[%s1 + $0x28] sm:$0xf]
  %v41 = vld [vmem:[%s1 + $0x2c] sm:$0xf]
  %v42 = vld [vmem:[%s1 + $0x30] sm:$0xf]
  %v43 = vld [vmem:[%s1 + $0x34] sm:$0xf]
  %v44 = vld [vmem:[%s1 + $0x38] sm:$0xf]
  %v45 = vld [vmem:[%s1 + $0x3c] sm:$0xf]
  %v46 = vld [vmem:[%s1 + $0x40] sm:$0xf]
  %v47 = vld [vmem:[%s1 + $0x44] sm:$0xf]
  %v48 = vld [vmem:[%s1 + $0x48] sm:$0xf]
  %v49 = vld [vmem:[%s1 + $0x4c] sm:$0xf]
  %v50 = vld [vmem:[%s1 + $0x50] sm:$0xf]
  %v51 = vld [vmem:[%s1 + $0x54] sm:$0xf]
  %v52 = vld [vmem:[%s1 + $0x58] sm:$0xf]
  %v53 = vld [vmem:[%s1 + $0x5c] sm:$0xf]
  %v54 = vld [vmem:[%s1 + $0x60] sm:$0xf]
  %v55 = vld [vmem:[%s1 + $0x64] sm:$0xf]
  %v56 = vld [vmem:[%s1 + $0x68] sm:$0xf]
  %v57 = vld [vmem:[%s1 + $0x6c] sm:$0xf]
  %v58 = vld [vmem:[%s1 + $0x70] sm:$0xf]
  %v59 = vld [vmem:[%s1 + $0x74] sm:$0xf]
  %v60 = vld [vmem:[%s1 + $0x78] sm:$0xf]
  %v61 = vld [vmem:[%s1 + $0x7c] sm:$0xf]
  %v62 = vld [vmem:[%s1 + $0x80] sm:$0xf]
  %v63 = vld [vmem:[%s1 + $0x84] sm:$0xf]
  %v64 = vld [vmem:[%s1 + $0x88] sm:$0xf]
  %v65 = vld [vmem:[%s1 + $0x8c] sm:$0xf]
  %v66 = vld [vmem:[%s1 + $0x90] sm:$0xf]
  %v67 = vld [vmem:[%s1 + $0x94] sm:$0xf]
  %v68 = vld [vmem:[%s1 + $0x98] sm:$0xf]
  %v69 = vld [vmem:[%s1 + $0x9c] sm:$0xf]
  %v70 = vld [vmem:[%s1 + $0xa0] sm:$0xf]
  %v71 = vld [vmem:[%s1 + $0xa4] sm:$0xf]
  %v72 = vld [vmem:[%s1 + $0xa8] sm:$0xf]
  %v73 = vld [vmem:[%s1 + $0xac] sm:$0xf]
  %v74 = vld [vmem:[%s1 + $0xb0] sm:$0xf]
  %v75 = vld [vmem:[%s1 + $0xb4] sm:$0xf]
  %v76 = vld [vmem:[%s1 + $0xb8] sm:$0xf]
  %v77 = vld [vmem:[%s1 + $0xbc] sm:$0xf]
  %v78 = vld [vmem:[%s1 + $0xc0] sm:$0xf]
  %v79 = vld [vmem:[%s1 + $0xc4] sm:$0xf]
  %v80 = vld [vmem:[%s1 + $0xc8] sm:$0xf]
  %v81 = vld [vmem:[%s1 + $0xcc] sm:$0xf]
  %v82 = vld [vmem:[%s1 + $0xd0] sm:$0xf]
  %v83 = vld [vmem:[%s1 + $0xd4] sm:$0xf]
  %v84 = vld [vmem:[%s1 + $0xd8] sm:$0xf]
  %v85 = vld [vmem:[%s1 + $0xdc] sm:$0xf]
  %v86 = vld [vmem:[%s1 + $0xe0] sm:$0xf]
  %v87 = vld [vmem:[%s1 + $0xe4] sm:$0xf]
  %v88 = vld [vmem:[%s1 + $0xe8] sm:$0xf]
  %v89 = vld [vmem:[%s1 + $0xec] sm:$0xf]
  %v90 = vld [vmem:[%s1 + $0xf0] sm:$0xf]
  %v91 = vld [vmem:[%s1 + $0xf4] sm:$0xf]
  %v92 = vld [vmem:[%s1 + $0xf8] sm:$0xf]
  %v93 = vld [vmem:[%s1 + $0xfc] sm:$0xf]
  %v94 = vld [vmem:[%s1 + $0x100] sm:$0xf]
  %v95 = vld [vmem:[%s1 + $0x104] sm:$0xf]
  %v96 = vld [vmem:[%s1 + $0x108] sm:$0xf]
  %v97 = vld [vmem:[%s1 + $0x10c] sm:$0xf]
  %v98 = vld [vmem:[%s1 + $0x110] sm:$0xf]
  %v99 = vld [vmem:[%s1 + $0x114] sm:$0xf]
  %v100 = vld [vmem:[%s1 + $0x118] sm:$0xf]
  %v101 = vld [vmem:[%s1 + $0x11c] sm:$0xf]
  %v114 = vunpack.c.l.b16 %v18
  %v115 = vunpack.c.h.b16 %v18
  %v116 = vunpack.c.l.b16 %v19
  %v117 = vunpack.c.h.b16 %v19
  %v118 = vunpack.c.l.b16 %v20
  %v119 = vunpack.c.l.b16 %v21
  %v120 = vunpack.c.h.b16 %v21
  %v121 = vunpack.c.l.b16 %v22
  %v122 = vunpack.c.h.b16 %v22
  %v123 = vunpack.c.l.b16 %v23
  %v124 = vunpack.c.l.b16 %v24
  %v125 = vunpack.c.h.b16 %v24
  %v126 = vunpack.c.l.b16 %v25
  %v127 = vunpack.c.h.b16 %v25
  %v128 = vunpack.c.l.b16 %v26
  %v129 = vunpack.c.l.b16 %v27
  %v130 = vunpack.c.h.b16 %v27
  %v131 = vunpack.c.l.b16 %v28
  %v132 = vunpack.c.h.b16 %v28
  %v133 = vunpack.c.l.b16 %v29
  %v134 = vpack.c.b16 %v119, %v114
  %v135 = vpack.c.b16 %v120, %v115
  %v136 = vpack.c.b16 %v121, %v116
  %v137 = vpack.c.b16 %v122, %v117
  %v138 = vpack.c.b16 %v123, %v118
  %v139 = vpack.c.b16 %v129, %v124
  %v140 = vpack.c.b16 %v130, %v125
  %v141 = vpack.c.b16 %v131, %v126
  %v142 = vpack.c.b16 %v132, %v127
  %v143 = vpack.c.b16 %v133, %v128
  %v224 = vunpack.c.l.b16 %v30
  %v225 = vunpack.c.l.b16 %v31
  %v226 = vunpack.c.l.b16 %v32
  %v227 = vunpack.c.l.b16 %v33
  %v228 = vunpack.c.l.b16 %v34
  %v229 = vunpack.c.l.b16 %v35
  %v230 = vunpack.c.l.b16 %v36
  %v231 = vunpack.c.l.b16 %v37
  %v232 = vunpack.c.l.b16 %v38
  %v233 = vunpack.c.l.b16 %v39
  %v234 = vunpack.c.l.b16 %v40
  %v235 = vunpack.c.l.b16 %v41
  %v236 = vunpack.c.l.b16 %v42
  %v237 = vunpack.c.l.b16 %v43
  %v238 = vunpack.c.l.b16 %v44
  %v239 = vunpack.c.l.b16 %v45
  %v240 = vunpack.c.l.b16 %v46
  %v241 = vunpack.c.l.b16 %v47
  %v242 = vunpack.c.l.b16 %v48
  %v243 = vunpack.c.l.b16 %v49
  %v244 = vunpack.c.l.b16 %v50
  %v245 = vunpack.c.l.b16 %v51
  %v246 = vunpack.c.l.b16 %v52
  %v247 = vunpack.c.l.b16 %v53
  %v248 = vunpack.c.l.b16 %v54
  %v249 = vunpack.c.l.b16 %v55
  %v250 = vunpack.c.l.b16 %v56
  %v251 = vunpack.c.l.b16 %v57
  %v252 = vunpack.c.l.b16 %v58
  %v253 = vunpack.c.l.b16 %v59
  %v254 = vunpack.c.l.b16 %v60
  %v255 = vunpack.c.l.b16 %v61
  %v256 = vunpack.c.l.b16 %v62
  %v257 = vunpack.c.l.b16 %v63
  %v258 = vunpack.c.l.b16 %v64
  %v259 = vunpack.c.l.b16 %v65
  %v260 = vunpack.c.l.b16 %v66
  %v261 = vunpack.c.l.b16 %v67
  %v262 = vunpack.c.l.b16 %v68
  %v263 = vunpack.c.l.b16 %v69
  %v264 = vunpack.c.l.b16 %v70
  %v265 = vunpack.c.l.b16 %v71
  %v266 = vunpack.c.l.b16 %v72
  %v267 = vunpack.c.l.b16 %v73
  %v268 = vunpack.c.l.b16 %v74
  %v269 = vunpack.c.l.b16 %v75
  %v270 = vunpack.c.l.b16 %v76
  %v271 = vunpack.c.l.b16 %v77
  %v272 = vunpack.c.l.b16 %v78
  %v273 = vunpack.c.l.b16 %v79
  %v274 = vunpack.c.l.b16 %v80
  %v275 = vunpack.c.l.b16 %v81
  %v276 = vunpack.c.l.b16 %v82
  %v277 = vunpack.c.l.b16 %v83
  %v278 = vunpack.c.l.b16 %v84
  %v279 = vunpack.c.l.b16 %v85
  %v280 = vunpack.c.l.b16 %v86
  %v281 = vunpack.c.l.b16 %v87
  %v282 = vunpack.c.l.b16 %v88
  %v283 = vunpack.c.l.b16 %v89
  %v284 = vunpack.c.l.b16 %v90
  %v285 = vunpack.c.l.b16 %v91
  %v286 = vunpack.c.l.b16 %v92
  %v287 = vunpack.c.l.b16 %v93
  %v288 = vunpack.c.l.b16 %v94
  %v289 = vunpack.c.l.b16 %v95
  %v290 = vunpack.c.l.b16 %v96
  %v291 = vunpack.c.l.b16 %v97
  %v292 = vunpack.c.l.b16 %v98
  %v293 = vunpack.c.l.b16 %v99
  %v294 = vunpack.c.l.b16 %v100
  %v295 = vunpack.c.l.b16 %v101
  %v296 = vpack.c.b16 %v225, %v224
  %v297 = vpack.c.b16 %v227, %v226
  %v298 = vpack.c.b16 %v229, %v228
  %v299 = vpack.c.b16 %v231, %v230
  %v300 = vpack.c.b16 %v233, %v232
  %v301 = vpack.c.b16 %v235, %v234
  %v302 = vpack.c.b16 %v237, %v236
  %v303 = vpack.c.b16 %v239, %v238
  %v304 = vpack.c.b16 %v241, %v240
  %v305 = vpack.c.b16 %v243, %v242
  %v306 = vpack.c.b16 %v245, %v244
  %v307 = vpack.c.b16 %v247, %v246
  %v308 = vpack.c.b16 %v249, %v248
  %v309 = vpack.c.b16 %v251, %v250
  %v310 = vpack.c.b16 %v253, %v252
  %v311 = vpack.c.b16 %v255, %v254
  %v312 = vpack.c.b16 %v257, %v256
  %v313 = vpack.c.b16 %v259, %v258
  %v314 = vpack.c.b16 %v261, %v260
  %v315 = vpack.c.b16 %v263, %v262
  %v316 = vpack.c.b16 %v265, %v264
  %v317 = vpack.c.b16 %v267, %v266
  %v318 = vpack.c.b16 %v269, %v268
  %v319 = vpack.c.b16 %v271, %v270
  %v320 = vpack.c.b16 %v273, %v272
  %v321 = vpack.c.b16 %v275, %v274
  %v322 = vpack.c.b16 %v277, %v276
  %v323 = vpack.c.b16 %v279, %v278
  %v324 = vpack.c.b16 %v281, %v280
  %v325 = vpack.c.b16 %v283, %v282
  %v326 = vpack.c.b16 %v285, %v284
  %v327 = vpack.c.b16 %v287, %v286
  %v328 = vpack.c.b16 %v289, %v288
  %v329 = vpack.c.b16 %v291, %v290
  %v330 = vpack.c.b16 %v293, %v292
  %v331 = vpack.c.b16 %v295, %v294
  %vm368 = vcmask 523264
  %v370 = vsel %vm368, %v138, 0
  %v373 = vsel %vm368, %v143, 0
  %375 = vmatprep.subr.bf16.mxu0 0
  %376 = vmatpush1.bf16.msra.mxu0 %v296
  %377 = vmatprep.subr.bf16.mxu0 0
  %378 = vmatpush1.bf16.msra.mxu0 %v297
  %379 = vmatprep.subr.bf16.mxu0 0
  %380 = vmatpush1.bf16.msra.mxu0 %v298
  %381 = vmatprep.subr.bf16.mxu0 0
  %382 = vmatpush1.bf16.msra.mxu0 %v299
  %383 = vmatprep.subr.bf16.mxu0 0
  %384 = vmatpush1.bf16.msra.mxu0 %v300
  %385 = vmatprep.subr.bf16.mxu0 0
  %386 = vmatpush1.bf16.msra.mxu0 %v301
  %387 = vmatprep.subr.bf16.mxu0 0
  %388 = vmatpush1.bf16.msra.mxu0 %v302
  %389 = vmatprep.subr.bf16.mxu0 0
  %390 = vmatpush1.bf16.msra.mxu0 %v303
  %391 = vmatprep.subr.bf16.mxu0 0
  %392 = vmatpush1.bf16.msra.mxu0 %v304
  %393 = vmatprep.subr.bf16.mxu0 0
  %394 = vmatpush1.bf16.msra.mxu0 %v305
  %395 = vmatprep.subr.bf16.mxu0 0
  %396 = vmatpush1.bf16.msra.mxu0 %v306
  %397 = vmatprep.subr.bf16.mxu0 0
  %398 = vmatpush1.bf16.msra.mxu0 %v307
  %399 = vmatprep.subr.bf16.mxu0 0
  %400 = vmatpush1.bf16.msra.mxu0 %v308
  %401 = vmatprep.subr.bf16.mxu0 0
  %402 = vmatpush1.bf16.msra.mxu0 %v309
  %403 = vmatprep.subr.bf16.mxu0 0
  %404 = vmatpush1.bf16.msra.mxu0 %v310
  %405 = vmatprep.subr.bf16.mxu0 0
  %406 = vmatpush1.bf16.msra.mxu0 %v311
  %407 = vmatprep.mubr.bf16.mxu0 %v135
  %408 = vmatmul.mubr.bf16.gmra.mrb[0].mxu0 %v134
  %v409 = vpop.f32.mrb[0].mxu0
  %v410 = vadd.f32 0.0, %v409
  %v411 = vpop.f32.mrb[0].mxu0
  %v412 = vpop.f32.mrb[0].mxu0
  %v413 = vadd.f32 0.0, %v412
  %v414 = vpop.f32.mrb[0].mxu0
  %415 = vmatprep.mubr.bf16.mxu0 %v140
  %416 = vmatmul.mubr.bf16.gmra.mrb[0].mxu0 %v139
  %v417 = vpop.f32.mrb[0].mxu0
  %v418 = vadd.f32 0.0, %v417
  %v419 = vpop.f32.mrb[0].mxu0
  %v420 = vpop.f32.mrb[0].mxu0
  %v421 = vadd.f32 0.0, %v420
  %v422 = vpop.f32.mrb[0].mxu0
  %423 = vdwg.mxu0
  %424 = vmatprep.subr.bf16.mxu0 0
  %425 = vmatpush1.bf16.msra.mxu0 %v312
  %426 = vmatprep.subr.bf16.mxu0 0
  %427 = vmatpush1.bf16.msra.mxu0 %v313
  %428 = vmatprep.subr.bf16.mxu0 0
  %429 = vmatpush1.bf16.msra.mxu0 %v314
  %430 = vmatprep.subr.bf16.mxu0 0
  %431 = vmatpush1.bf16.msra.mxu0 %v315
  %432 = vmatprep.subr.bf16.mxu0 0
  %433 = vmatpush1.bf16.msra.mxu0 %v316
  %434 = vmatprep.subr.bf16.mxu0 0
  %435 = vmatpush1.bf16.msra.mxu0 %v317
  %436 = vmatprep.subr.bf16.mxu0 0
  %437 = vmatpush1.bf16.msra.mxu0 %v318
  %438 = vmatprep.subr.bf16.mxu0 0
  %439 = vmatpush1.bf16.msra.mxu0 %v319
  %440 = vmatprep.subr.bf16.mxu0 0
  %441 = vmatpush1.bf16.msra.mxu0 %v320
  %442 = vmatprep.subr.bf16.mxu0 0
  %443 = vmatpush1.bf16.msra.mxu0 %v321
  %444 = vmatprep.subr.bf16.mxu0 0
  %445 = vmatpush1.bf16.msra.mxu0 %v322
  %446 = vmatprep.subr.bf16.mxu0 0
  %447 = vmatpush1.bf16.msra.mxu0 %v323
  %448 = vmatprep.subr.bf16.mxu0 0
  %449 = vmatpush1.bf16.msra.mxu0 %v324
  %450 = vmatprep.subr.bf16.mxu0 0
  %451 = vmatpush1.bf16.msra.mxu0 %v325
  %452 = vmatprep.subr.bf16.mxu0 0
  %453 = vmatpush1.bf16.msra.mxu0 %v326
  %454 = vmatprep.subr.bf16.mxu0 0
  %455 = vmatpush1.bf16.msra.mxu0 %v327
  %456 = vmatprep.mubr.bf16.mxu0 %v137
  %457 = vmatmul.mubr.bf16.gmra.mrb[0].mxu0 %v136
  %v458 = vpop.f32.mrb[0].mxu0
  %v459 = vadd.f32 %v410, %v458
  %v460 = vpop.f32.mrb[0].mxu0
  %v461 = vpop.f32.mrb[0].mxu0
  %v462 = vadd.f32 %v413, %v461
  %v463 = vpop.f32.mrb[0].mxu0
  %464 = vmatprep.mubr.bf16.mxu0 %v142
  %465 = vmatmul.mubr.bf16.gmra.mrb[0].mxu0 %v141
  %v466 = vpop.f32.mrb[0].mxu0
  %v467 = vadd.f32 %v418, %v466
  %v468 = vpop.f32.mrb[0].mxu0
  %v469 = vpop.f32.mrb[0].mxu0
  %v470 = vadd.f32 %v421, %v469
  %v471 = vpop.f32.mrb[0].mxu0
  %472 = vdwg.mxu0
  %473 = vmatprep.subr.bf16.mxu0 0
  %474 = vmatpush1.bf16.msra.mxu0 %v328
  %475 = vmatprep.subr.bf16.mxu0 0
  %476 = vmatpush1.bf16.msra.mxu0 %v329
  %477 = vmatprep.subr.bf16.mxu0 0
  %478 = vmatpush1.bf16.msra.mxu0 %v330
  %479 = vmatprep.subr.bf16.mxu0 0
  %480 = vmatpush1.bf16.msra.mxu0 %v331
  %481 = vmatprep.subr.bf16.mxu0 0
  %482 = vmatpush1.bf16.msra.mxu0 0
  %483 = vmatprep.subr.bf16.mxu0 0
  %484 = vmatpush1.bf16.msra.mxu0 0
  %485 = vmatprep.subr.bf16.mxu0 0
  %486 = vmatpush1.bf16.msra.mxu0 0
  %487 = vmatprep.subr.bf16.mxu0 0
  %488 = vmatpush1.bf16.msra.mxu0 0
  %489 = vmatprep.subr.bf16.mxu0 0
  %490 = vmatpush1.bf16.msra.mxu0 0
  %491 = vmatprep.subr.bf16.mxu0 0
  %492 = vmatpush1.bf16.msra.mxu0 0
  %493 = vmatprep.subr.bf16.mxu0 0
  %494 = vmatpush1.bf16.msra.mxu0 0
  %495 = vmatprep.subr.bf16.mxu0 0
  %496 = vmatpush1.bf16.msra.mxu0 0
  %497 = vmatprep.subr.bf16.mxu0 0
  %498 = vmatpush1.bf16.msra.mxu0 0
  %499 = vmatprep.subr.bf16.mxu0 0
  %500 = vmatpush1.bf16.msra.mxu0 0
  %501 = vmatprep.subr.bf16.mxu0 0
  %502 = vmatpush1.bf16.msra.mxu0 0
  %503 = vmatprep.subr.bf16.mxu0 0
  %504 = vmatpush1.bf16.msra.mxu0 0
  %505 = vmatprep.mubr.bf16.mxu0 0
  %506 = vmatmul.mubr.bf16.gmra.mrb[0].mxu0 %v370
  %v507 = vpop.f32.mrb[0].mxu0
  %v508 = vadd.f32 %v459, %v507
  %v509 = vpop.f32.mrb[0].mxu0
  %v510 = vpop.f32.mrb[0].mxu0
  %v511 = vadd.f32 %v462, %v510
  %v512 = vpop.f32.mrb[0].mxu0
  %513 = vmatprep.mubr.bf16.mxu0 0
  %514 = vmatmul.mubr.bf16.gmra.mrb[0].mxu0 %v373
  %v515 = vpop.f32.mrb[0].mxu0
  %v516 = vadd.f32 %v467, %v515
  %v517 = vpop.f32.mrb[0].mxu0
  %v518 = vpop.f32.mrb[0].mxu0
  %v519 = vadd.f32 %v470, %v518
  %v520 = vpop.f32.mrb[0].mxu0
  %521 = vdwg.mxu0
  %v522 = vld [vmem:[%s2] sm:$0x1]
  %v524 = vlaneseq
  %v525 = vshrl.u32 %v524, 7
  %v526 = vsub.s32 0, %v525
  %v527 = vrot.slane %v522, %v526
  %v529 = vmul.f32 %v508, %v527
  %v530 = vmul.f32 %v511, %v527
  %v531 = vmul.f32 %v516, %v527
  %v532 = vmul.f32 %v519, %v527
  %v533 = vld [vmem:[%s3] sm:$0x1]
  %v535 = vlaneseq
  %v536 = vshrl.u32 %v535, 7
  %v537 = vsub.s32 0, %v536
  %v538 = vrot.slane %v533, %v537
  %v540 = vadd.f32 %v529, %v538
  %v541 = vadd.f32 %v530, %v538
  %v542 = vadd.f32 %v531, %v538
  %v543 = vadd.f32 %v532, %v538
  %v544 = vmax.f32 %v540, 0.0
  %v545 = vmax.f32 %v541, 0.0
  %v546 = vmax.f32 %v542, 0.0
  %v547 = vmax.f32 %v543, 0.0
  %548 = vst.msk [vmem:[%s4] sm:$0xff] %vm368, %v544
  %549 = vst.msk [vmem:[%s4 + $0x8] sm:$0xff] %vm368, %v545
  %550 = vst.msk [vmem:[%s4 + $0x10] sm:$0xff] %vm368, %v546
  %551 = vst.msk [vmem:[%s4 + $0x18] sm:$0xff] %vm368, %v547
  // Predicated region
  $region18: #{unet_forward.25} parent=0 // pred_check
    _
  $region19: #{unet_forward.25} parent=0 // pred_check_branch
    %553 = sbr.rel (0) target = $region21
  $region20: #{unet_forward.25} parent=0 // pred_region
    _
  $region21: #{unet_forward.25} parent=0 // pred_fallthru
    _
  // Predicated region
  $region22: #{unet_forward.25} parent=0 // pred_check
    _
  $region23: #{unet_forward.25} parent=0 // pred_check_branch
    %555 = sbr.rel (0) target = $region25
  $region24: #{unet_forward.25} parent=0 // pred_region
    _
  $region25: #{unet_forward.25} parent=0 // pred_fallthru
    _

// kernel: unet_forward.26
$region0: #{unet_forward.26}
  #allocation0 [shape = 'u32[]', space=smem, size = 0x4, offset = 0x4, fixed_abs, tag = 'smem constant byte address 0x4 - core index']
  #allocation1 [shape = 'u32[144,128]{1,0:T(1,128)}', space=vmem, size = 0x12000, scoped, tag = 'internal scratch']
  %s0 = inlined_call_operand.vmem [shape: bf16[8,576], index: 0, kind: input, shape index: {}]
  %s1 = inlined_call_operand.vmem [shape: bf16[576,128], index: 1, kind: input, shape index: {}]
  %s2 = inlined_call_operand.vmem [shape: f32[1,128], index: 2, kind: input, shape index: {}]
  %s3 = inlined_call_operand.vmem [shape: f32[1,128], index: 3, kind: input, shape index: {}]
  %s4 = inlined_call_operand.vmem [shape: f32[8,128], index: 4, kind: output, shape index: {}]
  %s5 = sld [smem:[#allocation0]]
  $region26: #{unet_forward.26} parent=0
    _
  %s7 = ssub.s32 1, %s5
  %s8 = scalar_select 0, %s7, %s5
  // Predicated region
  $region2: #{unet_forward.26} parent=0 // pred_check
    _
  $region3: #{unet_forward.26} parent=0 // pred_check_branch
    %10 = sbr.rel (0) target = $region5
  $region4: #{unet_forward.26} parent=0 // pred_region
    _
  $region5: #{unet_forward.26} parent=0 // pred_fallthru
    _
  // Predicated region
  $region6: #{unet_forward.26} parent=0 // pred_check
    _
  $region7: #{unet_forward.26} parent=0 // pred_check_branch
    %12 = sbr.rel (0) target = $region9
  $region8: #{unet_forward.26} parent=0 // pred_region
    _
  $region9: #{unet_forward.26} parent=0 // pred_fallthru
    _
  // Predicated region
  $region10: #{unet_forward.26} parent=0 // pred_check
    _
  $region11: #{unet_forward.26} parent=0 // pred_check_branch
    %14 = sbr.rel (0) target = $region13
  $region12: #{unet_forward.26} parent=0 // pred_region
    _
  $region13: #{unet_forward.26} parent=0 // pred_fallthru
    _
  // Predicated region
  $region14: #{unet_forward.26} parent=0 // pred_check
    _
  $region15: #{unet_forward.26} parent=0 // pred_check_branch
    %16 = sbr.rel (0) target = $region17
  $region16: #{unet_forward.26} parent=0 // pred_region
    _
  $region17: #{unet_forward.26} parent=0 // pred_fallthru
    _
  %v18 = vld [vmem:[%s0] sm:$0xff]
  %v19 = vld [vmem:[%s0 + $0x8] sm:$0xff]
  %v20 = vld [vmem:[%s0 + $0x10] sm:$0xf]
  %v21 = vld [vmem:[%s1] sm:$0xf]
  %v22 = vld [vmem:[%s1 + $0x4] sm:$0xf]
  %v23 = vld [vmem:[%s1 + $0x8] sm:$0xf]
  %v24 = vld [vmem:[%s1 + $0xc] sm:$0xf]
  %v25 = vld [vmem:[%s1 + $0x10] sm:$0xf]
  %v26 = vld [vmem:[%s1 + $0x14] sm:$0xf]
  %v27 = vld [vmem:[%s1 + $0x18] sm:$0xf]
  %v28 = vld [vmem:[%s1 + $0x1c] sm:$0xf]
  %v29 = vld [vmem:[%s1 + $0x20] sm:$0xf]
  %v30 = vld [vmem:[%s1 + $0x24] sm:$0xf]
  %v31 = vld [vmem:[%s1 + $0x28] sm:$0xf]
  %v32 = vld [vmem:[%s1 + $0x2c] sm:$0xf]
  %v33 = vld [vmem:[%s1 + $0x30] sm:$0xf]
  %v34 = vld [vmem:[%s1 + $0x34] sm:$0xf]
  %v35 = vld [vmem:[%s1 + $0x38] sm:$0xf]
  %v36 = vld [vmem:[%s1 + $0x3c] sm:$0xf]
  %v37 = vld [vmem:[%s1 + $0x40] sm:$0xf]
  %v38 = vld [vmem:[%s1 + $0x44] sm:$0xf]
  %v39 = vld [vmem:[%s1 + $0x48] sm:$0xf]
  %v40 = vld [vmem:[%s1 + $0x4c] sm:$0xf]
  %v41 = vld [vmem:[%s1 + $0x50] sm:$0xf]
  %v42 = vld [vmem:[%s1 + $0x54] sm:$0xf]
  %v43 = vld [vmem:[%s1 + $0x58] sm:$0xf]
  %v44 = vld [vmem:[%s1 + $0x5c] sm:$0xf]
  %v45 = vld [vmem:[%s1 + $0x60] sm:$0xf]
  %v46 = vld [vmem:[%s1 + $0x64] sm:$0xf]
  %v47 = vld [vmem:[%s1 + $0x68] sm:$0xf]
  %v48 = vld [vmem:[%s1 + $0x6c] sm:$0xf]
  %v49 = vld [vmem:[%s1 + $0x70] sm:$0xf]
  %v50 = vld [vmem:[%s1 + $0x74] sm:$0xf]
  %v51 = vld [vmem:[%s1 + $0x78] sm:$0xf]
  %v52 = vld [vmem:[%s1 + $0x7c] sm:$0xf]
  %v53 = vld [vmem:[%s1 + $0x80] sm:$0xf]
  %v54 = vld [vmem:[%s1 + $0x84] sm:$0xf]
  %v55 = vld [vmem:[%s1 + $0x88] sm:$0xf]
  %v56 = vld [vmem:[%s1 + $0x8c] sm:$0xf]
  %v57 = vld [vmem:[%s1 + $0x90] sm:$0xf]
  %v58 = vld [vmem:[%s1 + $0x94] sm:$0xf]
  %v59 = vld [vmem:[%s1 + $0x98] sm:$0xf]
  %v60 = vld [vmem:[%s1 + $0x9c] sm:$0xf]
  %v61 = vld [vmem:[%s1 + $0xa0] sm:$0xf]
  %v62 = vld [vmem:[%s1 + $0xa4] sm:$0xf]
  %v63 = vld [vmem:[%s1 + $0xa8] sm:$0xf]
  %v64 = vld [vmem:[%s1 + $0xac] sm:$0xf]
  %v65 = vld [vmem:[%s1 + $0xb0] sm:$0xf]
  %v66 = vld [vmem:[%s1 + $0xb4] sm:$0xf]
  %v67 = vld [vmem:[%s1 + $0xb8] sm:$0xf]
  %v68 = vld [vmem:[%s1 + $0xbc] sm:$0xf]
  %v69 = vld [vmem:[%s1 + $0xc0] sm:$0xf]
  %v70 = vld [vmem:[%s1 + $0xc4] sm:$0xf]
  %v71 = vld [vmem:[%s1 + $0xc8] sm:$0xf]
  %v72 = vld [vmem:[%s1 + $0xcc] sm:$0xf]
  %v73 = vld [vmem:[%s1 + $0xd0] sm:$0xf]
  %v74 = vld [vmem:[%s1 + $0xd4] sm:$0xf]
  %v75 = vld [vmem:[%s1 + $0xd8] sm:$0xf]
  %v76 = vld [vmem:[%s1 + $0xdc] sm:$0xf]
  %v77 = vld [vmem:[%s1 + $0xe0] sm:$0xf]
  %v78 = vld [vmem:[%s1 + $0xe4] sm:$0xf]
  %v79 = vld [vmem:[%s1 + $0xe8] sm:$0xf]
  %v80 = vld [vmem:[%s1 + $0xec] sm:$0xf]
  %v81 = vld [vmem:[%s1 + $0xf0] sm:$0xf]
  %v82 = vld [vmem:[%s1 + $0xf4] sm:$0xf]
  %v83 = vld [vmem:[%s1 + $0xf8] sm:$0xf]
  %v84 = vld [vmem:[%s1 + $0xfc] sm:$0xf]
  %v85 = vld [vmem:[%s1 + $0x100] sm:$0xf]
  %v86 = vld [vmem:[%s1 + $0x104] sm:$0xf]
  %v87 = vld [vmem:[%s1 + $0x108] sm:$0xf]
  %v88 = vld [vmem:[%s1 + $0x10c] sm:$0xf]
  %v89 = vld [vmem:[%s1 + $0x110] sm:$0xf]
  %v90 = vld [vmem:[%s1 + $0x114] sm:$0xf]
  %v91 = vld [vmem:[%s1 + $0x118] sm:$0xf]
  %v92 = vld [vmem:[%s1 + $0x11c] sm:$0xf]
  %v96 = vunpack.c.l.b16 %v18
  %v97 = vunpack.c.h.b16 %v18
  %v98 = vunpack.c.l.b16 %v19
  %v99 = vunpack.c.h.b16 %v19
  %v100 = vunpack.c.l.b16 %v20
  %v101 = vpack.c.b16 %v96, %v96
  %v102 = vpack.c.b16 %v97, %v97
  %v103 = vpack.c.b16 %v98, %v98
  %v104 = vpack.c.b16 %v99, %v99
  %v105 = vpack.c.b16 %v100, %v100
  %v182 = vunpack.c.l.b16 %v21
  %v183 = vunpack.c.l.b16 %v22
  %v184 = vunpack.c.l.b16 %v23
  %v185 = vunpack.c.l.b16 %v24
  %v186 = vunpack.c.l.b16 %v25
  %v187 = vunpack.c.l.b16 %v26
  %v188 = vunpack.c.l.b16 %v27
  %v189 = vunpack.c.l.b16 %v28
  %v190 = vunpack.c.l.b16 %v29
  %v191 = vunpack.c.l.b16 %v30
  %v192 = vunpack.c.l.b16 %v31
  %v193 = vunpack.c.l.b16 %v32
  %v194 = vunpack.c.l.b16 %v33
  %v195 = vunpack.c.l.b16 %v34
  %v196 = vunpack.c.l.b16 %v35
  %v197 = vunpack.c.l.b16 %v36
  %v198 = vunpack.c.l.b16 %v37
  %v199 = vunpack.c.l.b16 %v38
  %v200 = vunpack.c.l.b16 %v39
  %v201 = vunpack.c.l.b16 %v40
  %v202 = vunpack.c.l.b16 %v41
  %v203 = vunpack.c.l.b16 %v42
  %v204 = vunpack.c.l.b16 %v43
  %v205 = vunpack.c.l.b16 %v44
  %v206 = vunpack.c.l.b16 %v45
  %v207 = vunpack.c.l.b16 %v46
  %v208 = vunpack.c.l.b16 %v47
  %v209 = vunpack.c.l.b16 %v48
  %v210 = vunpack.c.l.b16 %v49
  %v211 = vunpack.c.l.b16 %v50
  %v212 = vunpack.c.l.b16 %v51
  %v213 = vunpack.c.l.b16 %v52
  %v214 = vunpack.c.l.b16 %v53
  %v215 = vunpack.c.l.b16 %v54
  %v216 = vunpack.c.l.b16 %v55
  %v217 = vunpack.c.l.b16 %v56
  %v218 = vunpack.c.l.b16 %v57
  %v219 = vunpack.c.l.b16 %v58
  %v220 = vunpack.c.l.b16 %v59
  %v221 = vunpack.c.l.b16 %v60
  %v222 = vunpack.c.l.b16 %v61
  %v223 = vunpack.c.l.b16 %v62
  %v224 = vunpack.c.l.b16 %v63
  %v225 = vunpack.c.l.b16 %v64
  %v226 = vunpack.c.l.b16 %v65
  %v227 = vunpack.c.l.b16 %v66
  %v228 = vunpack.c.l.b16 %v67
  %v229 = vunpack.c.l.b16 %v68
  %v230 = vunpack.c.l.b16 %v69
  %v231 = vunpack.c.l.b16 %v70
  %v232 = vunpack.c.l.b16 %v71
  %v233 = vunpack.c.l.b16 %v72
  %v234 = vunpack.c.l.b16 %v73
  %v235 = vunpack.c.l.b16 %v74
  %v236 = vunpack.c.l.b16 %v75
  %v237 = vunpack.c.l.b16 %v76
  %v238 = vunpack.c.l.b16 %v77
  %v239 = vunpack.c.l.b16 %v78
  %v240 = vunpack.c.l.b16 %v79
  %v241 = vunpack.c.l.b16 %v80
  %v242 = vunpack.c.l.b16 %v81
  %v243 = vunpack.c.l.b16 %v82
  %v244 = vunpack.c.l.b16 %v83
  %v245 = vunpack.c.l.b16 %v84
  %v246 = vunpack.c.l.b16 %v85
  %v247 = vunpack.c.l.b16 %v86
  %v248 = vunpack.c.l.b16 %v87
  %v249 = vunpack.c.l.b16 %v88
  %v250 = vunpack.c.l.b16 %v89
  %v251 = vunpack.c.l.b16 %v90
  %v252 = vunpack.c.l.b16 %v91
  %v253 = vunpack.c.l.b16 %v92
  %v254 = vpack.c.b16 %v183, %v182
  %v255 = vpack.c.b16 %v185, %v184
  %v256 = vpack.c.b16 %v187, %v186
  %v257 = vpack.c.b16 %v189, %v188
  %v258 = vpack.c.b16 %v191, %v190
  %v259 = vpack.c.b16 %v193, %v192
  %v260 = vpack.c.b16 %v195, %v194
  %v261 = vpack.c.b16 %v197, %v196
  %v262 = vpack.c.b16 %v199, %v198
  %v263 = vpack.c.b16 %v201, %v200
  %v264 = vpack.c.b16 %v203, %v202
  %v265 = vpack.c.b16 %v205, %v204
  %v266 = vpack.c.b16 %v207, %v206
  %v267 = vpack.c.b16 %v209, %v208
  %v268 = vpack.c.b16 %v211, %v210
  %v269 = vpack.c.b16 %v213, %v212
  %v270 = vpack.c.b16 %v215, %v214
  %v271 = vpack.c.b16 %v217, %v216
  %v272 = vpack.c.b16 %v219, %v218
  %v273 = vpack.c.b16 %v221, %v220
  %v274 = vpack.c.b16 %v223, %v222
  %v275 = vpack.c.b16 %v225, %v224
  %v276 = vpack.c.b16 %v227, %v226
  %v277 = vpack.c.b16 %v229, %v228
  %v278 = vpack.c.b16 %v231, %v230
  %v279 = vpack.c.b16 %v233, %v232
  %v280 = vpack.c.b16 %v235, %v234
  %v281 = vpack.c.b16 %v237, %v236
  %v282 = vpack.c.b16 %v239, %v238
  %v283 = vpack.c.b16 %v241, %v240
  %v284 = vpack.c.b16 %v243, %v242
  %v285 = vpack.c.b16 %v245, %v244
  %v286 = vpack.c.b16 %v247, %v246
  %v287 = vpack.c.b16 %v249, %v248
  %v288 = vpack.c.b16 %v251, %v250
  %v289 = vpack.c.b16 %v253, %v252
  %vm326 = vcmask 523264
  %v328 = vsel %vm326, %v105, 0
  %330 = vmatprep.subr.bf16.mxu0 0
  %331 = vmatpush1.bf16.msra.mxu0 %v254
  %332 = vmatprep.subr.bf16.mxu0 0
  %333 = vmatpush1.bf16.msra.mxu0 %v255
  %334 = vmatprep.subr.bf16.mxu0 0
  %335 = vmatpush1.bf16.msra.mxu0 %v256
  %336 = vmatprep.subr.bf16.mxu0 0
  %337 = vmatpush1.bf16.msra.mxu0 %v257
  %338 = vmatprep.subr.bf16.mxu0 0
  %339 = vmatpush1.bf16.msra.mxu0 %v258
  %340 = vmatprep.subr.bf16.mxu0 0
  %341 = vmatpush1.bf16.msra.mxu0 %v259
  %342 = vmatprep.subr.bf16.mxu0 0
  %343 = vmatpush1.bf16.msra.mxu0 %v260
  %344 = vmatprep.subr.bf16.mxu0 0
  %345 = vmatpush1.bf16.msra.mxu0 %v261
  %346 = vmatprep.subr.bf16.mxu0 0
  %347 = vmatpush1.bf16.msra.mxu0 %v262
  %348 = vmatprep.subr.bf16.mxu0 0
  %349 = vmatpush1.bf16.msra.mxu0 %v263
  %350 = vmatprep.subr.bf16.mxu0 0
  %351 = vmatpush1.bf16.msra.mxu0 %v264
  %352 = vmatprep.subr.bf16.mxu0 0
  %353 = vmatpush1.bf16.msra.mxu0 %v265
  %354 = vmatprep.subr.bf16.mxu0 0
  %355 = vmatpush1.bf16.msra.mxu0 %v266
  %356 = vmatprep.subr.bf16.mxu0 0
  %357 = vmatpush1.bf16.msra.mxu0 %v267
  %358 = vmatprep.subr.bf16.mxu0 0
  %359 = vmatpush1.bf16.msra.mxu0 %v268
  %360 = vmatprep.subr.bf16.mxu0 0
  %361 = vmatpush1.bf16.msra.mxu0 %v269
  %362 = vmatprep.mubr.bf16.mxu0 %v102
  %363 = vmatmul.mubr.bf16.gmra.mrb[0].mxu0 %v101
  %v364 = vpop.f32.mrb[0].mxu0
  %v365 = vadd.f32 0.0, %v364
  %v366 = vpop.f32.mrb[0].mxu0
  %v367 = vpop.f32.mrb[0].mxu0
  %v368 = vpop.f32.mrb[0].mxu0
  %369 = vdwg.mxu0
  %370 = vmatprep.subr.bf16.mxu0 0
  %371 = vmatpush1.bf16.msra.mxu0 %v270
  %372 = vmatprep.subr.bf16.mxu0 0
  %373 = vmatpush1.bf16.msra.mxu0 %v271
  %374 = vmatprep.subr.bf16.mxu0 0
  %375 = vmatpush1.bf16.msra.mxu0 %v272
  %376 = vmatprep.subr.bf16.mxu0 0
  %377 = vmatpush1.bf16.msra.mxu0 %v273
  %378 = vmatprep.subr.bf16.mxu0 0
  %379 = vmatpush1.bf16.msra.mxu0 %v274
  %380 = vmatprep.subr.bf16.mxu0 0
  %381 = vmatpush1.bf16.msra.mxu0 %v275
  %382 = vmatprep.subr.bf16.mxu0 0
  %383 = vmatpush1.bf16.msra.mxu0 %v276
  %384 = vmatprep.subr.bf16.mxu0 0
  %385 = vmatpush1.bf16.msra.mxu0 %v277
  %386 = vmatprep.subr.bf16.mxu0 0
  %387 = vmatpush1.bf16.msra.mxu0 %v278
  %388 = vmatprep.subr.bf16.mxu0 0
  %389 = vmatpush1.bf16.msra.mxu0 %v279
  %390 = vmatprep.subr.bf16.mxu0 0
  %391 = vmatpush1.bf16.msra.mxu0 %v280
  %392 = vmatprep.subr.bf16.mxu0 0
  %393 = vmatpush1.bf16.msra.mxu0 %v281
  %394 = vmatprep.subr.bf16.mxu0 0
  %395 = vmatpush1.bf16.msra.mxu0 %v282
  %396 = vmatprep.subr.bf16.mxu0 0
  %397 = vmatpush1.bf16.msra.mxu0 %v283
  %398 = vmatprep.subr.bf16.mxu0 0
  %399 = vmatpush1.bf16.msra.mxu0 %v284
  %400 = vmatprep.subr.bf16.mxu0 0
  %401 = vmatpush1.bf16.msra.mxu0 %v285
  %402 = vmatprep.mubr.bf16.mxu0 %v104
  %403 = vmatmul.mubr.bf16.gmra.mrb[0].mxu0 %v103
  %v404 = vpop.f32.mrb[0].mxu0
  %v405 = vadd.f32 %v365, %v404
  %v406 = vpop.f32.mrb[0].mxu0
  %v407 = vpop.f32.mrb[0].mxu0
  %v408 = vpop.f32.mrb[0].mxu0
  %409 = vdwg.mxu0
  %410 = vmatprep.subr.bf16.mxu0 0
  %411 = vmatpush1.bf16.msra.mxu0 %v286
  %412 = vmatprep.subr.bf16.mxu0 0
  %413 = vmatpush1.bf16.msra.mxu0 %v287
  %414 = vmatprep.subr.bf16.mxu0 0
  %415 = vmatpush1.bf16.msra.mxu0 %v288
  %416 = vmatprep.subr.bf16.mxu0 0
  %417 = vmatpush1.bf16.msra.mxu0 %v289
  %418 = vmatprep.subr.bf16.mxu0 0
  %419 = vmatpush1.bf16.msra.mxu0 0
  %420 = vmatprep.subr.bf16.mxu0 0
  %421 = vmatpush1.bf16.msra.mxu0 0
  %422 = vmatprep.subr.bf16.mxu0 0
  %423 = vmatpush1.bf16.msra.mxu0 0
  %424 = vmatprep.subr.bf16.mxu0 0
  %425 = vmatpush1.bf16.msra.mxu0 0
  %426 = vmatprep.subr.bf16.mxu0 0
  %427 = vmatpush1.bf16.msra.mxu0 0
  %428 = vmatprep.subr.bf16.mxu0 0
  %429 = vmatpush1.bf16.msra.mxu0 0
  %430 = vmatprep.subr.bf16.mxu0 0
  %431 = vmatpush1.bf16.msra.mxu0 0
  %432 = vmatprep.subr.bf16.mxu0 0
  %433 = vmatpush1.bf16.msra.mxu0 0
  %434 = vmatprep.subr.bf16.mxu0 0
  %435 = vmatpush1.bf16.msra.mxu0 0
  %436 = vmatprep.subr.bf16.mxu0 0
  %437 = vmatpush1.bf16.msra.mxu0 0
  %438 = vmatprep.subr.bf16.mxu0 0
  %439 = vmatpush1.bf16.msra.mxu0 0
  %440 = vmatprep.subr.bf16.mxu0 0
  %441 = vmatpush1.bf16.msra.mxu0 0
  %442 = vmatprep.mubr.bf16.mxu0 0
  %443 = vmatmul.mubr.bf16.gmra.mrb[0].mxu0 %v328
  %v444 = vpop.f32.mrb[0].mxu0
  %v445 = vadd.f32 %v405, %v444
  %v446 = vpop.f32.mrb[0].mxu0
  %v447 = vpop.f32.mrb[0].mxu0
  %v448 = vpop.f32.mrb[0].mxu0
  %449 = vdwg.mxu0
  %v450 = vld [vmem:[%s2] sm:$0x1]
  %v452 = vlaneseq
  %v453 = vshrl.u32 %v452, 7
  %v454 = vsub.s32 0, %v453
  %v455 = vrot.slane %v450, %v454
  %v457 = vmul.f32 %v445, %v455
  %v458 = vld [vmem:[%s3] sm:$0x1]
  %v460 = vlaneseq
  %v461 = vshrl.u32 %v460, 7
  %v462 = vsub.s32 0, %v461
  %v463 = vrot.slane %v458, %v462
  %v465 = vadd.f32 %v457, %v463
  %v466 = vmax.f32 %v465, 0.0
  %467 = vst [vmem:[%s4] sm:$0xff] %v466
  // Predicated region
  $region18: #{unet_forward.26} parent=0 // pred_check
    _
  $region19: #{unet_forward.26} parent=0 // pred_check_branch
    %469 = sbr.rel (0) target = $region21
  $region20: #{unet_forward.26} parent=0 // pred_region
    _
  $region21: #{unet_forward.26} parent=0 // pred_fallthru
    _
  // Predicated region
  $region22: #{unet_forward.26} parent=0 // pred_check
    _
  $region23: #{unet_forward.26} parent=0 // pred_check_branch
    %471 = sbr.rel (0) target = $region25
  $region24: #{unet_forward.26} parent=0 // pred_region
    _
  $region25: #{unet_forward.26} parent=0 // pred_fallthru
    _

// kernel: unet_forward.27
$region0: #{unet_forward.27}
  #allocation0 [shape = 'u32[]', space=smem, size = 0x4, offset = 0x4, fixed_abs, tag = 'smem constant byte address 0x4 - core index']
  #allocation1 [shape = 'u32[144,128]{1,0:T(1,128)}', space=vmem, size = 0x12000, scoped, tag = 'internal scratch']
  %s0 = inlined_call_operand.vmem [shape: bf16[8,1152], index: 0, kind: input, shape index: {}]
  %s1 = inlined_call_operand.vmem [shape: bf16[1152,128], index: 1, kind: input, shape index: {}]
  %s2 = inlined_call_operand.vmem [shape: f32[1,128], index: 2, kind: input, shape index: {}]
  %s3 = inlined_call_operand.vmem [shape: f32[1,128], index: 3, kind: input, shape index: {}]
  %s4 = inlined_call_operand.vmem [shape: f32[8,128], index: 4, kind: output, shape index: {}]
  %s5 = sld [smem:[#allocation0]]
  $region26: #{unet_forward.27} parent=0
    _
  %s7 = ssub.s32 1, %s5
  %s8 = scalar_select 0, %s7, %s5
  // Predicated region
  $region2: #{unet_forward.27} parent=0 // pred_check
    _
  $region3: #{unet_forward.27} parent=0 // pred_check_branch
    %10 = sbr.rel (0) target = $region5
  $region4: #{unet_forward.27} parent=0 // pred_region
    _
  $region5: #{unet_forward.27} parent=0 // pred_fallthru
    _
  // Predicated region
  $region6: #{unet_forward.27} parent=0 // pred_check
    _
  $region7: #{unet_forward.27} parent=0 // pred_check_branch
    %12 = sbr.rel (0) target = $region9
  $region8: #{unet_forward.27} parent=0 // pred_region
    _
  $region9: #{unet_forward.27} parent=0 // pred_fallthru
    _
  // Predicated region
  $region10: #{unet_forward.27} parent=0 // pred_check
    _
  $region11: #{unet_forward.27} parent=0 // pred_check_branch
    %14 = sbr.rel (0) target = $region13
  $region12: #{unet_forward.27} parent=0 // pred_region
    _
  $region13: #{unet_forward.27} parent=0 // pred_fallthru
    _
  // Predicated region
  $region14: #{unet_forward.27} parent=0 // pred_check
    _
  $region15: #{unet_forward.27} parent=0 // pred_check_branch
    %16 = sbr.rel (0) target = $region17
  $region16: #{unet_forward.27} parent=0 // pred_region
    _
  $region17: #{unet_forward.27} parent=0 // pred_fallthru
    _
  %v18 = vld [vmem:[%s0] sm:$0xff]
  %v19 = vld [vmem:[%s0 + $0x8] sm:$0xff]
  %v20 = vld [vmem:[%s0 + $0x10] sm:$0xff]
  %v21 = vld [vmem:[%s0 + $0x18] sm:$0xff]
  %v22 = vld [vmem:[%s0 + $0x20] sm:$0xf]
  %v23 = vld [vmem:[%s1] sm:$0xf]
  %v24 = vld [vmem:[%s1 + $0x4] sm:$0xf]
  %v25 = vld [vmem:[%s1 + $0x8] sm:$0xf]
  %v26 = vld [vmem:[%s1 + $0xc] sm:$0xf]
  %v27 = vld [vmem:[%s1 + $0x10] sm:$0xf]
  %v28 = vld [vmem:[%s1 + $0x14] sm:$0xf]
  %v29 = vld [vmem:[%s1 + $0x18] sm:$0xf]
  %v30 = vld [vmem:[%s1 + $0x1c] sm:$0xf]
  %v31 = vld [vmem:[%s1 + $0x20] sm:$0xf]
  %v32 = vld [vmem:[%s1 + $0x24] sm:$0xf]
  %v33 = vld [vmem:[%s1 + $0x28] sm:$0xf]
  %v34 = vld [vmem:[%s1 + $0x2c] sm:$0xf]
  %v35 = vld [vmem:[%s1 + $0x30] sm:$0xf]
  %v36 = vld [vmem:[%s1 + $0x34] sm:$0xf]
  %v37 = vld [vmem:[%s1 + $0x38] sm:$0xf]
  %v38 = vld [vmem:[%s1 + $0x3c] sm:$0xf]
  %v39 = vld [vmem:[%s1 + $0x40] sm:$0xf]
  %v40 = vld [vmem:[%s1 + $0x44] sm:$0xf]
  %v41 = vld [vmem:[%s1 + $0x48] sm:$0xf]
  %v42 = vld [vmem:[%s1 + $0x4c] sm:$0xf]
  %v43 = vld [vmem:[%s1 + $0x50] sm:$0xf]
  %v44 = vld [vmem:[%s1 + $0x54] sm:$0xf]
  %v45 = vld [vmem:[%s1 + $0x58] sm:$0xf]
  %v46 = vld [vmem:[%s1 + $0x5c] sm:$0xf]
  %v47 = vld [vmem:[%s1 + $0x60] sm:$0xf]
  %v48 = vld [vmem:[%s1 + $0x64] sm:$0xf]
  %v49 = vld [vmem:[%s1 + $0x68] sm:$0xf]
  %v50 = vld [vmem:[%s1 + $0x6c] sm:$0xf]
  %v51 = vld [vmem:[%s1 + $0x70] sm:$0xf]
  %v52 = vld [vmem:[%s1 + $0x74] sm:$0xf]
  %v53 = vld [vmem:[%s1 + $0x78] sm:$0xf]
  %v54 = vld [vmem:[%s1 + $0x7c] sm:$0xf]
  %v55 = vld [vmem:[%s1 + $0x80] sm:$0xf]
  %v56 = vld [vmem:[%s1 + $0x84] sm:$0xf]
  %v57 = vld [vmem:[%s1 + $0x88] sm:$0xf]
  %v58 = vld [vmem:[%s1 + $0x8c] sm:$0xf]
  %v59 = vld [vmem:[%s1 + $0x90] sm:$0xf]
  %v60 = vld [vmem:[%s1 + $0x94] sm:$0xf]
  %v61 = vld [vmem:[%s1 + $0x98] sm:$0xf]
  %v62 = vld [vmem:[%s1 + $0x9c] sm:$0xf]
  %v63 = vld [vmem:[%s1 + $0xa0] sm:$0xf]
  %v64 = vld [vmem:[%s1 + $0xa4] sm:$0xf]
  %v65 = vld [vmem:[%s1 + $0xa8] sm:$0xf]
  %v66 = vld [vmem:[%s1 + $0xac] sm:$0xf]
  %v67 = vld [vmem:[%s1 + $0xb0] sm:$0xf]
  %v68 = vld [vmem:[%s1 + $0xb4] sm:$0xf]
  %v69 = vld [vmem:[%s1 + $0xb8] sm:$0xf]
  %v70 = vld [vmem:[%s1 + $0xbc] sm:$0xf]
  %v71 = vld [vmem:[%s1 + $0xc0] sm:$0xf]
  %v72 = vld [vmem:[%s1 + $0xc4] sm:$0xf]
  %v73 = vld [vmem:[%s1 + $0xc8] sm:$0xf]
  %v74 = vld [vmem:[%s1 + $0xcc] sm:$0xf]
  %v75 = vld [vmem:[%s1 + $0xd0] sm:$0xf]
  %v76 = vld [vmem:[%s1 + $0xd4] sm:$0xf]
  %v77 = vld [vmem:[%s1 + $0xd8] sm:$0xf]
  %v78 = vld [vmem:[%s1 + $0xdc] sm:$0xf]
  %v79 = vld [vmem:[%s1 + $0xe0] sm:$0xf]
  %v80 = vld [vmem:[%s1 + $0xe4] sm:$0xf]
  %v81 = vld [vmem:[%s1 + $0xe8] sm:$0xf]
  %v82 = vld [vmem:[%s1 + $0xec] sm:$0xf]
  %v83 = vld [vmem:[%s1 + $0xf0] sm:$0xf]
  %v84 = vld [vmem:[%s1 + $0xf4] sm:$0xf]
  %v85 = vld [vmem:[%s1 + $0xf8] sm:$0xf]
  %v86 = vld [vmem:[%s1 + $0xfc] sm:$0xf]
  %v87 = vld [vmem:[%s1 + $0x100] sm:$0xf]
  %v88 = vld [vmem:[%s1 + $0x104] sm:$0xf]
  %v89 = vld [vmem:[%s1 + $0x108] sm:$0xf]
  %v90 = vld [vmem:[%s1 + $0x10c] sm:$0xf]
  %v91 = vld [vmem:[%s1 + $0x110] sm:$0xf]
  %v92 = vld [vmem:[%s1 + $0x114] sm:$0xf]
  %v93 = vld [vmem:[%s1 + $0x118] sm:$0xf]
  %v94 = vld [vmem:[%s1 + $0x11c] sm:$0xf]
  %v95 = vld [vmem:[%s1 + $0x120] sm:$0xf]
  %v96 = vld [vmem:[%s1 + $0x124] sm:$0xf]
  %v97 = vld [vmem:[%s1 + $0x128] sm:$0xf]
  %v98 = vld [vmem:[%s1 + $0x12c] sm:$0xf]
  %v99 = vld [vmem:[%s1 + $0x130] sm:$0xf]
  %v100 = vld [vmem:[%s1 + $0x134] sm:$0xf]
  %v101 = vld [vmem:[%s1 + $0x138] sm:$0xf]
  %v102 = vld [vmem:[%s1 + $0x13c] sm:$0xf]
  %v103 = vld [vmem:[%s1 + $0x140] sm:$0xf]
  %v104 = vld [vmem:[%s1 + $0x144] sm:$0xf]
  %v105 = vld [vmem:[%s1 + $0x148] sm:$0xf]
  %v106 = vld [vmem:[%s1 + $0x14c] sm:$0xf]
  %v107 = vld [vmem:[%s1 + $0x150] sm:$0xf]
  %v108 = vld [vmem:[%s1 + $0x154] sm:$0xf]
  %v109 = vld [vmem:[%s1 + $0x158] sm:$0xf]
  %v110 = vld [vmem:[%s1 + $0x15c] sm:$0xf]
  %v111 = vld [vmem:[%s1 + $0x160] sm:$0xf]
  %v112 = vld [vmem:[%s1 + $0x164] sm:$0xf]
  %v113 = vld [vmem:[%s1 + $0x168] sm:$0xf]
  %v114 = vld [vmem:[%s1 + $0x16c] sm:$0xf]
  %v115 = vld [vmem:[%s1 + $0x170] sm:$0xf]
  %v116 = vld [vmem:[%s1 + $0x174] sm:$0xf]
  %v117 = vld [vmem:[%s1 + $0x178] sm:$0xf]
  %v118 = vld [vmem:[%s1 + $0x17c] sm:$0xf]
  %v119 = vld [vmem:[%s1 + $0x180] sm:$0xf]
  %v120 = vld [vmem:[%s1 + $0x184] sm:$0xf]
  %v121 = vld [vmem:[%s1 + $0x188] sm:$0xf]
  %v122 = vld [vmem:[%s1 + $0x18c] sm:$0xf]
  %v123 = vld [vmem:[%s1 + $0x190] sm:$0xf]
  %v124 = vld [vmem:[%s1 + $0x194] sm:$0xf]
  %v125 = vld [vmem:[%s1 + $0x198] sm:$0xf]
  %v126 = vld [vmem:[%s1 + $0x19c] sm:$0xf]
  %v127 = vld [vmem:[%s1 + $0x1a0] sm:$0xf]
  %v128 = vld [vmem:[%s1 + $0x1a4] sm:$0xf]
  %v129 = vld [vmem:[%s1 + $0x1a8] sm:$0xf]
  %v130 = vld [vmem:[%s1 + $0x1ac] sm:$0xf]
  %v131 = vld [vmem:[%s1 + $0x1b0] sm:$0xf]
  %v132 = vld [vmem:[%s1 + $0x1b4] sm:$0xf]
  %v133 = vld [vmem:[%s1 + $0x1b8] sm:$0xf]
  %v134 = vld [vmem:[%s1 + $0x1bc] sm:$0xf]
  %v135 = vld [vmem:[%s1 + $0x1c0] sm:$0xf]
  %v136 = vld [vmem:[%s1 + $0x1c4] sm:$0xf]
  %v137 = vld [vmem:[%s1 + $0x1c8] sm:$0xf]
  %v138 = vld [vmem:[%s1 + $0x1cc] sm:$0xf]
  %v139 = vld [vmem:[%s1 + $0x1d0] sm:$0xf]
  %v140 = vld [vmem:[%s1 + $0x1d4] sm:$0xf]
  %v141 = vld [vmem:[%s1 + $0x1d8] sm:$0xf]
  %v142 = vld [vmem:[%s1 + $0x1dc] sm:$0xf]
  %v143 = vld [vmem:[%s1 + $0x1e0] sm:$0xf]
  %v144 = vld [vmem:[%s1 + $0x1e4] sm:$0xf]
  %v145 = vld [vmem:[%s1 + $0x1e8] sm:$0xf]
  %v146 = vld [vmem:[%s1 + $0x1ec] sm:$0xf]
  %v147 = vld [vmem:[%s1 + $0x1f0] sm:$0xf]
  %v148 = vld [vmem:[%s1 + $0x1f4] sm:$0xf]
  %v149 = vld [vmem:[%s1 + $0x1f8] sm:$0xf]
  %v150 = vld [vmem:[%s1 + $0x1fc] sm:$0xf]
  %v151 = vld [vmem:[%s1 + $0x200] sm:$0xf]
  %v152 = vld [vmem:[%s1 + $0x204] sm:$0xf]
  %v153 = vld [vmem:[%s1 + $0x208] sm:$0xf]
  %v154 = vld [vmem:[%s1 + $0x20c] sm:$0xf]
  %v155 = vld [vmem:[%s1 + $0x210] sm:$0xf]
  %v156 = vld [vmem:[%s1 + $0x214] sm:$0xf]
  %v157 = vld [vmem:[%s1 + $0x218] sm:$0xf]
  %v158 = vld [vmem:[%s1 + $0x21c] sm:$0xf]
  %v159 = vld [vmem:[%s1 + $0x220] sm:$0xf]
  %v160 = vld [vmem:[%s1 + $0x224] sm:$0xf]
  %v161 = vld [vmem:[%s1 + $0x228] sm:$0xf]
  %v162 = vld [vmem:[%s1 + $0x22c] sm:$0xf]
  %v163 = vld [vmem:[%s1 + $0x230] sm:$0xf]
  %v164 = vld [vmem:[%s1 + $0x234] sm:$0xf]
  %v165 = vld [vmem:[%s1 + $0x238] sm:$0xf]
  %v166 = vld [vmem:[%s1 + $0x23c] sm:$0xf]
  %v172 = vunpack.c.l.b16 %v18
  %v173 = vunpack.c.h.b16 %v18
  %v174 = vunpack.c.l.b16 %v19
  %v175 = vunpack.c.h.b16 %v19
  %v176 = vunpack.c.l.b16 %v20
  %v177 = vunpack.c.h.b16 %v20
  %v178 = vunpack.c.l.b16 %v21
  %v179 = vunpack.c.h.b16 %v21
  %v180 = vunpack.c.l.b16 %v22
  %v181 = vpack.c.b16 %v172, %v172
  %v182 = vpack.c.b16 %v173, %v173
  %v183 = vpack.c.b16 %v174, %v174
  %v184 = vpack.c.b16 %v175, %v175
  %v185 = vpack.c.b16 %v176, %v176
  %v186 = vpack.c.b16 %v177, %v177
  %v187 = vpack.c.b16 %v178, %v178
  %v188 = vpack.c.b16 %v179, %v179
  %v189 = vpack.c.b16 %v180, %v180
  %v343 = vunpack.c.l.b16 %v23
  %v344 = vunpack.c.l.b16 %v24
  %v345 = vunpack.c.l.b16 %v25
  %v346 = vunpack.c.l.b16 %v26
  %v347 = vunpack.c.l.b16 %v27
  %v348 = vunpack.c.l.b16 %v28
  %v349 = vunpack.c.l.b16 %v29
  %v350 = vunpack.c.l.b16 %v30
  %v351 = vunpack.c.l.b16 %v31
  %v352 = vunpack.c.l.b16 %v32
  %v353 = vunpack.c.l.b16 %v33
  %v354 = vunpack.c.l.b16 %v34
  %v355 = vunpack.c.l.b16 %v35
  %v356 = vunpack.c.l.b16 %v36
  %v357 = vunpack.c.l.b16 %v37
  %v358 = vunpack.c.l.b16 %v38
  %v359 = vunpack.c.l.b16 %v39
  %v360 = vunpack.c.l.b16 %v40
  %v361 = vunpack.c.l.b16 %v41
  %v362 = vunpack.c.l.b16 %v42
  %v363 = vunpack.c.l.b16 %v43
  %v364 = vunpack.c.l.b16 %v44
  %v365 = vunpack.c.l.b16 %v45
  %v366 = vunpack.c.l.b16 %v46
  %v367 = vunpack.c.l.b16 %v47
  %v368 = vunpack.c.l.b16 %v48
  %v369 = vunpack.c.l.b16 %v49
  %v370 = vunpack.c.l.b16 %v50
  %v371 = vunpack.c.l.b16 %v51
  %v372 = vunpack.c.l.b16 %v52
  %v373 = vunpack.c.l.b16 %v53
  %v374 = vunpack.c.l.b16 %v54
  %v375 = vunpack.c.l.b16 %v55
  %v376 = vunpack.c.l.b16 %v56
  %v377 = vunpack.c.l.b16 %v57
  %v378 = vunpack.c.l.b16 %v58
  %v379 = vunpack.c.l.b16 %v59
  %v380 = vunpack.c.l.b16 %v60
  %v381 = vunpack.c.l.b16 %v61
  %v382 = vunpack.c.l.b16 %v62
  %v383 = vunpack.c.l.b16 %v63
  %v384 = vunpack.c.l.b16 %v64
  %v385 = vunpack.c.l.b16 %v65
  %v386 = vunpack.c.l.b16 %v66
  %v387 = vunpack.c.l.b16 %v67
  %v388 = vunpack.c.l.b16 %v68
  %v389 = vunpack.c.l.b16 %v69
  %v390 = vunpack.c.l.b16 %v70
  %v391 = vunpack.c.l.b16 %v71
  %v392 = vunpack.c.l.b16 %v72
  %v393 = vunpack.c.l.b16 %v73
  %v394 = vunpack.c.l.b16 %v74
  %v395 = vunpack.c.l.b16 %v75
  %v396 = vunpack.c.l.b16 %v76
  %v397 = vunpack.c.l.b16 %v77
  %v398 = vunpack.c.l.b16 %v78
  %v399 = vunpack.c.l.b16 %v79
  %v400 = vunpack.c.l.b16 %v80
  %v401 = vunpack.c.l.b16 %v81
  %v402 = vunpack.c.l.b16 %v82
  %v403 = vunpack.c.l.b16 %v83
  %v404 = vunpack.c.l.b16 %v84
  %v405 = vunpack.c.l.b16 %v85
  %v406 = vunpack.c.l.b16 %v86
  %v407 = vunpack.c.l.b16 %v87
  %v408 = vunpack.c.l.b16 %v88
  %v409 = vunpack.c.l.b16 %v89
  %v410 = vunpack.c.l.b16 %v90
  %v411 = vunpack.c.l.b16 %v91
  %v412 = vunpack.c.l.b16 %v92
  %v413 = vunpack.c.l.b16 %v93
  %v414 = vunpack.c.l.b16 %v94
  %v415 = vunpack.c.l.b16 %v95
  %v416 = vunpack.c.l.b16 %v96
  %v417 = vunpack.c.l.b16 %v97
  %v418 = vunpack.c.l.b16 %v98
  %v419 = vunpack.c.l.b16 %v99
  %v420 = vunpack.c.l.b16 %v100
  %v421 = vunpack.c.l.b16 %v101
  %v422 = vunpack.c.l.b16 %v102
  %v423 = vunpack.c.l.b16 %v103
  %v424 = vunpack.c.l.b16 %v104
  %v425 = vunpack.c.l.b16 %v105
  %v426 = vunpack.c.l.b16 %v106
  %v427 = vunpack.c.l.b16 %v107
  %v428 = vunpack.c.l.b16 %v108
  %v429 = vunpack.c.l.b16 %v109
  %v430 = vunpack.c.l.b16 %v110
  %v431 = vunpack.c.l.b16 %v111
  %v432 = vunpack.c.l.b16 %v112
  %v433 = vunpack.c.l.b16 %v113
  %v434 = vunpack.c.l.b16 %v114
  %v435 = vunpack.c.l.b16 %v115
  %v436 = vunpack.c.l.b16 %v116
  %v437 = vunpack.c.l.b16 %v117
  %v438 = vunpack.c.l.b16 %v118
  %v439 = vunpack.c.l.b16 %v119
  %v440 = vunpack.c.l.b16 %v120
  %v441 = vunpack.c.l.b16 %v121
  %v442 = vunpack.c.l.b16 %v122
  %v443 = vunpack.c.l.b16 %v123
  %v444 = vunpack.c.l.b16 %v124
  %v445 = vunpack.c.l.b16 %v125
  %v446 = vunpack.c.l.b16 %v126
  %v447 = vunpack.c.l.b16 %v127
  %v448 = vunpack.c.l.b16 %v128
  %v449 = vunpack.c.l.b16 %v129
  %v450 = vunpack.c.l.b16 %v130
  %v451 = vunpack.c.l.b16 %v131
  %v452 = vunpack.c.l.b16 %v132
  %v453 = vunpack.c.l.b16 %v133
  %v454 = vunpack.c.l.b16 %v134
  %v455 = vunpack.c.l.b16 %v135
  %v456 = vunpack.c.l.b16 %v136
  %v457 = vunpack.c.l.b16 %v137
  %v458 = vunpack.c.l.b16 %v138
  %v459 = vunpack.c.l.b16 %v139
  %v460 = vunpack.c.l.b16 %v140
  %v461 = vunpack.c.l.b16 %v141
  %v462 = vunpack.c.l.b16 %v142
  %v463 = vunpack.c.l.b16 %v143
  %v464 = vunpack.c.l.b16 %v144
  %v465 = vunpack.c.l.b16 %v145
  %v466 = vunpack.c.l.b16 %v146
  %v467 = vunpack.c.l.b16 %v147
  %v468 = vunpack.c.l.b16 %v148
  %v469 = vunpack.c.l.b16 %v149
  %v470 = vunpack.c.l.b16 %v150
  %v471 = vunpack.c.l.b16 %v151
  %v472 = vunpack.c.l.b16 %v152
  %v473 = vunpack.c.l.b16 %v153
  %v474 = vunpack.c.l.b16 %v154
  %v475 = vunpack.c.l.b16 %v155
  %v476 = vunpack.c.l.b16 %v156
  %v477 = vunpack.c.l.b16 %v157
  %v478 = vunpack.c.l.b16 %v158
  %v479 = vunpack.c.l.b16 %v159
  %v480 = vunpack.c.l.b16 %v160
  %v481 = vunpack.c.l.b16 %v161
  %v482 = vunpack.c.l.b16 %v162
  %v483 = vunpack.c.l.b16 %v163
  %v484 = vunpack.c.l.b16 %v164
  %v485 = vunpack.c.l.b16 %v165
  %v486 = vunpack.c.l.b16 %v166
  %v487 = vpack.c.b16 %v344, %v343
  %v488 = vpack.c.b16 %v346, %v345
  %v489 = vpack.c.b16 %v348, %v347
  %v490 = vpack.c.b16 %v350, %v349
  %v491 = vpack.c.b16 %v352, %v351
  %v492 = vpack.c.b16 %v354, %v353
  %v493 = vpack.c.b16 %v356, %v355
  %v494 = vpack.c.b16 %v358, %v357
  %v495 = vpack.c.b16 %v360, %v359
  %v496 = vpack.c.b16 %v362, %v361
  %v497 = vpack.c.b16 %v364, %v363
  %v498 = vpack.c.b16 %v366, %v365
  %v499 = vpack.c.b16 %v368, %v367
  %v500 = vpack.c.b16 %v370, %v369
  %v501 = vpack.c.b16 %v372, %v371
  %v502 = vpack.c.b16 %v374, %v373
  %v503 = vpack.c.b16 %v376, %v375
  %v504 = vpack.c.b16 %v378, %v377
  %v505 = vpack.c.b16 %v380, %v379
  %v506 = vpack.c.b16 %v382, %v381
  %v507 = vpack.c.b16 %v384, %v383
  %v508 = vpack.c.b16 %v386, %v385
  %v509 = vpack.c.b16 %v388, %v387
  %v510 = vpack.c.b16 %v390, %v389
  %v511 = vpack.c.b16 %v392, %v391
  %v512 = vpack.c.b16 %v394, %v393
  %v513 = vpack.c.b16 %v396, %v395
  %v514 = vpack.c.b16 %v398, %v397
  %v515 = vpack.c.b16 %v400, %v399
  %v516 = vpack.c.b16 %v402, %v401
  %v517 = vpack.c.b16 %v404, %v403
  %v518 = vpack.c.b16 %v406, %v405
  %v519 = vpack.c.b16 %v408, %v407
  %v520 = vpack.c.b16 %v410, %v409
  %v521 = vpack.c.b16 %v412, %v411
  %v522 = vpack.c.b16 %v414, %v413
  %v523 = vpack.c.b16 %v416, %v415
  %v524 = vpack.c.b16 %v418, %v417
  %v525 = vpack.c.b16 %v420, %v419
  %v526 = vpack.c.b16 %v422, %v421
  %v527 = vpack.c.b16 %v424, %v423
  %v528 = vpack.c.b16 %v426, %v425
  %v529 = vpack.c.b16 %v428, %v427
  %v530 = vpack.c.b16 %v430, %v429
  %v531 = vpack.c.b16 %v432, %v431
  %v532 = vpack.c.b16 %v434, %v433
  %v533 = vpack.c.b16 %v436, %v435
  %v534 = vpack.c.b16 %v438, %v437
  %v535 = vpack.c.b16 %v440, %v439
  %v536 = vpack.c.b16 %v442, %v441
  %v537 = vpack.c.b16 %v444, %v443
  %v538 = vpack.c.b16 %v446, %v445
  %v539 = vpack.c.b16 %v448, %v447
  %v540 = vpack.c.b16 %v450, %v449
  %v541 = vpack.c.b16 %v452, %v451
  %v542 = vpack.c.b16 %v454, %v453
  %v543 = vpack.c.b16 %v456, %v455
  %v544 = vpack.c.b16 %v458, %v457
  %v545 = vpack.c.b16 %v460, %v459
  %v546 = vpack.c.b16 %v462, %v461
  %v547 = vpack.c.b16 %v464, %v463
  %v548 = vpack.c.b16 %v466, %v465
  %v549 = vpack.c.b16 %v468, %v467
  %v550 = vpack.c.b16 %v470, %v469
  %v551 = vpack.c.b16 %v472, %v471
  %v552 = vpack.c.b16 %v474, %v473
  %v553 = vpack.c.b16 %v476, %v475
  %v554 = vpack.c.b16 %v478, %v477
  %v555 = vpack.c.b16 %v480, %v479
  %v556 = vpack.c.b16 %v482, %v481
  %v557 = vpack.c.b16 %v484, %v483
  %v558 = vpack.c.b16 %v486, %v485
  %631 = vmatprep.subr.bf16.mxu0 0
  %632 = vmatpush1.bf16.msra.mxu0 %v487
  %633 = vmatprep.subr.bf16.mxu0 0
  %634 = vmatpush1.bf16.msra.mxu0 %v488
  %635 = vmatprep.subr.bf16.mxu0 0
  %636 = vmatpush1.bf16.msra.mxu0 %v489
  %637 = vmatprep.subr.bf16.mxu0 0
  %638 = vmatpush1.bf16.msra.mxu0 %v490
  %639 = vmatprep.subr.bf16.mxu0 0
  %640 = vmatpush1.bf16.msra.mxu0 %v491
  %641 = vmatprep.subr.bf16.mxu0 0
  %642 = vmatpush1.bf16.msra.mxu0 %v492
  %643 = vmatprep.subr.bf16.mxu0 0
  %644 = vmatpush1.bf16.msra.mxu0 %v493
  %645 = vmatprep.subr.bf16.mxu0 0
  %646 = vmatpush1.bf16.msra.mxu0 %v494
  %647 = vmatprep.subr.bf16.mxu0 0
  %648 = vmatpush1.bf16.msra.mxu0 %v495
  %649 = vmatprep.subr.bf16.mxu0 0
  %650 = vmatpush1.bf16.msra.mxu0 %v496
  %651 = vmatprep.subr.bf16.mxu0 0
  %652 = vmatpush1.bf16.msra.mxu0 %v497
  %653 = vmatprep.subr.bf16.mxu0 0
  %654 = vmatpush1.bf16.msra.mxu0 %v498
  %655 = vmatprep.subr.bf16.mxu0 0
  %656 = vmatpush1.bf16.msra.mxu0 %v499
  %657 = vmatprep.subr.bf16.mxu0 0
  %658 = vmatpush1.bf16.msra.mxu0 %v500
  %659 = vmatprep.subr.bf16.mxu0 0
  %660 = vmatpush1.bf16.msra.mxu0 %v501
  %661 = vmatprep.subr.bf16.mxu0 0
  %662 = vmatpush1.bf16.msra.mxu0 %v502
  %663 = vmatprep.mubr.bf16.mxu0 %v182
  %664 = vmatmul.mubr.bf16.gmra.mrb[0].mxu0 %v181
  %v665 = vpop.f32.mrb[0].mxu0
  %v666 = vadd.f32 0.0, %v665
  %v667 = vpop.f32.mrb[0].mxu0
  %v668 = vpop.f32.mrb[0].mxu0
  %v669 = vpop.f32.mrb[0].mxu0
  %670 = vdwg.mxu0
  %671 = vmatprep.subr.bf16.mxu0 0
  %672 = vmatpush1.bf16.msra.mxu0 %v503
  %673 = vmatprep.subr.bf16.mxu0 0
  %674 = vmatpush1.bf16.msra.mxu0 %v504
  %675 = vmatprep.subr.bf16.mxu0 0
  %676 = vmatpush1.bf16.msra.mxu0 %v505
  %677 = vmatprep.subr.bf16.mxu0 0
  %678 = vmatpush1.bf16.msra.mxu0 %v506
  %679 = vmatprep.subr.bf16.mxu0 0
  %680 = vmatpush1.bf16.msra.mxu0 %v507
  %681 = vmatprep.subr.bf16.mxu0 0
  %682 = vmatpush1.bf16.msra.mxu0 %v508
  %683 = vmatprep.subr.bf16.mxu0 0
  %684 = vmatpush1.bf16.msra.mxu0 %v509
  %685 = vmatprep.subr.bf16.mxu0 0
  %686 = vmatpush1.bf16.msra.mxu0 %v510
  %687 = vmatprep.subr.bf16.mxu0 0
  %688 = vmatpush1.bf16.msra.mxu0 %v511
  %689 = vmatprep.subr.bf16.mxu0 0
  %690 = vmatpush1.bf16.msra.mxu0 %v512
  %691 = vmatprep.subr.bf16.mxu0 0
  %692 = vmatpush1.bf16.msra.mxu0 %v513
  %693 = vmatprep.subr.bf16.mxu0 0
  %694 = vmatpush1.bf16.msra.mxu0 %v514
  %695 = vmatprep.subr.bf16.mxu0 0
  %696 = vmatpush1.bf16.msra.mxu0 %v515
  %697 = vmatprep.subr.bf16.mxu0 0
  %698 = vmatpush1.bf16.msra.mxu0 %v516
  %699 = vmatprep.subr.bf16.mxu0 0
  %700 = vmatpush1.bf16.msra.mxu0 %v517
  %701 = vmatprep.subr.bf16.mxu0 0
  %702 = vmatpush1.bf16.msra.mxu0 %v518
  %703 = vmatprep.mubr.bf16.mxu0 %v184
  %704 = vmatmul.mubr.bf16.gmra.mrb[0].mxu0 %v183
  %v705 = vpop.f32.mrb[0].mxu0
  %v706 = vadd.f32 %v666, %v705
  %v707 = vpop.f32.mrb[0].mxu0
  %v708 = vpop.f32.mrb[0].mxu0
  %v709 = vpop.f32.mrb[0].mxu0
  %710 = vdwg.mxu0
  %711 = vmatprep.subr.bf16.mxu0 0
  %712 = vmatpush1.bf16.msra.mxu0 %v519
  %713 = vmatprep.subr.bf16.mxu0 0
  %714 = vmatpush1.bf16.msra.mxu0 %v520
  %715 = vmatprep.subr.bf16.mxu0 0
  %716 = vmatpush1.bf16.msra.mxu0 %v521
  %717 = vmatprep.subr.bf16.mxu0 0
  %718 = vmatpush1.bf16.msra.mxu0 %v522
  %719 = vmatprep.subr.bf16.mxu0 0
  %720 = vmatpush1.bf16.msra.mxu0 %v523
  %721 = vmatprep.subr.bf16.mxu0 0
  %722 = vmatpush1.bf16.msra.mxu0 %v524
  %723 = vmatprep.subr.bf16.mxu0 0
  %724 = vmatpush1.bf16.msra.mxu0 %v525
  %725 = vmatprep.subr.bf16.mxu0 0
  %726 = vmatpush1.bf16.msra.mxu0 %v526
  %727 = vmatprep.subr.bf16.mxu0 0
  %728 = vmatpush1.bf16.msra.mxu0 %v527
  %729 = vmatprep.subr.bf16.mxu0 0
  %730 = vmatpush1.bf16.msra.mxu0 %v528
  %731 = vmatprep.subr.bf16.mxu0 0
  %732 = vmatpush1.bf16.msra.mxu0 %v529
  %733 = vmatprep.subr.bf16.mxu0 0
  %734 = vmatpush1.bf16.msra.mxu0 %v530
  %735 = vmatprep.subr.bf16.mxu0 0
  %736 = vmatpush1.bf16.msra.mxu0 %v531
  %737 = vmatprep.subr.bf16.mxu0 0
  %738 = vmatpush1.bf16.msra.mxu0 %v532
  %739 = vmatprep.subr.bf16.mxu0 0
  %740 = vmatpush1.bf16.msra.mxu0 %v533
  %741 = vmatprep.subr.bf16.mxu0 0
  %742 = vmatpush1.bf16.msra.mxu0 %v534
  %743 = vmatprep.mubr.bf16.mxu0 %v186
  %744 = vmatmul.mubr.bf16.gmra.mrb[0].mxu0 %v185
  %v745 = vpop.f32.mrb[0].mxu0
  %v746 = vadd.f32 %v706, %v745
  %v747 = vpop.f32.mrb[0].mxu0
  %v748 = vpop.f32.mrb[0].mxu0
  %v749 = vpop.f32.mrb[0].mxu0
  %750 = vdwg.mxu0
  %751 = vmatprep.subr.bf16.mxu0 0
  %752 = vmatpush1.bf16.msra.mxu0 %v535
  %753 = vmatprep.subr.bf16.mxu0 0
  %754 = vmatpush1.bf16.msra.mxu0 %v536
  %755 = vmatprep.subr.bf16.mxu0 0
  %756 = vmatpush1.bf16.msra.mxu0 %v537
  %757 = vmatprep.subr.bf16.mxu0 0
  %758 = vmatpush1.bf16.msra.mxu0 %v538
  %759 = vmatprep.subr.bf16.mxu0 0
  %760 = vmatpush1.bf16.msra.mxu0 %v539
  %761 = vmatprep.subr.bf16.mxu0 0
  %762 = vmatpush1.bf16.msra.mxu0 %v540
  %763 = vmatprep.subr.bf16.mxu0 0
  %764 = vmatpush1.bf16.msra.mxu0 %v541
  %765 = vmatprep.subr.bf16.mxu0 0
  %766 = vmatpush1.bf16.msra.mxu0 %v542
  %767 = vmatprep.subr.bf16.mxu0 0
  %768 = vmatpush1.bf16.msra.mxu0 %v543
  %769 = vmatprep.subr.bf16.mxu0 0
  %770 = vmatpush1.bf16.msra.mxu0 %v544
  %771 = vmatprep.subr.bf16.mxu0 0
  %772 = vmatpush1.bf16.msra.mxu0 %v545
  %773 = vmatprep.subr.bf16.mxu0 0
  %774 = vmatpush1.bf16.msra.mxu0 %v546
  %775 = vmatprep.subr.bf16.mxu0 0
  %776 = vmatpush1.bf16.msra.mxu0 %v547
  %777 = vmatprep.subr.bf16.mxu0 0
  %778 = vmatpush1.bf16.msra.mxu0 %v548
  %779 = vmatprep.subr.bf16.mxu0 0
  %780 = vmatpush1.bf16.msra.mxu0 %v549
  %781 = vmatprep.subr.bf16.mxu0 0
  %782 = vmatpush1.bf16.msra.mxu0 %v550
  %783 = vmatprep.mubr.bf16.mxu0 %v188
  %784 = vmatmul.mubr.bf16.gmra.mrb[0].mxu0 %v187
  %v785 = vpop.f32.mrb[0].mxu0
  %v786 = vadd.f32 %v746, %v785
  %v787 = vpop.f32.mrb[0].mxu0
  %v788 = vpop.f32.mrb[0].mxu0
  %v789 = vpop.f32.mrb[0].mxu0
  %790 = vdwg.mxu0
  %791 = vmatprep.subr.bf16.mxu0 0
  %792 = vmatpush1.bf16.msra.mxu0 %v551
  %793 = vmatprep.subr.bf16.mxu0 0
  %794 = vmatpush1.bf16.msra.mxu0 %v552
  %795 = vmatprep.subr.bf16.mxu0 0
  %796 = vmatpush1.bf16.msra.mxu0 %v553
  %797 = vmatprep.subr.bf16.mxu0 0
  %798 = vmatpush1.bf16.msra.mxu0 %v554
  %799 = vmatprep.subr.bf16.mxu0 0
  %800 = vmatpush1.bf16.msra.mxu0 %v555
  %801 = vmatprep.subr.bf16.mxu0 0
  %802 = vmatpush1.bf16.msra.mxu0 %v556
  %803 = vmatprep.subr.bf16.mxu0 0
  %804 = vmatpush1.bf16.msra.mxu0 %v557
  %805 = vmatprep.subr.bf16.mxu0 0
  %806 = vmatpush1.bf16.msra.mxu0 %v558
  %807 = vmatprep.subr.bf16.mxu0 0
  %808 = vmatpush1.bf16.msra.mxu0 0
  %809 = vmatprep.subr.bf16.mxu0 0
  %810 = vmatpush1.bf16.msra.mxu0 0
  %811 = vmatprep.subr.bf16.mxu0 0
  %812 = vmatpush1.bf16.msra.mxu0 0
  %813 = vmatprep.subr.bf16.mxu0 0
  %814 = vmatpush1.bf16.msra.mxu0 0
  %815 = vmatprep.subr.bf16.mxu0 0
  %816 = vmatpush1.bf16.msra.mxu0 0
  %817 = vmatprep.subr.bf16.mxu0 0
  %818 = vmatpush1.bf16.msra.mxu0 0
  %819 = vmatprep.subr.bf16.mxu0 0
  %820 = vmatpush1.bf16.msra.mxu0 0
  %821 = vmatprep.subr.bf16.mxu0 0
  %822 = vmatpush1.bf16.msra.mxu0 0
  %823 = vmatprep.mubr.bf16.mxu0 0
  %824 = vmatmul.mubr.bf16.gmra.mrb[0].mxu0 %v189
  %v825 = vpop.f32.mrb[0].mxu0
  %v826 = vadd.f32 %v786, %v825
  %v827 = vpop.f32.mrb[0].mxu0
  %v828 = vpop.f32.mrb[0].mxu0
  %v829 = vpop.f32.mrb[0].mxu0
  %830 = vdwg.mxu0
  %v831 = vld [vmem:[%s2] sm:$0x1]
  %v833 = vlaneseq
  %v834 = vshrl.u32 %v833, 7
  %v835 = vsub.s32 0, %v834
  %v836 = vrot.slane %v831, %v835
  %v838 = vmul.f32 %v826, %v836
  %v839 = vld [vmem:[%s3] sm:$0x1]
  %v841 = vlaneseq
  %v842 = vshrl.u32 %v841, 7
  %v843 = vsub.s32 0, %v842
  %v844 = vrot.slane %v839, %v843
  %v846 = vadd.f32 %v838, %v844
  %v847 = vmax.f32 %v846, 0.0
  %848 = vst [vmem:[%s4] sm:$0xff] %v847
  // Predicated region
  $region18: #{unet_forward.27} parent=0 // pred_check
    _
  $region19: #{unet_forward.27} parent=0 // pred_check_branch
    %850 = sbr.rel (0) target = $region21
  $region20: #{unet_forward.27} parent=0 // pred_region
    _
  $region21: #{unet_forward.27} parent=0 // pred_fallthru
    _
  // Predicated region
  $region22: #{unet_forward.27} parent=0 // pred_check
    _
  $region23: #{unet_forward.27} parent=0 // pred_check_branch
    %852 = sbr.rel (0) target = $region25
  $region24: #{unet_forward.27} parent=0 // pred_region
    _
  $region25: #{unet_forward.27} parent=0 // pred_fallthru
    _

// kernel: unet_forward.28
$region0: #{unet_forward.28}
  #allocation0 [shape = 'u32[]', space=smem, size = 0x4, offset = 0x4, fixed_abs, tag = 'smem constant byte address 0x4 - core index']
  #allocation1 [shape = 'u32[144,128]{1,0:T(1,128)}', space=vmem, size = 0x12000, scoped, tag = 'internal scratch']
  %s0 = inlined_call_operand.vmem [shape: bf16[8,1152], index: 0, kind: input, shape index: {}]
  %s1 = inlined_call_operand.vmem [shape: bf16[1152,64], index: 1, kind: input, shape index: {}]
  %s2 = inlined_call_operand.vmem [shape: f32[1,64], index: 2, kind: input, shape index: {}]
  %s3 = inlined_call_operand.vmem [shape: f32[1,64], index: 3, kind: input, shape index: {}]
  %s4 = inlined_call_operand.vmem [shape: f32[8,64], index: 4, kind: output, shape index: {}]
  %s5 = sld [smem:[#allocation0]]
  $region26: #{unet_forward.28} parent=0
    _
  %s7 = ssub.s32 1, %s5
  %s8 = scalar_select 0, %s7, %s5
  // Predicated region
  $region2: #{unet_forward.28} parent=0 // pred_check
    _
  $region3: #{unet_forward.28} parent=0 // pred_check_branch
    %10 = sbr.rel (0) target = $region5
  $region4: #{unet_forward.28} parent=0 // pred_region
    _
  $region5: #{unet_forward.28} parent=0 // pred_fallthru
    _
  // Predicated region
  $region6: #{unet_forward.28} parent=0 // pred_check
    _
  $region7: #{unet_forward.28} parent=0 // pred_check_branch
    %12 = sbr.rel (0) target = $region9
  $region8: #{unet_forward.28} parent=0 // pred_region
    _
  $region9: #{unet_forward.28} parent=0 // pred_fallthru
    _
  // Predicated region
  $region10: #{unet_forward.28} parent=0 // pred_check
    _
  $region11: #{unet_forward.28} parent=0 // pred_check_branch
    %14 = sbr.rel (0) target = $region13
  $region12: #{unet_forward.28} parent=0 // pred_region
    _
  $region13: #{unet_forward.28} parent=0 // pred_fallthru
    _
  // Predicated region
  $region14: #{unet_forward.28} parent=0 // pred_check
    _
  $region15: #{unet_forward.28} parent=0 // pred_check_branch
    %16 = sbr.rel (0) target = $region17
  $region16: #{unet_forward.28} parent=0 // pred_region
    _
  $region17: #{unet_forward.28} parent=0 // pred_fallthru
    _
  %v18 = vld [vmem:[%s0] sm:$0xff]
  %v19 = vld [vmem:[%s0 + $0x8] sm:$0xff]
  %v20 = vld [vmem:[%s0 + $0x10] sm:$0xff]
  %v21 = vld [vmem:[%s0 + $0x18] sm:$0xff]
  %v22 = vld [vmem:[%s0 + $0x20] sm:$0xf]
  %v23 = vld [vmem:[%s1] sm:$0xf]
  %v24 = vld [vmem:[%s1 + $0x4] sm:$0xf]
  %v25 = vld [vmem:[%s1 + $0x8] sm:$0xf]
  %v26 = vld [vmem:[%s1 + $0xc] sm:$0xf]
  %v27 = vld [vmem:[%s1 + $0x10] sm:$0xf]
  %v28 = vld [vmem:[%s1 + $0x14] sm:$0xf]
  %v29 = vld [vmem:[%s1 + $0x18] sm:$0xf]
  %v30 = vld [vmem:[%s1 + $0x1c] sm:$0xf]
  %v31 = vld [vmem:[%s1 + $0x20] sm:$0xf]
  %v32 = vld [vmem:[%s1 + $0x24] sm:$0xf]
  %v33 = vld [vmem:[%s1 + $0x28] sm:$0xf]
  %v34 = vld [vmem:[%s1 + $0x2c] sm:$0xf]
  %v35 = vld [vmem:[%s1 + $0x30] sm:$0xf]
  %v36 = vld [vmem:[%s1 + $0x34] sm:$0xf]
  %v37 = vld [vmem:[%s1 + $0x38] sm:$0xf]
  %v38 = vld [vmem:[%s1 + $0x3c] sm:$0xf]
  %v39 = vld [vmem:[%s1 + $0x40] sm:$0xf]
  %v40 = vld [vmem:[%s1 + $0x44] sm:$0xf]
  %v41 = vld [vmem:[%s1 + $0x48] sm:$0xf]
  %v42 = vld [vmem:[%s1 + $0x4c] sm:$0xf]
  %v43 = vld [vmem:[%s1 + $0x50] sm:$0xf]
  %v44 = vld [vmem:[%s1 + $0x54] sm:$0xf]
  %v45 = vld [vmem:[%s1 + $0x58] sm:$0xf]
  %v46 = vld [vmem:[%s1 + $0x5c] sm:$0xf]
  %v47 = vld [vmem:[%s1 + $0x60] sm:$0xf]
  %v48 = vld [vmem:[%s1 + $0x64] sm:$0xf]
  %v49 = vld [vmem:[%s1 + $0x68] sm:$0xf]
  %v50 = vld [vmem:[%s1 + $0x6c] sm:$0xf]
  %v51 = vld [vmem:[%s1 + $0x70] sm:$0xf]
  %v52 = vld [vmem:[%s1 + $0x74] sm:$0xf]
  %v53 = vld [vmem:[%s1 + $0x78] sm:$0xf]
  %v54 = vld [vmem:[%s1 + $0x7c] sm:$0xf]
  %v55 = vld [vmem:[%s1 + $0x80] sm:$0xf]
  %v56 = vld [vmem:[%s1 + $0x84] sm:$0xf]
  %v57 = vld [vmem:[%s1 + $0x88] sm:$0xf]
  %v58 = vld [vmem:[%s1 + $0x8c] sm:$0xf]
  %v59 = vld [vmem:[%s1 + $0x90] sm:$0xf]
  %v60 = vld [vmem:[%s1 + $0x94] sm:$0xf]
  %v61 = vld [vmem:[%s1 + $0x98] sm:$0xf]
  %v62 = vld [vmem:[%s1 + $0x9c] sm:$0xf]
  %v63 = vld [vmem:[%s1 + $0xa0] sm:$0xf]
  %v64 = vld [vmem:[%s1 + $0xa4] sm:$0xf]
  %v65 = vld [vmem:[%s1 + $0xa8] sm:$0xf]
  %v66 = vld [vmem:[%s1 + $0xac] sm:$0xf]
  %v67 = vld [vmem:[%s1 + $0xb0] sm:$0xf]
  %v68 = vld [vmem:[%s1 + $0xb4] sm:$0xf]
  %v69 = vld [vmem:[%s1 + $0xb8] sm:$0xf]
  %v70 = vld [vmem:[%s1 + $0xbc] sm:$0xf]
  %v71 = vld [vmem:[%s1 + $0xc0] sm:$0xf]
  %v72 = vld [vmem:[%s1 + $0xc4] sm:$0xf]
  %v73 = vld [vmem:[%s1 + $0xc8] sm:$0xf]
  %v74 = vld [vmem:[%s1 + $0xcc] sm:$0xf]
  %v75 = vld [vmem:[%s1 + $0xd0] sm:$0xf]
  %v76 = vld [vmem:[%s1 + $0xd4] sm:$0xf]
  %v77 = vld [vmem:[%s1 + $0xd8] sm:$0xf]
  %v78 = vld [vmem:[%s1 + $0xdc] sm:$0xf]
  %v79 = vld [vmem:[%s1 + $0xe0] sm:$0xf]
  %v80 = vld [vmem:[%s1 + $0xe4] sm:$0xf]
  %v81 = vld [vmem:[%s1 + $0xe8] sm:$0xf]
  %v82 = vld [vmem:[%s1 + $0xec] sm:$0xf]
  %v83 = vld [vmem:[%s1 + $0xf0] sm:$0xf]
  %v84 = vld [vmem:[%s1 + $0xf4] sm:$0xf]
  %v85 = vld [vmem:[%s1 + $0xf8] sm:$0xf]
  %v86 = vld [vmem:[%s1 + $0xfc] sm:$0xf]
  %v87 = vld [vmem:[%s1 + $0x100] sm:$0xf]
  %v88 = vld [vmem:[%s1 + $0x104] sm:$0xf]
  %v89 = vld [vmem:[%s1 + $0x108] sm:$0xf]
  %v90 = vld [vmem:[%s1 + $0x10c] sm:$0xf]
  %v91 = vld [vmem:[%s1 + $0x110] sm:$0xf]
  %v92 = vld [vmem:[%s1 + $0x114] sm:$0xf]
  %v93 = vld [vmem:[%s1 + $0x118] sm:$0xf]
  %v94 = vld [vmem:[%s1 + $0x11c] sm:$0xf]
  %v95 = vld [vmem:[%s1 + $0x120] sm:$0xf]
  %v96 = vld [vmem:[%s1 + $0x124] sm:$0xf]
  %v97 = vld [vmem:[%s1 + $0x128] sm:$0xf]
  %v98 = vld [vmem:[%s1 + $0x12c] sm:$0xf]
  %v99 = vld [vmem:[%s1 + $0x130] sm:$0xf]
  %v100 = vld [vmem:[%s1 + $0x134] sm:$0xf]
  %v101 = vld [vmem:[%s1 + $0x138] sm:$0xf]
  %v102 = vld [vmem:[%s1 + $0x13c] sm:$0xf]
  %v103 = vld [vmem:[%s1 + $0x140] sm:$0xf]
  %v104 = vld [vmem:[%s1 + $0x144] sm:$0xf]
  %v105 = vld [vmem:[%s1 + $0x148] sm:$0xf]
  %v106 = vld [vmem:[%s1 + $0x14c] sm:$0xf]
  %v107 = vld [vmem:[%s1 + $0x150] sm:$0xf]
  %v108 = vld [vmem:[%s1 + $0x154] sm:$0xf]
  %v109 = vld [vmem:[%s1 + $0x158] sm:$0xf]
  %v110 = vld [vmem:[%s1 + $0x15c] sm:$0xf]
  %v111 = vld [vmem:[%s1 + $0x160] sm:$0xf]
  %v112 = vld [vmem:[%s1 + $0x164] sm:$0xf]
  %v113 = vld [vmem:[%s1 + $0x168] sm:$0xf]
  %v114 = vld [vmem:[%s1 + $0x16c] sm:$0xf]
  %v115 = vld [vmem:[%s1 + $0x170] sm:$0xf]
  %v116 = vld [vmem:[%s1 + $0x174] sm:$0xf]
  %v117 = vld [vmem:[%s1 + $0x178] sm:$0xf]
  %v118 = vld [vmem:[%s1 + $0x17c] sm:$0xf]
  %v119 = vld [vmem:[%s1 + $0x180] sm:$0xf]
  %v120 = vld [vmem:[%s1 + $0x184] sm:$0xf]
  %v121 = vld [vmem:[%s1 + $0x188] sm:$0xf]
  %v122 = vld [vmem:[%s1 + $0x18c] sm:$0xf]
  %v123 = vld [vmem:[%s1 + $0x190] sm:$0xf]
  %v124 = vld [vmem:[%s1 + $0x194] sm:$0xf]
  %v125 = vld [vmem:[%s1 + $0x198] sm:$0xf]
  %v126 = vld [vmem:[%s1 + $0x19c] sm:$0xf]
  %v127 = vld [vmem:[%s1 + $0x1a0] sm:$0xf]
  %v128 = vld [vmem:[%s1 + $0x1a4] sm:$0xf]
  %v129 = vld [vmem:[%s1 + $0x1a8] sm:$0xf]
  %v130 = vld [vmem:[%s1 + $0x1ac] sm:$0xf]
  %v131 = vld [vmem:[%s1 + $0x1b0] sm:$0xf]
  %v132 = vld [vmem:[%s1 + $0x1b4] sm:$0xf]
  %v133 = vld [vmem:[%s1 + $0x1b8] sm:$0xf]
  %v134 = vld [vmem:[%s1 + $0x1bc] sm:$0xf]
  %v135 = vld [vmem:[%s1 + $0x1c0] sm:$0xf]
  %v136 = vld [vmem:[%s1 + $0x1c4] sm:$0xf]
  %v137 = vld [vmem:[%s1 + $0x1c8] sm:$0xf]
  %v138 = vld [vmem:[%s1 + $0x1cc] sm:$0xf]
  %v139 = vld [vmem:[%s1 + $0x1d0] sm:$0xf]
  %v140 = vld [vmem:[%s1 + $0x1d4] sm:$0xf]
  %v141 = vld [vmem:[%s1 + $0x1d8] sm:$0xf]
  %v142 = vld [vmem:[%s1 + $0x1dc] sm:$0xf]
  %v143 = vld [vmem:[%s1 + $0x1e0] sm:$0xf]
  %v144 = vld [vmem:[%s1 + $0x1e4] sm:$0xf]
  %v145 = vld [vmem:[%s1 + $0x1e8] sm:$0xf]
  %v146 = vld [vmem:[%s1 + $0x1ec] sm:$0xf]
  %v147 = vld [vmem:[%s1 + $0x1f0] sm:$0xf]
  %v148 = vld [vmem:[%s1 + $0x1f4] sm:$0xf]
  %v149 = vld [vmem:[%s1 + $0x1f8] sm:$0xf]
  %v150 = vld [vmem:[%s1 + $0x1fc] sm:$0xf]
  %v151 = vld [vmem:[%s1 + $0x200] sm:$0xf]
  %v152 = vld [vmem:[%s1 + $0x204] sm:$0xf]
  %v153 = vld [vmem:[%s1 + $0x208] sm:$0xf]
  %v154 = vld [vmem:[%s1 + $0x20c] sm:$0xf]
  %v155 = vld [vmem:[%s1 + $0x210] sm:$0xf]
  %v156 = vld [vmem:[%s1 + $0x214] sm:$0xf]
  %v157 = vld [vmem:[%s1 + $0x218] sm:$0xf]
  %v158 = vld [vmem:[%s1 + $0x21c] sm:$0xf]
  %v159 = vld [vmem:[%s1 + $0x220] sm:$0xf]
  %v160 = vld [vmem:[%s1 + $0x224] sm:$0xf]
  %v161 = vld [vmem:[%s1 + $0x228] sm:$0xf]
  %v162 = vld [vmem:[%s1 + $0x22c] sm:$0xf]
  %v163 = vld [vmem:[%s1 + $0x230] sm:$0xf]
  %v164 = vld [vmem:[%s1 + $0x234] sm:$0xf]
  %v165 = vld [vmem:[%s1 + $0x238] sm:$0xf]
  %v166 = vld [vmem:[%s1 + $0x23c] sm:$0xf]
  %v172 = vunpack.c.l.b16 %v18
  %v173 = vunpack.c.h.b16 %v18
  %v174 = vunpack.c.l.b16 %v19
  %v175 = vunpack.c.h.b16 %v19
  %v176 = vunpack.c.l.b16 %v20
  %v177 = vunpack.c.h.b16 %v20
  %v178 = vunpack.c.l.b16 %v21
  %v179 = vunpack.c.h.b16 %v21
  %v180 = vunpack.c.l.b16 %v22
  %v181 = vpack.c.b16 %v172, %v172
  %v182 = vpack.c.b16 %v173, %v173
  %v183 = vpack.c.b16 %v174, %v174
  %v184 = vpack.c.b16 %v175, %v175
  %v185 = vpack.c.b16 %v176, %v176
  %v186 = vpack.c.b16 %v177, %v177
  %v187 = vpack.c.b16 %v178, %v178
  %v188 = vpack.c.b16 %v179, %v179
  %v189 = vpack.c.b16 %v180, %v180
  %v343 = vunpack.c.l.b16 %v23
  %v344 = vunpack.c.l.b16 %v24
  %v345 = vunpack.c.l.b16 %v25
  %v346 = vunpack.c.l.b16 %v26
  %v347 = vunpack.c.l.b16 %v27
  %v348 = vunpack.c.l.b16 %v28
  %v349 = vunpack.c.l.b16 %v29
  %v350 = vunpack.c.l.b16 %v30
  %v351 = vunpack.c.l.b16 %v31
  %v352 = vunpack.c.l.b16 %v32
  %v353 = vunpack.c.l.b16 %v33
  %v354 = vunpack.c.l.b16 %v34
  %v355 = vunpack.c.l.b16 %v35
  %v356 = vunpack.c.l.b16 %v36
  %v357 = vunpack.c.l.b16 %v37
  %v358 = vunpack.c.l.b16 %v38
  %v359 = vunpack.c.l.b16 %v39
  %v360 = vunpack.c.l.b16 %v40
  %v361 = vunpack.c.l.b16 %v41
  %v362 = vunpack.c.l.b16 %v42
  %v363 = vunpack.c.l.b16 %v43
  %v364 = vunpack.c.l.b16 %v44
  %v365 = vunpack.c.l.b16 %v45
  %v366 = vunpack.c.l.b16 %v46
  %v367 = vunpack.c.l.b16 %v47
  %v368 = vunpack.c.l.b16 %v48
  %v369 = vunpack.c.l.b16 %v49
  %v370 = vunpack.c.l.b16 %v50
  %v371 = vunpack.c.l.b16 %v51
  %v372 = vunpack.c.l.b16 %v52
  %v373 = vunpack.c.l.b16 %v53
  %v374 = vunpack.c.l.b16 %v54
  %v375 = vunpack.c.l.b16 %v55
  %v376 = vunpack.c.l.b16 %v56
  %v377 = vunpack.c.l.b16 %v57
  %v378 = vunpack.c.l.b16 %v58
  %v379 = vunpack.c.l.b16 %v59
  %v380 = vunpack.c.l.b16 %v60
  %v381 = vunpack.c.l.b16 %v61
  %v382 = vunpack.c.l.b16 %v62
  %v383 = vunpack.c.l.b16 %v63
  %v384 = vunpack.c.l.b16 %v64
  %v385 = vunpack.c.l.b16 %v65
  %v386 = vunpack.c.l.b16 %v66
  %v387 = vunpack.c.l.b16 %v67
  %v388 = vunpack.c.l.b16 %v68
  %v389 = vunpack.c.l.b16 %v69
  %v390 = vunpack.c.l.b16 %v70
  %v391 = vunpack.c.l.b16 %v71
  %v392 = vunpack.c.l.b16 %v72
  %v393 = vunpack.c.l.b16 %v73
  %v394 = vunpack.c.l.b16 %v74
  %v395 = vunpack.c.l.b16 %v75
  %v396 = vunpack.c.l.b16 %v76
  %v397 = vunpack.c.l.b16 %v77
  %v398 = vunpack.c.l.b16 %v78
  %v399 = vunpack.c.l.b16 %v79
  %v400 = vunpack.c.l.b16 %v80
  %v401 = vunpack.c.l.b16 %v81
  %v402 = vunpack.c.l.b16 %v82
  %v403 = vunpack.c.l.b16 %v83
  %v404 = vunpack.c.l.b16 %v84
  %v405 = vunpack.c.l.b16 %v85
  %v406 = vunpack.c.l.b16 %v86
  %v407 = vunpack.c.l.b16 %v87
  %v408 = vunpack.c.l.b16 %v88
  %v409 = vunpack.c.l.b16 %v89
  %v410 = vunpack.c.l.b16 %v90
  %v411 = vunpack.c.l.b16 %v91
  %v412 = vunpack.c.l.b16 %v92
  %v413 = vunpack.c.l.b16 %v93
  %v414 = vunpack.c.l.b16 %v94
  %v415 = vunpack.c.l.b16 %v95
  %v416 = vunpack.c.l.b16 %v96
  %v417 = vunpack.c.l.b16 %v97
  %v418 = vunpack.c.l.b16 %v98
  %v419 = vunpack.c.l.b16 %v99
  %v420 = vunpack.c.l.b16 %v100
  %v421 = vunpack.c.l.b16 %v101
  %v422 = vunpack.c.l.b16 %v102
  %v423 = vunpack.c.l.b16 %v103
  %v424 = vunpack.c.l.b16 %v104
  %v425 = vunpack.c.l.b16 %v105
  %v426 = vunpack.c.l.b16 %v106
  %v427 = vunpack.c.l.b16 %v107
  %v428 = vunpack.c.l.b16 %v108
  %v429 = vunpack.c.l.b16 %v109
  %v430 = vunpack.c.l.b16 %v110
  %v431 = vunpack.c.l.b16 %v111
  %v432 = vunpack.c.l.b16 %v112
  %v433 = vunpack.c.l.b16 %v113
  %v434 = vunpack.c.l.b16 %v114
  %v435 = vunpack.c.l.b16 %v115
  %v436 = vunpack.c.l.b16 %v116
  %v437 = vunpack.c.l.b16 %v117
  %v438 = vunpack.c.l.b16 %v118
  %v439 = vunpack.c.l.b16 %v119
  %v440 = vunpack.c.l.b16 %v120
  %v441 = vunpack.c.l.b16 %v121
  %v442 = vunpack.c.l.b16 %v122
  %v443 = vunpack.c.l.b16 %v123
  %v444 = vunpack.c.l.b16 %v124
  %v445 = vunpack.c.l.b16 %v125
  %v446 = vunpack.c.l.b16 %v126
  %v447 = vunpack.c.l.b16 %v127
  %v448 = vunpack.c.l.b16 %v128
  %v449 = vunpack.c.l.b16 %v129
  %v450 = vunpack.c.l.b16 %v130
  %v451 = vunpack.c.l.b16 %v131
  %v452 = vunpack.c.l.b16 %v132
  %v453 = vunpack.c.l.b16 %v133
  %v454 = vunpack.c.l.b16 %v134
  %v455 = vunpack.c.l.b16 %v135
  %v456 = vunpack.c.l.b16 %v136
  %v457 = vunpack.c.l.b16 %v137
  %v458 = vunpack.c.l.b16 %v138
  %v459 = vunpack.c.l.b16 %v139
  %v460 = vunpack.c.l.b16 %v140
  %v461 = vunpack.c.l.b16 %v141
  %v462 = vunpack.c.l.b16 %v142
  %v463 = vunpack.c.l.b16 %v143
  %v464 = vunpack.c.l.b16 %v144
  %v465 = vunpack.c.l.b16 %v145
  %v466 = vunpack.c.l.b16 %v146
  %v467 = vunpack.c.l.b16 %v147
  %v468 = vunpack.c.l.b16 %v148
  %v469 = vunpack.c.l.b16 %v149
  %v470 = vunpack.c.l.b16 %v150
  %v471 = vunpack.c.l.b16 %v151
  %v472 = vunpack.c.l.b16 %v152
  %v473 = vunpack.c.l.b16 %v153
  %v474 = vunpack.c.l.b16 %v154
  %v475 = vunpack.c.l.b16 %v155
  %v476 = vunpack.c.l.b16 %v156
  %v477 = vunpack.c.l.b16 %v157
  %v478 = vunpack.c.l.b16 %v158
  %v479 = vunpack.c.l.b16 %v159
  %v480 = vunpack.c.l.b16 %v160
  %v481 = vunpack.c.l.b16 %v161
  %v482 = vunpack.c.l.b16 %v162
  %v483 = vunpack.c.l.b16 %v163
  %v484 = vunpack.c.l.b16 %v164
  %v485 = vunpack.c.l.b16 %v165
  %v486 = vunpack.c.l.b16 %v166
  %v487 = vpack.c.b16 %v344, %v343
  %v488 = vpack.c.b16 %v346, %v345
  %v489 = vpack.c.b16 %v348, %v347
  %v490 = vpack.c.b16 %v350, %v349
  %v491 = vpack.c.b16 %v352, %v351
  %v492 = vpack.c.b16 %v354, %v353
  %v493 = vpack.c.b16 %v356, %v355
  %v494 = vpack.c.b16 %v358, %v357
  %v495 = vpack.c.b16 %v360, %v359
  %v496 = vpack.c.b16 %v362, %v361
  %v497 = vpack.c.b16 %v364, %v363
  %v498 = vpack.c.b16 %v366, %v365
  %v499 = vpack.c.b16 %v368, %v367
  %v500 = vpack.c.b16 %v370, %v369
  %v501 = vpack.c.b16 %v372, %v371
  %v502 = vpack.c.b16 %v374, %v373
  %v503 = vpack.c.b16 %v376, %v375
  %v504 = vpack.c.b16 %v378, %v377
  %v505 = vpack.c.b16 %v380, %v379
  %v506 = vpack.c.b16 %v382, %v381
  %v507 = vpack.c.b16 %v384, %v383
  %v508 = vpack.c.b16 %v386, %v385
  %v509 = vpack.c.b16 %v388, %v387
  %v510 = vpack.c.b16 %v390, %v389
  %v511 = vpack.c.b16 %v392, %v391
  %v512 = vpack.c.b16 %v394, %v393
  %v513 = vpack.c.b16 %v396, %v395
  %v514 = vpack.c.b16 %v398, %v397
  %v515 = vpack.c.b16 %v400, %v399
  %v516 = vpack.c.b16 %v402, %v401
  %v517 = vpack.c.b16 %v404, %v403
  %v518 = vpack.c.b16 %v406, %v405
  %v519 = vpack.c.b16 %v408, %v407
  %v520 = vpack.c.b16 %v410, %v409
  %v521 = vpack.c.b16 %v412, %v411
  %v522 = vpack.c.b16 %v414, %v413
  %v523 = vpack.c.b16 %v416, %v415
  %v524 = vpack.c.b16 %v418, %v417
  %v525 = vpack.c.b16 %v420, %v419
  %v526 = vpack.c.b16 %v422, %v421
  %v527 = vpack.c.b16 %v424, %v423
  %v528 = vpack.c.b16 %v426, %v425
  %v529 = vpack.c.b16 %v428, %v427
  %v530 = vpack.c.b16 %v430, %v429
  %v531 = vpack.c.b16 %v432, %v431
  %v532 = vpack.c.b16 %v434, %v433
  %v533 = vpack.c.b16 %v436, %v435
  %v534 = vpack.c.b16 %v438, %v437
  %v535 = vpack.c.b16 %v440, %v439
  %v536 = vpack.c.b16 %v442, %v441
  %v537 = vpack.c.b16 %v444, %v443
  %v538 = vpack.c.b16 %v446, %v445
  %v539 = vpack.c.b16 %v448, %v447
  %v540 = vpack.c.b16 %v450, %v449
  %v541 = vpack.c.b16 %v452, %v451
  %v542 = vpack.c.b16 %v454, %v453
  %v543 = vpack.c.b16 %v456, %v455
  %v544 = vpack.c.b16 %v458, %v457
  %v545 = vpack.c.b16 %v460, %v459
  %v546 = vpack.c.b16 %v462, %v461
  %v547 = vpack.c.b16 %v464, %v463
  %v548 = vpack.c.b16 %v466, %v465
  %v549 = vpack.c.b16 %v468, %v467
  %v550 = vpack.c.b16 %v470, %v469
  %v551 = vpack.c.b16 %v472, %v471
  %v552 = vpack.c.b16 %v474, %v473
  %v553 = vpack.c.b16 %v476, %v475
  %v554 = vpack.c.b16 %v478, %v477
  %v555 = vpack.c.b16 %v480, %v479
  %v556 = vpack.c.b16 %v482, %v481
  %v557 = vpack.c.b16 %v484, %v483
  %v558 = vpack.c.b16 %v486, %v485
  %631 = vmatprep.subr.bf16.mxu0 0
  %632 = vmatpush1.bf16.msra.mxu0 %v487
  %633 = vmatprep.subr.bf16.mxu0 0
  %634 = vmatpush1.bf16.msra.mxu0 %v488
  %635 = vmatprep.subr.bf16.mxu0 0
  %636 = vmatpush1.bf16.msra.mxu0 %v489
  %637 = vmatprep.subr.bf16.mxu0 0
  %638 = vmatpush1.bf16.msra.mxu0 %v490
  %639 = vmatprep.subr.bf16.mxu0 0
  %640 = vmatpush1.bf16.msra.mxu0 %v491
  %641 = vmatprep.subr.bf16.mxu0 0
  %642 = vmatpush1.bf16.msra.mxu0 %v492
  %643 = vmatprep.subr.bf16.mxu0 0
  %644 = vmatpush1.bf16.msra.mxu0 %v493
  %645 = vmatprep.subr.bf16.mxu0 0
  %646 = vmatpush1.bf16.msra.mxu0 %v494
  %647 = vmatprep.subr.bf16.mxu0 0
  %648 = vmatpush1.bf16.msra.mxu0 %v495
  %649 = vmatprep.subr.bf16.mxu0 0
  %650 = vmatpush1.bf16.msra.mxu0 %v496
  %651 = vmatprep.subr.bf16.mxu0 0
  %652 = vmatpush1.bf16.msra.mxu0 %v497
  %653 = vmatprep.subr.bf16.mxu0 0
  %654 = vmatpush1.bf16.msra.mxu0 %v498
  %655 = vmatprep.subr.bf16.mxu0 0
  %656 = vmatpush1.bf16.msra.mxu0 %v499
  %657 = vmatprep.subr.bf16.mxu0 0
  %658 = vmatpush1.bf16.msra.mxu0 %v500
  %659 = vmatprep.subr.bf16.mxu0 0
  %660 = vmatpush1.bf16.msra.mxu0 %v501
  %661 = vmatprep.subr.bf16.mxu0 0
  %662 = vmatpush1.bf16.msra.mxu0 %v502
  %663 = vmatprep.mubr.bf16.mxu0 %v182
  %664 = vmatmul.mubr.bf16.gmra.mrb[0].mxu0 %v181
  %v665 = vpop.f32.mrb[0].mxu0
  %v666 = vadd.f32 0.0, %v665
  %v667 = vpop.f32.mrb[0].mxu0
  %v668 = vpop.f32.mrb[0].mxu0
  %v669 = vpop.f32.mrb[0].mxu0
  %670 = vdwg.mxu0
  %671 = vmatprep.subr.bf16.mxu0 0
  %672 = vmatpush1.bf16.msra.mxu0 %v503
  %673 = vmatprep.subr.bf16.mxu0 0
  %674 = vmatpush1.bf16.msra.mxu0 %v504
  %675 = vmatprep.subr.bf16.mxu0 0
  %676 = vmatpush1.bf16.msra.mxu0 %v505
  %677 = vmatprep.subr.bf16.mxu0 0
  %678 = vmatpush1.bf16.msra.mxu0 %v506
  %679 = vmatprep.subr.bf16.mxu0 0
  %680 = vmatpush1.bf16.msra.mxu0 %v507
  %681 = vmatprep.subr.bf16.mxu0 0
  %682 = vmatpush1.bf16.msra.mxu0 %v508
  %683 = vmatprep.subr.bf16.mxu0 0
  %684 = vmatpush1.bf16.msra.mxu0 %v509
  %685 = vmatprep.subr.bf16.mxu0 0
  %686 = vmatpush1.bf16.msra.mxu0 %v510
  %687 = vmatprep.subr.bf16.mxu0 0
  %688 = vmatpush1.bf16.msra.mxu0 %v511
  %689 = vmatprep.subr.bf16.mxu0 0
  %690 = vmatpush1.bf16.msra.mxu0 %v512
  %691 = vmatprep.subr.bf16.mxu0 0
  %692 = vmatpush1.bf16.msra.mxu0 %v513
  %693 = vmatprep.subr.bf16.mxu0 0
  %694 = vmatpush1.bf16.msra.mxu0 %v514
  %695 = vmatprep.subr.bf16.mxu0 0
  %696 = vmatpush1.bf16.msra.mxu0 %v515
  %697 = vmatprep.subr.bf16.mxu0 0
  %698 = vmatpush1.bf16.msra.mxu0 %v516
  %699 = vmatprep.subr.bf16.mxu0 0
  %700 = vmatpush1.bf16.msra.mxu0 %v517
  %701 = vmatprep.subr.bf16.mxu0 0
  %702 = vmatpush1.bf16.msra.mxu0 %v518
  %703 = vmatprep.mubr.bf16.mxu0 %v184
  %704 = vmatmul.mubr.bf16.gmra.mrb[0].mxu0 %v183
  %v705 = vpop.f32.mrb[0].mxu0
  %v706 = vadd.f32 %v666, %v705
  %v707 = vpop.f32.mrb[0].mxu0
  %v708 = vpop.f32.mrb[0].mxu0
  %v709 = vpop.f32.mrb[0].mxu0
  %710 = vdwg.mxu0
  %711 = vmatprep.subr.bf16.mxu0 0
  %712 = vmatpush1.bf16.msra.mxu0 %v519
  %713 = vmatprep.subr.bf16.mxu0 0
  %714 = vmatpush1.bf16.msra.mxu0 %v520
  %715 = vmatprep.subr.bf16.mxu0 0
  %716 = vmatpush1.bf16.msra.mxu0 %v521
  %717 = vmatprep.subr.bf16.mxu0 0
  %718 = vmatpush1.bf16.msra.mxu0 %v522
  %719 = vmatprep.subr.bf16.mxu0 0
  %720 = vmatpush1.bf16.msra.mxu0 %v523
  %721 = vmatprep.subr.bf16.mxu0 0
  %722 = vmatpush1.bf16.msra.mxu0 %v524
  %723 = vmatprep.subr.bf16.mxu0 0
  %724 = vmatpush1.bf16.msra.mxu0 %v525
  %725 = vmatprep.subr.bf16.mxu0 0
  %726 = vmatpush1.bf16.msra.mxu0 %v526
  %727 = vmatprep.subr.bf16.mxu0 0
  %728 = vmatpush1.bf16.msra.mxu0 %v527
  %729 = vmatprep.subr.bf16.mxu0 0
  %730 = vmatpush1.bf16.msra.mxu0 %v528
  %731 = vmatprep.subr.bf16.mxu0 0
  %732 = vmatpush1.bf16.msra.mxu0 %v529
  %733 = vmatprep.subr.bf16.mxu0 0
  %734 = vmatpush1.bf16.msra.mxu0 %v530
  %735 = vmatprep.subr.bf16.mxu0 0
  %736 = vmatpush1.bf16.msra.mxu0 %v531
  %737 = vmatprep.subr.bf16.mxu0 0
  %738 = vmatpush1.bf16.msra.mxu0 %v532
  %739 = vmatprep.subr.bf16.mxu0 0
  %740 = vmatpush1.bf16.msra.mxu0 %v533
  %741 = vmatprep.subr.bf16.mxu0 0
  %742 = vmatpush1.bf16.msra.mxu0 %v534
  %743 = vmatprep.mubr.bf16.mxu0 %v186
  %744 = vmatmul.mubr.bf16.gmra.mrb[0].mxu0 %v185
  %v745 = vpop.f32.mrb[0].mxu0
  %v746 = vadd.f32 %v706, %v745
  %v747 = vpop.f32.mrb[0].mxu0
  %v748 = vpop.f32.mrb[0].mxu0
  %v749 = vpop.f32.mrb[0].mxu0
  %750 = vdwg.mxu0
  %751 = vmatprep.subr.bf16.mxu0 0
  %752 = vmatpush1.bf16.msra.mxu0 %v535
  %753 = vmatprep.subr.bf16.mxu0 0
  %754 = vmatpush1.bf16.msra.mxu0 %v536
  %755 = vmatprep.subr.bf16.mxu0 0
  %756 = vmatpush1.bf16.msra.mxu0 %v537
  %757 = vmatprep.subr.bf16.mxu0 0
  %758 = vmatpush1.bf16.msra.mxu0 %v538
  %759 = vmatprep.subr.bf16.mxu0 0
  %760 = vmatpush1.bf16.msra.mxu0 %v539
  %761 = vmatprep.subr.bf16.mxu0 0
  %762 = vmatpush1.bf16.msra.mxu0 %v540
  %763 = vmatprep.subr.bf16.mxu0 0
  %764 = vmatpush1.bf16.msra.mxu0 %v541
  %765 = vmatprep.subr.bf16.mxu0 0
  %766 = vmatpush1.bf16.msra.mxu0 %v542
  %767 = vmatprep.subr.bf16.mxu0 0
  %768 = vmatpush1.bf16.msra.mxu0 %v543
  %769 = vmatprep.subr.bf16.mxu0 0
  %770 = vmatpush1.bf16.msra.mxu0 %v544
  %771 = vmatprep.subr.bf16.mxu0 0
  %772 = vmatpush1.bf16.msra.mxu0 %v545
  %773 = vmatprep.subr.bf16.mxu0 0
  %774 = vmatpush1.bf16.msra.mxu0 %v546
  %775 = vmatprep.subr.bf16.mxu0 0
  %776 = vmatpush1.bf16.msra.mxu0 %v547
  %777 = vmatprep.subr.bf16.mxu0 0
  %778 = vmatpush1.bf16.msra.mxu0 %v548
  %779 = vmatprep.subr.bf16.mxu0 0
  %780 = vmatpush1.bf16.msra.mxu0 %v549
  %781 = vmatprep.subr.bf16.mxu0 0
  %782 = vmatpush1.bf16.msra.mxu0 %v550
  %783 = vmatprep.mubr.bf16.mxu0 %v188
  %784 = vmatmul.mubr.bf16.gmra.mrb[0].mxu0 %v187
  %v785 = vpop.f32.mrb[0].mxu0
  %v786 = vadd.f32 %v746, %v785
  %v787 = vpop.f32.mrb[0].mxu0
  %v788 = vpop.f32.mrb[0].mxu0
  %v789 = vpop.f32.mrb[0].mxu0
  %790 = vdwg.mxu0
  %791 = vmatprep.subr.bf16.mxu0 0
  %792 = vmatpush1.bf16.msra.mxu0 %v551
  %793 = vmatprep.subr.bf16.mxu0 0
  %794 = vmatpush1.bf16.msra.mxu0 %v552
  %795 = vmatprep.subr.bf16.mxu0 0
  %796 = vmatpush1.bf16.msra.mxu0 %v553
  %797 = vmatprep.subr.bf16.mxu0 0
  %798 = vmatpush1.bf16.msra.mxu0 %v554
  %799 = vmatprep.subr.bf16.mxu0 0
  %800 = vmatpush1.bf16.msra.mxu0 %v555
  %801 = vmatprep.subr.bf16.mxu0 0
  %802 = vmatpush1.bf16.msra.mxu0 %v556
  %803 = vmatprep.subr.bf16.mxu0 0
  %804 = vmatpush1.bf16.msra.mxu0 %v557
  %805 = vmatprep.subr.bf16.mxu0 0
  %806 = vmatpush1.bf16.msra.mxu0 %v558
  %807 = vmatprep.subr.bf16.mxu0 0
  %808 = vmatpush1.bf16.msra.mxu0 0
  %809 = vmatprep.subr.bf16.mxu0 0
  %810 = vmatpush1.bf16.msra.mxu0 0
  %811 = vmatprep.subr.bf16.mxu0 0
  %812 = vmatpush1.bf16.msra.mxu0 0
  %813 = vmatprep.subr.bf16.mxu0 0
  %814 = vmatpush1.bf16.msra.mxu0 0
  %815 = vmatprep.subr.bf16.mxu0 0
  %816 = vmatpush1.bf16.msra.mxu0 0
  %817 = vmatprep.subr.bf16.mxu0 0
  %818 = vmatpush1.bf16.msra.mxu0 0
  %819 = vmatprep.subr.bf16.mxu0 0
  %820 = vmatpush1.bf16.msra.mxu0 0
  %821 = vmatprep.subr.bf16.mxu0 0
  %822 = vmatpush1.bf16.msra.mxu0 0
  %823 = vmatprep.mubr.bf16.mxu0 0
  %824 = vmatmul.mubr.bf16.gmra.mrb[0].mxu0 %v189
  %v825 = vpop.f32.mrb[0].mxu0
  %v826 = vadd.f32 %v786, %v825
  %v827 = vpop.f32.mrb[0].mxu0
  %v828 = vpop.f32.mrb[0].mxu0
  %v829 = vpop.f32.mrb[0].mxu0
  %830 = vdwg.mxu0
  %v831 = vld [vmem:[%s2] sm:$0x1]
  %v833 = vlaneseq
  %v834 = vshrl.u32 %v833, 7
  %v835 = vsub.s32 0, %v834
  %v836 = vrot.slane %v831, %v835
  %v838 = vmul.f32 %v826, %v836
  %v839 = vld [vmem:[%s3] sm:$0x1]
  %v841 = vlaneseq
  %v842 = vshrl.u32 %v841, 7
  %v843 = vsub.s32 0, %v842
  %v844 = vrot.slane %v839, %v843
  %v846 = vadd.f32 %v838, %v844
  %v847 = vmax.f32 %v846, 0.0
  %vm848 = vcmask 523264
  %849 = vst.msk [vmem:[%s4] sm:$0xff] %vm848, %v847
  // Predicated region
  $region18: #{unet_forward.28} parent=0 // pred_check
    _
  $region19: #{unet_forward.28} parent=0 // pred_check_branch
    %851 = sbr.rel (0) target = $region21
  $region20: #{unet_forward.28} parent=0 // pred_region
    _
  $region21: #{unet_forward.28} parent=0 // pred_fallthru
    _
  // Predicated region
  $region22: #{unet_forward.28} parent=0 // pred_check
    _
  $region23: #{unet_forward.28} parent=0 // pred_check_branch
    %853 = sbr.rel (0) target = $region25
  $region24: #{unet_forward.28} parent=0 // pred_region
    _
  $region25: #{unet_forward.28} parent=0 // pred_fallthru
    _

// kernel: unet_forward.29
$region0: #{unet_forward.29}
  #allocation0 [shape = 'u32[]', space=smem, size = 0x4, offset = 0x4, fixed_abs, tag = 'smem constant byte address 0x4 - core index']
  #allocation1 [shape = 'u32[144,128]{1,0:T(1,128)}', space=vmem, size = 0x12000, scoped, tag = 'internal scratch']
  %s0 = inlined_call_operand.vmem [shape: bf16[8,576], index: 0, kind: input, shape index: {}]
  %s1 = inlined_call_operand.vmem [shape: bf16[576,64], index: 1, kind: input, shape index: {}]
  %s2 = inlined_call_operand.vmem [shape: f32[1,64], index: 2, kind: input, shape index: {}]
  %s3 = inlined_call_operand.vmem [shape: f32[1,64], index: 3, kind: input, shape index: {}]
  %s4 = inlined_call_operand.vmem [shape: f32[8,64], index: 4, kind: output, shape index: {}]
  %s5 = sld [smem:[#allocation0]]
  $region26: #{unet_forward.29} parent=0
    _
  %s7 = ssub.s32 1, %s5
  %s8 = scalar_select 0, %s7, %s5
  // Predicated region
  $region2: #{unet_forward.29} parent=0 // pred_check
    _
  $region3: #{unet_forward.29} parent=0 // pred_check_branch
    %10 = sbr.rel (0) target = $region5
  $region4: #{unet_forward.29} parent=0 // pred_region
    _
  $region5: #{unet_forward.29} parent=0 // pred_fallthru
    _
  // Predicated region
  $region6: #{unet_forward.29} parent=0 // pred_check
    _
  $region7: #{unet_forward.29} parent=0 // pred_check_branch
    %12 = sbr.rel (0) target = $region9
  $region8: #{unet_forward.29} parent=0 // pred_region
    _
  $region9: #{unet_forward.29} parent=0 // pred_fallthru
    _
  // Predicated region
  $region10: #{unet_forward.29} parent=0 // pred_check
    _
  $region11: #{unet_forward.29} parent=0 // pred_check_branch
    %14 = sbr.rel (0) target = $region13
  $region12: #{unet_forward.29} parent=0 // pred_region
    _
  $region13: #{unet_forward.29} parent=0 // pred_fallthru
    _
  // Predicated region
  $region14: #{unet_forward.29} parent=0 // pred_check
    _
  $region15: #{unet_forward.29} parent=0 // pred_check_branch
    %16 = sbr.rel (0) target = $region17
  $region16: #{unet_forward.29} parent=0 // pred_region
    _
  $region17: #{unet_forward.29} parent=0 // pred_fallthru
    _
  %v18 = vld [vmem:[%s0] sm:$0xff]
  %v19 = vld [vmem:[%s0 + $0x8] sm:$0xff]
  %v20 = vld [vmem:[%s0 + $0x10] sm:$0xf]
  %v21 = vld [vmem:[%s1] sm:$0xf]
  %v22 = vld [vmem:[%s1 + $0x4] sm:$0xf]
  %v23 = vld [vmem:[%s1 + $0x8] sm:$0xf]
  %v24 = vld [vmem:[%s1 + $0xc] sm:$0xf]
  %v25 = vld [vmem:[%s1 + $0x10] sm:$0xf]
  %v26 = vld [vmem:[%s1 + $0x14] sm:$0xf]
  %v27 = vld [vmem:[%s1 + $0x18] sm:$0xf]
  %v28 = vld [vmem:[%s1 + $0x1c] sm:$0xf]
  %v29 = vld [vmem:[%s1 + $0x20] sm:$0xf]
  %v30 = vld [vmem:[%s1 + $0x24] sm:$0xf]
  %v31 = vld [vmem:[%s1 + $0x28] sm:$0xf]
  %v32 = vld [vmem:[%s1 + $0x2c] sm:$0xf]
  %v33 = vld [vmem:[%s1 + $0x30] sm:$0xf]
  %v34 = vld [vmem:[%s1 + $0x34] sm:$0xf]
  %v35 = vld [vmem:[%s1 + $0x38] sm:$0xf]
  %v36 = vld [vmem:[%s1 + $0x3c] sm:$0xf]
  %v37 = vld [vmem:[%s1 + $0x40] sm:$0xf]
  %v38 = vld [vmem:[%s1 + $0x44] sm:$0xf]
  %v39 = vld [vmem:[%s1 + $0x48] sm:$0xf]
  %v40 = vld [vmem:[%s1 + $0x4c] sm:$0xf]
  %v41 = vld [vmem:[%s1 + $0x50] sm:$0xf]
  %v42 = vld [vmem:[%s1 + $0x54] sm:$0xf]
  %v43 = vld [vmem:[%s1 + $0x58] sm:$0xf]
  %v44 = vld [vmem:[%s1 + $0x5c] sm:$0xf]
  %v45 = vld [vmem:[%s1 + $0x60] sm:$0xf]
  %v46 = vld [vmem:[%s1 + $0x64] sm:$0xf]
  %v47 = vld [vmem:[%s1 + $0x68] sm:$0xf]
  %v48 = vld [vmem:[%s1 + $0x6c] sm:$0xf]
  %v49 = vld [vmem:[%s1 + $0x70] sm:$0xf]
  %v50 = vld [vmem:[%s1 + $0x74] sm:$0xf]
  %v51 = vld [vmem:[%s1 + $0x78] sm:$0xf]
  %v52 = vld [vmem:[%s1 + $0x7c] sm:$0xf]
  %v53 = vld [vmem:[%s1 + $0x80] sm:$0xf]
  %v54 = vld [vmem:[%s1 + $0x84] sm:$0xf]
  %v55 = vld [vmem:[%s1 + $0x88] sm:$0xf]
  %v56 = vld [vmem:[%s1 + $0x8c] sm:$0xf]
  %v57 = vld [vmem:[%s1 + $0x90] sm:$0xf]
  %v58 = vld [vmem:[%s1 + $0x94] sm:$0xf]
  %v59 = vld [vmem:[%s1 + $0x98] sm:$0xf]
  %v60 = vld [vmem:[%s1 + $0x9c] sm:$0xf]
  %v61 = vld [vmem:[%s1 + $0xa0] sm:$0xf]
  %v62 = vld [vmem:[%s1 + $0xa4] sm:$0xf]
  %v63 = vld [vmem:[%s1 + $0xa8] sm:$0xf]
  %v64 = vld [vmem:[%s1 + $0xac] sm:$0xf]
  %v65 = vld [vmem:[%s1 + $0xb0] sm:$0xf]
  %v66 = vld [vmem:[%s1 + $0xb4] sm:$0xf]
  %v67 = vld [vmem:[%s1 + $0xb8] sm:$0xf]
  %v68 = vld [vmem:[%s1 + $0xbc] sm:$0xf]
  %v69 = vld [vmem:[%s1 + $0xc0] sm:$0xf]
  %v70 = vld [vmem:[%s1 + $0xc4] sm:$0xf]
  %v71 = vld [vmem:[%s1 + $0xc8] sm:$0xf]
  %v72 = vld [vmem:[%s1 + $0xcc] sm:$0xf]
  %v73 = vld [vmem:[%s1 + $0xd0] sm:$0xf]
  %v74 = vld [vmem:[%s1 + $0xd4] sm:$0xf]
  %v75 = vld [vmem:[%s1 + $0xd8] sm:$0xf]
  %v76 = vld [vmem:[%s1 + $0xdc] sm:$0xf]
  %v77 = vld [vmem:[%s1 + $0xe0] sm:$0xf]
  %v78 = vld [vmem:[%s1 + $0xe4] sm:$0xf]
  %v79 = vld [vmem:[%s1 + $0xe8] sm:$0xf]
  %v80 = vld [vmem:[%s1 + $0xec] sm:$0xf]
  %v81 = vld [vmem:[%s1 + $0xf0] sm:$0xf]
  %v82 = vld [vmem:[%s1 + $0xf4] sm:$0xf]
  %v83 = vld [vmem:[%s1 + $0xf8] sm:$0xf]
  %v84 = vld [vmem:[%s1 + $0xfc] sm:$0xf]
  %v85 = vld [vmem:[%s1 + $0x100] sm:$0xf]
  %v86 = vld [vmem:[%s1 + $0x104] sm:$0xf]
  %v87 = vld [vmem:[%s1 + $0x108] sm:$0xf]
  %v88 = vld [vmem:[%s1 + $0x10c] sm:$0xf]
  %v89 = vld [vmem:[%s1 + $0x110] sm:$0xf]
  %v90 = vld [vmem:[%s1 + $0x114] sm:$0xf]
  %v91 = vld [vmem:[%s1 + $0x118] sm:$0xf]
  %v92 = vld [vmem:[%s1 + $0x11c] sm:$0xf]
  %v96 = vunpack.c.l.b16 %v18
  %v97 = vunpack.c.h.b16 %v18
  %v98 = vunpack.c.l.b16 %v19
  %v99 = vunpack.c.h.b16 %v19
  %v100 = vunpack.c.l.b16 %v20
  %v101 = vpack.c.b16 %v96, %v96
  %v102 = vpack.c.b16 %v97, %v97
  %v103 = vpack.c.b16 %v98, %v98
  %v104 = vpack.c.b16 %v99, %v99
  %v105 = vpack.c.b16 %v100, %v100
  %v182 = vunpack.c.l.b16 %v21
  %v183 = vunpack.c.l.b16 %v22
  %v184 = vunpack.c.l.b16 %v23
  %v185 = vunpack.c.l.b16 %v24
  %v186 = vunpack.c.l.b16 %v25
  %v187 = vunpack.c.l.b16 %v26
  %v188 = vunpack.c.l.b16 %v27
  %v189 = vunpack.c.l.b16 %v28
  %v190 = vunpack.c.l.b16 %v29
  %v191 = vunpack.c.l.b16 %v30
  %v192 = vunpack.c.l.b16 %v31
  %v193 = vunpack.c.l.b16 %v32
  %v194 = vunpack.c.l.b16 %v33
  %v195 = vunpack.c.l.b16 %v34
  %v196 = vunpack.c.l.b16 %v35
  %v197 = vunpack.c.l.b16 %v36
  %v198 = vunpack.c.l.b16 %v37
  %v199 = vunpack.c.l.b16 %v38
  %v200 = vunpack.c.l.b16 %v39
  %v201 = vunpack.c.l.b16 %v40
  %v202 = vunpack.c.l.b16 %v41
  %v203 = vunpack.c.l.b16 %v42
  %v204 = vunpack.c.l.b16 %v43
  %v205 = vunpack.c.l.b16 %v44
  %v206 = vunpack.c.l.b16 %v45
  %v207 = vunpack.c.l.b16 %v46
  %v208 = vunpack.c.l.b16 %v47
  %v209 = vunpack.c.l.b16 %v48
  %v210 = vunpack.c.l.b16 %v49
  %v211 = vunpack.c.l.b16 %v50
  %v212 = vunpack.c.l.b16 %v51
  %v213 = vunpack.c.l.b16 %v52
  %v214 = vunpack.c.l.b16 %v53
  %v215 = vunpack.c.l.b16 %v54
  %v216 = vunpack.c.l.b16 %v55
  %v217 = vunpack.c.l.b16 %v56
  %v218 = vunpack.c.l.b16 %v57
  %v219 = vunpack.c.l.b16 %v58
  %v220 = vunpack.c.l.b16 %v59
  %v221 = vunpack.c.l.b16 %v60
  %v222 = vunpack.c.l.b16 %v61
  %v223 = vunpack.c.l.b16 %v62
  %v224 = vunpack.c.l.b16 %v63
  %v225 = vunpack.c.l.b16 %v64
  %v226 = vunpack.c.l.b16 %v65
  %v227 = vunpack.c.l.b16 %v66
  %v228 = vunpack.c.l.b16 %v67
  %v229 = vunpack.c.l.b16 %v68
  %v230 = vunpack.c.l.b16 %v69
  %v231 = vunpack.c.l.b16 %v70
  %v232 = vunpack.c.l.b16 %v71
  %v233 = vunpack.c.l.b16 %v72
  %v234 = vunpack.c.l.b16 %v73
  %v235 = vunpack.c.l.b16 %v74
  %v236 = vunpack.c.l.b16 %v75
  %v237 = vunpack.c.l.b16 %v76
  %v238 = vunpack.c.l.b16 %v77
  %v239 = vunpack.c.l.b16 %v78
  %v240 = vunpack.c.l.b16 %v79
  %v241 = vunpack.c.l.b16 %v80
  %v242 = vunpack.c.l.b16 %v81
  %v243 = vunpack.c.l.b16 %v82
  %v244 = vunpack.c.l.b16 %v83
  %v245 = vunpack.c.l.b16 %v84
  %v246 = vunpack.c.l.b16 %v85
  %v247 = vunpack.c.l.b16 %v86
  %v248 = vunpack.c.l.b16 %v87
  %v249 = vunpack.c.l.b16 %v88
  %v250 = vunpack.c.l.b16 %v89
  %v251 = vunpack.c.l.b16 %v90
  %v252 = vunpack.c.l.b16 %v91
  %v253 = vunpack.c.l.b16 %v92
  %v254 = vpack.c.b16 %v183, %v182
  %v255 = vpack.c.b16 %v185, %v184
  %v256 = vpack.c.b16 %v187, %v186
  %v257 = vpack.c.b16 %v189, %v188
  %v258 = vpack.c.b16 %v191, %v190
  %v259 = vpack.c.b16 %v193, %v192
  %v260 = vpack.c.b16 %v195, %v194
  %v261 = vpack.c.b16 %v197, %v196
  %v262 = vpack.c.b16 %v199, %v198
  %v263 = vpack.c.b16 %v201, %v200
  %v264 = vpack.c.b16 %v203, %v202
  %v265 = vpack.c.b16 %v205, %v204
  %v266 = vpack.c.b16 %v207, %v206
  %v267 = vpack.c.b16 %v209, %v208
  %v268 = vpack.c.b16 %v211, %v210
  %v269 = vpack.c.b16 %v213, %v212
  %v270 = vpack.c.b16 %v215, %v214
  %v271 = vpack.c.b16 %v217, %v216
  %v272 = vpack.c.b16 %v219, %v218
  %v273 = vpack.c.b16 %v221, %v220
  %v274 = vpack.c.b16 %v223, %v222
  %v275 = vpack.c.b16 %v225, %v224
  %v276 = vpack.c.b16 %v227, %v226
  %v277 = vpack.c.b16 %v229, %v228
  %v278 = vpack.c.b16 %v231, %v230
  %v279 = vpack.c.b16 %v233, %v232
  %v280 = vpack.c.b16 %v235, %v234
  %v281 = vpack.c.b16 %v237, %v236
  %v282 = vpack.c.b16 %v239, %v238
  %v283 = vpack.c.b16 %v241, %v240
  %v284 = vpack.c.b16 %v243, %v242
  %v285 = vpack.c.b16 %v245, %v244
  %v286 = vpack.c.b16 %v247, %v246
  %v287 = vpack.c.b16 %v249, %v248
  %v288 = vpack.c.b16 %v251, %v250
  %v289 = vpack.c.b16 %v253, %v252
  %vm326 = vcmask 523264
  %v328 = vsel %vm326, %v105, 0
  %330 = vmatprep.subr.bf16.mxu0 0
  %331 = vmatpush1.bf16.msra.mxu0 %v254
  %332 = vmatprep.subr.bf16.mxu0 0
  %333 = vmatpush1.bf16.msra.mxu0 %v255
  %334 = vmatprep.subr.bf16.mxu0 0
  %335 = vmatpush1.bf16.msra.mxu0 %v256
  %336 = vmatprep.subr.bf16.mxu0 0
  %337 = vmatpush1.bf16.msra.mxu0 %v257
  %338 = vmatprep.subr.bf16.mxu0 0
  %339 = vmatpush1.bf16.msra.mxu0 %v258
  %340 = vmatprep.subr.bf16.mxu0 0
  %341 = vmatpush1.bf16.msra.mxu0 %v259
  %342 = vmatprep.subr.bf16.mxu0 0
  %343 = vmatpush1.bf16.msra.mxu0 %v260
  %344 = vmatprep.subr.bf16.mxu0 0
  %345 = vmatpush1.bf16.msra.mxu0 %v261
  %346 = vmatprep.subr.bf16.mxu0 0
  %347 = vmatpush1.bf16.msra.mxu0 %v262
  %348 = vmatprep.subr.bf16.mxu0 0
  %349 = vmatpush1.bf16.msra.mxu0 %v263
  %350 = vmatprep.subr.bf16.mxu0 0
  %351 = vmatpush1.bf16.msra.mxu0 %v264
  %352 = vmatprep.subr.bf16.mxu0 0
  %353 = vmatpush1.bf16.msra.mxu0 %v265
  %354 = vmatprep.subr.bf16.mxu0 0
  %355 = vmatpush1.bf16.msra.mxu0 %v266
  %356 = vmatprep.subr.bf16.mxu0 0
  %357 = vmatpush1.bf16.msra.mxu0 %v267
  %358 = vmatprep.subr.bf16.mxu0 0
  %359 = vmatpush1.bf16.msra.mxu0 %v268
  %360 = vmatprep.subr.bf16.mxu0 0
  %361 = vmatpush1.bf16.msra.mxu0 %v269
  %362 = vmatprep.mubr.bf16.mxu0 %v102
  %363 = vmatmul.mubr.bf16.gmra.mrb[0].mxu0 %v101
  %v364 = vpop.f32.mrb[0].mxu0
  %v365 = vadd.f32 0.0, %v364
  %v366 = vpop.f32.mrb[0].mxu0
  %v367 = vpop.f32.mrb[0].mxu0
  %v368 = vpop.f32.mrb[0].mxu0
  %369 = vdwg.mxu0
  %370 = vmatprep.subr.bf16.mxu0 0
  %371 = vmatpush1.bf16.msra.mxu0 %v270
  %372 = vmatprep.subr.bf16.mxu0 0
  %373 = vmatpush1.bf16.msra.mxu0 %v271
  %374 = vmatprep.subr.bf16.mxu0 0
  %375 = vmatpush1.bf16.msra.mxu0 %v272
  %376 = vmatprep.subr.bf16.mxu0 0
  %377 = vmatpush1.bf16.msra.mxu0 %v273
  %378 = vmatprep.subr.bf16.mxu0 0
  %379 = vmatpush1.bf16.msra.mxu0 %v274
  %380 = vmatprep.subr.bf16.mxu0 0
  %381 = vmatpush1.bf16.msra.mxu0 %v275
  %382 = vmatprep.subr.bf16.mxu0 0
  %383 = vmatpush1.bf16.msra.mxu0 %v276
  %384 = vmatprep.subr.bf16.mxu0 0
  %385 = vmatpush1.bf16.msra.mxu0 %v277
  %386 = vmatprep.subr.bf16.mxu0 0
  %387 = vmatpush1.bf16.msra.mxu0 %v278
  %388 = vmatprep.subr.bf16.mxu0 0
  %389 = vmatpush1.bf16.msra.mxu0 %v279
  %390 = vmatprep.subr.bf16.mxu0 0
  %391 = vmatpush1.bf16.msra.mxu0 %v280
  %392 = vmatprep.subr.bf16.mxu0 0
  %393 = vmatpush1.bf16.msra.mxu0 %v281
  %394 = vmatprep.subr.bf16.mxu0 0
  %395 = vmatpush1.bf16.msra.mxu0 %v282
  %396 = vmatprep.subr.bf16.mxu0 0
  %397 = vmatpush1.bf16.msra.mxu0 %v283
  %398 = vmatprep.subr.bf16.mxu0 0
  %399 = vmatpush1.bf16.msra.mxu0 %v284
  %400 = vmatprep.subr.bf16.mxu0 0
  %401 = vmatpush1.bf16.msra.mxu0 %v285
  %402 = vmatprep.mubr.bf16.mxu0 %v104
  %403 = vmatmul.mubr.bf16.gmra.mrb[0].mxu0 %v103
  %v404 = vpop.f32.mrb[0].mxu0
  %v405 = vadd.f32 %v365, %v404
  %v406 = vpop.f32.mrb[0].mxu0
  %v407 = vpop.f32.mrb[0].mxu0
  %v408 = vpop.f32.mrb[0].mxu0
  %409 = vdwg.mxu0
  %410 = vmatprep.subr.bf16.mxu0 0
  %411 = vmatpush1.bf16.msra.mxu0 %v286
  %412 = vmatprep.subr.bf16.mxu0 0
  %413 = vmatpush1.bf16.msra.mxu0 %v287
  %414 = vmatprep.subr.bf16.mxu0 0
  %415 = vmatpush1.bf16.msra.mxu0 %v288
  %416 = vmatprep.subr.bf16.mxu0 0
  %417 = vmatpush1.bf16.msra.mxu0 %v289
  %418 = vmatprep.subr.bf16.mxu0 0
  %419 = vmatpush1.bf16.msra.mxu0 0
  %420 = vmatprep.subr.bf16.mxu0 0
  %421 = vmatpush1.bf16.msra.mxu0 0
  %422 = vmatprep.subr.bf16.mxu0 0
  %423 = vmatpush1.bf16.msra.mxu0 0
  %424 = vmatprep.subr.bf16.mxu0 0
  %425 = vmatpush1.bf16.msra.mxu0 0
  %426 = vmatprep.subr.bf16.mxu0 0
  %427 = vmatpush1.bf16.msra.mxu0 0
  %428 = vmatprep.subr.bf16.mxu0 0
  %429 = vmatpush1.bf16.msra.mxu0 0
  %430 = vmatprep.subr.bf16.mxu0 0
  %431 = vmatpush1.bf16.msra.mxu0 0
  %432 = vmatprep.subr.bf16.mxu0 0
  %433 = vmatpush1.bf16.msra.mxu0 0
  %434 = vmatprep.subr.bf16.mxu0 0
  %435 = vmatpush1.bf16.msra.mxu0 0
  %436 = vmatprep.subr.bf16.mxu0 0
  %437 = vmatpush1.bf16.msra.mxu0 0
  %438 = vmatprep.subr.bf16.mxu0 0
  %439 = vmatpush1.bf16.msra.mxu0 0
  %440 = vmatprep.subr.bf16.mxu0 0
  %441 = vmatpush1.bf16.msra.mxu0 0
  %442 = vmatprep.mubr.bf16.mxu0 0
  %443 = vmatmul.mubr.bf16.gmra.mrb[0].mxu0 %v328
  %v444 = vpop.f32.mrb[0].mxu0
  %v445 = vadd.f32 %v405, %v444
  %v446 = vpop.f32.mrb[0].mxu0
  %v447 = vpop.f32.mrb[0].mxu0
  %v448 = vpop.f32.mrb[0].mxu0
  %449 = vdwg.mxu0
  %v450 = vld [vmem:[%s2] sm:$0x1]
  %v452 = vlaneseq
  %v453 = vshrl.u32 %v452, 7
  %v454 = vsub.s32 0, %v453
  %v455 = vrot.slane %v450, %v454
  %v457 = vmul.f32 %v445, %v455
  %v458 = vld [vmem:[%s3] sm:$0x1]
  %v460 = vlaneseq
  %v461 = vshrl.u32 %v460, 7
  %v462 = vsub.s32 0, %v461
  %v463 = vrot.slane %v458, %v462
  %v465 = vadd.f32 %v457, %v463
  %v466 = vmax.f32 %v465, 0.0
  %467 = vst.msk [vmem:[%s4] sm:$0xff] %vm326, %v466
  // Predicated region
  $region18: #{unet_forward.29} parent=0 // pred_check
    _
  $region19: #{unet_forward.29} parent=0 // pred_check_branch
    %469 = sbr.rel (0) target = $region21
  $region20: #{unet_forward.29} parent=0 // pred_region
    _
  $region21: #{unet_forward.29} parent=0 // pred_fallthru
    _
  // Predicated region
  $region22: #{unet_forward.29} parent=0 // pred_check
    _
  $region23: #{unet_forward.29} parent=0 // pred_check_branch
    %471 = sbr.rel (0) target = $region25
  $region24: #{unet_forward.29} parent=0 // pred_region
    _
  $region25: #{unet_forward.29} parent=0 // pred_fallthru
    _

// kernel: unet_forward.30
$region0: #{unet_forward.30}
  #allocation0 [shape = 'u32[]', space=smem, size = 0x4, offset = 0x4, fixed_abs, tag = 'smem constant byte address 0x4 - core index']
  #allocation1 [shape = 'u32[144,128]{1,0:T(1,128)}', space=vmem, size = 0x12000, scoped, tag = 'internal scratch']
  %s0 = inlined_call_operand.vmem [shape: bf16[8,576], index: 0, kind: input, shape index: {}]
  %s1 = inlined_call_operand.vmem [shape: bf16[576,64], index: 1, kind: input, shape index: {}]
  %s2 = inlined_call_operand.vmem [shape: f32[1,64], index: 2, kind: input, shape index: {}]
  %s3 = inlined_call_operand.vmem [shape: f32[1,64], index: 3, kind: input, shape index: {}]
  %s4 = inlined_call_operand.vmem [shape: f32[8,64], index: 4, kind: output, shape index: {}]
  %s5 = sld [smem:[#allocation0]]
  $region26: #{unet_forward.30} parent=0
    _
  %s7 = ssub.s32 1, %s5
  %s8 = scalar_select 0, %s7, %s5
  // Predicated region
  $region2: #{unet_forward.30} parent=0 // pred_check
    _
  $region3: #{unet_forward.30} parent=0 // pred_check_branch
    %10 = sbr.rel (0) target = $region5
  $region4: #{unet_forward.30} parent=0 // pred_region
    _
  $region5: #{unet_forward.30} parent=0 // pred_fallthru
    _
  // Predicated region
  $region6: #{unet_forward.30} parent=0 // pred_check
    _
  $region7: #{unet_forward.30} parent=0 // pred_check_branch
    %12 = sbr.rel (0) target = $region9
  $region8: #{unet_forward.30} parent=0 // pred_region
    _
  $region9: #{unet_forward.30} parent=0 // pred_fallthru
    _
  // Predicated region
  $region10: #{unet_forward.30} parent=0 // pred_check
    _
  $region11: #{unet_forward.30} parent=0 // pred_check_branch
    %14 = sbr.rel (0) target = $region13
  $region12: #{unet_forward.30} parent=0 // pred_region
    _
  $region13: #{unet_forward.30} parent=0 // pred_fallthru
    _
  // Predicated region
  $region14: #{unet_forward.30} parent=0 // pred_check
    _
  $region15: #{unet_forward.30} parent=0 // pred_check_branch
    %16 = sbr.rel (0) target = $region17
  $region16: #{unet_forward.30} parent=0 // pred_region
    _
  $region17: #{unet_forward.30} parent=0 // pred_fallthru
    _
  %v18 = vld [vmem:[%s0] sm:$0xff]
  %v19 = vld [vmem:[%s0 + $0x8] sm:$0xff]
  %v20 = vld [vmem:[%s0 + $0x10] sm:$0xf]
  %v21 = vld [vmem:[%s1] sm:$0xf]
  %v22 = vld [vmem:[%s1 + $0x4] sm:$0xf]
  %v23 = vld [vmem:[%s1 + $0x8] sm:$0xf]
  %v24 = vld [vmem:[%s1 + $0xc] sm:$0xf]
  %v25 = vld [vmem:[%s1 + $0x10] sm:$0xf]
  %v26 = vld [vmem:[%s1 + $0x14] sm:$0xf]
  %v27 = vld [vmem:[%s1 + $0x18] sm:$0xf]
  %v28 = vld [vmem:[%s1 + $0x1c] sm:$0xf]
  %v29 = vld [vmem:[%s1 + $0x20] sm:$0xf]
  %v30 = vld [vmem:[%s1 + $0x24] sm:$0xf]
  %v31 = vld [vmem:[%s1 + $0x28] sm:$0xf]
  %v32 = vld [vmem:[%s1 + $0x2c] sm:$0xf]
  %v33 = vld [vmem:[%s1 + $0x30] sm:$0xf]
  %v34 = vld [vmem:[%s1 + $0x34] sm:$0xf]
  %v35 = vld [vmem:[%s1 + $0x38] sm:$0xf]
  %v36 = vld [vmem:[%s1 + $0x3c] sm:$0xf]
  %v37 = vld [vmem:[%s1 + $0x40] sm:$0xf]
  %v38 = vld [vmem:[%s1 + $0x44] sm:$0xf]
  %v39 = vld [vmem:[%s1 + $0x48] sm:$0xf]
  %v40 = vld [vmem:[%s1 + $0x4c] sm:$0xf]
  %v41 = vld [vmem:[%s1 + $0x50] sm:$0xf]
  %v42 = vld [vmem:[%s1 + $0x54] sm:$0xf]
  %v43 = vld [vmem:[%s1 + $0x58] sm:$0xf]
  %v44 = vld [vmem:[%s1 + $0x5c] sm:$0xf]
  %v45 = vld [vmem:[%s1 + $0x60] sm:$0xf]
  %v46 = vld [vmem:[%s1 + $0x64] sm:$0xf]
  %v47 = vld [vmem:[%s1 + $0x68] sm:$0xf]
  %v48 = vld [vmem:[%s1 + $0x6c] sm:$0xf]
  %v49 = vld [vmem:[%s1 + $0x70] sm:$0xf]
  %v50 = vld [vmem:[%s1 + $0x74] sm:$0xf]
  %v51 = vld [vmem:[%s1 + $0x78] sm:$0xf]
  %v52 = vld [vmem:[%s1 + $0x7c] sm:$0xf]
  %v53 = vld [vmem:[%s1 + $0x80] sm:$0xf]
  %v54 = vld [vmem:[%s1 + $0x84] sm:$0xf]
  %v55 = vld [vmem:[%s1 + $0x88] sm:$0xf]
  %v56 = vld [vmem:[%s1 + $0x8c] sm:$0xf]
  %v57 = vld [vmem:[%s1 + $0x90] sm:$0xf]
  %v58 = vld [vmem:[%s1 + $0x94] sm:$0xf]
  %v59 = vld [vmem:[%s1 + $0x98] sm:$0xf]
  %v60 = vld [vmem:[%s1 + $0x9c] sm:$0xf]
  %v61 = vld [vmem:[%s1 + $0xa0] sm:$0xf]
  %v62 = vld [vmem:[%s1 + $0xa4] sm:$0xf]
  %v63 = vld [vmem:[%s1 + $0xa8] sm:$0xf]
  %v64 = vld [vmem:[%s1 + $0xac] sm:$0xf]
  %v65 = vld [vmem:[%s1 + $0xb0] sm:$0xf]
  %v66 = vld [vmem:[%s1 + $0xb4] sm:$0xf]
  %v67 = vld [vmem:[%s1 + $0xb8] sm:$0xf]
  %v68 = vld [vmem:[%s1 + $0xbc] sm:$0xf]
  %v69 = vld [vmem:[%s1 + $0xc0] sm:$0xf]
  %v70 = vld [vmem:[%s1 + $0xc4] sm:$0xf]
  %v71 = vld [vmem:[%s1 + $0xc8] sm:$0xf]
  %v72 = vld [vmem:[%s1 + $0xcc] sm:$0xf]
  %v73 = vld [vmem:[%s1 + $0xd0] sm:$0xf]
  %v74 = vld [vmem:[%s1 + $0xd4] sm:$0xf]
  %v75 = vld [vmem:[%s1 + $0xd8] sm:$0xf]
  %v76 = vld [vmem:[%s1 + $0xdc] sm:$0xf]
  %v77 = vld [vmem:[%s1 + $0xe0] sm:$0xf]
  %v78 = vld [vmem:[%s1 + $0xe4] sm:$0xf]
  %v79 = vld [vmem:[%s1 + $0xe8] sm:$0xf]
  %v80 = vld [vmem:[%s1 + $0xec] sm:$0xf]
  %v81 = vld [vmem:[%s1 + $0xf0] sm:$0xf]
  %v82 = vld [vmem:[%s1 + $0xf4] sm:$0xf]
  %v83 = vld [vmem:[%s1 + $0xf8] sm:$0xf]
  %v84 = vld [vmem:[%s1 + $0xfc] sm:$0xf]
  %v85 = vld [vmem:[%s1 + $0x100] sm:$0xf]
  %v86 = vld [vmem:[%s1 + $0x104] sm:$0xf]
  %v87 = vld [vmem:[%s1 + $0x108] sm:$0xf]
  %v88 = vld [vmem:[%s1 + $0x10c] sm:$0xf]
  %v89 = vld [vmem:[%s1 + $0x110] sm:$0xf]
  %v90 = vld [vmem:[%s1 + $0x114] sm:$0xf]
  %v91 = vld [vmem:[%s1 + $0x118] sm:$0xf]
  %v92 = vld [vmem:[%s1 + $0x11c] sm:$0xf]
  %v96 = vunpack.c.l.b16 %v18
  %v97 = vunpack.c.h.b16 %v18
  %v98 = vunpack.c.l.b16 %v19
  %v99 = vunpack.c.h.b16 %v19
  %v100 = vunpack.c.l.b16 %v20
  %v101 = vpack.c.b16 %v96, %v96
  %v102 = vpack.c.b16 %v97, %v97
  %v103 = vpack.c.b16 %v98, %v98
  %v104 = vpack.c.b16 %v99, %v99
  %v105 = vpack.c.b16 %v100, %v100
  %v182 = vunpack.c.l.b16 %v21
  %v183 = vunpack.c.l.b16 %v22
  %v184 = vunpack.c.l.b16 %v23
  %v185 = vunpack.c.l.b16 %v24
  %v186 = vunpack.c.l.b16 %v25
  %v187 = vunpack.c.l.b16 %v26
  %v188 = vunpack.c.l.b16 %v27
  %v189 = vunpack.c.l.b16 %v28
  %v190 = vunpack.c.l.b16 %v29
  %v191 = vunpack.c.l.b16 %v30
  %v192 = vunpack.c.l.b16 %v31
  %v193 = vunpack.c.l.b16 %v32
  %v194 = vunpack.c.l.b16 %v33
  %v195 = vunpack.c.l.b16 %v34
  %v196 = vunpack.c.l.b16 %v35
  %v197 = vunpack.c.l.b16 %v36
  %v198 = vunpack.c.l.b16 %v37
  %v199 = vunpack.c.l.b16 %v38
  %v200 = vunpack.c.l.b16 %v39
  %v201 = vunpack.c.l.b16 %v40
  %v202 = vunpack.c.l.b16 %v41
  %v203 = vunpack.c.l.b16 %v42
  %v204 = vunpack.c.l.b16 %v43
  %v205 = vunpack.c.l.b16 %v44
  %v206 = vunpack.c.l.b16 %v45
  %v207 = vunpack.c.l.b16 %v46
  %v208 = vunpack.c.l.b16 %v47
  %v209 = vunpack.c.l.b16 %v48
  %v210 = vunpack.c.l.b16 %v49
  %v211 = vunpack.c.l.b16 %v50
  %v212 = vunpack.c.l.b16 %v51
  %v213 = vunpack.c.l.b16 %v52
  %v214 = vunpack.c.l.b16 %v53
  %v215 = vunpack.c.l.b16 %v54
  %v216 = vunpack.c.l.b16 %v55
  %v217 = vunpack.c.l.b16 %v56
  %v218 = vunpack.c.l.b16 %v57
  %v219 = vunpack.c.l.b16 %v58
  %v220 = vunpack.c.l.b16 %v59
  %v221 = vunpack.c.l.b16 %v60
  %v222 = vunpack.c.l.b16 %v61
  %v223 = vunpack.c.l.b16 %v62
  %v224 = vunpack.c.l.b16 %v63
  %v225 = vunpack.c.l.b16 %v64
  %v226 = vunpack.c.l.b16 %v65
  %v227 = vunpack.c.l.b16 %v66
  %v228 = vunpack.c.l.b16 %v67
  %v229 = vunpack.c.l.b16 %v68
  %v230 = vunpack.c.l.b16 %v69
  %v231 = vunpack.c.l.b16 %v70
  %v232 = vunpack.c.l.b16 %v71
  %v233 = vunpack.c.l.b16 %v72
  %v234 = vunpack.c.l.b16 %v73
  %v235 = vunpack.c.l.b16 %v74
  %v236 = vunpack.c.l.b16 %v75
  %v237 = vunpack.c.l.b16 %v76
  %v238 = vunpack.c.l.b16 %v77
  %v239 = vunpack.c.l.b16 %v78
  %v240 = vunpack.c.l.b16 %v79
  %v241 = vunpack.c.l.b16 %v80
  %v242 = vunpack.c.l.b16 %v81
  %v243 = vunpack.c.l.b16 %v82
  %v244 = vunpack.c.l.b16 %v83
  %v245 = vunpack.c.l.b16 %v84
  %v246 = vunpack.c.l.b16 %v85
  %v247 = vunpack.c.l.b16 %v86
  %v248 = vunpack.c.l.b16 %v87
  %v249 = vunpack.c.l.b16 %v88
  %v250 = vunpack.c.l.b16 %v89
  %v251 = vunpack.c.l.b16 %v90
  %v252 = vunpack.c.l.b16 %v91
  %v253 = vunpack.c.l.b16 %v92
  %v254 = vpack.c.b16 %v183, %v182
  %v255 = vpack.c.b16 %v185, %v184
  %v256 = vpack.c.b16 %v187, %v186
  %v257 = vpack.c.b16 %v189, %v188
  %v258 = vpack.c.b16 %v191, %v190
  %v259 = vpack.c.b16 %v193, %v192
  %v260 = vpack.c.b16 %v195, %v194
  %v261 = vpack.c.b16 %v197, %v196
  %v262 = vpack.c.b16 %v199, %v198
  %v263 = vpack.c.b16 %v201, %v200
  %v264 = vpack.c.b16 %v203, %v202
  %v265 = vpack.c.b16 %v205, %v204
  %v266 = vpack.c.b16 %v207, %v206
  %v267 = vpack.c.b16 %v209, %v208
  %v268 = vpack.c.b16 %v211, %v210
  %v269 = vpack.c.b16 %v213, %v212
  %v270 = vpack.c.b16 %v215, %v214
  %v271 = vpack.c.b16 %v217, %v216
  %v272 = vpack.c.b16 %v219, %v218
  %v273 = vpack.c.b16 %v221, %v220
  %v274 = vpack.c.b16 %v223, %v222
  %v275 = vpack.c.b16 %v225, %v224
  %v276 = vpack.c.b16 %v227, %v226
  %v277 = vpack.c.b16 %v229, %v228
  %v278 = vpack.c.b16 %v231, %v230
  %v279 = vpack.c.b16 %v233, %v232
  %v280 = vpack.c.b16 %v235, %v234
  %v281 = vpack.c.b16 %v237, %v236
  %v282 = vpack.c.b16 %v239, %v238
  %v283 = vpack.c.b16 %v241, %v240
  %v284 = vpack.c.b16 %v243, %v242
  %v285 = vpack.c.b16 %v245, %v244
  %v286 = vpack.c.b16 %v247, %v246
  %v287 = vpack.c.b16 %v249, %v248
  %v288 = vpack.c.b16 %v251, %v250
  %v289 = vpack.c.b16 %v253, %v252
  %vm326 = vcmask 523264
  %v328 = vsel %vm326, %v105, 0
  %330 = vmatprep.subr.bf16.mxu0 0
  %331 = vmatpush1.bf16.msra.mxu0 %v254
  %332 = vmatprep.subr.bf16.mxu0 0
  %333 = vmatpush1.bf16.msra.mxu0 %v255
  %334 = vmatprep.subr.bf16.mxu0 0
  %335 = vmatpush1.bf16.msra.mxu0 %v256
  %336 = vmatprep.subr.bf16.mxu0 0
  %337 = vmatpush1.bf16.msra.mxu0 %v257
  %338 = vmatprep.subr.bf16.mxu0 0
  %339 = vmatpush1.bf16.msra.mxu0 %v258
  %340 = vmatprep.subr.bf16.mxu0 0
  %341 = vmatpush1.bf16.msra.mxu0 %v259
  %342 = vmatprep.subr.bf16.mxu0 0
  %343 = vmatpush1.bf16.msra.mxu0 %v260
  %344 = vmatprep.subr.bf16.mxu0 0
  %345 = vmatpush1.bf16.msra.mxu0 %v261
  %346 = vmatprep.subr.bf16.mxu0 0
  %347 = vmatpush1.bf16.msra.mxu0 %v262
  %348 = vmatprep.subr.bf16.mxu0 0
  %349 = vmatpush1.bf16.msra.mxu0 %v263
  %350 = vmatprep.subr.bf16.mxu0 0
  %351 = vmatpush1.bf16.msra.mxu0 %v264
  %352 = vmatprep.subr.bf16.mxu0 0
  %353 = vmatpush1.bf16.msra.mxu0 %v265
  %354 = vmatprep.subr.bf16.mxu0 0
  %355 = vmatpush1.bf16.msra.mxu0 %v266
  %356 = vmatprep.subr.bf16.mxu0 0
  %357 = vmatpush1.bf16.msra.mxu0 %v267
  %358 = vmatprep.subr.bf16.mxu0 0
  %359 = vmatpush1.bf16.msra.mxu0 %v268
  %360 = vmatprep.subr.bf16.mxu0 0
  %361 = vmatpush1.bf16.msra.mxu0 %v269
  %362 = vmatprep.mubr.bf16.mxu0 %v102
  %363 = vmatmul.mubr.bf16.gmra.mrb[0].mxu0 %v101
  %v364 = vpop.f32.mrb[0].mxu0
  %v365 = vadd.f32 0.0, %v364
  %v366 = vpop.f32.mrb[0].mxu0
  %v367 = vpop.f32.mrb[0].mxu0
  %v368 = vpop.f32.mrb[0].mxu0
  %369 = vdwg.mxu0
  %370 = vmatprep.subr.bf16.mxu0 0
  %371 = vmatpush1.bf16.msra.mxu0 %v270
  %372 = vmatprep.subr.bf16.mxu0 0
  %373 = vmatpush1.bf16.msra.mxu0 %v271
  %374 = vmatprep.subr.bf16.mxu0 0
  %375 = vmatpush1.bf16.msra.mxu0 %v272
  %376 = vmatprep.subr.bf16.mxu0 0
  %377 = vmatpush1.bf16.msra.mxu0 %v273
  %378 = vmatprep.subr.bf16.mxu0 0
  %379 = vmatpush1.bf16.msra.mxu0 %v274
  %380 = vmatprep.subr.bf16.mxu0 0
  %381 = vmatpush1.bf16.msra.mxu0 %v275
  %382 = vmatprep.subr.bf16.mxu0 0
  %383 = vmatpush1.bf16.msra.mxu0 %v276
  %384 = vmatprep.subr.bf16.mxu0 0
  %385 = vmatpush1.bf16.msra.mxu0 %v277
  %386 = vmatprep.subr.bf16.mxu0 0
  %387 = vmatpush1.bf16.msra.mxu0 %v278
  %388 = vmatprep.subr.bf16.mxu0 0
  %389 = vmatpush1.bf16.msra.mxu0 %v279
  %390 = vmatprep.subr.bf16.mxu0 0
  %391 = vmatpush1.bf16.msra.mxu0 %v280
  %392 = vmatprep.subr.bf16.mxu0 0
  %393 = vmatpush1.bf16.msra.mxu0 %v281
  %394 = vmatprep.subr.bf16.mxu0 0
  %395 = vmatpush1.bf16.msra.mxu0 %v282
  %396 = vmatprep.subr.bf16.mxu0 0
  %397 = vmatpush1.bf16.msra.mxu0 %v283
  %398 = vmatprep.subr.bf16.mxu0 0
  %399 = vmatpush1.bf16.msra.mxu0 %v284
  %400 = vmatprep.subr.bf16.mxu0 0
  %401 = vmatpush1.bf16.msra.mxu0 %v285
  %402 = vmatprep.mubr.bf16.mxu0 %v104
  %403 = vmatmul.mubr.bf16.gmra.mrb[0].mxu0 %v103
  %v404 = vpop.f32.mrb[0].mxu0
  %v405 = vadd.f32 %v365, %v404
  %v406 = vpop.f32.mrb[0].mxu0
  %v407 = vpop.f32.mrb[0].mxu0
  %v408 = vpop.f32.mrb[0].mxu0
  %409 = vdwg.mxu0
  %410 = vmatprep.subr.bf16.mxu0 0
  %411 = vmatpush1.bf16.msra.mxu0 %v286
  %412 = vmatprep.subr.bf16.mxu0 0
  %413 = vmatpush1.bf16.msra.mxu0 %v287
  %414 = vmatprep.subr.bf16.mxu0 0
  %415 = vmatpush1.bf16.msra.mxu0 %v288
  %416 = vmatprep.subr.bf16.mxu0 0
  %417 = vmatpush1.bf16.msra.mxu0 %v289
  %418 = vmatprep.subr.bf16.mxu0 0
  %419 = vmatpush1.bf16.msra.mxu0 0
  %420 = vmatprep.subr.bf16.mxu0 0
  %421 = vmatpush1.bf16.msra.mxu0 0
  %422 = vmatprep.subr.bf16.mxu0 0
  %423 = vmatpush1.bf16.msra.mxu0 0
  %424 = vmatprep.subr.bf16.mxu0 0
  %425 = vmatpush1.bf16.msra.mxu0 0
  %426 = vmatprep.subr.bf16.mxu0 0
  %427 = vmatpush1.bf16.msra.mxu0 0
  %428 = vmatprep.subr.bf16.mxu0 0
  %429 = vmatpush1.bf16.msra.mxu0 0
  %430 = vmatprep.subr.bf16.mxu0 0
  %431 = vmatpush1.bf16.msra.mxu0 0
  %432 = vmatprep.subr.bf16.mxu0 0
  %433 = vmatpush1.bf16.msra.mxu0 0
  %434 = vmatprep.subr.bf16.mxu0 0
  %435 = vmatpush1.bf16.msra.mxu0 0
  %436 = vmatprep.subr.bf16.mxu0 0
  %437 = vmatpush1.bf16.msra.mxu0 0
  %438 = vmatprep.subr.bf16.mxu0 0
  %439 = vmatpush1.bf16.msra.mxu0 0
  %440 = vmatprep.subr.bf16.mxu0 0
  %441 = vmatpush1.bf16.msra.mxu0 0
  %442 = vmatprep.mubr.bf16.mxu0 0
  %443 = vmatmul.mubr.bf16.gmra.mrb[0].mxu0 %v328
  %v444 = vpop.f32.mrb[0].mxu0
  %v445 = vadd.f32 %v405, %v444
  %v446 = vpop.f32.mrb[0].mxu0
  %v447 = vpop.f32.mrb[0].mxu0
  %v448 = vpop.f32.mrb[0].mxu0
  %449 = vdwg.mxu0
  %v450 = vld [vmem:[%s2] sm:$0x1]
  %v452 = vlaneseq
  %v453 = vshrl.u32 %v452, 7
  %v454 = vsub.s32 0, %v453
  %v455 = vrot.slane %v450, %v454
  %v457 = vmul.f32 %v445, %v455
  %v458 = vld [vmem:[%s3] sm:$0x1]
  %v460 = vlaneseq
  %v461 = vshrl.u32 %v460, 7
  %v462 = vsub.s32 0, %v461
  %v463 = vrot.slane %v458, %v462
  %v465 = vadd.f32 %v457, %v463
  %466 = vst.msk [vmem:[%s4] sm:$0xff] %vm326, %v465
  // Predicated region
  $region18: #{unet_forward.30} parent=0 // pred_check
    _
  $region19: #{unet_forward.30} parent=0 // pred_check_branch
    %468 = sbr.rel (0) target = $region21
  $region20: #{unet_forward.30} parent=0 // pred_region
    _
  $region21: #{unet_forward.30} parent=0 // pred_fallthru
    _
  // Predicated region
  $region22: #{unet_forward.30} parent=0 // pred_check
    _
  $region23: #{unet_forward.30} parent=0 // pred_check_branch
    %470 = sbr.rel (0) target = $region25
  $region24: #{unet_forward.30} parent=0 // pred_region
    _
  $region25: #{unet_forward.30} parent=0 // pred_fallthru
    _

// kernel: unet_forward.31
$region0: #{unet_forward.31}
  #allocation0 [shape = 'u32[]', space=smem, size = 0x4, offset = 0x4, fixed_abs, tag = 'smem constant byte address 0x4 - core index']
  #allocation1 [shape = 'u32[144,128]{1,0:T(1,128)}', space=vmem, size = 0x12000, scoped, tag = 'internal scratch']
  %s0 = inlined_call_operand.vmem [shape: bf16[8,1152], index: 0, kind: input, shape index: {}]
  %s1 = inlined_call_operand.vmem [shape: bf16[1152,32], index: 1, kind: input, shape index: {}]
  %s2 = inlined_call_operand.vmem [shape: f32[1,32], index: 2, kind: input, shape index: {}]
  %s3 = inlined_call_operand.vmem [shape: f32[1,32], index: 3, kind: input, shape index: {}]
  %s4 = inlined_call_operand.vmem [shape: f32[8,32], index: 4, kind: output, shape index: {}]
  %s5 = sld [smem:[#allocation0]]
  $region26: #{unet_forward.31} parent=0
    _
  %s7 = ssub.s32 1, %s5
  %s8 = scalar_select 0, %s7, %s5
  // Predicated region
  $region2: #{unet_forward.31} parent=0 // pred_check
    _
  $region3: #{unet_forward.31} parent=0 // pred_check_branch
    %10 = sbr.rel (0) target = $region5
  $region4: #{unet_forward.31} parent=0 // pred_region
    _
  $region5: #{unet_forward.31} parent=0 // pred_fallthru
    _
  // Predicated region
  $region6: #{unet_forward.31} parent=0 // pred_check
    _
  $region7: #{unet_forward.31} parent=0 // pred_check_branch
    %12 = sbr.rel (0) target = $region9
  $region8: #{unet_forward.31} parent=0 // pred_region
    _
  $region9: #{unet_forward.31} parent=0 // pred_fallthru
    _
  // Predicated region
  $region10: #{unet_forward.31} parent=0 // pred_check
    _
  $region11: #{unet_forward.31} parent=0 // pred_check_branch
    %14 = sbr.rel (0) target = $region13
  $region12: #{unet_forward.31} parent=0 // pred_region
    _
  $region13: #{unet_forward.31} parent=0 // pred_fallthru
    _
  // Predicated region
  $region14: #{unet_forward.31} parent=0 // pred_check
    _
  $region15: #{unet_forward.31} parent=0 // pred_check_branch
    %16 = sbr.rel (0) target = $region17
  $region16: #{unet_forward.31} parent=0 // pred_region
    _
  $region17: #{unet_forward.31} parent=0 // pred_fallthru
    _
  %v18 = vld [vmem:[%s0] sm:$0xff]
  %v19 = vld [vmem:[%s0 + $0x8] sm:$0xff]
  %v20 = vld [vmem:[%s0 + $0x10] sm:$0xff]
  %v21 = vld [vmem:[%s0 + $0x18] sm:$0xff]
  %v22 = vld [vmem:[%s0 + $0x20] sm:$0xf]
  %v23 = vld [vmem:[%s1] sm:$0xf]
  %v24 = vld [vmem:[%s1 + $0x4] sm:$0xf]
  %v25 = vld [vmem:[%s1 + $0x8] sm:$0xf]
  %v26 = vld [vmem:[%s1 + $0xc] sm:$0xf]
  %v27 = vld [vmem:[%s1 + $0x10] sm:$0xf]
  %v28 = vld [vmem:[%s1 + $0x14] sm:$0xf]
  %v29 = vld [vmem:[%s1 + $0x18] sm:$0xf]
  %v30 = vld [vmem:[%s1 + $0x1c] sm:$0xf]
  %v31 = vld [vmem:[%s1 + $0x20] sm:$0xf]
  %v32 = vld [vmem:[%s1 + $0x24] sm:$0xf]
  %v33 = vld [vmem:[%s1 + $0x28] sm:$0xf]
  %v34 = vld [vmem:[%s1 + $0x2c] sm:$0xf]
  %v35 = vld [vmem:[%s1 + $0x30] sm:$0xf]
  %v36 = vld [vmem:[%s1 + $0x34] sm:$0xf]
  %v37 = vld [vmem:[%s1 + $0x38] sm:$0xf]
  %v38 = vld [vmem:[%s1 + $0x3c] sm:$0xf]
  %v39 = vld [vmem:[%s1 + $0x40] sm:$0xf]
  %v40 = vld [vmem:[%s1 + $0x44] sm:$0xf]
  %v41 = vld [vmem:[%s1 + $0x48] sm:$0xf]
  %v42 = vld [vmem:[%s1 + $0x4c] sm:$0xf]
  %v43 = vld [vmem:[%s1 + $0x50] sm:$0xf]
  %v44 = vld [vmem:[%s1 + $0x54] sm:$0xf]
  %v45 = vld [vmem:[%s1 + $0x58] sm:$0xf]
  %v46 = vld [vmem:[%s1 + $0x5c] sm:$0xf]
  %v47 = vld [vmem:[%s1 + $0x60] sm:$0xf]
  %v48 = vld [vmem:[%s1 + $0x64] sm:$0xf]
  %v49 = vld [vmem:[%s1 + $0x68] sm:$0xf]
  %v50 = vld [vmem:[%s1 + $0x6c] sm:$0xf]
  %v51 = vld [vmem:[%s1 + $0x70] sm:$0xf]
  %v52 = vld [vmem:[%s1 + $0x74] sm:$0xf]
  %v53 = vld [vmem:[%s1 + $0x78] sm:$0xf]
  %v54 = vld [vmem:[%s1 + $0x7c] sm:$0xf]
  %v55 = vld [vmem:[%s1 + $0x80] sm:$0xf]
  %v56 = vld [vmem:[%s1 + $0x84] sm:$0xf]
  %v57 = vld [vmem:[%s1 + $0x88] sm:$0xf]
  %v58 = vld [vmem:[%s1 + $0x8c] sm:$0xf]
  %v59 = vld [vmem:[%s1 + $0x90] sm:$0xf]
  %v60 = vld [vmem:[%s1 + $0x94] sm:$0xf]
  %v61 = vld [vmem:[%s1 + $0x98] sm:$0xf]
  %v62 = vld [vmem:[%s1 + $0x9c] sm:$0xf]
  %v63 = vld [vmem:[%s1 + $0xa0] sm:$0xf]
  %v64 = vld [vmem:[%s1 + $0xa4] sm:$0xf]
  %v65 = vld [vmem:[%s1 + $0xa8] sm:$0xf]
  %v66 = vld [vmem:[%s1 + $0xac] sm:$0xf]
  %v67 = vld [vmem:[%s1 + $0xb0] sm:$0xf]
  %v68 = vld [vmem:[%s1 + $0xb4] sm:$0xf]
  %v69 = vld [vmem:[%s1 + $0xb8] sm:$0xf]
  %v70 = vld [vmem:[%s1 + $0xbc] sm:$0xf]
  %v71 = vld [vmem:[%s1 + $0xc0] sm:$0xf]
  %v72 = vld [vmem:[%s1 + $0xc4] sm:$0xf]
  %v73 = vld [vmem:[%s1 + $0xc8] sm:$0xf]
  %v74 = vld [vmem:[%s1 + $0xcc] sm:$0xf]
  %v75 = vld [vmem:[%s1 + $0xd0] sm:$0xf]
  %v76 = vld [vmem:[%s1 + $0xd4] sm:$0xf]
  %v77 = vld [vmem:[%s1 + $0xd8] sm:$0xf]
  %v78 = vld [vmem:[%s1 + $0xdc] sm:$0xf]
  %v79 = vld [vmem:[%s1 + $0xe0] sm:$0xf]
  %v80 = vld [vmem:[%s1 + $0xe4] sm:$0xf]
  %v81 = vld [vmem:[%s1 + $0xe8] sm:$0xf]
  %v82 = vld [vmem:[%s1 + $0xec] sm:$0xf]
  %v83 = vld [vmem:[%s1 + $0xf0] sm:$0xf]
  %v84 = vld [vmem:[%s1 + $0xf4] sm:$0xf]
  %v85 = vld [vmem:[%s1 + $0xf8] sm:$0xf]
  %v86 = vld [vmem:[%s1 + $0xfc] sm:$0xf]
  %v87 = vld [vmem:[%s1 + $0x100] sm:$0xf]
  %v88 = vld [vmem:[%s1 + $0x104] sm:$0xf]
  %v89 = vld [vmem:[%s1 + $0x108] sm:$0xf]
  %v90 = vld [vmem:[%s1 + $0x10c] sm:$0xf]
  %v91 = vld [vmem:[%s1 + $0x110] sm:$0xf]
  %v92 = vld [vmem:[%s1 + $0x114] sm:$0xf]
  %v93 = vld [vmem:[%s1 + $0x118] sm:$0xf]
  %v94 = vld [vmem:[%s1 + $0x11c] sm:$0xf]
  %v95 = vld [vmem:[%s1 + $0x120] sm:$0xf]
  %v96 = vld [vmem:[%s1 + $0x124] sm:$0xf]
  %v97 = vld [vmem:[%s1 + $0x128] sm:$0xf]
  %v98 = vld [vmem:[%s1 + $0x12c] sm:$0xf]
  %v99 = vld [vmem:[%s1 + $0x130] sm:$0xf]
  %v100 = vld [vmem:[%s1 + $0x134] sm:$0xf]
  %v101 = vld [vmem:[%s1 + $0x138] sm:$0xf]
  %v102 = vld [vmem:[%s1 + $0x13c] sm:$0xf]
  %v103 = vld [vmem:[%s1 + $0x140] sm:$0xf]
  %v104 = vld [vmem:[%s1 + $0x144] sm:$0xf]
  %v105 = vld [vmem:[%s1 + $0x148] sm:$0xf]
  %v106 = vld [vmem:[%s1 + $0x14c] sm:$0xf]
  %v107 = vld [vmem:[%s1 + $0x150] sm:$0xf]
  %v108 = vld [vmem:[%s1 + $0x154] sm:$0xf]
  %v109 = vld [vmem:[%s1 + $0x158] sm:$0xf]
  %v110 = vld [vmem:[%s1 + $0x15c] sm:$0xf]
  %v111 = vld [vmem:[%s1 + $0x160] sm:$0xf]
  %v112 = vld [vmem:[%s1 + $0x164] sm:$0xf]
  %v113 = vld [vmem:[%s1 + $0x168] sm:$0xf]
  %v114 = vld [vmem:[%s1 + $0x16c] sm:$0xf]
  %v115 = vld [vmem:[%s1 + $0x170] sm:$0xf]
  %v116 = vld [vmem:[%s1 + $0x174] sm:$0xf]
  %v117 = vld [vmem:[%s1 + $0x178] sm:$0xf]
  %v118 = vld [vmem:[%s1 + $0x17c] sm:$0xf]
  %v119 = vld [vmem:[%s1 + $0x180] sm:$0xf]
  %v120 = vld [vmem:[%s1 + $0x184] sm:$0xf]
  %v121 = vld [vmem:[%s1 + $0x188] sm:$0xf]
  %v122 = vld [vmem:[%s1 + $0x18c] sm:$0xf]
  %v123 = vld [vmem:[%s1 + $0x190] sm:$0xf]
  %v124 = vld [vmem:[%s1 + $0x194] sm:$0xf]
  %v125 = vld [vmem:[%s1 + $0x198] sm:$0xf]
  %v126 = vld [vmem:[%s1 + $0x19c] sm:$0xf]
  %v127 = vld [vmem:[%s1 + $0x1a0] sm:$0xf]
  %v128 = vld [vmem:[%s1 + $0x1a4] sm:$0xf]
  %v129 = vld [vmem:[%s1 + $0x1a8] sm:$0xf]
  %v130 = vld [vmem:[%s1 + $0x1ac] sm:$0xf]
  %v131 = vld [vmem:[%s1 + $0x1b0] sm:$0xf]
  %v132 = vld [vmem:[%s1 + $0x1b4] sm:$0xf]
  %v133 = vld [vmem:[%s1 + $0x1b8] sm:$0xf]
  %v134 = vld [vmem:[%s1 + $0x1bc] sm:$0xf]
  %v135 = vld [vmem:[%s1 + $0x1c0] sm:$0xf]
  %v136 = vld [vmem:[%s1 + $0x1c4] sm:$0xf]
  %v137 = vld [vmem:[%s1 + $0x1c8] sm:$0xf]
  %v138 = vld [vmem:[%s1 + $0x1cc] sm:$0xf]
  %v139 = vld [vmem:[%s1 + $0x1d0] sm:$0xf]
  %v140 = vld [vmem:[%s1 + $0x1d4] sm:$0xf]
  %v141 = vld [vmem:[%s1 + $0x1d8] sm:$0xf]
  %v142 = vld [vmem:[%s1 + $0x1dc] sm:$0xf]
  %v143 = vld [vmem:[%s1 + $0x1e0] sm:$0xf]
  %v144 = vld [vmem:[%s1 + $0x1e4] sm:$0xf]
  %v145 = vld [vmem:[%s1 + $0x1e8] sm:$0xf]
  %v146 = vld [vmem:[%s1 + $0x1ec] sm:$0xf]
  %v147 = vld [vmem:[%s1 + $0x1f0] sm:$0xf]
  %v148 = vld [vmem:[%s1 + $0x1f4] sm:$0xf]
  %v149 = vld [vmem:[%s1 + $0x1f8] sm:$0xf]
  %v150 = vld [vmem:[%s1 + $0x1fc] sm:$0xf]
  %v151 = vld [vmem:[%s1 + $0x200] sm:$0xf]
  %v152 = vld [vmem:[%s1 + $0x204] sm:$0xf]
  %v153 = vld [vmem:[%s1 + $0x208] sm:$0xf]
  %v154 = vld [vmem:[%s1 + $0x20c] sm:$0xf]
  %v155 = vld [vmem:[%s1 + $0x210] sm:$0xf]
  %v156 = vld [vmem:[%s1 + $0x214] sm:$0xf]
  %v157 = vld [vmem:[%s1 + $0x218] sm:$0xf]
  %v158 = vld [vmem:[%s1 + $0x21c] sm:$0xf]
  %v159 = vld [vmem:[%s1 + $0x220] sm:$0xf]
  %v160 = vld [vmem:[%s1 + $0x224] sm:$0xf]
  %v161 = vld [vmem:[%s1 + $0x228] sm:$0xf]
  %v162 = vld [vmem:[%s1 + $0x22c] sm:$0xf]
  %v163 = vld [vmem:[%s1 + $0x230] sm:$0xf]
  %v164 = vld [vmem:[%s1 + $0x234] sm:$0xf]
  %v165 = vld [vmem:[%s1 + $0x238] sm:$0xf]
  %v166 = vld [vmem:[%s1 + $0x23c] sm:$0xf]
  %v172 = vunpack.c.l.b16 %v18
  %v173 = vunpack.c.h.b16 %v18
  %v174 = vunpack.c.l.b16 %v19
  %v175 = vunpack.c.h.b16 %v19
  %v176 = vunpack.c.l.b16 %v20
  %v177 = vunpack.c.h.b16 %v20
  %v178 = vunpack.c.l.b16 %v21
  %v179 = vunpack.c.h.b16 %v21
  %v180 = vunpack.c.l.b16 %v22
  %v181 = vpack.c.b16 %v172, %v172
  %v182 = vpack.c.b16 %v173, %v173
  %v183 = vpack.c.b16 %v174, %v174
  %v184 = vpack.c.b16 %v175, %v175
  %v185 = vpack.c.b16 %v176, %v176
  %v186 = vpack.c.b16 %v177, %v177
  %v187 = vpack.c.b16 %v178, %v178
  %v188 = vpack.c.b16 %v179, %v179
  %v189 = vpack.c.b16 %v180, %v180
  %v343 = vunpack.c.l.b16 %v23
  %v344 = vunpack.c.l.b16 %v24
  %v345 = vunpack.c.l.b16 %v25
  %v346 = vunpack.c.l.b16 %v26
  %v347 = vunpack.c.l.b16 %v27
  %v348 = vunpack.c.l.b16 %v28
  %v349 = vunpack.c.l.b16 %v29
  %v350 = vunpack.c.l.b16 %v30
  %v351 = vunpack.c.l.b16 %v31
  %v352 = vunpack.c.l.b16 %v32
  %v353 = vunpack.c.l.b16 %v33
  %v354 = vunpack.c.l.b16 %v34
  %v355 = vunpack.c.l.b16 %v35
  %v356 = vunpack.c.l.b16 %v36
  %v357 = vunpack.c.l.b16 %v37
  %v358 = vunpack.c.l.b16 %v38
  %v359 = vunpack.c.l.b16 %v39
  %v360 = vunpack.c.l.b16 %v40
  %v361 = vunpack.c.l.b16 %v41
  %v362 = vunpack.c.l.b16 %v42
  %v363 = vunpack.c.l.b16 %v43
  %v364 = vunpack.c.l.b16 %v44
  %v365 = vunpack.c.l.b16 %v45
  %v366 = vunpack.c.l.b16 %v46
  %v367 = vunpack.c.l.b16 %v47
  %v368 = vunpack.c.l.b16 %v48
  %v369 = vunpack.c.l.b16 %v49
  %v370 = vunpack.c.l.b16 %v50
  %v371 = vunpack.c.l.b16 %v51
  %v372 = vunpack.c.l.b16 %v52
  %v373 = vunpack.c.l.b16 %v53
  %v374 = vunpack.c.l.b16 %v54
  %v375 = vunpack.c.l.b16 %v55
  %v376 = vunpack.c.l.b16 %v56
  %v377 = vunpack.c.l.b16 %v57
  %v378 = vunpack.c.l.b16 %v58
  %v379 = vunpack.c.l.b16 %v59
  %v380 = vunpack.c.l.b16 %v60
  %v381 = vunpack.c.l.b16 %v61
  %v382 = vunpack.c.l.b16 %v62
  %v383 = vunpack.c.l.b16 %v63
  %v384 = vunpack.c.l.b16 %v64
  %v385 = vunpack.c.l.b16 %v65
  %v386 = vunpack.c.l.b16 %v66
  %v387 = vunpack.c.l.b16 %v67
  %v388 = vunpack.c.l.b16 %v68
  %v389 = vunpack.c.l.b16 %v69
  %v390 = vunpack.c.l.b16 %v70
  %v391 = vunpack.c.l.b16 %v71
  %v392 = vunpack.c.l.b16 %v72
  %v393 = vunpack.c.l.b16 %v73
  %v394 = vunpack.c.l.b16 %v74
  %v395 = vunpack.c.l.b16 %v75
  %v396 = vunpack.c.l.b16 %v76
  %v397 = vunpack.c.l.b16 %v77
  %v398 = vunpack.c.l.b16 %v78
  %v399 = vunpack.c.l.b16 %v79
  %v400 = vunpack.c.l.b16 %v80
  %v401 = vunpack.c.l.b16 %v81
  %v402 = vunpack.c.l.b16 %v82
  %v403 = vunpack.c.l.b16 %v83
  %v404 = vunpack.c.l.b16 %v84
  %v405 = vunpack.c.l.b16 %v85
  %v406 = vunpack.c.l.b16 %v86
  %v407 = vunpack.c.l.b16 %v87
  %v408 = vunpack.c.l.b16 %v88
  %v409 = vunpack.c.l.b16 %v89
  %v410 = vunpack.c.l.b16 %v90
  %v411 = vunpack.c.l.b16 %v91
  %v412 = vunpack.c.l.b16 %v92
  %v413 = vunpack.c.l.b16 %v93
  %v414 = vunpack.c.l.b16 %v94
  %v415 = vunpack.c.l.b16 %v95
  %v416 = vunpack.c.l.b16 %v96
  %v417 = vunpack.c.l.b16 %v97
  %v418 = vunpack.c.l.b16 %v98
  %v419 = vunpack.c.l.b16 %v99
  %v420 = vunpack.c.l.b16 %v100
  %v421 = vunpack.c.l.b16 %v101
  %v422 = vunpack.c.l.b16 %v102
  %v423 = vunpack.c.l.b16 %v103
  %v424 = vunpack.c.l.b16 %v104
  %v425 = vunpack.c.l.b16 %v105
  %v426 = vunpack.c.l.b16 %v106
  %v427 = vunpack.c.l.b16 %v107
  %v428 = vunpack.c.l.b16 %v108
  %v429 = vunpack.c.l.b16 %v109
  %v430 = vunpack.c.l.b16 %v110
  %v431 = vunpack.c.l.b16 %v111
  %v432 = vunpack.c.l.b16 %v112
  %v433 = vunpack.c.l.b16 %v113
  %v434 = vunpack.c.l.b16 %v114
  %v435 = vunpack.c.l.b16 %v115
  %v436 = vunpack.c.l.b16 %v116
  %v437 = vunpack.c.l.b16 %v117
  %v438 = vunpack.c.l.b16 %v118
  %v439 = vunpack.c.l.b16 %v119
  %v440 = vunpack.c.l.b16 %v120
  %v441 = vunpack.c.l.b16 %v121
  %v442 = vunpack.c.l.b16 %v122
  %v443 = vunpack.c.l.b16 %v123
  %v444 = vunpack.c.l.b16 %v124
  %v445 = vunpack.c.l.b16 %v125
  %v446 = vunpack.c.l.b16 %v126
  %v447 = vunpack.c.l.b16 %v127
  %v448 = vunpack.c.l.b16 %v128
  %v449 = vunpack.c.l.b16 %v129
  %v450 = vunpack.c.l.b16 %v130
  %v451 = vunpack.c.l.b16 %v131
  %v452 = vunpack.c.l.b16 %v132
  %v453 = vunpack.c.l.b16 %v133
  %v454 = vunpack.c.l.b16 %v134
  %v455 = vunpack.c.l.b16 %v135
  %v456 = vunpack.c.l.b16 %v136
  %v457 = vunpack.c.l.b16 %v137
  %v458 = vunpack.c.l.b16 %v138
  %v459 = vunpack.c.l.b16 %v139
  %v460 = vunpack.c.l.b16 %v140
  %v461 = vunpack.c.l.b16 %v141
  %v462 = vunpack.c.l.b16 %v142
  %v463 = vunpack.c.l.b16 %v143
  %v464 = vunpack.c.l.b16 %v144
  %v465 = vunpack.c.l.b16 %v145
  %v466 = vunpack.c.l.b16 %v146
  %v467 = vunpack.c.l.b16 %v147
  %v468 = vunpack.c.l.b16 %v148
  %v469 = vunpack.c.l.b16 %v149
  %v470 = vunpack.c.l.b16 %v150
  %v471 = vunpack.c.l.b16 %v151
  %v472 = vunpack.c.l.b16 %v152
  %v473 = vunpack.c.l.b16 %v153
  %v474 = vunpack.c.l.b16 %v154
  %v475 = vunpack.c.l.b16 %v155
  %v476 = vunpack.c.l.b16 %v156
  %v477 = vunpack.c.l.b16 %v157
  %v478 = vunpack.c.l.b16 %v158
  %v479 = vunpack.c.l.b16 %v159
  %v480 = vunpack.c.l.b16 %v160
  %v481 = vunpack.c.l.b16 %v161
  %v482 = vunpack.c.l.b16 %v162
  %v483 = vunpack.c.l.b16 %v163
  %v484 = vunpack.c.l.b16 %v164
  %v485 = vunpack.c.l.b16 %v165
  %v486 = vunpack.c.l.b16 %v166
  %v487 = vpack.c.b16 %v344, %v343
  %v488 = vpack.c.b16 %v346, %v345
  %v489 = vpack.c.b16 %v348, %v347
  %v490 = vpack.c.b16 %v350, %v349
  %v491 = vpack.c.b16 %v352, %v351
  %v492 = vpack.c.b16 %v354, %v353
  %v493 = vpack.c.b16 %v356, %v355
  %v494 = vpack.c.b16 %v358, %v357
  %v495 = vpack.c.b16 %v360, %v359
  %v496 = vpack.c.b16 %v362, %v361
  %v497 = vpack.c.b16 %v364, %v363
  %v498 = vpack.c.b16 %v366, %v365
  %v499 = vpack.c.b16 %v368, %v367
  %v500 = vpack.c.b16 %v370, %v369
  %v501 = vpack.c.b16 %v372, %v371
  %v502 = vpack.c.b16 %v374, %v373
  %v503 = vpack.c.b16 %v376, %v375
  %v504 = vpack.c.b16 %v378, %v377
  %v505 = vpack.c.b16 %v380, %v379
  %v506 = vpack.c.b16 %v382, %v381
  %v507 = vpack.c.b16 %v384, %v383
  %v508 = vpack.c.b16 %v386, %v385
  %v509 = vpack.c.b16 %v388, %v387
  %v510 = vpack.c.b16 %v390, %v389
  %v511 = vpack.c.b16 %v392, %v391
  %v512 = vpack.c.b16 %v394, %v393
  %v513 = vpack.c.b16 %v396, %v395
  %v514 = vpack.c.b16 %v398, %v397
  %v515 = vpack.c.b16 %v400, %v399
  %v516 = vpack.c.b16 %v402, %v401
  %v517 = vpack.c.b16 %v404, %v403
  %v518 = vpack.c.b16 %v406, %v405
  %v519 = vpack.c.b16 %v408, %v407
  %v520 = vpack.c.b16 %v410, %v409
  %v521 = vpack.c.b16 %v412, %v411
  %v522 = vpack.c.b16 %v414, %v413
  %v523 = vpack.c.b16 %v416, %v415
  %v524 = vpack.c.b16 %v418, %v417
  %v525 = vpack.c.b16 %v420, %v419
  %v526 = vpack.c.b16 %v422, %v421
  %v527 = vpack.c.b16 %v424, %v423
  %v528 = vpack.c.b16 %v426, %v425
  %v529 = vpack.c.b16 %v428, %v427
  %v530 = vpack.c.b16 %v430, %v429
  %v531 = vpack.c.b16 %v432, %v431
  %v532 = vpack.c.b16 %v434, %v433
  %v533 = vpack.c.b16 %v436, %v435
  %v534 = vpack.c.b16 %v438, %v437
  %v535 = vpack.c.b16 %v440, %v439
  %v536 = vpack.c.b16 %v442, %v441
  %v537 = vpack.c.b16 %v444, %v443
  %v538 = vpack.c.b16 %v446, %v445
  %v539 = vpack.c.b16 %v448, %v447
  %v540 = vpack.c.b16 %v450, %v449
  %v541 = vpack.c.b16 %v452, %v451
  %v542 = vpack.c.b16 %v454, %v453
  %v543 = vpack.c.b16 %v456, %v455
  %v544 = vpack.c.b16 %v458, %v457
  %v545 = vpack.c.b16 %v460, %v459
  %v546 = vpack.c.b16 %v462, %v461
  %v547 = vpack.c.b16 %v464, %v463
  %v548 = vpack.c.b16 %v466, %v465
  %v549 = vpack.c.b16 %v468, %v467
  %v550 = vpack.c.b16 %v470, %v469
  %v551 = vpack.c.b16 %v472, %v471
  %v552 = vpack.c.b16 %v474, %v473
  %v553 = vpack.c.b16 %v476, %v475
  %v554 = vpack.c.b16 %v478, %v477
  %v555 = vpack.c.b16 %v480, %v479
  %v556 = vpack.c.b16 %v482, %v481
  %v557 = vpack.c.b16 %v484, %v483
  %v558 = vpack.c.b16 %v486, %v485
  %631 = vmatprep.subr.bf16.mxu0 0
  %632 = vmatpush1.bf16.msra.mxu0 %v487
  %633 = vmatprep.subr.bf16.mxu0 0
  %634 = vmatpush1.bf16.msra.mxu0 %v488
  %635 = vmatprep.subr.bf16.mxu0 0
  %636 = vmatpush1.bf16.msra.mxu0 %v489
  %637 = vmatprep.subr.bf16.mxu0 0
  %638 = vmatpush1.bf16.msra.mxu0 %v490
  %639 = vmatprep.subr.bf16.mxu0 0
  %640 = vmatpush1.bf16.msra.mxu0 %v491
  %641 = vmatprep.subr.bf16.mxu0 0
  %642 = vmatpush1.bf16.msra.mxu0 %v492
  %643 = vmatprep.subr.bf16.mxu0 0
  %644 = vmatpush1.bf16.msra.mxu0 %v493
  %645 = vmatprep.subr.bf16.mxu0 0
  %646 = vmatpush1.bf16.msra.mxu0 %v494
  %647 = vmatprep.subr.bf16.mxu0 0
  %648 = vmatpush1.bf16.msra.mxu0 %v495
  %649 = vmatprep.subr.bf16.mxu0 0
  %650 = vmatpush1.bf16.msra.mxu0 %v496
  %651 = vmatprep.subr.bf16.mxu0 0
  %652 = vmatpush1.bf16.msra.mxu0 %v497
  %653 = vmatprep.subr.bf16.mxu0 0
  %654 = vmatpush1.bf16.msra.mxu0 %v498
  %655 = vmatprep.subr.bf16.mxu0 0
  %656 = vmatpush1.bf16.msra.mxu0 %v499
  %657 = vmatprep.subr.bf16.mxu0 0
  %658 = vmatpush1.bf16.msra.mxu0 %v500
  %659 = vmatprep.subr.bf16.mxu0 0
  %660 = vmatpush1.bf16.msra.mxu0 %v501
  %661 = vmatprep.subr.bf16.mxu0 0
  %662 = vmatpush1.bf16.msra.mxu0 %v502
  %663 = vmatprep.mubr.bf16.mxu0 %v182
  %664 = vmatmul.mubr.bf16.gmra.mrb[0].mxu0 %v181
  %v665 = vpop.f32.mrb[0].mxu0
  %v666 = vadd.f32 0.0, %v665
  %v667 = vpop.f32.mrb[0].mxu0
  %v668 = vpop.f32.mrb[0].mxu0
  %v669 = vpop.f32.mrb[0].mxu0
  %670 = vdwg.mxu0
  %671 = vmatprep.subr.bf16.mxu0 0
  %672 = vmatpush1.bf16.msra.mxu0 %v503
  %673 = vmatprep.subr.bf16.mxu0 0
  %674 = vmatpush1.bf16.msra.mxu0 %v504
  %675 = vmatprep.subr.bf16.mxu0 0
  %676 = vmatpush1.bf16.msra.mxu0 %v505
  %677 = vmatprep.subr.bf16.mxu0 0
  %678 = vmatpush1.bf16.msra.mxu0 %v506
  %679 = vmatprep.subr.bf16.mxu0 0
  %680 = vmatpush1.bf16.msra.mxu0 %v507
  %681 = vmatprep.subr.bf16.mxu0 0
  %682 = vmatpush1.bf16.msra.mxu0 %v508
  %683 = vmatprep.subr.bf16.mxu0 0
  %684 = vmatpush1.bf16.msra.mxu0 %v509
  %685 = vmatprep.subr.bf16.mxu0 0
  %686 = vmatpush1.bf16.msra.mxu0 %v510
  %687 = vmatprep.subr.bf16.mxu0 0
  %688 = vmatpush1.bf16.msra.mxu0 %v511
  %689 = vmatprep.subr.bf16.mxu0 0
  %690 = vmatpush1.bf16.msra.mxu0 %v512
  %691 = vmatprep.subr.bf16.mxu0 0
  %692 = vmatpush1.bf16.msra.mxu0 %v513
  %693 = vmatprep.subr.bf16.mxu0 0
  %694 = vmatpush1.bf16.msra.mxu0 %v514
  %695 = vmatprep.subr.bf16.mxu0 0
  %696 = vmatpush1.bf16.msra.mxu0 %v515
  %697 = vmatprep.subr.bf16.mxu0 0
  %698 = vmatpush1.bf16.msra.mxu0 %v516
  %699 = vmatprep.subr.bf16.mxu0 0
  %700 = vmatpush1.bf16.msra.mxu0 %v517
  %701 = vmatprep.subr.bf16.mxu0 0
  %702 = vmatpush1.bf16.msra.mxu0 %v518
  %703 = vmatprep.mubr.bf16.mxu0 %v184
  %704 = vmatmul.mubr.bf16.gmra.mrb[0].mxu0 %v183
  %v705 = vpop.f32.mrb[0].mxu0
  %v706 = vadd.f32 %v666, %v705
  %v707 = vpop.f32.mrb[0].mxu0
  %v708 = vpop.f32.mrb[0].mxu0
  %v709 = vpop.f32.mrb[0].mxu0
  %710 = vdwg.mxu0
  %711 = vmatprep.subr.bf16.mxu0 0
  %712 = vmatpush1.bf16.msra.mxu0 %v519
  %713 = vmatprep.subr.bf16.mxu0 0
  %714 = vmatpush1.bf16.msra.mxu0 %v520
  %715 = vmatprep.subr.bf16.mxu0 0
  %716 = vmatpush1.bf16.msra.mxu0 %v521
  %717 = vmatprep.subr.bf16.mxu0 0
  %718 = vmatpush1.bf16.msra.mxu0 %v522
  %719 = vmatprep.subr.bf16.mxu0 0
  %720 = vmatpush1.bf16.msra.mxu0 %v523
  %721 = vmatprep.subr.bf16.mxu0 0
  %722 = vmatpush1.bf16.msra.mxu0 %v524
  %723 = vmatprep.subr.bf16.mxu0 0
  %724 = vmatpush1.bf16.msra.mxu0 %v525
  %725 = vmatprep.subr.bf16.mxu0 0
  %726 = vmatpush1.bf16.msra.mxu0 %v526
  %727 = vmatprep.subr.bf16.mxu0 0
  %728 = vmatpush1.bf16.msra.mxu0 %v527
  %729 = vmatprep.subr.bf16.mxu0 0
  %730 = vmatpush1.bf16.msra.mxu0 %v528
  %731 = vmatprep.subr.bf16.mxu0 0
  %732 = vmatpush1.bf16.msra.mxu0 %v529
  %733 = vmatprep.subr.bf16.mxu0 0
  %734 = vmatpush1.bf16.msra.mxu0 %v530
  %735 = vmatprep.subr.bf16.mxu0 0
  %736 = vmatpush1.bf16.msra.mxu0 %v531
  %737 = vmatprep.subr.bf16.mxu0 0
  %738 = vmatpush1.bf16.msra.mxu0 %v532
  %739 = vmatprep.subr.bf16.mxu0 0
  %740 = vmatpush1.bf16.msra.mxu0 %v533
  %741 = vmatprep.subr.bf16.mxu0 0
  %742 = vmatpush1.bf16.msra.mxu0 %v534
  %743 = vmatprep.mubr.bf16.mxu0 %v186
  %744 = vmatmul.mubr.bf16.gmra.mrb[0].mxu0 %v185
  %v745 = vpop.f32.mrb[0].mxu0
  %v746 = vadd.f32 %v706, %v745
  %v747 = vpop.f32.mrb[0].mxu0
  %v748 = vpop.f32.mrb[0].mxu0
  %v749 = vpop.f32.mrb[0].mxu0
  %750 = vdwg.mxu0
  %751 = vmatprep.subr.bf16.mxu0 0
  %752 = vmatpush1.bf16.msra.mxu0 %v535
  %753 = vmatprep.subr.bf16.mxu0 0
  %754 = vmatpush1.bf16.msra.mxu0 %v536
  %755 = vmatprep.subr.bf16.mxu0 0
  %756 = vmatpush1.bf16.msra.mxu0 %v537
  %757 = vmatprep.subr.bf16.mxu0 0
  %758 = vmatpush1.bf16.msra.mxu0 %v538
  %759 = vmatprep.subr.bf16.mxu0 0
  %760 = vmatpush1.bf16.msra.mxu0 %v539
  %761 = vmatprep.subr.bf16.mxu0 0
  %762 = vmatpush1.bf16.msra.mxu0 %v540
  %763 = vmatprep.subr.bf16.mxu0 0
  %764 = vmatpush1.bf16.msra.mxu0 %v541
  %765 = vmatprep.subr.bf16.mxu0 0
  %766 = vmatpush1.bf16.msra.mxu0 %v542
  %767 = vmatprep.subr.bf16.mxu0 0
  %768 = vmatpush1.bf16.msra.mxu0 %v543
  %769 = vmatprep.subr.bf16.mxu0 0
  %770 = vmatpush1.bf16.msra.mxu0 %v544
  %771 = vmatprep.subr.bf16.mxu0 0
  %772 = vmatpush1.bf16.msra.mxu0 %v545
  %773 = vmatprep.subr.bf16.mxu0 0
  %774 = vmatpush1.bf16.msra.mxu0 %v546
  %775 = vmatprep.subr.bf16.mxu0 0
  %776 = vmatpush1.bf16.msra.mxu0 %v547
  %777 = vmatprep.subr.bf16.mxu0 0
  %778 = vmatpush1.bf16.msra.mxu0 %v548
  %779 = vmatprep.subr.bf16.mxu0 0
  %780 = vmatpush1.bf16.msra.mxu0 %v549
  %781 = vmatprep.subr.bf16.mxu0 0
  %782 = vmatpush1.bf16.msra.mxu0 %v550
  %783 = vmatprep.mubr.bf16.mxu0 %v188
  %784 = vmatmul.mubr.bf16.gmra.mrb[0].mxu0 %v187
  %v785 = vpop.f32.mrb[0].mxu0
  %v786 = vadd.f32 %v746, %v785
  %v787 = vpop.f32.mrb[0].mxu0
  %v788 = vpop.f32.mrb[0].mxu0
  %v789 = vpop.f32.mrb[0].mxu0
  %790 = vdwg.mxu0
  %791 = vmatprep.subr.bf16.mxu0 0
  %792 = vmatpush1.bf16.msra.mxu0 %v551
  %793 = vmatprep.subr.bf16.mxu0 0
  %794 = vmatpush1.bf16.msra.mxu0 %v552
  %795 = vmatprep.subr.bf16.mxu0 0
  %796 = vmatpush1.bf16.msra.mxu0 %v553
  %797 = vmatprep.subr.bf16.mxu0 0
  %798 = vmatpush1.bf16.msra.mxu0 %v554
  %799 = vmatprep.subr.bf16.mxu0 0
  %800 = vmatpush1.bf16.msra.mxu0 %v555
  %801 = vmatprep.subr.bf16.mxu0 0
  %802 = vmatpush1.bf16.msra.mxu0 %v556
  %803 = vmatprep.subr.bf16.mxu0 0
  %804 = vmatpush1.bf16.msra.mxu0 %v557
  %805 = vmatprep.subr.bf16.mxu0 0
  %806 = vmatpush1.bf16.msra.mxu0 %v558
  %807 = vmatprep.subr.bf16.mxu0 0
  %808 = vmatpush1.bf16.msra.mxu0 0
  %809 = vmatprep.subr.bf16.mxu0 0
  %810 = vmatpush1.bf16.msra.mxu0 0
  %811 = vmatprep.subr.bf16.mxu0 0
  %812 = vmatpush1.bf16.msra.mxu0 0
  %813 = vmatprep.subr.bf16.mxu0 0
  %814 = vmatpush1.bf16.msra.mxu0 0
  %815 = vmatprep.subr.bf16.mxu0 0
  %816 = vmatpush1.bf16.msra.mxu0 0
  %817 = vmatprep.subr.bf16.mxu0 0
  %818 = vmatpush1.bf16.msra.mxu0 0
  %819 = vmatprep.subr.bf16.mxu0 0
  %820 = vmatpush1.bf16.msra.mxu0 0
  %821 = vmatprep.subr.bf16.mxu0 0
  %822 = vmatpush1.bf16.msra.mxu0 0
  %823 = vmatprep.mubr.bf16.mxu0 0
  %824 = vmatmul.mubr.bf16.gmra.mrb[0].mxu0 %v189
  %v825 = vpop.f32.mrb[0].mxu0
  %v826 = vadd.f32 %v786, %v825
  %v827 = vpop.f32.mrb[0].mxu0
  %v828 = vpop.f32.mrb[0].mxu0
  %v829 = vpop.f32.mrb[0].mxu0
  %830 = vdwg.mxu0
  %v831 = vld [vmem:[%s2] sm:$0x1]
  %v833 = vlaneseq
  %v834 = vshrl.u32 %v833, 7
  %v835 = vsub.s32 0, %v834
  %v836 = vrot.slane %v831, %v835
  %v838 = vmul.f32 %v826, %v836
  %v839 = vld [vmem:[%s3] sm:$0x1]
  %v841 = vlaneseq
  %v842 = vshrl.u32 %v841, 7
  %v843 = vsub.s32 0, %v842
  %v844 = vrot.slane %v839, %v843
  %v846 = vadd.f32 %v838, %v844
  %v847 = vmax.f32 %v846, 0.0
  %vm848 = vcmask 261120
  %849 = vst.msk [vmem:[%s4] sm:$0xff] %vm848, %v847
  // Predicated region
  $region18: #{unet_forward.31} parent=0 // pred_check
    _
  $region19: #{unet_forward.31} parent=0 // pred_check_branch
    %851 = sbr.rel (0) target = $region21
  $region20: #{unet_forward.31} parent=0 // pred_region
    _
  $region21: #{unet_forward.31} parent=0 // pred_fallthru
    _
  // Predicated region
  $region22: #{unet_forward.31} parent=0 // pred_check
    _
  $region23: #{unet_forward.31} parent=0 // pred_check_branch
    %853 = sbr.rel (0) target = $region25
  $region24: #{unet_forward.31} parent=0 // pred_region
    _
  $region25: #{unet_forward.31} parent=0 // pred_fallthru
    _

// kernel: unet_forward.32
$region0: #{unet_forward.32}
  #allocation0 [shape = 'u32[]', space=smem, size = 0x4, offset = 0x4, fixed_abs, tag = 'smem constant byte address 0x4 - core index']
  #allocation1 [shape = 'u32[144,128]{1,0:T(1,128)}', space=vmem, size = 0x12000, scoped, tag = 'internal scratch']
  %s0 = inlined_call_operand.vmem [shape: bf16[8,288], index: 0, kind: input, shape index: {}]
  %s1 = inlined_call_operand.vmem [shape: bf16[288,32], index: 1, kind: input, shape index: {}]
  %s2 = inlined_call_operand.vmem [shape: f32[1,32], index: 2, kind: input, shape index: {}]
  %s3 = inlined_call_operand.vmem [shape: f32[1,32], index: 3, kind: input, shape index: {}]
  %s4 = inlined_call_operand.vmem [shape: f32[8,32], index: 4, kind: output, shape index: {}]
  %s5 = sld [smem:[#allocation0]]
  $region26: #{unet_forward.32} parent=0
    _
  %s7 = ssub.s32 1, %s5
  %s8 = scalar_select 0, %s7, %s5
  // Predicated region
  $region2: #{unet_forward.32} parent=0 // pred_check
    _
  $region3: #{unet_forward.32} parent=0 // pred_check_branch
    %10 = sbr.rel (0) target = $region5
  $region4: #{unet_forward.32} parent=0 // pred_region
    _
  $region5: #{unet_forward.32} parent=0 // pred_fallthru
    _
  // Predicated region
  $region6: #{unet_forward.32} parent=0 // pred_check
    _
  $region7: #{unet_forward.32} parent=0 // pred_check_branch
    %12 = sbr.rel (0) target = $region9
  $region8: #{unet_forward.32} parent=0 // pred_region
    _
  $region9: #{unet_forward.32} parent=0 // pred_fallthru
    _
  // Predicated region
  $region10: #{unet_forward.32} parent=0 // pred_check
    _
  $region11: #{unet_forward.32} parent=0 // pred_check_branch
    %14 = sbr.rel (0) target = $region13
  $region12: #{unet_forward.32} parent=0 // pred_region
    _
  $region13: #{unet_forward.32} parent=0 // pred_fallthru
    _
  // Predicated region
  $region14: #{unet_forward.32} parent=0 // pred_check
    _
  $region15: #{unet_forward.32} parent=0 // pred_check_branch
    %16 = sbr.rel (0) target = $region17
  $region16: #{unet_forward.32} parent=0 // pred_region
    _
  $region17: #{unet_forward.32} parent=0 // pred_fallthru
    _
  %v18 = vld [vmem:[%s0] sm:$0xff]
  %v19 = vld [vmem:[%s0 + $0x8] sm:$0xf]
  %v20 = vld [vmem:[%s1] sm:$0xf]
  %v21 = vld [vmem:[%s1 + $0x4] sm:$0xf]
  %v22 = vld [vmem:[%s1 + $0x8] sm:$0xf]
  %v23 = vld [vmem:[%s1 + $0xc] sm:$0xf]
  %v24 = vld [vmem:[%s1 + $0x10] sm:$0xf]
  %v25 = vld [vmem:[%s1 + $0x14] sm:$0xf]
  %v26 = vld [vmem:[%s1 + $0x18] sm:$0xf]
  %v27 = vld [vmem:[%s1 + $0x1c] sm:$0xf]
  %v28 = vld [vmem:[%s1 + $0x20] sm:$0xf]
  %v29 = vld [vmem:[%s1 + $0x24] sm:$0xf]
  %v30 = vld [vmem:[%s1 + $0x28] sm:$0xf]
  %v31 = vld [vmem:[%s1 + $0x2c] sm:$0xf]
  %v32 = vld [vmem:[%s1 + $0x30] sm:$0xf]
  %v33 = vld [vmem:[%s1 + $0x34] sm:$0xf]
  %v34 = vld [vmem:[%s1 + $0x38] sm:$0xf]
  %v35 = vld [vmem:[%s1 + $0x3c] sm:$0xf]
  %v36 = vld [vmem:[%s1 + $0x40] sm:$0xf]
  %v37 = vld [vmem:[%s1 + $0x44] sm:$0xf]
  %v38 = vld [vmem:[%s1 + $0x48] sm:$0xf]
  %v39 = vld [vmem:[%s1 + $0x4c] sm:$0xf]
  %v40 = vld [vmem:[%s1 + $0x50] sm:$0xf]
  %v41 = vld [vmem:[%s1 + $0x54] sm:$0xf]
  %v42 = vld [vmem:[%s1 + $0x58] sm:$0xf]
  %v43 = vld [vmem:[%s1 + $0x5c] sm:$0xf]
  %v44 = vld [vmem:[%s1 + $0x60] sm:$0xf]
  %v45 = vld [vmem:[%s1 + $0x64] sm:$0xf]
  %v46 = vld [vmem:[%s1 + $0x68] sm:$0xf]
  %v47 = vld [vmem:[%s1 + $0x6c] sm:$0xf]
  %v48 = vld [vmem:[%s1 + $0x70] sm:$0xf]
  %v49 = vld [vmem:[%s1 + $0x74] sm:$0xf]
  %v50 = vld [vmem:[%s1 + $0x78] sm:$0xf]
  %v51 = vld [vmem:[%s1 + $0x7c] sm:$0xf]
  %v52 = vld [vmem:[%s1 + $0x80] sm:$0xf]
  %v53 = vld [vmem:[%s1 + $0x84] sm:$0xf]
  %v54 = vld [vmem:[%s1 + $0x88] sm:$0xf]
  %v55 = vld [vmem:[%s1 + $0x8c] sm:$0xf]
  %v58 = vunpack.c.l.b16 %v18
  %v59 = vunpack.c.h.b16 %v18
  %v60 = vunpack.c.l.b16 %v19
  %v61 = vpack.c.b16 %v58, %v58
  %v62 = vpack.c.b16 %v59, %v59
  %v63 = vpack.c.b16 %v60, %v60
  %v102 = vunpack.c.l.b16 %v20
  %v103 = vunpack.c.l.b16 %v21
  %v104 = vunpack.c.l.b16 %v22
  %v105 = vunpack.c.l.b16 %v23
  %v106 = vunpack.c.l.b16 %v24
  %v107 = vunpack.c.l.b16 %v25
  %v108 = vunpack.c.l.b16 %v26
  %v109 = vunpack.c.l.b16 %v27
  %v110 = vunpack.c.l.b16 %v28
  %v111 = vunpack.c.l.b16 %v29
  %v112 = vunpack.c.l.b16 %v30
  %v113 = vunpack.c.l.b16 %v31
  %v114 = vunpack.c.l.b16 %v32
  %v115 = vunpack.c.l.b16 %v33
  %v116 = vunpack.c.l.b16 %v34
  %v117 = vunpack.c.l.b16 %v35
  %v118 = vunpack.c.l.b16 %v36
  %v119 = vunpack.c.l.b16 %v37
  %v120 = vunpack.c.l.b16 %v38
  %v121 = vunpack.c.l.b16 %v39
  %v122 = vunpack.c.l.b16 %v40
  %v123 = vunpack.c.l.b16 %v41
  %v124 = vunpack.c.l.b16 %v42
  %v125 = vunpack.c.l.b16 %v43
  %v126 = vunpack.c.l.b16 %v44
  %v127 = vunpack.c.l.b16 %v45
  %v128 = vunpack.c.l.b16 %v46
  %v129 = vunpack.c.l.b16 %v47
  %v130 = vunpack.c.l.b16 %v48
  %v131 = vunpack.c.l.b16 %v49
  %v132 = vunpack.c.l.b16 %v50
  %v133 = vunpack.c.l.b16 %v51
  %v134 = vunpack.c.l.b16 %v52
  %v135 = vunpack.c.l.b16 %v53
  %v136 = vunpack.c.l.b16 %v54
  %v137 = vunpack.c.l.b16 %v55
  %v138 = vpack.c.b16 %v103, %v102
  %v139 = vpack.c.b16 %v105, %v104
  %v140 = vpack.c.b16 %v107, %v106
  %v141 = vpack.c.b16 %v109, %v108
  %v142 = vpack.c.b16 %v111, %v110
  %v143 = vpack.c.b16 %v113, %v112
  %v144 = vpack.c.b16 %v115, %v114
  %v145 = vpack.c.b16 %v117, %v116
  %v146 = vpack.c.b16 %v119, %v118
  %v147 = vpack.c.b16 %v121, %v120
  %v148 = vpack.c.b16 %v123, %v122
  %v149 = vpack.c.b16 %v125, %v124
  %v150 = vpack.c.b16 %v127, %v126
  %v151 = vpack.c.b16 %v129, %v128
  %v152 = vpack.c.b16 %v131, %v130
  %v153 = vpack.c.b16 %v133, %v132
  %v154 = vpack.c.b16 %v135, %v134
  %v155 = vpack.c.b16 %v137, %v136
  %vm174 = vcmask 261120
  %v176 = vsel %vm174, %v63, 0
  %178 = vmatprep.subr.bf16.mxu0 0
  %179 = vmatpush1.bf16.msra.mxu0 %v138
  %180 = vmatprep.subr.bf16.mxu0 0
  %181 = vmatpush1.bf16.msra.mxu0 %v139
  %182 = vmatprep.subr.bf16.mxu0 0
  %183 = vmatpush1.bf16.msra.mxu0 %v140
  %184 = vmatprep.subr.bf16.mxu0 0
  %185 = vmatpush1.bf16.msra.mxu0 %v141
  %186 = vmatprep.subr.bf16.mxu0 0
  %187 = vmatpush1.bf16.msra.mxu0 %v142
  %188 = vmatprep.subr.bf16.mxu0 0
  %189 = vmatpush1.bf16.msra.mxu0 %v143
  %190 = vmatprep.subr.bf16.mxu0 0
  %191 = vmatpush1.bf16.msra.mxu0 %v144
  %192 = vmatprep.subr.bf16.mxu0 0
  %193 = vmatpush1.bf16.msra.mxu0 %v145
  %194 = vmatprep.subr.bf16.mxu0 0
  %195 = vmatpush1.bf16.msra.mxu0 %v146
  %196 = vmatprep.subr.bf16.mxu0 0
  %197 = vmatpush1.bf16.msra.mxu0 %v147
  %198 = vmatprep.subr.bf16.mxu0 0
  %199 = vmatpush1.bf16.msra.mxu0 %v148
  %200 = vmatprep.subr.bf16.mxu0 0
  %201 = vmatpush1.bf16.msra.mxu0 %v149
  %202 = vmatprep.subr.bf16.mxu0 0
  %203 = vmatpush1.bf16.msra.mxu0 %v150
  %204 = vmatprep.subr.bf16.mxu0 0
  %205 = vmatpush1.bf16.msra.mxu0 %v151
  %206 = vmatprep.subr.bf16.mxu0 0
  %207 = vmatpush1.bf16.msra.mxu0 %v152
  %208 = vmatprep.subr.bf16.mxu0 0
  %209 = vmatpush1.bf16.msra.mxu0 %v153
  %210 = vmatprep.mubr.bf16.mxu0 %v62
  %211 = vmatmul.mubr.bf16.gmra.mrb[0].mxu0 %v61
  %v212 = vpop.f32.mrb[0].mxu0
  %v213 = vadd.f32 0.0, %v212
  %v214 = vpop.f32.mrb[0].mxu0
  %v215 = vpop.f32.mrb[0].mxu0
  %v216 = vpop.f32.mrb[0].mxu0
  %217 = vdwg.mxu0
  %218 = vmatprep.subr.bf16.mxu0 0
  %219 = vmatpush1.bf16.msra.mxu0 %v154
  %220 = vmatprep.subr.bf16.mxu0 0
  %221 = vmatpush1.bf16.msra.mxu0 %v155
  %222 = vmatprep.subr.bf16.mxu0 0
  %223 = vmatpush1.bf16.msra.mxu0 0
  %224 = vmatprep.subr.bf16.mxu0 0
  %225 = vmatpush1.bf16.msra.mxu0 0
  %226 = vmatprep.subr.bf16.mxu0 0
  %227 = vmatpush1.bf16.msra.mxu0 0
  %228 = vmatprep.subr.bf16.mxu0 0
  %229 = vmatpush1.bf16.msra.mxu0 0
  %230 = vmatprep.subr.bf16.mxu0 0
  %231 = vmatpush1.bf16.msra.mxu0 0
  %232 = vmatprep.subr.bf16.mxu0 0
  %233 = vmatpush1.bf16.msra.mxu0 0
  %234 = vmatprep.subr.bf16.mxu0 0
  %235 = vmatpush1.bf16.msra.mxu0 0
  %236 = vmatprep.subr.bf16.mxu0 0
  %237 = vmatpush1.bf16.msra.mxu0 0
  %238 = vmatprep.subr.bf16.mxu0 0
  %239 = vmatpush1.bf16.msra.mxu0 0
  %240 = vmatprep.subr.bf16.mxu0 0
  %241 = vmatpush1.bf16.msra.mxu0 0
  %242 = vmatprep.subr.bf16.mxu0 0
  %243 = vmatpush1.bf16.msra.mxu0 0
  %244 = vmatprep.subr.bf16.mxu0 0
  %245 = vmatpush1.bf16.msra.mxu0 0
  %246 = vmatprep.subr.bf16.mxu0 0
  %247 = vmatpush1.bf16.msra.mxu0 0
  %248 = vmatprep.subr.bf16.mxu0 0
  %249 = vmatpush1.bf16.msra.mxu0 0
  %250 = vmatprep.mubr.bf16.mxu0 0
  %251 = vmatmul.mubr.bf16.gmra.mrb[0].mxu0 %v176
  %v252 = vpop.f32.mrb[0].mxu0
  %v253 = vadd.f32 %v213, %v252
  %v254 = vpop.f32.mrb[0].mxu0
  %v255 = vpop.f32.mrb[0].mxu0
  %v256 = vpop.f32.mrb[0].mxu0
  %257 = vdwg.mxu0
  %v258 = vld [vmem:[%s2] sm:$0x1]
  %v260 = vlaneseq
  %v261 = vshrl.u32 %v260, 7
  %v262 = vsub.s32 0, %v261
  %v263 = vrot.slane %v258, %v262
  %v265 = vmul.f32 %v253, %v263
  %v266 = vld [vmem:[%s3] sm:$0x1]
  %v268 = vlaneseq
  %v269 = vshrl.u32 %v268, 7
  %v270 = vsub.s32 0, %v269
  %v271 = vrot.slane %v266, %v270
  %v273 = vadd.f32 %v265, %v271
  %v274 = vmax.f32 %v273, 0.0
  %275 = vst.msk [vmem:[%s4] sm:$0xff] %vm174, %v274
  // Predicated region
  $region18: #{unet_forward.32} parent=0 // pred_check
    _
  $region19: #{unet_forward.32} parent=0 // pred_check_branch
    %277 = sbr.rel (0) target = $region21
  $region20: #{unet_forward.32} parent=0 // pred_region
    _
  $region21: #{unet_forward.32} parent=0 // pred_fallthru
    _
  // Predicated region
  $region22: #{unet_forward.32} parent=0 // pred_check
    _
  $region23: #{unet_forward.32} parent=0 // pred_check_branch
    %279 = sbr.rel (0) target = $region25
  $region24: #{unet_forward.32} parent=0 // pred_region
    _
  $region25: #{unet_forward.32} parent=0 // pred_fallthru
    _

// kernel: unet_forward.33
$region0: #{unet_forward.33}
  #allocation0 [shape = 'u32[]', space=smem, size = 0x4, offset = 0x4, fixed_abs, tag = 'smem constant byte address 0x4 - core index']
  #allocation1 [shape = 'u32[144,128]{1,0:T(1,128)}', space=vmem, size = 0x12000, scoped, tag = 'internal scratch']
  %s0 = inlined_call_operand.vmem [shape: bf16[32,288], index: 0, kind: input, shape index: {}]
  %s1 = inlined_call_operand.vmem [shape: bf16[288,32], index: 1, kind: input, shape index: {}]
  %s2 = inlined_call_operand.vmem [shape: f32[1,32], index: 2, kind: input, shape index: {}]
  %s3 = inlined_call_operand.vmem [shape: f32[1,32], index: 3, kind: input, shape index: {}]
  %s4 = inlined_call_operand.vmem [shape: f32[32,32], index: 4, kind: output, shape index: {}]
  %s5 = sld [smem:[#allocation0]]
  $region26: #{unet_forward.33} parent=0
    _
  %s7 = ssub.s32 1, %s5
  %s8 = scalar_select 0, %s7, %s5
  // Predicated region
  $region2: #{unet_forward.33} parent=0 // pred_check
    _
  $region3: #{unet_forward.33} parent=0 // pred_check_branch
    %10 = sbr.rel (0) target = $region5
  $region4: #{unet_forward.33} parent=0 // pred_region
    _
  $region5: #{unet_forward.33} parent=0 // pred_fallthru
    _
  // Predicated region
  $region6: #{unet_forward.33} parent=0 // pred_check
    _
  $region7: #{unet_forward.33} parent=0 // pred_check_branch
    %12 = sbr.rel (0) target = $region9
  $region8: #{unet_forward.33} parent=0 // pred_region
    _
  $region9: #{unet_forward.33} parent=0 // pred_fallthru
    _
  // Predicated region
  $region10: #{unet_forward.33} parent=0 // pred_check
    _
  $region11: #{unet_forward.33} parent=0 // pred_check_branch
    %14 = sbr.rel (0) target = $region13
  $region12: #{unet_forward.33} parent=0 // pred_region
    _
  $region13: #{unet_forward.33} parent=0 // pred_fallthru
    _
  // Predicated region
  $region14: #{unet_forward.33} parent=0 // pred_check
    _
  $region15: #{unet_forward.33} parent=0 // pred_check_branch
    %16 = sbr.rel (0) target = $region17
  $region16: #{unet_forward.33} parent=0 // pred_region
    _
  $region17: #{unet_forward.33} parent=0 // pred_fallthru
    _
  %v18 = vld [vmem:[%s0] sm:$0xff]
  %v19 = vld [vmem:[%s0 + $0x8] sm:$0xf]
  %v20 = vld [vmem:[%s0 + $0xc] sm:$0xff]
  %v21 = vld [vmem:[%s0 + $0x14] sm:$0xf]
  %v22 = vld [vmem:[%s0 + $0x18] sm:$0xff]
  %v23 = vld [vmem:[%s0 + $0x20] sm:$0xf]
  %v24 = vld [vmem:[%s0 + $0x24] sm:$0xff]
  %v25 = vld [vmem:[%s0 + $0x2c] sm:$0xf]
  %v26 = vld [vmem:[%s1] sm:$0xf]
  %v27 = vld [vmem:[%s1 + $0x4] sm:$0xf]
  %v28 = vld [vmem:[%s1 + $0x8] sm:$0xf]
  %v29 = vld [vmem:[%s1 + $0xc] sm:$0xf]
  %v30 = vld [vmem:[%s1 + $0x10] sm:$0xf]
  %v31 = vld [vmem:[%s1 + $0x14] sm:$0xf]
  %v32 = vld [vmem:[%s1 + $0x18] sm:$0xf]
  %v33 = vld [vmem:[%s1 + $0x1c] sm:$0xf]
  %v34 = vld [vmem:[%s1 + $0x20] sm:$0xf]
  %v35 = vld [vmem:[%s1 + $0x24] sm:$0xf]
  %v36 = vld [vmem:[%s1 + $0x28] sm:$0xf]
  %v37 = vld [vmem:[%s1 + $0x2c] sm:$0xf]
  %v38 = vld [vmem:[%s1 + $0x30] sm:$0xf]
  %v39 = vld [vmem:[%s1 + $0x34] sm:$0xf]
  %v40 = vld [vmem:[%s1 + $0x38] sm:$0xf]
  %v41 = vld [vmem:[%s1 + $0x3c] sm:$0xf]
  %v42 = vld [vmem:[%s1 + $0x40] sm:$0xf]
  %v43 = vld [vmem:[%s1 + $0x44] sm:$0xf]
  %v44 = vld [vmem:[%s1 + $0x48] sm:$0xf]
  %v45 = vld [vmem:[%s1 + $0x4c] sm:$0xf]
  %v46 = vld [vmem:[%s1 + $0x50] sm:$0xf]
  %v47 = vld [vmem:[%s1 + $0x54] sm:$0xf]
  %v48 = vld [vmem:[%s1 + $0x58] sm:$0xf]
  %v49 = vld [vmem:[%s1 + $0x5c] sm:$0xf]
  %v50 = vld [vmem:[%s1 + $0x60] sm:$0xf]
  %v51 = vld [vmem:[%s1 + $0x64] sm:$0xf]
  %v52 = vld [vmem:[%s1 + $0x68] sm:$0xf]
  %v53 = vld [vmem:[%s1 + $0x6c] sm:$0xf]
  %v54 = vld [vmem:[%s1 + $0x70] sm:$0xf]
  %v55 = vld [vmem:[%s1 + $0x74] sm:$0xf]
  %v56 = vld [vmem:[%s1 + $0x78] sm:$0xf]
  %v57 = vld [vmem:[%s1 + $0x7c] sm:$0xf]
  %v58 = vld [vmem:[%s1 + $0x80] sm:$0xf]
  %v59 = vld [vmem:[%s1 + $0x84] sm:$0xf]
  %v60 = vld [vmem:[%s1 + $0x88] sm:$0xf]
  %v61 = vld [vmem:[%s1 + $0x8c] sm:$0xf]
  %v70 = vunpack.c.l.b16 %v18
  %v71 = vunpack.c.h.b16 %v18
  %v72 = vunpack.c.l.b16 %v19
  %v73 = vunpack.c.l.b16 %v20
  %v74 = vunpack.c.h.b16 %v20
  %v75 = vunpack.c.l.b16 %v21
  %v76 = vunpack.c.l.b16 %v22
  %v77 = vunpack.c.h.b16 %v22
  %v78 = vunpack.c.l.b16 %v23
  %v79 = vunpack.c.l.b16 %v24
  %v80 = vunpack.c.h.b16 %v24
  %v81 = vunpack.c.l.b16 %v25
  %v82 = vpack.c.b16 %v73, %v70
  %v83 = vpack.c.b16 %v74, %v71
  %v84 = vpack.c.b16 %v75, %v72
  %v85 = vpack.c.b16 %v79, %v76
  %v86 = vpack.c.b16 %v80, %v77
  %v87 = vpack.c.b16 %v81, %v78
  %v128 = vunpack.c.l.b16 %v26
  %v129 = vunpack.c.l.b16 %v27
  %v130 = vunpack.c.l.b16 %v28
  %v131 = vunpack.c.l.b16 %v29
  %v132 = vunpack.c.l.b16 %v30
  %v133 = vunpack.c.l.b16 %v31
  %v134 = vunpack.c.l.b16 %v32
  %v135 = vunpack.c.l.b16 %v33
  %v136 = vunpack.c.l.b16 %v34
  %v137 = vunpack.c.l.b16 %v35
  %v138 = vunpack.c.l.b16 %v36
  %v139 = vunpack.c.l.b16 %v37
  %v140 = vunpack.c.l.b16 %v38
  %v141 = vunpack.c.l.b16 %v39
  %v142 = vunpack.c.l.b16 %v40
  %v143 = vunpack.c.l.b16 %v41
  %v144 = vunpack.c.l.b16 %v42
  %v145 = vunpack.c.l.b16 %v43
  %v146 = vunpack.c.l.b16 %v44
  %v147 = vunpack.c.l.b16 %v45
  %v148 = vunpack.c.l.b16 %v46
  %v149 = vunpack.c.l.b16 %v47
  %v150 = vunpack.c.l.b16 %v48
  %v151 = vunpack.c.l.b16 %v49
  %v152 = vunpack.c.l.b16 %v50
  %v153 = vunpack.c.l.b16 %v51
  %v154 = vunpack.c.l.b16 %v52
  %v155 = vunpack.c.l.b16 %v53
  %v156 = vunpack.c.l.b16 %v54
  %v157 = vunpack.c.l.b16 %v55
  %v158 = vunpack.c.l.b16 %v56
  %v159 = vunpack.c.l.b16 %v57
  %v160 = vunpack.c.l.b16 %v58
  %v161 = vunpack.c.l.b16 %v59
  %v162 = vunpack.c.l.b16 %v60
  %v163 = vunpack.c.l.b16 %v61
  %v164 = vpack.c.b16 %v129, %v128
  %v165 = vpack.c.b16 %v131, %v130
  %v166 = vpack.c.b16 %v133, %v132
  %v167 = vpack.c.b16 %v135, %v134
  %v168 = vpack.c.b16 %v137, %v136
  %v169 = vpack.c.b16 %v139, %v138
  %v170 = vpack.c.b16 %v141, %v140
  %v171 = vpack.c.b16 %v143, %v142
  %v172 = vpack.c.b16 %v145, %v144
  %v173 = vpack.c.b16 %v147, %v146
  %v174 = vpack.c.b16 %v149, %v148
  %v175 = vpack.c.b16 %v151, %v150
  %v176 = vpack.c.b16 %v153, %v152
  %v177 = vpack.c.b16 %v155, %v154
  %v178 = vpack.c.b16 %v157, %v156
  %v179 = vpack.c.b16 %v159, %v158
  %v180 = vpack.c.b16 %v161, %v160
  %v181 = vpack.c.b16 %v163, %v162
  %vm200 = vcmask 261120
  %v202 = vsel %vm200, %v84, 0
  %v205 = vsel %vm200, %v87, 0
  %207 = vmatprep.subr.bf16.mxu0 0
  %208 = vmatpush1.bf16.msra.mxu0 %v164
  %209 = vmatprep.subr.bf16.mxu0 0
  %210 = vmatpush1.bf16.msra.mxu0 %v165
  %211 = vmatprep.subr.bf16.mxu0 0
  %212 = vmatpush1.bf16.msra.mxu0 %v166
  %213 = vmatprep.subr.bf16.mxu0 0
  %214 = vmatpush1.bf16.msra.mxu0 %v167
  %215 = vmatprep.subr.bf16.mxu0 0
  %216 = vmatpush1.bf16.msra.mxu0 %v168
  %217 = vmatprep.subr.bf16.mxu0 0
  %218 = vmatpush1.bf16.msra.mxu0 %v169
  %219 = vmatprep.subr.bf16.mxu0 0
  %220 = vmatpush1.bf16.msra.mxu0 %v170
  %221 = vmatprep.subr.bf16.mxu0 0
  %222 = vmatpush1.bf16.msra.mxu0 %v171
  %223 = vmatprep.subr.bf16.mxu0 0
  %224 = vmatpush1.bf16.msra.mxu0 %v172
  %225 = vmatprep.subr.bf16.mxu0 0
  %226 = vmatpush1.bf16.msra.mxu0 %v173
  %227 = vmatprep.subr.bf16.mxu0 0
  %228 = vmatpush1.bf16.msra.mxu0 %v174
  %229 = vmatprep.subr.bf16.mxu0 0
  %230 = vmatpush1.bf16.msra.mxu0 %v175
  %231 = vmatprep.subr.bf16.mxu0 0
  %232 = vmatpush1.bf16.msra.mxu0 %v176
  %233 = vmatprep.subr.bf16.mxu0 0
  %234 = vmatpush1.bf16.msra.mxu0 %v177
  %235 = vmatprep.subr.bf16.mxu0 0
  %236 = vmatpush1.bf16.msra.mxu0 %v178
  %237 = vmatprep.subr.bf16.mxu0 0
  %238 = vmatpush1.bf16.msra.mxu0 %v179
  %239 = vmatprep.mubr.bf16.mxu0 %v83
  %240 = vmatmul.mubr.bf16.gmra.mrb[0].mxu0 %v82
  %v241 = vpop.f32.mrb[0].mxu0
  %v242 = vadd.f32 0.0, %v241
  %v243 = vpop.f32.mrb[0].mxu0
  %v244 = vpop.f32.mrb[0].mxu0
  %v245 = vadd.f32 0.0, %v244
  %v246 = vpop.f32.mrb[0].mxu0
  %247 = vmatprep.mubr.bf16.mxu0 %v86
  %248 = vmatmul.mubr.bf16.gmra.mrb[0].mxu0 %v85
  %v249 = vpop.f32.mrb[0].mxu0
  %v250 = vadd.f32 0.0, %v249
  %v251 = vpop.f32.mrb[0].mxu0
  %v252 = vpop.f32.mrb[0].mxu0
  %v253 = vadd.f32 0.0, %v252
  %v254 = vpop.f32.mrb[0].mxu0
  %255 = vdwg.mxu0
  %256 = vmatprep.subr.bf16.mxu0 0
  %257 = vmatpush1.bf16.msra.mxu0 %v180
  %258 = vmatprep.subr.bf16.mxu0 0
  %259 = vmatpush1.bf16.msra.mxu0 %v181
  %260 = vmatprep.subr.bf16.mxu0 0
  %261 = vmatpush1.bf16.msra.mxu0 0
  %262 = vmatprep.subr.bf16.mxu0 0
  %263 = vmatpush1.bf16.msra.mxu0 0
  %264 = vmatprep.subr.bf16.mxu0 0
  %265 = vmatpush1.bf16.msra.mxu0 0
  %266 = vmatprep.subr.bf16.mxu0 0
  %267 = vmatpush1.bf16.msra.mxu0 0
  %268 = vmatprep.subr.bf16.mxu0 0
  %269 = vmatpush1.bf16.msra.mxu0 0
  %270 = vmatprep.subr.bf16.mxu0 0
  %271 = vmatpush1.bf16.msra.mxu0 0
  %272 = vmatprep.subr.bf16.mxu0 0
  %273 = vmatpush1.bf16.msra.mxu0 0
  %274 = vmatprep.subr.bf16.mxu0 0
  %275 = vmatpush1.bf16.msra.mxu0 0
  %276 = vmatprep.subr.bf16.mxu0 0
  %277 = vmatpush1.bf16.msra.mxu0 0
  %278 = vmatprep.subr.bf16.mxu0 0
  %279 = vmatpush1.bf16.msra.mxu0 0
  %280 = vmatprep.subr.bf16.mxu0 0
  %281 = vmatpush1.bf16.msra.mxu0 0
  %282 = vmatprep.subr.bf16.mxu0 0
  %283 = vmatpush1.bf16.msra.mxu0 0
  %284 = vmatprep.subr.bf16.mxu0 0
  %285 = vmatpush1.bf16.msra.mxu0 0
  %286 = vmatprep.subr.bf16.mxu0 0
  %287 = vmatpush1.bf16.msra.mxu0 0
  %288 = vmatprep.mubr.bf16.mxu0 0
  %289 = vmatmul.mubr.bf16.gmra.mrb[0].mxu0 %v202
  %v290 = vpop.f32.mrb[0].mxu0
  %v291 = vadd.f32 %v242, %v290
  %v292 = vpop.f32.mrb[0].mxu0
  %v293 = vpop.f32.mrb[0].mxu0
  %v294 = vadd.f32 %v245, %v293
  %v295 = vpop.f32.mrb[0].mxu0
  %296 = vmatprep.mubr.bf16.mxu0 0
  %297 = vmatmul.mubr.bf16.gmra.mrb[0].mxu0 %v205
  %v298 = vpop.f32.mrb[0].mxu0
  %v299 = vadd.f32 %v250, %v298
  %v300 = vpop.f32.mrb[0].mxu0
  %v301 = vpop.f32.mrb[0].mxu0
  %v302 = vadd.f32 %v253, %v301
  %v303 = vpop.f32.mrb[0].mxu0
  %304 = vdwg.mxu0
  %v305 = vld [vmem:[%s2] sm:$0x1]
  %v307 = vlaneseq
  %v308 = vshrl.u32 %v307, 7
  %v309 = vsub.s32 0, %v308
  %v310 = vrot.slane %v305, %v309
  %v312 = vmul.f32 %v291, %v310
  %v313 = vmul.f32 %v294, %v310
  %v314 = vmul.f32 %v299, %v310
  %v315 = vmul.f32 %v302, %v310
  %v316 = vld [vmem:[%s3] sm:$0x1]
  %v318 = vlaneseq
  %v319 = vshrl.u32 %v318, 7
  %v320 = vsub.s32 0, %v319
  %v321 = vrot.slane %v316, %v320
  %v323 = vadd.f32 %v312, %v321
  %v324 = vadd.f32 %v313, %v321
  %v325 = vadd.f32 %v314, %v321
  %v326 = vadd.f32 %v315, %v321
  %327 = vst.msk [vmem:[%s4] sm:$0xff] %vm200, %v323
  %328 = vst.msk [vmem:[%s4 + $0x8] sm:$0xff] %vm200, %v324
  %329 = vst.msk [vmem:[%s4 + $0x10] sm:$0xff] %vm200, %v325
  %330 = vst.msk [vmem:[%s4 + $0x18] sm:$0xff] %vm200, %v326
  // Predicated region
  $region18: #{unet_forward.33} parent=0 // pred_check
    _
  $region19: #{unet_forward.33} parent=0 // pred_check_branch
    %332 = sbr.rel (0) target = $region21
  $region20: #{unet_forward.33} parent=0 // pred_region
    _
  $region21: #{unet_forward.33} parent=0 // pred_fallthru
    _
  // Predicated region
  $region22: #{unet_forward.33} parent=0 // pred_check
    _
  $region23: #{unet_forward.33} parent=0 // pred_check_branch
    %334 = sbr.rel (0) target = $region25
  $region24: #{unet_forward.33} parent=0 // pred_region
    _
  $region25: #{unet_forward.33} parent=0 // pred_fallthru
    _

// kernel: unet_forward.34
$region0: #{unet_forward.34}
  #allocation0 [shape = 'u32[]', space=smem, size = 0x4, offset = 0x4, fixed_abs, tag = 'smem constant byte address 0x4 - core index']
  #allocation1 [shape = 'u32[144,128]{1,0:T(1,128)}', space=vmem, size = 0x12000, scoped, tag = 'internal scratch']
  %s0 = inlined_call_operand.vmem [shape: bf16[32,576], index: 0, kind: input, shape index: {}]
  %s1 = inlined_call_operand.vmem [shape: bf16[576,16], index: 1, kind: input, shape index: {}]
  %s2 = inlined_call_operand.vmem [shape: f32[1,16], index: 2, kind: input, shape index: {}]
  %s3 = inlined_call_operand.vmem [shape: f32[1,16], index: 3, kind: input, shape index: {}]
  %s4 = inlined_call_operand.vmem [shape: f32[32,16], index: 4, kind: output, shape index: {}]
  %s5 = sld [smem:[#allocation0]]
  $region26: #{unet_forward.34} parent=0
    _
  %s7 = ssub.s32 1, %s5
  %s8 = scalar_select 0, %s7, %s5
  // Predicated region
  $region2: #{unet_forward.34} parent=0 // pred_check
    _
  $region3: #{unet_forward.34} parent=0 // pred_check_branch
    %10 = sbr.rel (0) target = $region5
  $region4: #{unet_forward.34} parent=0 // pred_region
    _
  $region5: #{unet_forward.34} parent=0 // pred_fallthru
    _
  // Predicated region
  $region6: #{unet_forward.34} parent=0 // pred_check
    _
  $region7: #{unet_forward.34} parent=0 // pred_check_branch
    %12 = sbr.rel (0) target = $region9
  $region8: #{unet_forward.34} parent=0 // pred_region
    _
  $region9: #{unet_forward.34} parent=0 // pred_fallthru
    _
  // Predicated region
  $region10: #{unet_forward.34} parent=0 // pred_check
    _
  $region11: #{unet_forward.34} parent=0 // pred_check_branch
    %14 = sbr.rel (0) target = $region13
  $region12: #{unet_forward.34} parent=0 // pred_region
    _
  $region13: #{unet_forward.34} parent=0 // pred_fallthru
    _
  // Predicated region
  $region14: #{unet_forward.34} parent=0 // pred_check
    _
  $region15: #{unet_forward.34} parent=0 // pred_check_branch
    %16 = sbr.rel (0) target = $region17
  $region16: #{unet_forward.34} parent=0 // pred_region
    _
  $region17: #{unet_forward.34} parent=0 // pred_fallthru
    _
  %v18 = vld [vmem:[%s0] sm:$0xff]
  %v19 = vld [vmem:[%s0 + $0x8] sm:$0xff]
  %v20 = vld [vmem:[%s0 + $0x10] sm:$0xf]
  %v21 = vld [vmem:[%s0 + $0x14] sm:$0xff]
  %v22 = vld [vmem:[%s0 + $0x1c] sm:$0xff]
  %v23 = vld [vmem:[%s0 + $0x24] sm:$0xf]
  %v24 = vld [vmem:[%s0 + $0x28] sm:$0xff]
  %v25 = vld [vmem:[%s0 + $0x30] sm:$0xff]
  %v26 = vld [vmem:[%s0 + $0x38] sm:$0xf]
  %v27 = vld [vmem:[%s0 + $0x3c] sm:$0xff]
  %v28 = vld [vmem:[%s0 + $0x44] sm:$0xff]
  %v29 = vld [vmem:[%s0 + $0x4c] sm:$0xf]
  %v30 = vld [vmem:[%s1] sm:$0xf]
  %v31 = vld [vmem:[%s1 + $0x4] sm:$0xf]
  %v32 = vld [vmem:[%s1 + $0x8] sm:$0xf]
  %v33 = vld [vmem:[%s1 + $0xc] sm:$0xf]
  %v34 = vld [vmem:[%s1 + $0x10] sm:$0xf]
  %v35 = vld [vmem:[%s1 + $0x14] sm:$0xf]
  %v36 = vld [vmem:[%s1 + $0x18] sm:$0xf]
  %v37 = vld [vmem:[%s1 + $0x1c] sm:$0xf]
  %v38 = vld [vmem:[%s1 + $0x20] sm:$0xf]
  %v39 = vld [vmem:[%s1 + $0x24] sm:$0xf]
  %v40 = vld [vmem:[%s1 + $0x28] sm:$0xf]
  %v41 = vld [vmem:[%s1 + $0x2c] sm:$0xf]
  %v42 = vld [vmem:[%s1 + $0x30] sm:$0xf]
  %v43 = vld [vmem:[%s1 + $0x34] sm:$0xf]
  %v44 = vld [vmem:[%s1 + $0x38] sm:$0xf]
  %v45 = vld [vmem:[%s1 + $0x3c] sm:$0xf]
  %v46 = vld [vmem:[%s1 + $0x40] sm:$0xf]
  %v47 = vld [vmem:[%s1 + $0x44] sm:$0xf]
  %v48 = vld [vmem:[%s1 + $0x48] sm:$0xf]
  %v49 = vld [vmem:[%s1 + $0x4c] sm:$0xf]
  %v50 = vld [vmem:[%s1 + $0x50] sm:$0xf]
  %v51 = vld [vmem:[%s1 + $0x54] sm:$0xf]
  %v52 = vld [vmem:[%s1 + $0x58] sm:$0xf]
  %v53 = vld [vmem:[%s1 + $0x5c] sm:$0xf]
  %v54 = vld [vmem:[%s1 + $0x60] sm:$0xf]
  %v55 = vld [vmem:[%s1 + $0x64] sm:$0xf]
  %v56 = vld [vmem:[%s1 + $0x68] sm:$0xf]
  %v57 = vld [vmem:[%s1 + $0x6c] sm:$0xf]
  %v58 = vld [vmem:[%s1 + $0x70] sm:$0xf]
  %v59 = vld [vmem:[%s1 + $0x74] sm:$0xf]
  %v60 = vld [vmem:[%s1 + $0x78] sm:$0xf]
  %v61 = vld [vmem:[%s1 + $0x7c] sm:$0xf]
  %v62 = vld [vmem:[%s1 + $0x80] sm:$0xf]
  %v63 = vld [vmem:[%s1 + $0x84] sm:$0xf]
  %v64 = vld [vmem:[%s1 + $0x88] sm:$0xf]
  %v65 = vld [vmem:[%s1 + $0x8c] sm:$0xf]
  %v66 = vld [vmem:[%s1 + $0x90] sm:$0xf]
  %v67 = vld [vmem:[%s1 + $0x94] sm:$0xf]
  %v68 = vld [vmem:[%s1 + $0x98] sm:$0xf]
  %v69 = vld [vmem:[%s1 + $0x9c] sm:$0xf]
  %v70 = vld [vmem:[%s1 + $0xa0] sm:$0xf]
  %v71 = vld [vmem:[%s1 + $0xa4] sm:$0xf]
  %v72 = vld [vmem:[%s1 + $0xa8] sm:$0xf]
  %v73 = vld [vmem:[%s1 + $0xac] sm:$0xf]
  %v74 = vld [vmem:[%s1 + $0xb0] sm:$0xf]
  %v75 = vld [vmem:[%s1 + $0xb4] sm:$0xf]
  %v76 = vld [vmem:[%s1 + $0xb8] sm:$0xf]
  %v77 = vld [vmem:[%s1 + $0xbc] sm:$0xf]
  %v78 = vld [vmem:[%s1 + $0xc0] sm:$0xf]
  %v79 = vld [vmem:[%s1 + $0xc4] sm:$0xf]
  %v80 = vld [vmem:[%s1 + $0xc8] sm:$0xf]
  %v81 = vld [vmem:[%s1 + $0xcc] sm:$0xf]
  %v82 = vld [vmem:[%s1 + $0xd0] sm:$0xf]
  %v83 = vld [vmem:[%s1 + $0xd4] sm:$0xf]
  %v84 = vld [vmem:[%s1 + $0xd8] sm:$0xf]
  %v85 = vld [vmem:[%s1 + $0xdc] sm:$0xf]
  %v86 = vld [vmem:[%s1 + $0xe0] sm:$0xf]
  %v87 = vld [vmem:[%s1 + $0xe4] sm:$0xf]
  %v88 = vld [vmem:[%s1 + $0xe8] sm:$0xf]
  %v89 = vld [vmem:[%s1 + $0xec] sm:$0xf]
  %v90 = vld [vmem:[%s1 + $0xf0] sm:$0xf]
  %v91 = vld [vmem:[%s1 + $0xf4] sm:$0xf]
  %v92 = vld [vmem:[%s1 + $0xf8] sm:$0xf]
  %v93 = vld [vmem:[%s1 + $0xfc] sm:$0xf]
  %v94 = vld [vmem:[%s1 + $0x100] sm:$0xf]
  %v95 = vld [vmem:[%s1 + $0x104] sm:$0xf]
  %v96 = vld [vmem:[%s1 + $0x108] sm:$0xf]
  %v97 = vld [vmem:[%s1 + $0x10c] sm:$0xf]
  %v98 = vld [vmem:[%s1 + $0x110] sm:$0xf]
  %v99 = vld [vmem:[%s1 + $0x114] sm:$0xf]
  %v100 = vld [vmem:[%s1 + $0x118] sm:$0xf]
  %v101 = vld [vmem:[%s1 + $0x11c] sm:$0xf]
  %v114 = vunpack.c.l.b16 %v18
  %v115 = vunpack.c.h.b16 %v18
  %v116 = vunpack.c.l.b16 %v19
  %v117 = vunpack.c.h.b16 %v19
  %v118 = vunpack.c.l.b16 %v20
  %v119 = vunpack.c.l.b16 %v21
  %v120 = vunpack.c.h.b16 %v21
  %v121 = vunpack.c.l.b16 %v22
  %v122 = vunpack.c.h.b16 %v22
  %v123 = vunpack.c.l.b16 %v23
  %v124 = vunpack.c.l.b16 %v24
  %v125 = vunpack.c.h.b16 %v24
  %v126 = vunpack.c.l.b16 %v25
  %v127 = vunpack.c.h.b16 %v25
  %v128 = vunpack.c.l.b16 %v26
  %v129 = vunpack.c.l.b16 %v27
  %v130 = vunpack.c.h.b16 %v27
  %v131 = vunpack.c.l.b16 %v28
  %v132 = vunpack.c.h.b16 %v28
  %v133 = vunpack.c.l.b16 %v29
  %v134 = vpack.c.b16 %v119, %v114
  %v135 = vpack.c.b16 %v120, %v115
  %v136 = vpack.c.b16 %v121, %v116
  %v137 = vpack.c.b16 %v122, %v117
  %v138 = vpack.c.b16 %v123, %v118
  %v139 = vpack.c.b16 %v129, %v124
  %v140 = vpack.c.b16 %v130, %v125
  %v141 = vpack.c.b16 %v131, %v126
  %v142 = vpack.c.b16 %v132, %v127
  %v143 = vpack.c.b16 %v133, %v128
  %v224 = vunpack.c.l.b16 %v30
  %v225 = vunpack.c.l.b16 %v31
  %v226 = vunpack.c.l.b16 %v32
  %v227 = vunpack.c.l.b16 %v33
  %v228 = vunpack.c.l.b16 %v34
  %v229 = vunpack.c.l.b16 %v35
  %v230 = vunpack.c.l.b16 %v36
  %v231 = vunpack.c.l.b16 %v37
  %v232 = vunpack.c.l.b16 %v38
  %v233 = vunpack.c.l.b16 %v39
  %v234 = vunpack.c.l.b16 %v40
  %v235 = vunpack.c.l.b16 %v41
  %v236 = vunpack.c.l.b16 %v42
  %v237 = vunpack.c.l.b16 %v43
  %v238 = vunpack.c.l.b16 %v44
  %v239 = vunpack.c.l.b16 %v45
  %v240 = vunpack.c.l.b16 %v46
  %v241 = vunpack.c.l.b16 %v47
  %v242 = vunpack.c.l.b16 %v48
  %v243 = vunpack.c.l.b16 %v49
  %v244 = vunpack.c.l.b16 %v50
  %v245 = vunpack.c.l.b16 %v51
  %v246 = vunpack.c.l.b16 %v52
  %v247 = vunpack.c.l.b16 %v53
  %v248 = vunpack.c.l.b16 %v54
  %v249 = vunpack.c.l.b16 %v55
  %v250 = vunpack.c.l.b16 %v56
  %v251 = vunpack.c.l.b16 %v57
  %v252 = vunpack.c.l.b16 %v58
  %v253 = vunpack.c.l.b16 %v59
  %v254 = vunpack.c.l.b16 %v60
  %v255 = vunpack.c.l.b16 %v61
  %v256 = vunpack.c.l.b16 %v62
  %v257 = vunpack.c.l.b16 %v63
  %v258 = vunpack.c.l.b16 %v64
  %v259 = vunpack.c.l.b16 %v65
  %v260 = vunpack.c.l.b16 %v66
  %v261 = vunpack.c.l.b16 %v67
  %v262 = vunpack.c.l.b16 %v68
  %v263 = vunpack.c.l.b16 %v69
  %v264 = vunpack.c.l.b16 %v70
  %v265 = vunpack.c.l.b16 %v71
  %v266 = vunpack.c.l.b16 %v72
  %v267 = vunpack.c.l.b16 %v73
  %v268 = vunpack.c.l.b16 %v74
  %v269 = vunpack.c.l.b16 %v75
  %v270 = vunpack.c.l.b16 %v76
  %v271 = vunpack.c.l.b16 %v77
  %v272 = vunpack.c.l.b16 %v78
  %v273 = vunpack.c.l.b16 %v79
  %v274 = vunpack.c.l.b16 %v80
  %v275 = vunpack.c.l.b16 %v81
  %v276 = vunpack.c.l.b16 %v82
  %v277 = vunpack.c.l.b16 %v83
  %v278 = vunpack.c.l.b16 %v84
  %v279 = vunpack.c.l.b16 %v85
  %v280 = vunpack.c.l.b16 %v86
  %v281 = vunpack.c.l.b16 %v87
  %v282 = vunpack.c.l.b16 %v88
  %v283 = vunpack.c.l.b16 %v89
  %v284 = vunpack.c.l.b16 %v90
  %v285 = vunpack.c.l.b16 %v91
  %v286 = vunpack.c.l.b16 %v92
  %v287 = vunpack.c.l.b16 %v93
  %v288 = vunpack.c.l.b16 %v94
  %v289 = vunpack.c.l.b16 %v95
  %v290 = vunpack.c.l.b16 %v96
  %v291 = vunpack.c.l.b16 %v97
  %v292 = vunpack.c.l.b16 %v98
  %v293 = vunpack.c.l.b16 %v99
  %v294 = vunpack.c.l.b16 %v100
  %v295 = vunpack.c.l.b16 %v101
  %v296 = vpack.c.b16 %v225, %v224
  %v297 = vpack.c.b16 %v227, %v226
  %v298 = vpack.c.b16 %v229, %v228
  %v299 = vpack.c.b16 %v231, %v230
  %v300 = vpack.c.b16 %v233, %v232
  %v301 = vpack.c.b16 %v235, %v234
  %v302 = vpack.c.b16 %v237, %v236
  %v303 = vpack.c.b16 %v239, %v238
  %v304 = vpack.c.b16 %v241, %v240
  %v305 = vpack.c.b16 %v243, %v242
  %v306 = vpack.c.b16 %v245, %v244
  %v307 = vpack.c.b16 %v247, %v246
  %v308 = vpack.c.b16 %v249, %v248
  %v309 = vpack.c.b16 %v251, %v250
  %v310 = vpack.c.b16 %v253, %v252
  %v311 = vpack.c.b16 %v255, %v254
  %v312 = vpack.c.b16 %v257, %v256
  %v313 = vpack.c.b16 %v259, %v258
  %v314 = vpack.c.b16 %v261, %v260
  %v315 = vpack.c.b16 %v263, %v262
  %v316 = vpack.c.b16 %v265, %v264
  %v317 = vpack.c.b16 %v267, %v266
  %v318 = vpack.c.b16 %v269, %v268
  %v319 = vpack.c.b16 %v271, %v270
  %v320 = vpack.c.b16 %v273, %v272
  %v321 = vpack.c.b16 %v275, %v274
  %v322 = vpack.c.b16 %v277, %v276
  %v323 = vpack.c.b16 %v279, %v278
  %v324 = vpack.c.b16 %v281, %v280
  %v325 = vpack.c.b16 %v283, %v282
  %v326 = vpack.c.b16 %v285, %v284
  %v327 = vpack.c.b16 %v287, %v286
  %v328 = vpack.c.b16 %v289, %v288
  %v329 = vpack.c.b16 %v291, %v290
  %v330 = vpack.c.b16 %v293, %v292
  %v331 = vpack.c.b16 %v295, %v294
  %vm368 = vcmask 523264
  %v370 = vsel %vm368, %v138, 0
  %v373 = vsel %vm368, %v143, 0
  %375 = vmatprep.subr.bf16.mxu0 0
  %376 = vmatpush1.bf16.msra.mxu0 %v296
  %377 = vmatprep.subr.bf16.mxu0 0
  %378 = vmatpush1.bf16.msra.mxu0 %v297
  %379 = vmatprep.subr.bf16.mxu0 0
  %380 = vmatpush1.bf16.msra.mxu0 %v298
  %381 = vmatprep.subr.bf16.mxu0 0
  %382 = vmatpush1.bf16.msra.mxu0 %v299
  %383 = vmatprep.subr.bf16.mxu0 0
  %384 = vmatpush1.bf16.msra.mxu0 %v300
  %385 = vmatprep.subr.bf16.mxu0 0
  %386 = vmatpush1.bf16.msra.mxu0 %v301
  %387 = vmatprep.subr.bf16.mxu0 0
  %388 = vmatpush1.bf16.msra.mxu0 %v302
  %389 = vmatprep.subr.bf16.mxu0 0
  %390 = vmatpush1.bf16.msra.mxu0 %v303
  %391 = vmatprep.subr.bf16.mxu0 0
  %392 = vmatpush1.bf16.msra.mxu0 %v304
  %393 = vmatprep.subr.bf16.mxu0 0
  %394 = vmatpush1.bf16.msra.mxu0 %v305
  %395 = vmatprep.subr.bf16.mxu0 0
  %396 = vmatpush1.bf16.msra.mxu0 %v306
  %397 = vmatprep.subr.bf16.mxu0 0
  %398 = vmatpush1.bf16.msra.mxu0 %v307
  %399 = vmatprep.subr.bf16.mxu0 0
  %400 = vmatpush1.bf16.msra.mxu0 %v308
  %401 = vmatprep.subr.bf16.mxu0 0
  %402 = vmatpush1.bf16.msra.mxu0 %v309
  %403 = vmatprep.subr.bf16.mxu0 0
  %404 = vmatpush1.bf16.msra.mxu0 %v310
  %405 = vmatprep.subr.bf16.mxu0 0
  %406 = vmatpush1.bf16.msra.mxu0 %v311
  %407 = vmatprep.mubr.bf16.mxu0 %v135
  %408 = vmatmul.mubr.bf16.gmra.mrb[0].mxu0 %v134
  %v409 = vpop.f32.mrb[0].mxu0
  %v410 = vadd.f32 0.0, %v409
  %v411 = vpop.f32.mrb[0].mxu0
  %v412 = vpop.f32.mrb[0].mxu0
  %v413 = vadd.f32 0.0, %v412
  %v414 = vpop.f32.mrb[0].mxu0
  %415 = vmatprep.mubr.bf16.mxu0 %v140
  %416 = vmatmul.mubr.bf16.gmra.mrb[0].mxu0 %v139
  %v417 = vpop.f32.mrb[0].mxu0
  %v418 = vadd.f32 0.0, %v417
  %v419 = vpop.f32.mrb[0].mxu0
  %v420 = vpop.f32.mrb[0].mxu0
  %v421 = vadd.f32 0.0, %v420
  %v422 = vpop.f32.mrb[0].mxu0
  %423 = vdwg.mxu0
  %424 = vmatprep.subr.bf16.mxu0 0
  %425 = vmatpush1.bf16.msra.mxu0 %v312
  %426 = vmatprep.subr.bf16.mxu0 0
  %427 = vmatpush1.bf16.msra.mxu0 %v313
  %428 = vmatprep.subr.bf16.mxu0 0
  %429 = vmatpush1.bf16.msra.mxu0 %v314
  %430 = vmatprep.subr.bf16.mxu0 0
  %431 = vmatpush1.bf16.msra.mxu0 %v315
  %432 = vmatprep.subr.bf16.mxu0 0
  %433 = vmatpush1.bf16.msra.mxu0 %v316
  %434 = vmatprep.subr.bf16.mxu0 0
  %435 = vmatpush1.bf16.msra.mxu0 %v317
  %436 = vmatprep.subr.bf16.mxu0 0
  %437 = vmatpush1.bf16.msra.mxu0 %v318
  %438 = vmatprep.subr.bf16.mxu0 0
  %439 = vmatpush1.bf16.msra.mxu0 %v319
  %440 = vmatprep.subr.bf16.mxu0 0
  %441 = vmatpush1.bf16.msra.mxu0 %v320
  %442 = vmatprep.subr.bf16.mxu0 0
  %443 = vmatpush1.bf16.msra.mxu0 %v321
  %444 = vmatprep.subr.bf16.mxu0 0
  %445 = vmatpush1.bf16.msra.mxu0 %v322
  %446 = vmatprep.subr.bf16.mxu0 0
  %447 = vmatpush1.bf16.msra.mxu0 %v323
  %448 = vmatprep.subr.bf16.mxu0 0
  %449 = vmatpush1.bf16.msra.mxu0 %v324
  %450 = vmatprep.subr.bf16.mxu0 0
  %451 = vmatpush1.bf16.msra.mxu0 %v325
  %452 = vmatprep.subr.bf16.mxu0 0
  %453 = vmatpush1.bf16.msra.mxu0 %v326
  %454 = vmatprep.subr.bf16.mxu0 0
  %455 = vmatpush1.bf16.msra.mxu0 %v327
  %456 = vmatprep.mubr.bf16.mxu0 %v137
  %457 = vmatmul.mubr.bf16.gmra.mrb[0].mxu0 %v136
  %v458 = vpop.f32.mrb[0].mxu0
  %v459 = vadd.f32 %v410, %v458
  %v460 = vpop.f32.mrb[0].mxu0
  %v461 = vpop.f32.mrb[0].mxu0
  %v462 = vadd.f32 %v413, %v461
  %v463 = vpop.f32.mrb[0].mxu0
  %464 = vmatprep.mubr.bf16.mxu0 %v142
  %465 = vmatmul.mubr.bf16.gmra.mrb[0].mxu0 %v141
  %v466 = vpop.f32.mrb[0].mxu0
  %v467 = vadd.f32 %v418, %v466
  %v468 = vpop.f32.mrb[0].mxu0
  %v469 = vpop.f32.mrb[0].mxu0
  %v470 = vadd.f32 %v421, %v469
  %v471 = vpop.f32.mrb[0].mxu0
  %472 = vdwg.mxu0
  %473 = vmatprep.subr.bf16.mxu0 0
  %474 = vmatpush1.bf16.msra.mxu0 %v328
  %475 = vmatprep.subr.bf16.mxu0 0
  %476 = vmatpush1.bf16.msra.mxu0 %v329
  %477 = vmatprep.subr.bf16.mxu0 0
  %478 = vmatpush1.bf16.msra.mxu0 %v330
  %479 = vmatprep.subr.bf16.mxu0 0
  %480 = vmatpush1.bf16.msra.mxu0 %v331
  %481 = vmatprep.subr.bf16.mxu0 0
  %482 = vmatpush1.bf16.msra.mxu0 0
  %483 = vmatprep.subr.bf16.mxu0 0
  %484 = vmatpush1.bf16.msra.mxu0 0
  %485 = vmatprep.subr.bf16.mxu0 0
  %486 = vmatpush1.bf16.msra.mxu0 0
  %487 = vmatprep.subr.bf16.mxu0 0
  %488 = vmatpush1.bf16.msra.mxu0 0
  %489 = vmatprep.subr.bf16.mxu0 0
  %490 = vmatpush1.bf16.msra.mxu0 0
  %491 = vmatprep.subr.bf16.mxu0 0
  %492 = vmatpush1.bf16.msra.mxu0 0
  %493 = vmatprep.subr.bf16.mxu0 0
  %494 = vmatpush1.bf16.msra.mxu0 0
  %495 = vmatprep.subr.bf16.mxu0 0
  %496 = vmatpush1.bf16.msra.mxu0 0
  %497 = vmatprep.subr.bf16.mxu0 0
  %498 = vmatpush1.bf16.msra.mxu0 0
  %499 = vmatprep.subr.bf16.mxu0 0
  %500 = vmatpush1.bf16.msra.mxu0 0
  %501 = vmatprep.subr.bf16.mxu0 0
  %502 = vmatpush1.bf16.msra.mxu0 0
  %503 = vmatprep.subr.bf16.mxu0 0
  %504 = vmatpush1.bf16.msra.mxu0 0
  %505 = vmatprep.mubr.bf16.mxu0 0
  %506 = vmatmul.mubr.bf16.gmra.mrb[0].mxu0 %v370
  %v507 = vpop.f32.mrb[0].mxu0
  %v508 = vadd.f32 %v459, %v507
  %v509 = vpop.f32.mrb[0].mxu0
  %v510 = vpop.f32.mrb[0].mxu0
  %v511 = vadd.f32 %v462, %v510
  %v512 = vpop.f32.mrb[0].mxu0
  %513 = vmatprep.mubr.bf16.mxu0 0
  %514 = vmatmul.mubr.bf16.gmra.mrb[0].mxu0 %v373
  %v515 = vpop.f32.mrb[0].mxu0
  %v516 = vadd.f32 %v467, %v515
  %v517 = vpop.f32.mrb[0].mxu0
  %v518 = vpop.f32.mrb[0].mxu0
  %v519 = vadd.f32 %v470, %v518
  %v520 = vpop.f32.mrb[0].mxu0
  %521 = vdwg.mxu0
  %v522 = vld [vmem:[%s2] sm:$0x1]
  %v524 = vlaneseq
  %v525 = vshrl.u32 %v524, 7
  %v526 = vsub.s32 0, %v525
  %v527 = vrot.slane %v522, %v526
  %v529 = vmul.f32 %v508, %v527
  %v530 = vmul.f32 %v511, %v527
  %v531 = vmul.f32 %v516, %v527
  %v532 = vmul.f32 %v519, %v527
  %v533 = vld [vmem:[%s3] sm:$0x1]
  %v535 = vlaneseq
  %v536 = vshrl.u32 %v535, 7
  %v537 = vsub.s32 0, %v536
  %v538 = vrot.slane %v533, %v537
  %v540 = vadd.f32 %v529, %v538
  %v541 = vadd.f32 %v530, %v538
  %v542 = vadd.f32 %v531, %v538
  %v543 = vadd.f32 %v532, %v538
  %v544 = vmax.f32 %v540, 0.0
  %v545 = vmax.f32 %v541, 0.0
  %v546 = vmax.f32 %v542, 0.0
  %v547 = vmax.f32 %v543, 0.0
  %vm548 = vcmask 130048
  %549 = vst.msk [vmem:[%s4] sm:$0xff] %vm548, %v544
  %550 = vst.msk [vmem:[%s4 + $0x8] sm:$0xff] %vm548, %v545
  %551 = vst.msk [vmem:[%s4 + $0x10] sm:$0xff] %vm548, %v546
  %552 = vst.msk [vmem:[%s4 + $0x18] sm:$0xff] %vm548, %v547
  // Predicated region
  $region18: #{unet_forward.34} parent=0 // pred_check
    _
  $region19: #{unet_forward.34} parent=0 // pred_check_branch
    %554 = sbr.rel (0) target = $region21
  $region20: #{unet_forward.34} parent=0 // pred_region
    _
  $region21: #{unet_forward.34} parent=0 // pred_fallthru
    _
  // Predicated region
  $region22: #{unet_forward.34} parent=0 // pred_check
    _
  $region23: #{unet_forward.34} parent=0 // pred_check_branch
    %556 = sbr.rel (0) target = $region25
  $region24: #{unet_forward.34} parent=0 // pred_region
    _
  $region25: #{unet_forward.34} parent=0 // pred_fallthru
    _

// kernel: unet_forward.35
$region0: #{unet_forward.35}
  #allocation0 [shape = 'u32[]', space=smem, size = 0x4, offset = 0x4, fixed_abs, tag = 'smem constant byte address 0x4 - core index']
  #allocation1 [shape = 'u32[144,128]{1,0:T(1,128)}', space=vmem, size = 0x12000, scoped, tag = 'internal scratch']
  %s0 = inlined_call_operand.vmem [shape: bf16[32,144], index: 0, kind: input, shape index: {}]
  %s1 = inlined_call_operand.vmem [shape: bf16[144,16], index: 1, kind: input, shape index: {}]
  %s2 = inlined_call_operand.vmem [shape: f32[1,16], index: 2, kind: input, shape index: {}]
  %s3 = inlined_call_operand.vmem [shape: f32[1,16], index: 3, kind: input, shape index: {}]
  %s4 = inlined_call_operand.vmem [shape: f32[32,16], index: 4, kind: output, shape index: {}]
  %s5 = sld [smem:[#allocation0]]
  $region26: #{unet_forward.35} parent=0
    _
  %s7 = ssub.s32 1, %s5
  %s8 = scalar_select 0, %s7, %s5
  // Predicated region
  $region2: #{unet_forward.35} parent=0 // pred_check
    _
  $region3: #{unet_forward.35} parent=0 // pred_check_branch
    %10 = sbr.rel (0) target = $region5
  $region4: #{unet_forward.35} parent=0 // pred_region
    _
  $region5: #{unet_forward.35} parent=0 // pred_fallthru
    _
  // Predicated region
  $region6: #{unet_forward.35} parent=0 // pred_check
    _
  $region7: #{unet_forward.35} parent=0 // pred_check_branch
    %12 = sbr.rel (0) target = $region9
  $region8: #{unet_forward.35} parent=0 // pred_region
    _
  $region9: #{unet_forward.35} parent=0 // pred_fallthru
    _
  // Predicated region
  $region10: #{unet_forward.35} parent=0 // pred_check
    _
  $region11: #{unet_forward.35} parent=0 // pred_check_branch
    %14 = sbr.rel (0) target = $region13
  $region12: #{unet_forward.35} parent=0 // pred_region
    _
  $region13: #{unet_forward.35} parent=0 // pred_fallthru
    _
  // Predicated region
  $region14: #{unet_forward.35} parent=0 // pred_check
    _
  $region15: #{unet_forward.35} parent=0 // pred_check_branch
    %16 = sbr.rel (0) target = $region17
  $region16: #{unet_forward.35} parent=0 // pred_region
    _
  $region17: #{unet_forward.35} parent=0 // pred_fallthru
    _
  %v18 = vld [vmem:[%s0] sm:$0xff]
  %v19 = vld [vmem:[%s0 + $0x8] sm:$0xff]
  %v20 = vld [vmem:[%s0 + $0x10] sm:$0xff]
  %v21 = vld [vmem:[%s0 + $0x18] sm:$0xff]
  %v22 = vld [vmem:[%s1] sm:$0xf]
  %v23 = vld [vmem:[%s1 + $0x4] sm:$0xf]
  %v24 = vld [vmem:[%s1 + $0x8] sm:$0xf]
  %v25 = vld [vmem:[%s1 + $0xc] sm:$0xf]
  %v26 = vld [vmem:[%s1 + $0x10] sm:$0xf]
  %v27 = vld [vmem:[%s1 + $0x14] sm:$0xf]
  %v28 = vld [vmem:[%s1 + $0x18] sm:$0xf]
  %v29 = vld [vmem:[%s1 + $0x1c] sm:$0xf]
  %v30 = vld [vmem:[%s1 + $0x20] sm:$0xf]
  %v31 = vld [vmem:[%s1 + $0x24] sm:$0xf]
  %v32 = vld [vmem:[%s1 + $0x28] sm:$0xf]
  %v33 = vld [vmem:[%s1 + $0x2c] sm:$0xf]
  %v34 = vld [vmem:[%s1 + $0x30] sm:$0xf]
  %v35 = vld [vmem:[%s1 + $0x34] sm:$0xf]
  %v36 = vld [vmem:[%s1 + $0x38] sm:$0xf]
  %v37 = vld [vmem:[%s1 + $0x3c] sm:$0xf]
  %v38 = vld [vmem:[%s1 + $0x40] sm:$0xf]
  %v39 = vld [vmem:[%s1 + $0x44] sm:$0xf]
  %v44 = vunpack.c.l.b16 %v18
  %v45 = vunpack.c.h.b16 %v18
  %v46 = vunpack.c.l.b16 %v19
  %v47 = vunpack.c.h.b16 %v19
  %v48 = vunpack.c.l.b16 %v20
  %v49 = vunpack.c.h.b16 %v20
  %v50 = vunpack.c.l.b16 %v21
  %v51 = vunpack.c.h.b16 %v21
  %v52 = vpack.c.b16 %v46, %v44
  %v53 = vpack.c.b16 %v47, %v45
  %v54 = vpack.c.b16 %v50, %v48
  %v55 = vpack.c.b16 %v51, %v49
  %v76 = vunpack.c.l.b16 %v22
  %v77 = vunpack.c.l.b16 %v23
  %v78 = vunpack.c.l.b16 %v24
  %v79 = vunpack.c.l.b16 %v25
  %v80 = vunpack.c.l.b16 %v26
  %v81 = vunpack.c.l.b16 %v27
  %v82 = vunpack.c.l.b16 %v28
  %v83 = vunpack.c.l.b16 %v29
  %v84 = vunpack.c.l.b16 %v30
  %v85 = vunpack.c.l.b16 %v31
  %v86 = vunpack.c.l.b16 %v32
  %v87 = vunpack.c.l.b16 %v33
  %v88 = vunpack.c.l.b16 %v34
  %v89 = vunpack.c.l.b16 %v35
  %v90 = vunpack.c.l.b16 %v36
  %v91 = vunpack.c.l.b16 %v37
  %v92 = vunpack.c.l.b16 %v38
  %v93 = vunpack.c.l.b16 %v39
  %v94 = vpack.c.b16 %v77, %v76
  %v95 = vpack.c.b16 %v79, %v78
  %v96 = vpack.c.b16 %v81, %v80
  %v97 = vpack.c.b16 %v83, %v82
  %v98 = vpack.c.b16 %v85, %v84
  %v99 = vpack.c.b16 %v87, %v86
  %v100 = vpack.c.b16 %v89, %v88
  %v101 = vpack.c.b16 %v91, %v90
  %v102 = vpack.c.b16 %v93, %v92
  %vm112 = vcmask 130048
  %v114 = vsel %vm112, %v53, 0
  %v117 = vsel %vm112, %v55, 0
  %119 = vmatprep.subr.bf16.mxu0 0
  %120 = vmatpush1.bf16.msra.mxu0 %v94
  %121 = vmatprep.subr.bf16.mxu0 0
  %122 = vmatpush1.bf16.msra.mxu0 %v95
  %123 = vmatprep.subr.bf16.mxu0 0
  %124 = vmatpush1.bf16.msra.mxu0 %v96
  %125 = vmatprep.subr.bf16.mxu0 0
  %126 = vmatpush1.bf16.msra.mxu0 %v97
  %127 = vmatprep.subr.bf16.mxu0 0
  %128 = vmatpush1.bf16.msra.mxu0 %v98
  %129 = vmatprep.subr.bf16.mxu0 0
  %130 = vmatpush1.bf16.msra.mxu0 %v99
  %131 = vmatprep.subr.bf16.mxu0 0
  %132 = vmatpush1.bf16.msra.mxu0 %v100
  %133 = vmatprep.subr.bf16.mxu0 0
  %134 = vmatpush1.bf16.msra.mxu0 %v101
  %135 = vmatprep.subr.bf16.mxu0 0
  %136 = vmatpush1.bf16.msra.mxu0 %v102
  %137 = vmatprep.subr.bf16.mxu0 0
  %138 = vmatpush1.bf16.msra.mxu0 0
  %139 = vmatprep.subr.bf16.mxu0 0
  %140 = vmatpush1.bf16.msra.mxu0 0
  %141 = vmatprep.subr.bf16.mxu0 0
  %142 = vmatpush1.bf16.msra.mxu0 0
  %143 = vmatprep.subr.bf16.mxu0 0
  %144 = vmatpush1.bf16.msra.mxu0 0
  %145 = vmatprep.subr.bf16.mxu0 0
  %146 = vmatpush1.bf16.msra.mxu0 0
  %147 = vmatprep.subr.bf16.mxu0 0
  %148 = vmatpush1.bf16.msra.mxu0 0
  %149 = vmatprep.subr.bf16.mxu0 0
  %150 = vmatpush1.bf16.msra.mxu0 0
  %151 = vmatprep.mubr.bf16.mxu0 %v114
  %152 = vmatmul.mubr.bf16.gmra.mrb[0].mxu0 %v52
  %v153 = vpop.f32.mrb[0].mxu0
  %v154 = vadd.f32 0.0, %v153
  %v155 = vpop.f32.mrb[0].mxu0
  %v156 = vpop.f32.mrb[0].mxu0
  %v157 = vadd.f32 0.0, %v156
  %v158 = vpop.f32.mrb[0].mxu0
  %159 = vmatprep.mubr.bf16.mxu0 %v117
  %160 = vmatmul.mubr.bf16.gmra.mrb[0].mxu0 %v54
  %v161 = vpop.f32.mrb[0].mxu0
  %v162 = vadd.f32 0.0, %v161
  %v163 = vpop.f32.mrb[0].mxu0
  %v164 = vpop.f32.mrb[0].mxu0
  %v165 = vadd.f32 0.0, %v164
  %v166 = vpop.f32.mrb[0].mxu0
  %167 = vdwg.mxu0
  %v168 = vld [vmem:[%s2] sm:$0x1]
  %v170 = vlaneseq
  %v171 = vshrl.u32 %v170, 7
  %v172 = vsub.s32 0, %v171
  %v173 = vrot.slane %v168, %v172
  %v175 = vmul.f32 %v154, %v173
  %v176 = vmul.f32 %v157, %v173
  %v177 = vmul.f32 %v162, %v173
  %v178 = vmul.f32 %v165, %v173
  %v179 = vld [vmem:[%s3] sm:$0x1]
  %v181 = vlaneseq
  %v182 = vshrl.u32 %v181, 7
  %v183 = vsub.s32 0, %v182
  %v184 = vrot.slane %v179, %v183
  %v186 = vadd.f32 %v175, %v184
  %v187 = vadd.f32 %v176, %v184
  %v188 = vadd.f32 %v177, %v184
  %v189 = vadd.f32 %v178, %v184
  %v190 = vmax.f32 %v186, 0.0
  %v191 = vmax.f32 %v187, 0.0
  %v192 = vmax.f32 %v188, 0.0
  %v193 = vmax.f32 %v189, 0.0
  %194 = vst.msk [vmem:[%s4] sm:$0xff] %vm112, %v190
  %195 = vst.msk [vmem:[%s4 + $0x8] sm:$0xff] %vm112, %v191
  %196 = vst.msk [vmem:[%s4 + $0x10] sm:$0xff] %vm112, %v192
  %197 = vst.msk [vmem:[%s4 + $0x18] sm:$0xff] %vm112, %v193
  // Predicated region
  $region18: #{unet_forward.35} parent=0 // pred_check
    _
  $region19: #{unet_forward.35} parent=0 // pred_check_branch
    %199 = sbr.rel (0) target = $region21
  $region20: #{unet_forward.35} parent=0 // pred_region
    _
  $region21: #{unet_forward.35} parent=0 // pred_fallthru
    _
  // Predicated region
  $region22: #{unet_forward.35} parent=0 // pred_check
    _
  $region23: #{unet_forward.35} parent=0 // pred_check_branch
    %201 = sbr.rel (0) target = $region25
  $region24: #{unet_forward.35} parent=0 // pred_region
    _
  $region25: #{unet_forward.35} parent=0 // pred_fallthru
    _

// kernel: unet_forward.36
$region0: #{unet_forward.36}
  #allocation0 [shape = 'u32[]', space=smem, size = 0x4, offset = 0x4, fixed_abs, tag = 'smem constant byte address 0x4 - core index']
  #allocation1 [shape = 'u32[144,128]{1,0:T(1,128)}', space=vmem, size = 0x12000, scoped, tag = 'internal scratch']
  %s0 = inlined_call_operand.vmem [shape: bf16[128,144], index: 0, kind: input, shape index: {}]
  %s1 = inlined_call_operand.vmem [shape: bf16[144,16], index: 1, kind: input, shape index: {}]
  %s2 = inlined_call_operand.vmem [shape: f32[1,16], index: 2, kind: input, shape index: {}]
  %s3 = inlined_call_operand.vmem [shape: f32[1,16], index: 3, kind: input, shape index: {}]
  %s4 = inlined_call_operand.vmem [shape: f32[128,16], index: 4, kind: output, shape index: {}]
  %s5 = sld [smem:[#allocation0]]
  $region26: #{unet_forward.36} parent=0
    _
  %s7 = ssub.s32 1, %s5
  %s8 = scalar_select 0, %s7, %s5
  // Predicated region
  $region2: #{unet_forward.36} parent=0 // pred_check
    _
  $region3: #{unet_forward.36} parent=0 // pred_check_branch
    %10 = sbr.rel (0) target = $region5
  $region4: #{unet_forward.36} parent=0 // pred_region
    _
  $region5: #{unet_forward.36} parent=0 // pred_fallthru
    _
  // Predicated region
  $region6: #{unet_forward.36} parent=0 // pred_check
    _
  $region7: #{unet_forward.36} parent=0 // pred_check_branch
    %12 = sbr.rel (0) target = $region9
  $region8: #{unet_forward.36} parent=0 // pred_region
    _
  $region9: #{unet_forward.36} parent=0 // pred_fallthru
    _
  // Predicated region
  $region10: #{unet_forward.36} parent=0 // pred_check
    _
  $region11: #{unet_forward.36} parent=0 // pred_check_branch
    %14 = sbr.rel (0) target = $region13
  $region12: #{unet_forward.36} parent=0 // pred_region
    _
  $region13: #{unet_forward.36} parent=0 // pred_fallthru
    _
  // Predicated region
  $region14: #{unet_forward.36} parent=0 // pred_check
    _
  $region15: #{unet_forward.36} parent=0 // pred_check_branch
    %16 = sbr.rel (0) target = $region17
  $region16: #{unet_forward.36} parent=0 // pred_region
    _
  $region17: #{unet_forward.36} parent=0 // pred_fallthru
    _
  %v18 = vld [vmem:[%s0] sm:$0xff]
  %v19 = vld [vmem:[%s0 + $0x8] sm:$0xff]
  %v20 = vld [vmem:[%s0 + $0x10] sm:$0xff]
  %v21 = vld [vmem:[%s0 + $0x18] sm:$0xff]
  %v22 = vld [vmem:[%s0 + $0x20] sm:$0xff]
  %v23 = vld [vmem:[%s0 + $0x28] sm:$0xff]
  %v24 = vld [vmem:[%s0 + $0x30] sm:$0xff]
  %v25 = vld [vmem:[%s0 + $0x38] sm:$0xff]
  %v26 = vld [vmem:[%s0 + $0x40] sm:$0xff]
  %v27 = vld [vmem:[%s0 + $0x48] sm:$0xff]
  %v28 = vld [vmem:[%s0 + $0x50] sm:$0xff]
  %v29 = vld [vmem:[%s0 + $0x58] sm:$0xff]
  %v30 = vld [vmem:[%s0 + $0x60] sm:$0xff]
  %v31 = vld [vmem:[%s0 + $0x68] sm:$0xff]
  %v32 = vld [vmem:[%s0 + $0x70] sm:$0xff]
  %v33 = vld [vmem:[%s0 + $0x78] sm:$0xff]
  %v34 = vld [vmem:[%s1] sm:$0xf]
  %v35 = vld [vmem:[%s1 + $0x4] sm:$0xf]
  %v36 = vld [vmem:[%s1 + $0x8] sm:$0xf]
  %v37 = vld [vmem:[%s1 + $0xc] sm:$0xf]
  %v38 = vld [vmem:[%s1 + $0x10] sm:$0xf]
  %v39 = vld [vmem:[%s1 + $0x14] sm:$0xf]
  %v40 = vld [vmem:[%s1 + $0x18] sm:$0xf]
  %v41 = vld [vmem:[%s1 + $0x1c] sm:$0xf]
  %v42 = vld [vmem:[%s1 + $0x20] sm:$0xf]
  %v43 = vld [vmem:[%s1 + $0x24] sm:$0xf]
  %v44 = vld [vmem:[%s1 + $0x28] sm:$0xf]
  %v45 = vld [vmem:[%s1 + $0x2c] sm:$0xf]
  %v46 = vld [vmem:[%s1 + $0x30] sm:$0xf]
  %v47 = vld [vmem:[%s1 + $0x34] sm:$0xf]
  %v48 = vld [vmem:[%s1 + $0x38] sm:$0xf]
  %v49 = vld [vmem:[%s1 + $0x3c] sm:$0xf]
  %v50 = vld [vmem:[%s1 + $0x40] sm:$0xf]
  %v51 = vld [vmem:[%s1 + $0x44] sm:$0xf]
  %v68 = vunpack.c.l.b16 %v18
  %v69 = vunpack.c.h.b16 %v18
  %v70 = vunpack.c.l.b16 %v19
  %v71 = vunpack.c.h.b16 %v19
  %v72 = vunpack.c.l.b16 %v20
  %v73 = vunpack.c.h.b16 %v20
  %v74 = vunpack.c.l.b16 %v21
  %v75 = vunpack.c.h.b16 %v21
  %v76 = vunpack.c.l.b16 %v22
  %v77 = vunpack.c.h.b16 %v22
  %v78 = vunpack.c.l.b16 %v23
  %v79 = vunpack.c.h.b16 %v23
  %v80 = vunpack.c.l.b16 %v24
  %v81 = vunpack.c.h.b16 %v24
  %v82 = vunpack.c.l.b16 %v25
  %v83 = vunpack.c.h.b16 %v25
  %v84 = vunpack.c.l.b16 %v26
  %v85 = vunpack.c.h.b16 %v26
  %v86 = vunpack.c.l.b16 %v27
  %v87 = vunpack.c.h.b16 %v27
  %v88 = vunpack.c.l.b16 %v28
  %v89 = vunpack.c.h.b16 %v28
  %v90 = vunpack.c.l.b16 %v29
  %v91 = vunpack.c.h.b16 %v29
  %v92 = vunpack.c.l.b16 %v30
  %v93 = vunpack.c.h.b16 %v30
  %v94 = vunpack.c.l.b16 %v31
  %v95 = vunpack.c.h.b16 %v31
  %v96 = vunpack.c.l.b16 %v32
  %v97 = vunpack.c.h.b16 %v32
  %v98 = vunpack.c.l.b16 %v33
  %v99 = vunpack.c.h.b16 %v33
  %v100 = vpack.c.b16 %v70, %v68
  %v101 = vpack.c.b16 %v71, %v69
  %v102 = vpack.c.b16 %v74, %v72
  %v103 = vpack.c.b16 %v75, %v73
  %v104 = vpack.c.b16 %v78, %v76
  %v105 = vpack.c.b16 %v79, %v77
  %v106 = vpack.c.b16 %v82, %v80
  %v107 = vpack.c.b16 %v83, %v81
  %v108 = vpack.c.b16 %v86, %v84
  %v109 = vpack.c.b16 %v87, %v85
  %v110 = vpack.c.b16 %v90, %v88
  %v111 = vpack.c.b16 %v91, %v89
  %v112 = vpack.c.b16 %v94, %v92
  %v113 = vpack.c.b16 %v95, %v93
  %v114 = vpack.c.b16 %v98, %v96
  %v115 = vpack.c.b16 %v99, %v97
  %v142 = vunpack.c.l.b16 %v34
  %v143 = vunpack.c.l.b16 %v35
  %v144 = vunpack.c.l.b16 %v36
  %v145 = vunpack.c.l.b16 %v37
  %v146 = vunpack.c.l.b16 %v38
  %v147 = vunpack.c.l.b16 %v39
  %v148 = vunpack.c.l.b16 %v40
  %v149 = vunpack.c.l.b16 %v41
  %v150 = vunpack.c.l.b16 %v42
  %v151 = vunpack.c.l.b16 %v43
  %v152 = vunpack.c.l.b16 %v44
  %v153 = vunpack.c.l.b16 %v45
  %v154 = vunpack.c.l.b16 %v46
  %v155 = vunpack.c.l.b16 %v47
  %v156 = vunpack.c.l.b16 %v48
  %v157 = vunpack.c.l.b16 %v49
  %v158 = vunpack.c.l.b16 %v50
  %v159 = vunpack.c.l.b16 %v51
  %v160 = vpack.c.b16 %v143, %v142
  %v161 = vpack.c.b16 %v145, %v144
  %v162 = vpack.c.b16 %v147, %v146
  %v163 = vpack.c.b16 %v149, %v148
  %v164 = vpack.c.b16 %v151, %v150
  %v165 = vpack.c.b16 %v153, %v152
  %v166 = vpack.c.b16 %v155, %v154
  %v167 = vpack.c.b16 %v157, %v156
  %v168 = vpack.c.b16 %v159, %v158
  %vm178 = vcmask 130048
  %v180 = vsel %vm178, %v101, 0
  %v183 = vsel %vm178, %v103, 0
  %v186 = vsel %vm178, %v105, 0
  %v189 = vsel %vm178, %v107, 0
  %v192 = vsel %vm178, %v109, 0
  %v195 = vsel %vm178, %v111, 0
  %v198 = vsel %vm178, %v113, 0
  %v201 = vsel %vm178, %v115, 0
  %203 = vmatprep.subr.bf16.mxu0 0
  %204 = vmatpush1.bf16.msra.mxu0 %v160
  %205 = vmatprep.subr.bf16.mxu0 0
  %206 = vmatpush1.bf16.msra.mxu0 %v161
  %207 = vmatprep.subr.bf16.mxu0 0
  %208 = vmatpush1.bf16.msra.mxu0 %v162
  %209 = vmatprep.subr.bf16.mxu0 0
  %210 = vmatpush1.bf16.msra.mxu0 %v163
  %211 = vmatprep.subr.bf16.mxu0 0
  %212 = vmatpush1.bf16.msra.mxu0 %v164
  %213 = vmatprep.subr.bf16.mxu0 0
  %214 = vmatpush1.bf16.msra.mxu0 %v165
  %215 = vmatprep.subr.bf16.mxu0 0
  %216 = vmatpush1.bf16.msra.mxu0 %v166
  %217 = vmatprep.subr.bf16.mxu0 0
  %218 = vmatpush1.bf16.msra.mxu0 %v167
  %219 = vmatprep.subr.bf16.mxu0 0
  %220 = vmatpush1.bf16.msra.mxu0 %v168
  %221 = vmatprep.subr.bf16.mxu0 0
  %222 = vmatpush1.bf16.msra.mxu0 0
  %223 = vmatprep.subr.bf16.mxu0 0
  %224 = vmatpush1.bf16.msra.mxu0 0
  %225 = vmatprep.subr.bf16.mxu0 0
  %226 = vmatpush1.bf16.msra.mxu0 0
  %227 = vmatprep.subr.bf16.mxu0 0
  %228 = vmatpush1.bf16.msra.mxu0 0
  %229 = vmatprep.subr.bf16.mxu0 0
  %230 = vmatpush1.bf16.msra.mxu0 0
  %231 = vmatprep.subr.bf16.mxu0 0
  %232 = vmatpush1.bf16.msra.mxu0 0
  %233 = vmatprep.subr.bf16.mxu0 0
  %234 = vmatpush1.bf16.msra.mxu0 0
  %235 = vmatprep.mubr.bf16.mxu0 %v180
  %236 = vmatmul.mubr.bf16.gmra.mrb[0].mxu0 %v100
  %v237 = vpop.f32.mrb[0].mxu0
  %v238 = vadd.f32 0.0, %v237
  %v239 = vpop.f32.mrb[0].mxu0
  %v240 = vpop.f32.mrb[0].mxu0
  %v241 = vadd.f32 0.0, %v240
  %v242 = vpop.f32.mrb[0].mxu0
  %243 = vmatprep.mubr.bf16.mxu0 %v183
  %244 = vmatmul.mubr.bf16.gmra.mrb[0].mxu0 %v102
  %v245 = vpop.f32.mrb[0].mxu0
  %v246 = vadd.f32 0.0, %v245
  %v247 = vpop.f32.mrb[0].mxu0
  %v248 = vpop.f32.mrb[0].mxu0
  %v249 = vadd.f32 0.0, %v248
  %v250 = vpop.f32.mrb[0].mxu0
  %251 = vmatprep.mubr.bf16.mxu0 %v186
  %252 = vmatmul.mubr.bf16.gmra.mrb[0].mxu0 %v104
  %v253 = vpop.f32.mrb[0].mxu0
  %v254 = vadd.f32 0.0, %v253
  %v255 = vpop.f32.mrb[0].mxu0
  %v256 = vpop.f32.mrb[0].mxu0
  %v257 = vadd.f32 0.0, %v256
  %v258 = vpop.f32.mrb[0].mxu0
  %259 = vmatprep.mubr.bf16.mxu0 %v189
  %260 = vmatmul.mubr.bf16.gmra.mrb[0].mxu0 %v106
  %v261 = vpop.f32.mrb[0].mxu0
  %v262 = vadd.f32 0.0, %v261
  %v263 = vpop.f32.mrb[0].mxu0
  %v264 = vpop.f32.mrb[0].mxu0
  %v265 = vadd.f32 0.0, %v264
  %v266 = vpop.f32.mrb[0].mxu0
  %267 = vmatprep.mubr.bf16.mxu0 %v192
  %268 = vmatmul.mubr.bf16.gmra.mrb[0].mxu0 %v108
  %v269 = vpop.f32.mrb[0].mxu0
  %v270 = vadd.f32 0.0, %v269
  %v271 = vpop.f32.mrb[0].mxu0
  %v272 = vpop.f32.mrb[0].mxu0
  %v273 = vadd.f32 0.0, %v272
  %v274 = vpop.f32.mrb[0].mxu0
  %275 = vmatprep.mubr.bf16.mxu0 %v195
  %276 = vmatmul.mubr.bf16.gmra.mrb[0].mxu0 %v110
  %v277 = vpop.f32.mrb[0].mxu0
  %v278 = vadd.f32 0.0, %v277
  %v279 = vpop.f32.mrb[0].mxu0
  %v280 = vpop.f32.mrb[0].mxu0
  %v281 = vadd.f32 0.0, %v280
  %v282 = vpop.f32.mrb[0].mxu0
  %283 = vmatprep.mubr.bf16.mxu0 %v198
  %284 = vmatmul.mubr.bf16.gmra.mrb[0].mxu0 %v112
  %v285 = vpop.f32.mrb[0].mxu0
  %v286 = vadd.f32 0.0, %v285
  %v287 = vpop.f32.mrb[0].mxu0
  %v288 = vpop.f32.mrb[0].mxu0
  %v289 = vadd.f32 0.0, %v288
  %v290 = vpop.f32.mrb[0].mxu0
  %291 = vmatprep.mubr.bf16.mxu0 %v201
  %292 = vmatmul.mubr.bf16.gmra.mrb[0].mxu0 %v114
  %v293 = vpop.f32.mrb[0].mxu0
  %v294 = vadd.f32 0.0, %v293
  %v295 = vpop.f32.mrb[0].mxu0
  %v296 = vpop.f32.mrb[0].mxu0
  %v297 = vadd.f32 0.0, %v296
  %v298 = vpop.f32.mrb[0].mxu0
  %299 = vdwg.mxu0
  %v300 = vld [vmem:[%s2] sm:$0x1]
  %v302 = vlaneseq
  %v303 = vshrl.u32 %v302, 7
  %v304 = vsub.s32 0, %v303
  %v305 = vrot.slane %v300, %v304
  %v307 = vmul.f32 %v238, %v305
  %v308 = vmul.f32 %v241, %v305
  %v309 = vmul.f32 %v246, %v305
  %v310 = vmul.f32 %v249, %v305
  %v311 = vmul.f32 %v254, %v305
  %v312 = vmul.f32 %v257, %v305
  %v313 = vmul.f32 %v262, %v305
  %v314 = vmul.f32 %v265, %v305
  %v315 = vmul.f32 %v270, %v305
  %v316 = vmul.f32 %v273, %v305
  %v317 = vmul.f32 %v278, %v305
  %v318 = vmul.f32 %v281, %v305
  %v319 = vmul.f32 %v286, %v305
  %v320 = vmul.f32 %v289, %v305
  %v321 = vmul.f32 %v294, %v305
  %v322 = vmul.f32 %v297, %v305
  %v323 = vld [vmem:[%s3] sm:$0x1]
  %v325 = vlaneseq
  %v326 = vshrl.u32 %v325, 7
  %v327 = vsub.s32 0, %v326
  %v328 = vrot.slane %v323, %v327
  %v330 = vadd.f32 %v307, %v328
  %v331 = vadd.f32 %v308, %v328
  %v332 = vadd.f32 %v309, %v328
  %v333 = vadd.f32 %v310, %v328
  %v334 = vadd.f32 %v311, %v328
  %v335 = vadd.f32 %v312, %v328
  %v336 = vadd.f32 %v313, %v328
  %v337 = vadd.f32 %v314, %v328
  %v338 = vadd.f32 %v315, %v328
  %v339 = vadd.f32 %v316, %v328
  %v340 = vadd.f32 %v317, %v328
  %v341 = vadd.f32 %v318, %v328
  %v342 = vadd.f32 %v319, %v328
  %v343 = vadd.f32 %v320, %v328
  %v344 = vadd.f32 %v321, %v328
  %v345 = vadd.f32 %v322, %v328
  %346 = vst.msk [vmem:[%s4] sm:$0xff] %vm178, %v330
  %347 = vst.msk [vmem:[%s4 + $0x8] sm:$0xff] %vm178, %v331
  %348 = vst.msk [vmem:[%s4 + $0x10] sm:$0xff] %vm178, %v332
  %349 = vst.msk [vmem:[%s4 + $0x18] sm:$0xff] %vm178, %v333
  %350 = vst.msk [vmem:[%s4 + $0x20] sm:$0xff] %vm178, %v334
  %351 = vst.msk [vmem:[%s4 + $0x28] sm:$0xff] %vm178, %v335
  %352 = vst.msk [vmem:[%s4 + $0x30] sm:$0xff] %vm178, %v336
  %353 = vst.msk [vmem:[%s4 + $0x38] sm:$0xff] %vm178, %v337
  %354 = vst.msk [vmem:[%s4 + $0x40] sm:$0xff] %vm178, %v338
  %355 = vst.msk [vmem:[%s4 + $0x48] sm:$0xff] %vm178, %v339
  %356 = vst.msk [vmem:[%s4 + $0x50] sm:$0xff] %vm178, %v340
  %357 = vst.msk [vmem:[%s4 + $0x58] sm:$0xff] %vm178, %v341
  %358 = vst.msk [vmem:[%s4 + $0x60] sm:$0xff] %vm178, %v342
  %359 = vst.msk [vmem:[%s4 + $0x68] sm:$0xff] %vm178, %v343
  %360 = vst.msk [vmem:[%s4 + $0x70] sm:$0xff] %vm178, %v344
  %361 = vst.msk [vmem:[%s4 + $0x78] sm:$0xff] %vm178, %v345
  // Predicated region
  $region18: #{unet_forward.36} parent=0 // pred_check
    _
  $region19: #{unet_forward.36} parent=0 // pred_check_branch
    %363 = sbr.rel (0) target = $region21
  $region20: #{unet_forward.36} parent=0 // pred_region
    _
  $region21: #{unet_forward.36} parent=0 // pred_fallthru
    _
  // Predicated region
  $region22: #{unet_forward.36} parent=0 // pred_check
    _
  $region23: #{unet_forward.36} parent=0 // pred_check_branch
    %365 = sbr.rel (0) target = $region25
  $region24: #{unet_forward.36} parent=0 // pred_region
    _
  $region25: #{unet_forward.36} parent=0 // pred_fallthru
    _

// kernel: unet_forward.37
$region0: #{unet_forward.37}
  #allocation0 [shape = 'u32[]', space=smem, size = 0x4, offset = 0x4, fixed_abs, tag = 'smem constant byte address 0x4 - core index']
  #allocation1 [shape = 'u32[144,128]{1,0:T(1,128)}', space=vmem, size = 0x12000, scoped, tag = 'internal scratch']
  %s0 = inlined_call_operand.vmem [shape: bf16[128,288], index: 0, kind: input, shape index: {}]
  %s1 = inlined_call_operand.vmem [shape: bf16[288,4], index: 1, kind: input, shape index: {}]
  %s2 = inlined_call_operand.vmem [shape: f32[1,4], index: 2, kind: input, shape index: {}]
  %s3 = inlined_call_operand.vmem [shape: f32[1,4], index: 3, kind: input, shape index: {}]
  %s4 = inlined_call_operand.vmem [shape: f32[128,4], index: 4, kind: output, shape index: {}]
  %s5 = sld [smem:[#allocation0]]
  $region26: #{unet_forward.37} parent=0
    _
  %s7 = ssub.s32 1, %s5
  %s8 = scalar_select 0, %s7, %s5
  // Predicated region
  $region2: #{unet_forward.37} parent=0 // pred_check
    _
  $region3: #{unet_forward.37} parent=0 // pred_check_branch
    %10 = sbr.rel (0) target = $region5
  $region4: #{unet_forward.37} parent=0 // pred_region
    _
  $region5: #{unet_forward.37} parent=0 // pred_fallthru
    _
  // Predicated region
  $region6: #{unet_forward.37} parent=0 // pred_check
    _
  $region7: #{unet_forward.37} parent=0 // pred_check_branch
    %12 = sbr.rel (0) target = $region9
  $region8: #{unet_forward.37} parent=0 // pred_region
    _
  $region9: #{unet_forward.37} parent=0 // pred_fallthru
    _
  // Predicated region
  $region10: #{unet_forward.37} parent=0 // pred_check
    _
  $region11: #{unet_forward.37} parent=0 // pred_check_branch
    %14 = sbr.rel (0) target = $region13
  $region12: #{unet_forward.37} parent=0 // pred_region
    _
  $region13: #{unet_forward.37} parent=0 // pred_fallthru
    _
  // Predicated region
  $region14: #{unet_forward.37} parent=0 // pred_check
    _
  $region15: #{unet_forward.37} parent=0 // pred_check_branch
    %16 = sbr.rel (0) target = $region17
  $region16: #{unet_forward.37} parent=0 // pred_region
    _
  $region17: #{unet_forward.37} parent=0 // pred_fallthru
    _
  %v18 = vld [vmem:[%s0] sm:$0xff]
  %v19 = vld [vmem:[%s0 + $0x8] sm:$0xf]
  %v20 = vld [vmem:[%s0 + $0xc] sm:$0xff]
  %v21 = vld [vmem:[%s0 + $0x14] sm:$0xf]
  %v22 = vld [vmem:[%s0 + $0x18] sm:$0xff]
  %v23 = vld [vmem:[%s0 + $0x20] sm:$0xf]
  %v24 = vld [vmem:[%s0 + $0x24] sm:$0xff]
  %v25 = vld [vmem:[%s0 + $0x2c] sm:$0xf]
  %v26 = vld [vmem:[%s0 + $0x30] sm:$0xff]
  %v27 = vld [vmem:[%s0 + $0x38] sm:$0xf]
  %v28 = vld [vmem:[%s0 + $0x3c] sm:$0xff]
  %v29 = vld [vmem:[%s0 + $0x44] sm:$0xf]
  %v30 = vld [vmem:[%s0 + $0x48] sm:$0xff]
  %v31 = vld [vmem:[%s0 + $0x50] sm:$0xf]
  %v32 = vld [vmem:[%s0 + $0x54] sm:$0xff]
  %v33 = vld [vmem:[%s0 + $0x5c] sm:$0xf]
  %v34 = vld [vmem:[%s0 + $0x60] sm:$0xff]
  %v35 = vld [vmem:[%s0 + $0x68] sm:$0xf]
  %v36 = vld [vmem:[%s0 + $0x6c] sm:$0xff]
  %v37 = vld [vmem:[%s0 + $0x74] sm:$0xf]
  %v38 = vld [vmem:[%s0 + $0x78] sm:$0xff]
  %v39 = vld [vmem:[%s0 + $0x80] sm:$0xf]
  %v40 = vld [vmem:[%s0 + $0x84] sm:$0xff]
  %v41 = vld [vmem:[%s0 + $0x8c] sm:$0xf]
  %v42 = vld [vmem:[%s0 + $0x90] sm:$0xff]
  %v43 = vld [vmem:[%s0 + $0x98] sm:$0xf]
  %v44 = vld [vmem:[%s0 + $0x9c] sm:$0xff]
  %v45 = vld [vmem:[%s0 + $0xa4] sm:$0xf]
  %v46 = vld [vmem:[%s0 + $0xa8] sm:$0xff]
  %v47 = vld [vmem:[%s0 + $0xb0] sm:$0xf]
  %v48 = vld [vmem:[%s0 + $0xb4] sm:$0xff]
  %v49 = vld [vmem:[%s0 + $0xbc] sm:$0xf]
  %v50 = vld [vmem:[%s1] sm:$0xf]
  %v51 = vld [vmem:[%s1 + $0x4] sm:$0xf]
  %v52 = vld [vmem:[%s1 + $0x8] sm:$0xf]
  %v53 = vld [vmem:[%s1 + $0xc] sm:$0xf]
  %v54 = vld [vmem:[%s1 + $0x10] sm:$0xf]
  %v55 = vld [vmem:[%s1 + $0x14] sm:$0xf]
  %v56 = vld [vmem:[%s1 + $0x18] sm:$0xf]
  %v57 = vld [vmem:[%s1 + $0x1c] sm:$0xf]
  %v58 = vld [vmem:[%s1 + $0x20] sm:$0xf]
  %v59 = vld [vmem:[%s1 + $0x24] sm:$0xf]
  %v60 = vld [vmem:[%s1 + $0x28] sm:$0xf]
  %v61 = vld [vmem:[%s1 + $0x2c] sm:$0xf]
  %v62 = vld [vmem:[%s1 + $0x30] sm:$0xf]
  %v63 = vld [vmem:[%s1 + $0x34] sm:$0xf]
  %v64 = vld [vmem:[%s1 + $0x38] sm:$0xf]
  %v65 = vld [vmem:[%s1 + $0x3c] sm:$0xf]
  %v66 = vld [vmem:[%s1 + $0x40] sm:$0xf]
  %v67 = vld [vmem:[%s1 + $0x44] sm:$0xf]
  %v68 = vld [vmem:[%s1 + $0x48] sm:$0xf]
  %v69 = vld [vmem:[%s1 + $0x4c] sm:$0xf]
  %v70 = vld [vmem:[%s1 + $0x50] sm:$0xf]
  %v71 = vld [vmem:[%s1 + $0x54] sm:$0xf]
  %v72 = vld [vmem:[%s1 + $0x58] sm:$0xf]
  %v73 = vld [vmem:[%s1 + $0x5c] sm:$0xf]
  %v74 = vld [vmem:[%s1 + $0x60] sm:$0xf]
  %v75 = vld [vmem:[%s1 + $0x64] sm:$0xf]
  %v76 = vld [vmem:[%s1 + $0x68] sm:$0xf]
  %v77 = vld [vmem:[%s1 + $0x6c] sm:$0xf]
  %v78 = vld [vmem:[%s1 + $0x70] sm:$0xf]
  %v79 = vld [vmem:[%s1 + $0x74] sm:$0xf]
  %v80 = vld [vmem:[%s1 + $0x78] sm:$0xf]
  %v81 = vld [vmem:[%s1 + $0x7c] sm:$0xf]
  %v82 = vld [vmem:[%s1 + $0x80] sm:$0xf]
  %v83 = vld [vmem:[%s1 + $0x84] sm:$0xf]
  %v84 = vld [vmem:[%s1 + $0x88] sm:$0xf]
  %v85 = vld [vmem:[%s1 + $0x8c] sm:$0xf]
  %v118 = vunpack.c.l.b16 %v18
  %v119 = vunpack.c.h.b16 %v18
  %v120 = vunpack.c.l.b16 %v19
  %v121 = vunpack.c.l.b16 %v20
  %v122 = vunpack.c.h.b16 %v20
  %v123 = vunpack.c.l.b16 %v21
  %v124 = vunpack.c.l.b16 %v22
  %v125 = vunpack.c.h.b16 %v22
  %v126 = vunpack.c.l.b16 %v23
  %v127 = vunpack.c.l.b16 %v24
  %v128 = vunpack.c.h.b16 %v24
  %v129 = vunpack.c.l.b16 %v25
  %v130 = vunpack.c.l.b16 %v26
  %v131 = vunpack.c.h.b16 %v26
  %v132 = vunpack.c.l.b16 %v27
  %v133 = vunpack.c.l.b16 %v28
  %v134 = vunpack.c.h.b16 %v28
  %v135 = vunpack.c.l.b16 %v29
  %v136 = vunpack.c.l.b16 %v30
  %v137 = vunpack.c.h.b16 %v30
  %v138 = vunpack.c.l.b16 %v31
  %v139 = vunpack.c.l.b16 %v32
  %v140 = vunpack.c.h.b16 %v32
  %v141 = vunpack.c.l.b16 %v33
  %v142 = vunpack.c.l.b16 %v34
  %v143 = vunpack.c.h.b16 %v34
  %v144 = vunpack.c.l.b16 %v35
  %v145 = vunpack.c.l.b16 %v36
  %v146 = vunpack.c.h.b16 %v36
  %v147 = vunpack.c.l.b16 %v37
  %v148 = vunpack.c.l.b16 %v38
  %v149 = vunpack.c.h.b16 %v38
  %v150 = vunpack.c.l.b16 %v39
  %v151 = vunpack.c.l.b16 %v40
  %v152 = vunpack.c.h.b16 %v40
  %v153 = vunpack.c.l.b16 %v41
  %v154 = vunpack.c.l.b16 %v42
  %v155 = vunpack.c.h.b16 %v42
  %v156 = vunpack.c.l.b16 %v43
  %v157 = vunpack.c.l.b16 %v44
  %v158 = vunpack.c.h.b16 %v44
  %v159 = vunpack.c.l.b16 %v45
  %v160 = vunpack.c.l.b16 %v46
  %v161 = vunpack.c.h.b16 %v46
  %v162 = vunpack.c.l.b16 %v47
  %v163 = vunpack.c.l.b16 %v48
  %v164 = vunpack.c.h.b16 %v48
  %v165 = vunpack.c.l.b16 %v49
  %v166 = vpack.c.b16 %v121, %v118
  %v167 = vpack.c.b16 %v122, %v119
  %v168 = vpack.c.b16 %v123, %v120
  %v169 = vpack.c.b16 %v127, %v124
  %v170 = vpack.c.b16 %v128, %v125
  %v171 = vpack.c.b16 %v129, %v126
  %v172 = vpack.c.b16 %v133, %v130
  %v173 = vpack.c.b16 %v134, %v131
  %v174 = vpack.c.b16 %v135, %v132
  %v175 = vpack.c.b16 %v139, %v136
  %v176 = vpack.c.b16 %v140, %v137
  %v177 = vpack.c.b16 %v141, %v138
  %v178 = vpack.c.b16 %v145, %v142
  %v179 = vpack.c.b16 %v146, %v143
  %v180 = vpack.c.b16 %v147, %v144
  %v181 = vpack.c.b16 %v151, %v148
  %v182 = vpack.c.b16 %v152, %v149
  %v183 = vpack.c.b16 %v153, %v150
  %v184 = vpack.c.b16 %v157, %v154
  %v185 = vpack.c.b16 %v158, %v155
  %v186 = vpack.c.b16 %v159, %v156
  %v187 = vpack.c.b16 %v163, %v160
  %v188 = vpack.c.b16 %v164, %v161
  %v189 = vpack.c.b16 %v165, %v162
  %v242 = vunpack.c.l.b16 %v50
  %v243 = vunpack.c.l.b16 %v51
  %v244 = vunpack.c.l.b16 %v52
  %v245 = vunpack.c.l.b16 %v53
  %v246 = vunpack.c.l.b16 %v54
  %v247 = vunpack.c.l.b16 %v55
  %v248 = vunpack.c.l.b16 %v56
  %v249 = vunpack.c.l.b16 %v57
  %v250 = vunpack.c.l.b16 %v58
  %v251 = vunpack.c.l.b16 %v59
  %v252 = vunpack.c.l.b16 %v60
  %v253 = vunpack.c.l.b16 %v61
  %v254 = vunpack.c.l.b16 %v62
  %v255 = vunpack.c.l.b16 %v63
  %v256 = vunpack.c.l.b16 %v64
  %v257 = vunpack.c.l.b16 %v65
  %v258 = vunpack.c.l.b16 %v66
  %v259 = vunpack.c.l.b16 %v67
  %v260 = vunpack.c.l.b16 %v68
  %v261 = vunpack.c.l.b16 %v69
  %v262 = vunpack.c.l.b16 %v70
  %v263 = vunpack.c.l.b16 %v71
  %v264 = vunpack.c.l.b16 %v72
  %v265 = vunpack.c.l.b16 %v73
  %v266 = vunpack.c.l.b16 %v74
  %v267 = vunpack.c.l.b16 %v75
  %v268 = vunpack.c.l.b16 %v76
  %v269 = vunpack.c.l.b16 %v77
  %v270 = vunpack.c.l.b16 %v78
  %v271 = vunpack.c.l.b16 %v79
  %v272 = vunpack.c.l.b16 %v80
  %v273 = vunpack.c.l.b16 %v81
  %v274 = vunpack.c.l.b16 %v82
  %v275 = vunpack.c.l.b16 %v83
  %v276 = vunpack.c.l.b16 %v84
  %v277 = vunpack.c.l.b16 %v85
  %v278 = vpack.c.b16 %v243, %v242
  %v279 = vpack.c.b16 %v245, %v244
  %v280 = vpack.c.b16 %v247, %v246
  %v281 = vpack.c.b16 %v249, %v248
  %v282 = vpack.c.b16 %v251, %v250
  %v283 = vpack.c.b16 %v253, %v252
  %v284 = vpack.c.b16 %v255, %v254
  %v285 = vpack.c.b16 %v257, %v256
  %v286 = vpack.c.b16 %v259, %v258
  %v287 = vpack.c.b16 %v261, %v260
  %v288 = vpack.c.b16 %v263, %v262
  %v289 = vpack.c.b16 %v265, %v264
  %v290 = vpack.c.b16 %v267, %v266
  %v291 = vpack.c.b16 %v269, %v268
  %v292 = vpack.c.b16 %v271, %v270
  %v293 = vpack.c.b16 %v273, %v272
  %v294 = vpack.c.b16 %v275, %v274
  %v295 = vpack.c.b16 %v277, %v276
  %vm314 = vcmask 261120
  %v316 = vsel %vm314, %v168, 0
  %v319 = vsel %vm314, %v171, 0
  %v322 = vsel %vm314, %v174, 0
  %v325 = vsel %vm314, %v177, 0
  %v328 = vsel %vm314, %v180, 0
  %v331 = vsel %vm314, %v183, 0
  %v334 = vsel %vm314, %v186, 0
  %v337 = vsel %vm314, %v189, 0
  %339 = vmatprep.subr.bf16.mxu0 0
  %340 = vmatpush1.bf16.msra.mxu0 %v278
  %341 = vmatprep.subr.bf16.mxu0 0
  %342 = vmatpush1.bf16.msra.mxu0 %v279
  %343 = vmatprep.subr.bf16.mxu0 0
  %344 = vmatpush1.bf16.msra.mxu0 %v280
  %345 = vmatprep.subr.bf16.mxu0 0
  %346 = vmatpush1.bf16.msra.mxu0 %v281
  %347 = vmatprep.subr.bf16.mxu0 0
  %348 = vmatpush1.bf16.msra.mxu0 %v282
  %349 = vmatprep.subr.bf16.mxu0 0
  %350 = vmatpush1.bf16.msra.mxu0 %v283
  %351 = vmatprep.subr.bf16.mxu0 0
  %352 = vmatpush1.bf16.msra.mxu0 %v284
  %353 = vmatprep.subr.bf16.mxu0 0
  %354 = vmatpush1.bf16.msra.mxu0 %v285
  %355 = vmatprep.subr.bf16.mxu0 0
  %356 = vmatpush1.bf16.msra.mxu0 %v286
  %357 = vmatprep.subr.bf16.mxu0 0
  %358 = vmatpush1.bf16.msra.mxu0 %v287
  %359 = vmatprep.subr.bf16.mxu0 0
  %360 = vmatpush1.bf16.msra.mxu0 %v288
  %361 = vmatprep.subr.bf16.mxu0 0
  %362 = vmatpush1.bf16.msra.mxu0 %v289
  %363 = vmatprep.subr.bf16.mxu0 0
  %364 = vmatpush1.bf16.msra.mxu0 %v290
  %365 = vmatprep.subr.bf16.mxu0 0
  %366 = vmatpush1.bf16.msra.mxu0 %v291
  %367 = vmatprep.subr.bf16.mxu0 0
  %368 = vmatpush1.bf16.msra.mxu0 %v292
  %369 = vmatprep.subr.bf16.mxu0 0
  %370 = vmatpush1.bf16.msra.mxu0 %v293
  %371 = vmatprep.mubr.bf16.mxu0 %v167
  %372 = vmatmul.mubr.bf16.gmra.mrb[0].mxu0 %v166
  %v373 = vpop.f32.mrb[0].mxu0
  %v374 = vadd.f32 0.0, %v373
  %v375 = vpop.f32.mrb[0].mxu0
  %v376 = vpop.f32.mrb[0].mxu0
  %v377 = vadd.f32 0.0, %v376
  %v378 = vpop.f32.mrb[0].mxu0
  %379 = vmatprep.mubr.bf16.mxu0 %v170
  %380 = vmatmul.mubr.bf16.gmra.mrb[0].mxu0 %v169
  %v381 = vpop.f32.mrb[0].mxu0
  %v382 = vadd.f32 0.0, %v381
  %v383 = vpop.f32.mrb[0].mxu0
  %v384 = vpop.f32.mrb[0].mxu0
  %v385 = vadd.f32 0.0, %v384
  %v386 = vpop.f32.mrb[0].mxu0
  %387 = vmatprep.mubr.bf16.mxu0 %v173
  %388 = vmatmul.mubr.bf16.gmra.mrb[0].mxu0 %v172
  %v389 = vpop.f32.mrb[0].mxu0
  %v390 = vadd.f32 0.0, %v389
  %v391 = vpop.f32.mrb[0].mxu0
  %v392 = vpop.f32.mrb[0].mxu0
  %v393 = vadd.f32 0.0, %v392
  %v394 = vpop.f32.mrb[0].mxu0
  %395 = vmatprep.mubr.bf16.mxu0 %v176
  %396 = vmatmul.mubr.bf16.gmra.mrb[0].mxu0 %v175
  %v397 = vpop.f32.mrb[0].mxu0
  %v398 = vadd.f32 0.0, %v397
  %v399 = vpop.f32.mrb[0].mxu0
  %v400 = vpop.f32.mrb[0].mxu0
  %v401 = vadd.f32 0.0, %v400
  %v402 = vpop.f32.mrb[0].mxu0
  %403 = vmatprep.mubr.bf16.mxu0 %v179
  %404 = vmatmul.mubr.bf16.gmra.mrb[0].mxu0 %v178
  %v405 = vpop.f32.mrb[0].mxu0
  %v406 = vadd.f32 0.0, %v405
  %v407 = vpop.f32.mrb[0].mxu0
  %v408 = vpop.f32.mrb[0].mxu0
  %v409 = vadd.f32 0.0, %v408
  %v410 = vpop.f32.mrb[0].mxu0
  %411 = vmatprep.mubr.bf16.mxu0 %v182
  %412 = vmatmul.mubr.bf16.gmra.mrb[0].mxu0 %v181
  %v413 = vpop.f32.mrb[0].mxu0
  %v414 = vadd.f32 0.0, %v413
  %v415 = vpop.f32.mrb[0].mxu0
  %v416 = vpop.f32.mrb[0].mxu0
  %v417 = vadd.f32 0.0, %v416
  %v418 = vpop.f32.mrb[0].mxu0
  %419 = vmatprep.mubr.bf16.mxu0 %v185
  %420 = vmatmul.mubr.bf16.gmra.mrb[0].mxu0 %v184
  %v421 = vpop.f32.mrb[0].mxu0
  %v422 = vadd.f32 0.0, %v421
  %v423 = vpop.f32.mrb[0].mxu0
  %v424 = vpop.f32.mrb[0].mxu0
  %v425 = vadd.f32 0.0, %v424
  %v426 = vpop.f32.mrb[0].mxu0
  %427 = vmatprep.mubr.bf16.mxu0 %v188
  %428 = vmatmul.mubr.bf16.gmra.mrb[0].mxu0 %v187
  %v429 = vpop.f32.mrb[0].mxu0
  %v430 = vadd.f32 0.0, %v429
  %v431 = vpop.f32.mrb[0].mxu0
  %v432 = vpop.f32.mrb[0].mxu0
  %v433 = vadd.f32 0.0, %v432
  %v434 = vpop.f32.mrb[0].mxu0
  %435 = vdwg.mxu0
  %436 = vmatprep.subr.bf16.mxu0 0
  %437 = vmatpush1.bf16.msra.mxu0 %v294
  %438 = vmatprep.subr.bf16.mxu0 0
  %439 = vmatpush1.bf16.msra.mxu0 %v295
  %440 = vmatprep.subr.bf16.mxu0 0
  %441 = vmatpush1.bf16.msra.mxu0 0
  %442 = vmatprep.subr.bf16.mxu0 0
  %443 = vmatpush1.bf16.msra.mxu0 0
  %444 = vmatprep.subr.bf16.mxu0 0
  %445 = vmatpush1.bf16.msra.mxu0 0
  %446 = vmatprep.subr.bf16.mxu0 0
  %447 = vmatpush1.bf16.msra.mxu0 0
  %448 = vmatprep.subr.bf16.mxu0 0
  %449 = vmatpush1.bf16.msra.mxu0 0
  %450 = vmatprep.subr.bf16.mxu0 0
  %451 = vmatpush1.bf16.msra.mxu0 0
  %452 = vmatprep.subr.bf16.mxu0 0
  %453 = vmatpush1.bf16.msra.mxu0 0
  %454 = vmatprep.subr.bf16.mxu0 0
  %455 = vmatpush1.bf16.msra.mxu0 0
  %456 = vmatprep.subr.bf16.mxu0 0
  %457 = vmatpush1.bf16.msra.mxu0 0
  %458 = vmatprep.subr.bf16.mxu0 0
  %459 = vmatpush1.bf16.msra.mxu0 0
  %460 = vmatprep.subr.bf16.mxu0 0
  %461 = vmatpush1.bf16.msra.mxu0 0
  %462 = vmatprep.subr.bf16.mxu0 0
  %463 = vmatpush1.bf16.msra.mxu0 0
  %464 = vmatprep.subr.bf16.mxu0 0
  %465 = vmatpush1.bf16.msra.mxu0 0
  %466 = vmatprep.subr.bf16.mxu0 0
  %467 = vmatpush1.bf16.msra.mxu0 0
  %468 = vmatprep.mubr.bf16.mxu0 0
  %469 = vmatmul.mubr.bf16.gmra.mrb[0].mxu0 %v316
  %v470 = vpop.f32.mrb[0].mxu0
  %v471 = vadd.f32 %v374, %v470
  %v472 = vpop.f32.mrb[0].mxu0
  %v473 = vpop.f32.mrb[0].mxu0
  %v474 = vadd.f32 %v377, %v473
  %v475 = vpop.f32.mrb[0].mxu0
  %476 = vmatprep.mubr.bf16.mxu0 0
  %477 = vmatmul.mubr.bf16.gmra.mrb[0].mxu0 %v319
  %v478 = vpop.f32.mrb[0].mxu0
  %v479 = vadd.f32 %v382, %v478
  %v480 = vpop.f32.mrb[0].mxu0
  %v481 = vpop.f32.mrb[0].mxu0
  %v482 = vadd.f32 %v385, %v481
  %v483 = vpop.f32.mrb[0].mxu0
  %484 = vmatprep.mubr.bf16.mxu0 0
  %485 = vmatmul.mubr.bf16.gmra.mrb[0].mxu0 %v322
  %v486 = vpop.f32.mrb[0].mxu0
  %v487 = vadd.f32 %v390, %v486
  %v488 = vpop.f32.mrb[0].mxu0
  %v489 = vpop.f32.mrb[0].mxu0
  %v490 = vadd.f32 %v393, %v489
  %v491 = vpop.f32.mrb[0].mxu0
  %492 = vmatprep.mubr.bf16.mxu0 0
  %493 = vmatmul.mubr.bf16.gmra.mrb[0].mxu0 %v325
  %v494 = vpop.f32.mrb[0].mxu0
  %v495 = vadd.f32 %v398, %v494
  %v496 = vpop.f32.mrb[0].mxu0
  %v497 = vpop.f32.mrb[0].mxu0
  %v498 = vadd.f32 %v401, %v497
  %v499 = vpop.f32.mrb[0].mxu0
  %500 = vmatprep.mubr.bf16.mxu0 0
  %501 = vmatmul.mubr.bf16.gmra.mrb[0].mxu0 %v328
  %v502 = vpop.f32.mrb[0].mxu0
  %v503 = vadd.f32 %v406, %v502
  %v504 = vpop.f32.mrb[0].mxu0
  %v505 = vpop.f32.mrb[0].mxu0
  %v506 = vadd.f32 %v409, %v505
  %v507 = vpop.f32.mrb[0].mxu0
  %508 = vmatprep.mubr.bf16.mxu0 0
  %509 = vmatmul.mubr.bf16.gmra.mrb[0].mxu0 %v331
  %v510 = vpop.f32.mrb[0].mxu0
  %v511 = vadd.f32 %v414, %v510
  %v512 = vpop.f32.mrb[0].mxu0
  %v513 = vpop.f32.mrb[0].mxu0
  %v514 = vadd.f32 %v417, %v513
  %v515 = vpop.f32.mrb[0].mxu0
  %516 = vmatprep.mubr.bf16.mxu0 0
  %517 = vmatmul.mubr.bf16.gmra.mrb[0].mxu0 %v334
  %v518 = vpop.f32.mrb[0].mxu0
  %v519 = vadd.f32 %v422, %v518
  %v520 = vpop.f32.mrb[0].mxu0
  %v521 = vpop.f32.mrb[0].mxu0
  %v522 = vadd.f32 %v425, %v521
  %v523 = vpop.f32.mrb[0].mxu0
  %524 = vmatprep.mubr.bf16.mxu0 0
  %525 = vmatmul.mubr.bf16.gmra.mrb[0].mxu0 %v337
  %v526 = vpop.f32.mrb[0].mxu0
  %v527 = vadd.f32 %v430, %v526
  %v528 = vpop.f32.mrb[0].mxu0
  %v529 = vpop.f32.mrb[0].mxu0
  %v530 = vadd.f32 %v433, %v529
  %v531 = vpop.f32.mrb[0].mxu0
  %532 = vdwg.mxu0
  %v533 = vld [vmem:[%s2] sm:$0x1]
  %v535 = vlaneseq
  %v536 = vshrl.u32 %v535, 7
  %v537 = vsub.s32 0, %v536
  %v538 = vrot.slane %v533, %v537
  %v540 = vmul.f32 %v471, %v538
  %v541 = vmul.f32 %v474, %v538
  %v542 = vmul.f32 %v479, %v538
  %v543 = vmul.f32 %v482, %v538
  %v544 = vmul.f32 %v487, %v538
  %v545 = vmul.f32 %v490, %v538
  %v546 = vmul.f32 %v495, %v538
  %v547 = vmul.f32 %v498, %v538
  %v548 = vmul.f32 %v503, %v538
  %v549 = vmul.f32 %v506, %v538
  %v550 = vmul.f32 %v511, %v538
  %v551 = vmul.f32 %v514, %v538
  %v552 = vmul.f32 %v519, %v538
  %v553 = vmul.f32 %v522, %v538
  %v554 = vmul.f32 %v527, %v538
  %v555 = vmul.f32 %v530, %v538
  %v556 = vld [vmem:[%s3] sm:$0x1]
  %v558 = vlaneseq
  %v559 = vshrl.u32 %v558, 7
  %v560 = vsub.s32 0, %v559
  %v561 = vrot.slane %v556, %v560
  %v563 = vadd.f32 %v540, %v561
  %v564 = vadd.f32 %v541, %v561
  %v565 = vadd.f32 %v542, %v561
  %v566 = vadd.f32 %v543, %v561
  %v567 = vadd.f32 %v544, %v561
  %v568 = vadd.f32 %v545, %v561
  %v569 = vadd.f32 %v546, %v561
  %v570 = vadd.f32 %v547, %v561
  %v571 = vadd.f32 %v548, %v561
  %v572 = vadd.f32 %v549, %v561
  %v573 = vadd.f32 %v550, %v561
  %v574 = vadd.f32 %v551, %v561
  %v575 = vadd.f32 %v552, %v561
  %v576 = vadd.f32 %v553, %v561
  %v577 = vadd.f32 %v554, %v561
  %v578 = vadd.f32 %v555, %v561
  %v579 = vmax.f32 %v563, 0.0
  %v580 = vmax.f32 %v564, 0.0
  %v581 = vmax.f32 %v565, 0.0
  %v582 = vmax.f32 %v566, 0.0
  %v583 = vmax.f32 %v567, 0.0
  %v584 = vmax.f32 %v568, 0.0
  %v585 = vmax.f32 %v569, 0.0
  %v586 = vmax.f32 %v570, 0.0
  %v587 = vmax.f32 %v571, 0.0
  %v588 = vmax.f32 %v572, 0.0
  %v589 = vmax.f32 %v573, 0.0
  %v590 = vmax.f32 %v574, 0.0
  %v591 = vmax.f32 %v575, 0.0
  %v592 = vmax.f32 %v576, 0.0
  %v593 = vmax.f32 %v577, 0.0
  %v594 = vmax.f32 %v578, 0.0
  %vm595 = vcmask 31744
  %596 = vst.msk [vmem:[%s4] sm:$0xff] %vm595, %v579
  %597 = vst.msk [vmem:[%s4 + $0x8] sm:$0xff] %vm595, %v580
  %598 = vst.msk [vmem:[%s4 + $0x10] sm:$0xff] %vm595, %v581
  %599 = vst.msk [vmem:[%s4 + $0x18] sm:$0xff] %vm595, %v582
  %600 = vst.msk [vmem:[%s4 + $0x20] sm:$0xff] %vm595, %v583
  %601 = vst.msk [vmem:[%s4 + $0x28] sm:$0xff] %vm595, %v584
  %602 = vst.msk [vmem:[%s4 + $0x30] sm:$0xff] %vm595, %v585
  %603 = vst.msk [vmem:[%s4 + $0x38] sm:$0xff] %vm595, %v586
  %604 = vst.msk [vmem:[%s4 + $0x40] sm:$0xff] %vm595, %v587
  %605 = vst.msk [vmem:[%s4 + $0x48] sm:$0xff] %vm595, %v588
  %606 = vst.msk [vmem:[%s4 + $0x50] sm:$0xff] %vm595, %v589
  %607 = vst.msk [vmem:[%s4 + $0x58] sm:$0xff] %vm595, %v590
  %608 = vst.msk [vmem:[%s4 + $0x60] sm:$0xff] %vm595, %v591
  %609 = vst.msk [vmem:[%s4 + $0x68] sm:$0xff] %vm595, %v592
  %610 = vst.msk [vmem:[%s4 + $0x70] sm:$0xff] %vm595, %v593
  %611 = vst.msk [vmem:[%s4 + $0x78] sm:$0xff] %vm595, %v594
  // Predicated region
  $region18: #{unet_forward.37} parent=0 // pred_check
    _
  $region19: #{unet_forward.37} parent=0 // pred_check_branch
    %613 = sbr.rel (0) target = $region21
  $region20: #{unet_forward.37} parent=0 // pred_region
    _
  $region21: #{unet_forward.37} parent=0 // pred_fallthru
    _
  // Predicated region
  $region22: #{unet_forward.37} parent=0 // pred_check
    _
  $region23: #{unet_forward.37} parent=0 // pred_check_branch
    %615 = sbr.rel (0) target = $region25
  $region24: #{unet_forward.37} parent=0 // pred_region
    _
  $region25: #{unet_forward.37} parent=0 // pred_fallthru
    _

// kernel: unet_forward.38
$region0: #{unet_forward.38}
  #allocation0 [shape = 'u32[]', space=smem, size = 0x4, offset = 0x4, fixed_abs, tag = 'smem constant byte address 0x4 - core index']
  #allocation1 [shape = 'u32[144,128]{1,0:T(1,128)}', space=vmem, size = 0x12000, scoped, tag = 'internal scratch']
  %s0 = inlined_call_operand.vmem [shape: bf16[128,36], index: 0, kind: input, shape index: {}]
  %s1 = inlined_call_operand.vmem [shape: bf16[36,4], index: 1, kind: input, shape index: {}]
  %s2 = inlined_call_operand.vmem [shape: f32[1,4], index: 2, kind: input, shape index: {}]
  %s3 = inlined_call_operand.vmem [shape: f32[1,4], index: 3, kind: input, shape index: {}]
  %s4 = inlined_call_operand.vmem [shape: f32[128,4], index: 4, kind: output, shape index: {}]
  %s5 = sld [smem:[#allocation0]]
  $region26: #{unet_forward.38} parent=0
    _
  %s7 = ssub.s32 1, %s5
  %s8 = scalar_select 0, %s7, %s5
  // Predicated region
  $region2: #{unet_forward.38} parent=0 // pred_check
    _
  $region3: #{unet_forward.38} parent=0 // pred_check_branch
    %10 = sbr.rel (0) target = $region5
  $region4: #{unet_forward.38} parent=0 // pred_region
    _
  $region5: #{unet_forward.38} parent=0 // pred_fallthru
    _
  // Predicated region
  $region6: #{unet_forward.38} parent=0 // pred_check
    _
  $region7: #{unet_forward.38} parent=0 // pred_check_branch
    %12 = sbr.rel (0) target = $region9
  $region8: #{unet_forward.38} parent=0 // pred_region
    _
  $region9: #{unet_forward.38} parent=0 // pred_fallthru
    _
  // Predicated region
  $region10: #{unet_forward.38} parent=0 // pred_check
    _
  $region11: #{unet_forward.38} parent=0 // pred_check_branch
    %14 = sbr.rel (0) target = $region13
  $region12: #{unet_forward.38} parent=0 // pred_region
    _
  $region13: #{unet_forward.38} parent=0 // pred_fallthru
    _
  // Predicated region
  $region14: #{unet_forward.38} parent=0 // pred_check
    _
  $region15: #{unet_forward.38} parent=0 // pred_check_branch
    %16 = sbr.rel (0) target = $region17
  $region16: #{unet_forward.38} parent=0 // pred_region
    _
  $region17: #{unet_forward.38} parent=0 // pred_fallthru
    _
  %v18 = vld [vmem:[%s0] sm:$0xf]
  %v19 = vld [vmem:[%s0 + $0x4] sm:$0xf]
  %v20 = vld [vmem:[%s0 + $0x8] sm:$0xf]
  %v21 = vld [vmem:[%s0 + $0xc] sm:$0xf]
  %v22 = vld [vmem:[%s0 + $0x10] sm:$0xf]
  %v23 = vld [vmem:[%s0 + $0x14] sm:$0xf]
  %v24 = vld [vmem:[%s0 + $0x18] sm:$0xf]
  %v25 = vld [vmem:[%s0 + $0x1c] sm:$0xf]
  %v26 = vld [vmem:[%s0 + $0x20] sm:$0xf]
  %v27 = vld [vmem:[%s0 + $0x24] sm:$0xf]
  %v28 = vld [vmem:[%s0 + $0x28] sm:$0xf]
  %v29 = vld [vmem:[%s0 + $0x2c] sm:$0xf]
  %v30 = vld [vmem:[%s0 + $0x30] sm:$0xf]
  %v31 = vld [vmem:[%s0 + $0x34] sm:$0xf]
  %v32 = vld [vmem:[%s0 + $0x38] sm:$0xf]
  %v33 = vld [vmem:[%s0 + $0x3c] sm:$0xf]
  %v34 = vld [vmem:[%s1] sm:$0xf]
  %v35 = vld [vmem:[%s1 + $0x4] sm:$0xf]
  %v36 = vld [vmem:[%s1 + $0x8] sm:$0xf]
  %v37 = vld [vmem:[%s1 + $0xc] sm:$0xf]
  %v38 = vld [vmem:[%s1 + $0x10] sm:$0x3]
  %v55 = vunpack.c.l.b16 %v18
  %v56 = vunpack.c.l.b16 %v19
  %v57 = vunpack.c.l.b16 %v20
  %v58 = vunpack.c.l.b16 %v21
  %v59 = vunpack.c.l.b16 %v22
  %v60 = vunpack.c.l.b16 %v23
  %v61 = vunpack.c.l.b16 %v24
  %v62 = vunpack.c.l.b16 %v25
  %v63 = vunpack.c.l.b16 %v26
  %v64 = vunpack.c.l.b16 %v27
  %v65 = vunpack.c.l.b16 %v28
  %v66 = vunpack.c.l.b16 %v29
  %v67 = vunpack.c.l.b16 %v30
  %v68 = vunpack.c.l.b16 %v31
  %v69 = vunpack.c.l.b16 %v32
  %v70 = vunpack.c.l.b16 %v33
  %v71 = vpack.c.b16 %v56, %v55
  %v72 = vpack.c.b16 %v58, %v57
  %v73 = vpack.c.b16 %v60, %v59
  %v74 = vpack.c.b16 %v62, %v61
  %v75 = vpack.c.b16 %v64, %v63
  %v76 = vpack.c.b16 %v66, %v65
  %v77 = vpack.c.b16 %v68, %v67
  %v78 = vpack.c.b16 %v70, %v69
  %v84 = vunpack.c.l.b16 %v34
  %v85 = vunpack.c.l.b16 %v35
  %v86 = vunpack.c.l.b16 %v36
  %v87 = vunpack.c.l.b16 %v37
  %v88 = vunpack.c.l.b16 %v38
  %v89 = vpack.c.b16 %v85, %v84
  %v90 = vpack.c.b16 %v87, %v86
  %v91 = vpack.c.b16 %v88, %v88
  %vm94 = vcmask 293888
  %v96 = vsel %vm94, %v71, 0
  %v99 = vsel %vm94, %v72, 0
  %v102 = vsel %vm94, %v73, 0
  %v105 = vsel %vm94, %v74, 0
  %v108 = vsel %vm94, %v75, 0
  %v111 = vsel %vm94, %v76, 0
  %v114 = vsel %vm94, %v77, 0
  %v117 = vsel %vm94, %v78, 0
  %vm119 = vcmask 1041408
  %v121 = vsel %vm119, %v91, 0
  %123 = vmatprep.subr.bf16.mxu0 0
  %124 = vmatpush1.bf16.msra.mxu0 %v89
  %125 = vmatprep.subr.bf16.mxu0 0
  %126 = vmatpush1.bf16.msra.mxu0 %v90
  %127 = vmatprep.subr.bf16.mxu0 0
  %128 = vmatpush1.bf16.msra.mxu0 %v121
  %129 = vmatprep.subr.bf16.mxu0 0
  %130 = vmatpush1.bf16.msra.mxu0 0
  %131 = vmatprep.subr.bf16.mxu0 0
  %132 = vmatpush1.bf16.msra.mxu0 0
  %133 = vmatprep.subr.bf16.mxu0 0
  %134 = vmatpush1.bf16.msra.mxu0 0
  %135 = vmatprep.subr.bf16.mxu0 0
  %136 = vmatpush1.bf16.msra.mxu0 0
  %137 = vmatprep.subr.bf16.mxu0 0
  %138 = vmatpush1.bf16.msra.mxu0 0
  %139 = vmatprep.subr.bf16.mxu0 0
  %140 = vmatpush1.bf16.msra.mxu0 0
  %141 = vmatprep.subr.bf16.mxu0 0
  %142 = vmatpush1.bf16.msra.mxu0 0
  %143 = vmatprep.subr.bf16.mxu0 0
  %144 = vmatpush1.bf16.msra.mxu0 0
  %145 = vmatprep.subr.bf16.mxu0 0
  %146 = vmatpush1.bf16.msra.mxu0 0
  %147 = vmatprep.subr.bf16.mxu0 0
  %148 = vmatpush1.bf16.msra.mxu0 0
  %149 = vmatprep.subr.bf16.mxu0 0
  %150 = vmatpush1.bf16.msra.mxu0 0
  %151 = vmatprep.subr.bf16.mxu0 0
  %152 = vmatpush1.bf16.msra.mxu0 0
  %153 = vmatprep.subr.bf16.mxu0 0
  %154 = vmatpush1.bf16.msra.mxu0 0
  %155 = vmatprep.mubr.bf16.mxu0 0
  %156 = vmatmul.mubr.bf16.gmra.mrb[0].mxu0 %v96
  %v157 = vpop.f32.mrb[0].mxu0
  %v158 = vadd.f32 0.0, %v157
  %v159 = vpop.f32.mrb[0].mxu0
  %v160 = vpop.f32.mrb[0].mxu0
  %v161 = vadd.f32 0.0, %v160
  %v162 = vpop.f32.mrb[0].mxu0
  %163 = vmatprep.mubr.bf16.mxu0 0
  %164 = vmatmul.mubr.bf16.gmra.mrb[0].mxu0 %v99
  %v165 = vpop.f32.mrb[0].mxu0
  %v166 = vadd.f32 0.0, %v165
  %v167 = vpop.f32.mrb[0].mxu0
  %v168 = vpop.f32.mrb[0].mxu0
  %v169 = vadd.f32 0.0, %v168
  %v170 = vpop.f32.mrb[0].mxu0
  %171 = vmatprep.mubr.bf16.mxu0 0
  %172 = vmatmul.mubr.bf16.gmra.mrb[0].mxu0 %v102
  %v173 = vpop.f32.mrb[0].mxu0
  %v174 = vadd.f32 0.0, %v173
  %v175 = vpop.f32.mrb[0].mxu0
  %v176 = vpop.f32.mrb[0].mxu0
  %v177 = vadd.f32 0.0, %v176
  %v178 = vpop.f32.mrb[0].mxu0
  %179 = vmatprep.mubr.bf16.mxu0 0
  %180 = vmatmul.mubr.bf16.gmra.mrb[0].mxu0 %v105
  %v181 = vpop.f32.mrb[0].mxu0
  %v182 = vadd.f32 0.0, %v181
  %v183 = vpop.f32.mrb[0].mxu0
  %v184 = vpop.f32.mrb[0].mxu0
  %v185 = vadd.f32 0.0, %v184
  %v186 = vpop.f32.mrb[0].mxu0
  %187 = vmatprep.mubr.bf16.mxu0 0
  %188 = vmatmul.mubr.bf16.gmra.mrb[0].mxu0 %v108
  %v189 = vpop.f32.mrb[0].mxu0
  %v190 = vadd.f32 0.0, %v189
  %v191 = vpop.f32.mrb[0].mxu0
  %v192 = vpop.f32.mrb[0].mxu0
  %v193 = vadd.f32 0.0, %v192
  %v194 = vpop.f32.mrb[0].mxu0
  %195 = vmatprep.mubr.bf16.mxu0 0
  %196 = vmatmul.mubr.bf16.gmra.mrb[0].mxu0 %v111
  %v197 = vpop.f32.mrb[0].mxu0
  %v198 = vadd.f32 0.0, %v197
  %v199 = vpop.f32.mrb[0].mxu0
  %v200 = vpop.f32.mrb[0].mxu0
  %v201 = vadd.f32 0.0, %v200
  %v202 = vpop.f32.mrb[0].mxu0
  %203 = vmatprep.mubr.bf16.mxu0 0
  %204 = vmatmul.mubr.bf16.gmra.mrb[0].mxu0 %v114
  %v205 = vpop.f32.mrb[0].mxu0
  %v206 = vadd.f32 0.0, %v205
  %v207 = vpop.f32.mrb[0].mxu0
  %v208 = vpop.f32.mrb[0].mxu0
  %v209 = vadd.f32 0.0, %v208
  %v210 = vpop.f32.mrb[0].mxu0
  %211 = vmatprep.mubr.bf16.mxu0 0
  %212 = vmatmul.mubr.bf16.gmra.mrb[0].mxu0 %v117
  %v213 = vpop.f32.mrb[0].mxu0
  %v214 = vadd.f32 0.0, %v213
  %v215 = vpop.f32.mrb[0].mxu0
  %v216 = vpop.f32.mrb[0].mxu0
  %v217 = vadd.f32 0.0, %v216
  %v218 = vpop.f32.mrb[0].mxu0
  %219 = vdwg.mxu0
  %v220 = vld [vmem:[%s2] sm:$0x1]
  %v222 = vlaneseq
  %v223 = vshrl.u32 %v222, 7
  %v224 = vsub.s32 0, %v223
  %v225 = vrot.slane %v220, %v224
  %v227 = vmul.f32 %v158, %v225
  %v228 = vmul.f32 %v161, %v225
  %v229 = vmul.f32 %v166, %v225
  %v230 = vmul.f32 %v169, %v225
  %v231 = vmul.f32 %v174, %v225
  %v232 = vmul.f32 %v177, %v225
  %v233 = vmul.f32 %v182, %v225
  %v234 = vmul.f32 %v185, %v225
  %v235 = vmul.f32 %v190, %v225
  %v236 = vmul.f32 %v193, %v225
  %v237 = vmul.f32 %v198, %v225
  %v238 = vmul.f32 %v201, %v225
  %v239 = vmul.f32 %v206, %v225
  %v240 = vmul.f32 %v209, %v225
  %v241 = vmul.f32 %v214, %v225
  %v242 = vmul.f32 %v217, %v225
  %v243 = vld [vmem:[%s3] sm:$0x1]
  %v245 = vlaneseq
  %v246 = vshrl.u32 %v245, 7
  %v247 = vsub.s32 0, %v246
  %v248 = vrot.slane %v243, %v247
  %v250 = vadd.f32 %v227, %v248
  %v251 = vadd.f32 %v228, %v248
  %v252 = vadd.f32 %v229, %v248
  %v253 = vadd.f32 %v230, %v248
  %v254 = vadd.f32 %v231, %v248
  %v255 = vadd.f32 %v232, %v248
  %v256 = vadd.f32 %v233, %v248
  %v257 = vadd.f32 %v234, %v248
  %v258 = vadd.f32 %v235, %v248
  %v259 = vadd.f32 %v236, %v248
  %v260 = vadd.f32 %v237, %v248
  %v261 = vadd.f32 %v238, %v248
  %v262 = vadd.f32 %v239, %v248
  %v263 = vadd.f32 %v240, %v248
  %v264 = vadd.f32 %v241, %v248
  %v265 = vadd.f32 %v242, %v248
  %v266 = vmax.f32 %v250, 0.0
  %v267 = vmax.f32 %v251, 0.0
  %v268 = vmax.f32 %v252, 0.0
  %v269 = vmax.f32 %v253, 0.0
  %v270 = vmax.f32 %v254, 0.0
  %v271 = vmax.f32 %v255, 0.0
  %v272 = vmax.f32 %v256, 0.0
  %v273 = vmax.f32 %v257, 0.0
  %v274 = vmax.f32 %v258, 0.0
  %v275 = vmax.f32 %v259, 0.0
  %v276 = vmax.f32 %v260, 0.0
  %v277 = vmax.f32 %v261, 0.0
  %v278 = vmax.f32 %v262, 0.0
  %v279 = vmax.f32 %v263, 0.0
  %v280 = vmax.f32 %v264, 0.0
  %v281 = vmax.f32 %v265, 0.0
  %vm282 = vcmask 31744
  %283 = vst.msk [vmem:[%s4] sm:$0xff] %vm282, %v266
  %284 = vst.msk [vmem:[%s4 + $0x8] sm:$0xff] %vm282, %v267
  %285 = vst.msk [vmem:[%s4 + $0x10] sm:$0xff] %vm282, %v268
  %286 = vst.msk [vmem:[%s4 + $0x18] sm:$0xff] %vm282, %v269
  %287 = vst.msk [vmem:[%s4 + $0x20] sm:$0xff] %vm282, %v270
  %288 = vst.msk [vmem:[%s4 + $0x28] sm:$0xff] %vm282, %v271
  %289 = vst.msk [vmem:[%s4 + $0x30] sm:$0xff] %vm282, %v272
  %290 = vst.msk [vmem:[%s4 + $0x38] sm:$0xff] %vm282, %v273
  %291 = vst.msk [vmem:[%s4 + $0x40] sm:$0xff] %vm282, %v274
  %292 = vst.msk [vmem:[%s4 + $0x48] sm:$0xff] %vm282, %v275
  %293 = vst.msk [vmem:[%s4 + $0x50] sm:$0xff] %vm282, %v276
  %294 = vst.msk [vmem:[%s4 + $0x58] sm:$0xff] %vm282, %v277
  %295 = vst.msk [vmem:[%s4 + $0x60] sm:$0xff] %vm282, %v278
  %296 = vst.msk [vmem:[%s4 + $0x68] sm:$0xff] %vm282, %v279
  %297 = vst.msk [vmem:[%s4 + $0x70] sm:$0xff] %vm282, %v280
  %298 = vst.msk [vmem:[%s4 + $0x78] sm:$0xff] %vm282, %v281
  // Predicated region
  $region18: #{unet_forward.38} parent=0 // pred_check
    _
  $region19: #{unet_forward.38} parent=0 // pred_check_branch
    %300 = sbr.rel (0) target = $region21
  $region20: #{unet_forward.38} parent=0 // pred_region
    _
  $region21: #{unet_forward.38} parent=0 // pred_fallthru
    _
  // Predicated region
  $region22: #{unet_forward.38} parent=0 // pred_check
    _
  $region23: #{unet_forward.38} parent=0 // pred_check_branch
    %302 = sbr.rel (0) target = $region25
  $region24: #{unet_forward.38} parent=0 // pred_region
    _
  $region25: #{unet_forward.38} parent=0 // pred_fallthru
    _

// kernel: unet_forward.39
$region0: #{unet_forward.39}
  #allocation0 [shape = 'u32[]', space=smem, size = 0x4, offset = 0x4, fixed_abs, tag = 'smem constant byte address 0x4 - core index']
  #allocation1 [shape = 'u32[144,128]{1,0:T(1,128)}', space=vmem, size = 0x12000, scoped, tag = 'internal scratch']
  %s0 = inlined_call_operand.vmem [shape: bf16[512,36], index: 0, kind: input, shape index: {}]
  %s1 = inlined_call_operand.vmem [shape: bf16[36,4], index: 1, kind: input, shape index: {}]
  %s2 = inlined_call_operand.vmem [shape: f32[1,4], index: 2, kind: input, shape index: {}]
  %s3 = inlined_call_operand.vmem [shape: f32[1,4], index: 3, kind: input, shape index: {}]
  %s4 = inlined_call_operand.vmem [shape: f32[512,4], index: 4, kind: output, shape index: {}]
  %s5 = sld [smem:[#allocation0]]
  $region26: #{unet_forward.39} parent=0
    _
  %s7 = ssub.s32 1, %s5
  %s8 = scalar_select 0, %s7, %s5
  // Predicated region
  $region2: #{unet_forward.39} parent=0 // pred_check
    _
  $region3: #{unet_forward.39} parent=0 // pred_check_branch
    %10 = sbr.rel (0) target = $region5
  $region4: #{unet_forward.39} parent=0 // pred_region
    _
  $region5: #{unet_forward.39} parent=0 // pred_fallthru
    _
  // Predicated region
  $region6: #{unet_forward.39} parent=0 // pred_check
    _
  $region7: #{unet_forward.39} parent=0 // pred_check_branch
    %12 = sbr.rel (0) target = $region9
  $region8: #{unet_forward.39} parent=0 // pred_region
    _
  $region9: #{unet_forward.39} parent=0 // pred_fallthru
    _
  // Predicated region
  $region10: #{unet_forward.39} parent=0 // pred_check
    _
  $region11: #{unet_forward.39} parent=0 // pred_check_branch
    %14 = sbr.rel (0) target = $region13
  $region12: #{unet_forward.39} parent=0 // pred_region
    _
  $region13: #{unet_forward.39} parent=0 // pred_fallthru
    _
  // Predicated region
  $region14: #{unet_forward.39} parent=0 // pred_check
    _
  $region15: #{unet_forward.39} parent=0 // pred_check_branch
    %16 = sbr.rel (0) target = $region17
  $region16: #{unet_forward.39} parent=0 // pred_region
    _
  $region17: #{unet_forward.39} parent=0 // pred_fallthru
    _
  %v18 = vld [vmem:[%s0] sm:$0xf]
  %v19 = vld [vmem:[%s0 + $0x4] sm:$0xf]
  %v20 = vld [vmem:[%s0 + $0x8] sm:$0xf]
  %v21 = vld [vmem:[%s0 + $0xc] sm:$0xf]
  %v22 = vld [vmem:[%s0 + $0x10] sm:$0xf]
  %v23 = vld [vmem:[%s0 + $0x14] sm:$0xf]
  %v24 = vld [vmem:[%s0 + $0x18] sm:$0xf]
  %v25 = vld [vmem:[%s0 + $0x1c] sm:$0xf]
  %v26 = vld [vmem:[%s0 + $0x20] sm:$0xf]
  %v27 = vld [vmem:[%s0 + $0x24] sm:$0xf]
  %v28 = vld [vmem:[%s0 + $0x28] sm:$0xf]
  %v29 = vld [vmem:[%s0 + $0x2c] sm:$0xf]
  %v30 = vld [vmem:[%s0 + $0x30] sm:$0xf]
  %v31 = vld [vmem:[%s0 + $0x34] sm:$0xf]
  %v32 = vld [vmem:[%s0 + $0x38] sm:$0xf]
  %v33 = vld [vmem:[%s0 + $0x3c] sm:$0xf]
  %v34 = vld [vmem:[%s0 + $0x40] sm:$0xf]
  %v35 = vld [vmem:[%s0 + $0x44] sm:$0xf]
  %v36 = vld [vmem:[%s0 + $0x48] sm:$0xf]
  %v37 = vld [vmem:[%s0 + $0x4c] sm:$0xf]
  %v38 = vld [vmem:[%s0 + $0x50] sm:$0xf]
  %v39 = vld [vmem:[%s0 + $0x54] sm:$0xf]
  %v40 = vld [vmem:[%s0 + $0x58] sm:$0xf]
  %v41 = vld [vmem:[%s0 + $0x5c] sm:$0xf]
  %v42 = vld [vmem:[%s0 + $0x60] sm:$0xf]
  %v43 = vld [vmem:[%s0 + $0x64] sm:$0xf]
  %v44 = vld [vmem:[%s0 + $0x68] sm:$0xf]
  %v45 = vld [vmem:[%s0 + $0x6c] sm:$0xf]
  %v46 = vld [vmem:[%s0 + $0x70] sm:$0xf]
  %v47 = vld [vmem:[%s0 + $0x74] sm:$0xf]
  %v48 = vld [vmem:[%s0 + $0x78] sm:$0xf]
  %v49 = vld [vmem:[%s0 + $0x7c] sm:$0xf]
  %v50 = vld [vmem:[%s0 + $0x80] sm:$0xf]
  %v51 = vld [vmem:[%s0 + $0x84] sm:$0xf]
  %v52 = vld [vmem:[%s0 + $0x88] sm:$0xf]
  %v53 = vld [vmem:[%s0 + $0x8c] sm:$0xf]
  %v54 = vld [vmem:[%s0 + $0x90] sm:$0xf]
  %v55 = vld [vmem:[%s0 + $0x94] sm:$0xf]
  %v56 = vld [vmem:[%s0 + $0x98] sm:$0xf]
  %v57 = vld [vmem:[%s0 + $0x9c] sm:$0xf]
  %v58 = vld [vmem:[%s0 + $0xa0] sm:$0xf]
  %v59 = vld [vmem:[%s0 + $0xa4] sm:$0xf]
  %v60 = vld [vmem:[%s0 + $0xa8] sm:$0xf]
  %v61 = vld [vmem:[%s0 + $0xac] sm:$0xf]
  %v62 = vld [vmem:[%s0 + $0xb0] sm:$0xf]
  %v63 = vld [vmem:[%s0 + $0xb4] sm:$0xf]
  %v64 = vld [vmem:[%s0 + $0xb8] sm:$0xf]
  %v65 = vld [vmem:[%s0 + $0xbc] sm:$0xf]
  %v66 = vld [vmem:[%s0 + $0xc0] sm:$0xf]
  %v67 = vld [vmem:[%s0 + $0xc4] sm:$0xf]
  %v68 = vld [vmem:[%s0 + $0xc8] sm:$0xf]
  %v69 = vld [vmem:[%s0 + $0xcc] sm:$0xf]
  %v70 = vld [vmem:[%s0 + $0xd0] sm:$0xf]
  %v71 = vld [vmem:[%s0 + $0xd4] sm:$0xf]
  %v72 = vld [vmem:[%s0 + $0xd8] sm:$0xf]
  %v73 = vld [vmem:[%s0 + $0xdc] sm:$0xf]
  %v74 = vld [vmem:[%s0 + $0xe0] sm:$0xf]
  %v75 = vld [vmem:[%s0 + $0xe4] sm:$0xf]
  %v76 = vld [vmem:[%s0 + $0xe8] sm:$0xf]
  %v77 = vld [vmem:[%s0 + $0xec] sm:$0xf]
  %v78 = vld [vmem:[%s0 + $0xf0] sm:$0xf]
  %v79 = vld [vmem:[%s0 + $0xf4] sm:$0xf]
  %v80 = vld [vmem:[%s0 + $0xf8] sm:$0xf]
  %v81 = vld [vmem:[%s0 + $0xfc] sm:$0xf]
  %v82 = vld [vmem:[%s1] sm:$0xf]
  %v83 = vld [vmem:[%s1 + $0x4] sm:$0xf]
  %v84 = vld [vmem:[%s1 + $0x8] sm:$0xf]
  %v85 = vld [vmem:[%s1 + $0xc] sm:$0xf]
  %v86 = vld [vmem:[%s1 + $0x10] sm:$0x3]
  %v151 = vunpack.c.l.b16 %v18
  %v152 = vunpack.c.l.b16 %v19
  %v153 = vunpack.c.l.b16 %v20
  %v154 = vunpack.c.l.b16 %v21
  %v155 = vunpack.c.l.b16 %v22
  %v156 = vunpack.c.l.b16 %v23
  %v157 = vunpack.c.l.b16 %v24
  %v158 = vunpack.c.l.b16 %v25
  %v159 = vunpack.c.l.b16 %v26
  %v160 = vunpack.c.l.b16 %v27
  %v161 = vunpack.c.l.b16 %v28
  %v162 = vunpack.c.l.b16 %v29
  %v163 = vunpack.c.l.b16 %v30
  %v164 = vunpack.c.l.b16 %v31
  %v165 = vunpack.c.l.b16 %v32
  %v166 = vunpack.c.l.b16 %v33
  %v167 = vunpack.c.l.b16 %v34
  %v168 = vunpack.c.l.b16 %v35
  %v169 = vunpack.c.l.b16 %v36
  %v170 = vunpack.c.l.b16 %v37
  %v171 = vunpack.c.l.b16 %v38
  %v172 = vunpack.c.l.b16 %v39
  %v173 = vunpack.c.l.b16 %v40
  %v174 = vunpack.c.l.b16 %v41
  %v175 = vunpack.c.l.b16 %v42
  %v176 = vunpack.c.l.b16 %v43
  %v177 = vunpack.c.l.b16 %v44
  %v178 = vunpack.c.l.b16 %v45
  %v179 = vunpack.c.l.b16 %v46
  %v180 = vunpack.c.l.b16 %v47
  %v181 = vunpack.c.l.b16 %v48
  %v182 = vunpack.c.l.b16 %v49
  %v183 = vunpack.c.l.b16 %v50
  %v184 = vunpack.c.l.b16 %v51
  %v185 = vunpack.c.l.b16 %v52
  %v186 = vunpack.c.l.b16 %v53
  %v187 = vunpack.c.l.b16 %v54
  %v188 = vunpack.c.l.b16 %v55
  %v189 = vunpack.c.l.b16 %v56
  %v190 = vunpack.c.l.b16 %v57
  %v191 = vunpack.c.l.b16 %v58
  %v192 = vunpack.c.l.b16 %v59
  %v193 = vunpack.c.l.b16 %v60
  %v194 = vunpack.c.l.b16 %v61
  %v195 = vunpack.c.l.b16 %v62
  %v196 = vunpack.c.l.b16 %v63
  %v197 = vunpack.c.l.b16 %v64
  %v198 = vunpack.c.l.b16 %v65
  %v199 = vunpack.c.l.b16 %v66
  %v200 = vunpack.c.l.b16 %v67
  %v201 = vunpack.c.l.b16 %v68
  %v202 = vunpack.c.l.b16 %v69
  %v203 = vunpack.c.l.b16 %v70
  %v204 = vunpack.c.l.b16 %v71
  %v205 = vunpack.c.l.b16 %v72
  %v206 = vunpack.c.l.b16 %v73
  %v207 = vunpack.c.l.b16 %v74
  %v208 = vunpack.c.l.b16 %v75
  %v209 = vunpack.c.l.b16 %v76
  %v210 = vunpack.c.l.b16 %v77
  %v211 = vunpack.c.l.b16 %v78
  %v212 = vunpack.c.l.b16 %v79
  %v213 = vunpack.c.l.b16 %v80
  %v214 = vunpack.c.l.b16 %v81
  %v215 = vpack.c.b16 %v152, %v151
  %v216 = vpack.c.b16 %v154, %v153
  %v217 = vpack.c.b16 %v156, %v155
  %v218 = vpack.c.b16 %v158, %v157
  %v219 = vpack.c.b16 %v160, %v159
  %v220 = vpack.c.b16 %v162, %v161
  %v221 = vpack.c.b16 %v164, %v163
  %v222 = vpack.c.b16 %v166, %v165
  %v223 = vpack.c.b16 %v168, %v167
  %v224 = vpack.c.b16 %v170, %v169
  %v225 = vpack.c.b16 %v172, %v171
  %v226 = vpack.c.b16 %v174, %v173
  %v227 = vpack.c.b16 %v176, %v175
  %v228 = vpack.c.b16 %v178, %v177
  %v229 = vpack.c.b16 %v180, %v179
  %v230 = vpack.c.b16 %v182, %v181
  %v231 = vpack.c.b16 %v184, %v183
  %v232 = vpack.c.b16 %v186, %v185
  %v233 = vpack.c.b16 %v188, %v187
  %v234 = vpack.c.b16 %v190, %v189
  %v235 = vpack.c.b16 %v192, %v191
  %v236 = vpack.c.b16 %v194, %v193
  %v237 = vpack.c.b16 %v196, %v195
  %v238 = vpack.c.b16 %v198, %v197
  %v239 = vpack.c.b16 %v200, %v199
  %v240 = vpack.c.b16 %v202, %v201
  %v241 = vpack.c.b16 %v204, %v203
  %v242 = vpack.c.b16 %v206, %v205
  %v243 = vpack.c.b16 %v208, %v207
  %v244 = vpack.c.b16 %v210, %v209
  %v245 = vpack.c.b16 %v212, %v211
  %v246 = vpack.c.b16 %v214, %v213
  %v252 = vunpack.c.l.b16 %v82
  %v253 = vunpack.c.l.b16 %v83
  %v254 = vunpack.c.l.b16 %v84
  %v255 = vunpack.c.l.b16 %v85
  %v256 = vunpack.c.l.b16 %v86
  %v257 = vpack.c.b16 %v253, %v252
  %v258 = vpack.c.b16 %v255, %v254
  %v259 = vpack.c.b16 %v256, %v256
  %vm262 = vcmask 293888
  %v264 = vsel %vm262, %v215, 0
  %v267 = vsel %vm262, %v216, 0
  %v270 = vsel %vm262, %v217, 0
  %v273 = vsel %vm262, %v218, 0
  %v276 = vsel %vm262, %v219, 0
  %v279 = vsel %vm262, %v220, 0
  %v282 = vsel %vm262, %v221, 0
  %v285 = vsel %vm262, %v222, 0
  %v288 = vsel %vm262, %v223, 0
  %v291 = vsel %vm262, %v224, 0
  %v294 = vsel %vm262, %v225, 0
  %v297 = vsel %vm262, %v226, 0
  %v300 = vsel %vm262, %v227, 0
  %v303 = vsel %vm262, %v228, 0
  %v306 = vsel %vm262, %v229, 0
  %v309 = vsel %vm262, %v230, 0
  %v312 = vsel %vm262, %v231, 0
  %v315 = vsel %vm262, %v232, 0
  %v318 = vsel %vm262, %v233, 0
  %v321 = vsel %vm262, %v234, 0
  %v324 = vsel %vm262, %v235, 0
  %v327 = vsel %vm262, %v236, 0
  %v330 = vsel %vm262, %v237, 0
  %v333 = vsel %vm262, %v238, 0
  %v336 = vsel %vm262, %v239, 0
  %v339 = vsel %vm262, %v240, 0
  %v342 = vsel %vm262, %v241, 0
  %v345 = vsel %vm262, %v242, 0
  %v348 = vsel %vm262, %v243, 0
  %v351 = vsel %vm262, %v244, 0
  %v354 = vsel %vm262, %v245, 0
  %v357 = vsel %vm262, %v246, 0
  %vm359 = vcmask 1041408
  %v361 = vsel %vm359, %v259, 0
  %363 = vmatprep.subr.bf16.mxu0 0
  %364 = vmatpush1.bf16.msra.mxu0 %v257
  %365 = vmatprep.subr.bf16.mxu0 0
  %366 = vmatpush1.bf16.msra.mxu0 %v258
  %367 = vmatprep.subr.bf16.mxu0 0
  %368 = vmatpush1.bf16.msra.mxu0 %v361
  %369 = vmatprep.subr.bf16.mxu0 0
  %370 = vmatpush1.bf16.msra.mxu0 0
  %371 = vmatprep.subr.bf16.mxu0 0
  %372 = vmatpush1.bf16.msra.mxu0 0
  %373 = vmatprep.subr.bf16.mxu0 0
  %374 = vmatpush1.bf16.msra.mxu0 0
  %375 = vmatprep.subr.bf16.mxu0 0
  %376 = vmatpush1.bf16.msra.mxu0 0
  %377 = vmatprep.subr.bf16.mxu0 0
  %378 = vmatpush1.bf16.msra.mxu0 0
  %379 = vmatprep.subr.bf16.mxu0 0
  %380 = vmatpush1.bf16.msra.mxu0 0
  %381 = vmatprep.subr.bf16.mxu0 0
  %382 = vmatpush1.bf16.msra.mxu0 0
  %383 = vmatprep.subr.bf16.mxu0 0
  %384 = vmatpush1.bf16.msra.mxu0 0
  %385 = vmatprep.subr.bf16.mxu0 0
  %386 = vmatpush1.bf16.msra.mxu0 0
  %387 = vmatprep.subr.bf16.mxu0 0
  %388 = vmatpush1.bf16.msra.mxu0 0
  %389 = vmatprep.subr.bf16.mxu0 0
  %390 = vmatpush1.bf16.msra.mxu0 0
  %391 = vmatprep.subr.bf16.mxu0 0
  %392 = vmatpush1.bf16.msra.mxu0 0
  %393 = vmatprep.subr.bf16.mxu0 0
  %394 = vmatpush1.bf16.msra.mxu0 0
  %395 = vmatprep.mubr.bf16.mxu0 0
  %396 = vmatmul.mubr.bf16.gmra.mrb[0].mxu0 %v264
  %v397 = vpop.f32.mrb[0].mxu0
  %v398 = vadd.f32 0.0, %v397
  %v399 = vpop.f32.mrb[0].mxu0
  %v400 = vpop.f32.mrb[0].mxu0
  %v401 = vadd.f32 0.0, %v400
  %v402 = vpop.f32.mrb[0].mxu0
  %403 = vmatprep.mubr.bf16.mxu0 0
  %404 = vmatmul.mubr.bf16.gmra.mrb[0].mxu0 %v267
  %v405 = vpop.f32.mrb[0].mxu0
  %v406 = vadd.f32 0.0, %v405
  %v407 = vpop.f32.mrb[0].mxu0
  %v408 = vpop.f32.mrb[0].mxu0
  %v409 = vadd.f32 0.0, %v408
  %v410 = vpop.f32.mrb[0].mxu0
  %411 = vmatprep.mubr.bf16.mxu0 0
  %412 = vmatmul.mubr.bf16.gmra.mrb[0].mxu0 %v270
  %v413 = vpop.f32.mrb[0].mxu0
  %v414 = vadd.f32 0.0, %v413
  %v415 = vpop.f32.mrb[0].mxu0
  %v416 = vpop.f32.mrb[0].mxu0
  %v417 = vadd.f32 0.0, %v416
  %v418 = vpop.f32.mrb[0].mxu0
  %419 = vmatprep.mubr.bf16.mxu0 0
  %420 = vmatmul.mubr.bf16.gmra.mrb[0].mxu0 %v273
  %v421 = vpop.f32.mrb[0].mxu0
  %v422 = vadd.f32 0.0, %v421
  %v423 = vpop.f32.mrb[0].mxu0
  %v424 = vpop.f32.mrb[0].mxu0
  %v425 = vadd.f32 0.0, %v424
  %v426 = vpop.f32.mrb[0].mxu0
  %427 = vmatprep.mubr.bf16.mxu0 0
  %428 = vmatmul.mubr.bf16.gmra.mrb[0].mxu0 %v276
  %v429 = vpop.f32.mrb[0].mxu0
  %v430 = vadd.f32 0.0, %v429
  %v431 = vpop.f32.mrb[0].mxu0
  %v432 = vpop.f32.mrb[0].mxu0
  %v433 = vadd.f32 0.0, %v432
  %v434 = vpop.f32.mrb[0].mxu0
  %435 = vmatprep.mubr.bf16.mxu0 0
  %436 = vmatmul.mubr.bf16.gmra.mrb[0].mxu0 %v279
  %v437 = vpop.f32.mrb[0].mxu0
  %v438 = vadd.f32 0.0, %v437
  %v439 = vpop.f32.mrb[0].mxu0
  %v440 = vpop.f32.mrb[0].mxu0
  %v441 = vadd.f32 0.0, %v440
  %v442 = vpop.f32.mrb[0].mxu0
  %443 = vmatprep.mubr.bf16.mxu0 0
  %444 = vmatmul.mubr.bf16.gmra.mrb[0].mxu0 %v282
  %v445 = vpop.f32.mrb[0].mxu0
  %v446 = vadd.f32 0.0, %v445
  %v447 = vpop.f32.mrb[0].mxu0
  %v448 = vpop.f32.mrb[0].mxu0
  %v449 = vadd.f32 0.0, %v448
  %v450 = vpop.f32.mrb[0].mxu0
  %451 = vmatprep.mubr.bf16.mxu0 0
  %452 = vmatmul.mubr.bf16.gmra.mrb[0].mxu0 %v285
  %v453 = vpop.f32.mrb[0].mxu0
  %v454 = vadd.f32 0.0, %v453
  %v455 = vpop.f32.mrb[0].mxu0
  %v456 = vpop.f32.mrb[0].mxu0
  %v457 = vadd.f32 0.0, %v456
  %v458 = vpop.f32.mrb[0].mxu0
  %459 = vmatprep.mubr.bf16.mxu0 0
  %460 = vmatmul.mubr.bf16.gmra.mrb[0].mxu0 %v288
  %v461 = vpop.f32.mrb[0].mxu0
  %v462 = vadd.f32 0.0, %v461
  %v463 = vpop.f32.mrb[0].mxu0
  %v464 = vpop.f32.mrb[0].mxu0
  %v465 = vadd.f32 0.0, %v464
  %v466 = vpop.f32.mrb[0].mxu0
  %467 = vmatprep.mubr.bf16.mxu0 0
  %468 = vmatmul.mubr.bf16.gmra.mrb[0].mxu0 %v291
  %v469 = vpop.f32.mrb[0].mxu0
  %v470 = vadd.f32 0.0, %v469
  %v471 = vpop.f32.mrb[0].mxu0
  %v472 = vpop.f32.mrb[0].mxu0
  %v473 = vadd.f32 0.0, %v472
  %v474 = vpop.f32.mrb[0].mxu0
  %475 = vmatprep.mubr.bf16.mxu0 0
  %476 = vmatmul.mubr.bf16.gmra.mrb[0].mxu0 %v294
  %v477 = vpop.f32.mrb[0].mxu0
  %v478 = vadd.f32 0.0, %v477
  %v479 = vpop.f32.mrb[0].mxu0
  %v480 = vpop.f32.mrb[0].mxu0
  %v481 = vadd.f32 0.0, %v480
  %v482 = vpop.f32.mrb[0].mxu0
  %483 = vmatprep.mubr.bf16.mxu0 0
  %484 = vmatmul.mubr.bf16.gmra.mrb[0].mxu0 %v297
  %v485 = vpop.f32.mrb[0].mxu0
  %v486 = vadd.f32 0.0, %v485
  %v487 = vpop.f32.mrb[0].mxu0
  %v488 = vpop.f32.mrb[0].mxu0
  %v489 = vadd.f32 0.0, %v488
  %v490 = vpop.f32.mrb[0].mxu0
  %491 = vmatprep.mubr.bf16.mxu0 0
  %492 = vmatmul.mubr.bf16.gmra.mrb[0].mxu0 %v300
  %v493 = vpop.f32.mrb[0].mxu0
  %v494 = vadd.f32 0.0, %v493
  %v495 = vpop.f32.mrb[0].mxu0
  %v496 = vpop.f32.mrb[0].mxu0
  %v497 = vadd.f32 0.0, %v496
  %v498 = vpop.f32.mrb[0].mxu0
  %499 = vmatprep.mubr.bf16.mxu0 0
  %500 = vmatmul.mubr.bf16.gmra.mrb[0].mxu0 %v303
  %v501 = vpop.f32.mrb[0].mxu0
  %v502 = vadd.f32 0.0, %v501
  %v503 = vpop.f32.mrb[0].mxu0
  %v504 = vpop.f32.mrb[0].mxu0
  %v505 = vadd.f32 0.0, %v504
  %v506 = vpop.f32.mrb[0].mxu0
  %507 = vmatprep.mubr.bf16.mxu0 0
  %508 = vmatmul.mubr.bf16.gmra.mrb[0].mxu0 %v306
  %v509 = vpop.f32.mrb[0].mxu0
  %v510 = vadd.f32 0.0, %v509
  %v511 = vpop.f32.mrb[0].mxu0
  %v512 = vpop.f32.mrb[0].mxu0
  %v513 = vadd.f32 0.0, %v512
  %v514 = vpop.f32.mrb[0].mxu0
  %515 = vmatprep.mubr.bf16.mxu0 0
  %516 = vmatmul.mubr.bf16.gmra.mrb[0].mxu0 %v309
  %v517 = vpop.f32.mrb[0].mxu0
  %v518 = vadd.f32 0.0, %v517
  %v519 = vpop.f32.mrb[0].mxu0
  %v520 = vpop.f32.mrb[0].mxu0
  %v521 = vadd.f32 0.0, %v520
  %v522 = vpop.f32.mrb[0].mxu0
  %523 = vmatprep.mubr.bf16.mxu0 0
  %524 = vmatmul.mubr.bf16.gmra.mrb[0].mxu0 %v312
  %v525 = vpop.f32.mrb[0].mxu0
  %v526 = vadd.f32 0.0, %v525
  %v527 = vpop.f32.mrb[0].mxu0
  %v528 = vpop.f32.mrb[0].mxu0
  %v529 = vadd.f32 0.0, %v528
  %v530 = vpop.f32.mrb[0].mxu0
  %531 = vmatprep.mubr.bf16.mxu0 0
  %532 = vmatmul.mubr.bf16.gmra.mrb[0].mxu0 %v315
  %v533 = vpop.f32.mrb[0].mxu0
  %v534 = vadd.f32 0.0, %v533
  %v535 = vpop.f32.mrb[0].mxu0
  %v536 = vpop.f32.mrb[0].mxu0
  %v537 = vadd.f32 0.0, %v536
  %v538 = vpop.f32.mrb[0].mxu0
  %539 = vmatprep.mubr.bf16.mxu0 0
  %540 = vmatmul.mubr.bf16.gmra.mrb[0].mxu0 %v318
  %v541 = vpop.f32.mrb[0].mxu0
  %v542 = vadd.f32 0.0, %v541
  %v543 = vpop.f32.mrb[0].mxu0
  %v544 = vpop.f32.mrb[0].mxu0
  %v545 = vadd.f32 0.0, %v544
  %v546 = vpop.f32.mrb[0].mxu0
  %547 = vmatprep.mubr.bf16.mxu0 0
  %548 = vmatmul.mubr.bf16.gmra.mrb[0].mxu0 %v321
  %v549 = vpop.f32.mrb[0].mxu0
  %v550 = vadd.f32 0.0, %v549
  %v551 = vpop.f32.mrb[0].mxu0
  %v552 = vpop.f32.mrb[0].mxu0
  %v553 = vadd.f32 0.0, %v552
  %v554 = vpop.f32.mrb[0].mxu0
  %555 = vmatprep.mubr.bf16.mxu0 0
  %556 = vmatmul.mubr.bf16.gmra.mrb[0].mxu0 %v324
  %v557 = vpop.f32.mrb[0].mxu0
  %v558 = vadd.f32 0.0, %v557
  %v559 = vpop.f32.mrb[0].mxu0
  %v560 = vpop.f32.mrb[0].mxu0
  %v561 = vadd.f32 0.0, %v560
  %v562 = vpop.f32.mrb[0].mxu0
  %563 = vmatprep.mubr.bf16.mxu0 0
  %564 = vmatmul.mubr.bf16.gmra.mrb[0].mxu0 %v327
  %v565 = vpop.f32.mrb[0].mxu0
  %v566 = vadd.f32 0.0, %v565
  %v567 = vpop.f32.mrb[0].mxu0
  %v568 = vpop.f32.mrb[0].mxu0
  %v569 = vadd.f32 0.0, %v568
  %v570 = vpop.f32.mrb[0].mxu0
  %571 = vmatprep.mubr.bf16.mxu0 0
  %572 = vmatmul.mubr.bf16.gmra.mrb[0].mxu0 %v330
  %v573 = vpop.f32.mrb[0].mxu0
  %v574 = vadd.f32 0.0, %v573
  %v575 = vpop.f32.mrb[0].mxu0
  %v576 = vpop.f32.mrb[0].mxu0
  %v577 = vadd.f32 0.0, %v576
  %v578 = vpop.f32.mrb[0].mxu0
  %579 = vmatprep.mubr.bf16.mxu0 0
  %580 = vmatmul.mubr.bf16.gmra.mrb[0].mxu0 %v333
  %v581 = vpop.f32.mrb[0].mxu0
  %v582 = vadd.f32 0.0, %v581
  %v583 = vpop.f32.mrb[0].mxu0
  %v584 = vpop.f32.mrb[0].mxu0
  %v585 = vadd.f32 0.0, %v584
  %v586 = vpop.f32.mrb[0].mxu0
  %587 = vmatprep.mubr.bf16.mxu0 0
  %588 = vmatmul.mubr.bf16.gmra.mrb[0].mxu0 %v336
  %v589 = vpop.f32.mrb[0].mxu0
  %v590 = vadd.f32 0.0, %v589
  %v591 = vpop.f32.mrb[0].mxu0
  %v592 = vpop.f32.mrb[0].mxu0
  %v593 = vadd.f32 0.0, %v592
  %v594 = vpop.f32.mrb[0].mxu0
  %595 = vmatprep.mubr.bf16.mxu0 0
  %596 = vmatmul.mubr.bf16.gmra.mrb[0].mxu0 %v339
  %v597 = vpop.f32.mrb[0].mxu0
  %v598 = vadd.f32 0.0, %v597
  %v599 = vpop.f32.mrb[0].mxu0
  %v600 = vpop.f32.mrb[0].mxu0
  %v601 = vadd.f32 0.0, %v600
  %v602 = vpop.f32.mrb[0].mxu0
  %603 = vmatprep.mubr.bf16.mxu0 0
  %604 = vmatmul.mubr.bf16.gmra.mrb[0].mxu0 %v342
  %v605 = vpop.f32.mrb[0].mxu0
  %v606 = vadd.f32 0.0, %v605
  %v607 = vpop.f32.mrb[0].mxu0
  %v608 = vpop.f32.mrb[0].mxu0
  %v609 = vadd.f32 0.0, %v608
  %v610 = vpop.f32.mrb[0].mxu0
  %611 = vmatprep.mubr.bf16.mxu0 0
  %612 = vmatmul.mubr.bf16.gmra.mrb[0].mxu0 %v345
  %v613 = vpop.f32.mrb[0].mxu0
  %v614 = vadd.f32 0.0, %v613
  %v615 = vpop.f32.mrb[0].mxu0
  %v616 = vpop.f32.mrb[0].mxu0
  %v617 = vadd.f32 0.0, %v616
  %v618 = vpop.f32.mrb[0].mxu0
  %619 = vmatprep.mubr.bf16.mxu0 0
  %620 = vmatmul.mubr.bf16.gmra.mrb[0].mxu0 %v348
  %v621 = vpop.f32.mrb[0].mxu0
  %v622 = vadd.f32 0.0, %v621
  %v623 = vpop.f32.mrb[0].mxu0
  %v624 = vpop.f32.mrb[0].mxu0
  %v625 = vadd.f32 0.0, %v624
  %v626 = vpop.f32.mrb[0].mxu0
  %627 = vmatprep.mubr.bf16.mxu0 0
  %628 = vmatmul.mubr.bf16.gmra.mrb[0].mxu0 %v351
  %v629 = vpop.f32.mrb[0].mxu0
  %v630 = vadd.f32 0.0, %v629
  %v631 = vpop.f32.mrb[0].mxu0
  %v632 = vpop.f32.mrb[0].mxu0
  %v633 = vadd.f32 0.0, %v632
  %v634 = vpop.f32.mrb[0].mxu0
  %635 = vmatprep.mubr.bf16.mxu0 0
  %636 = vmatmul.mubr.bf16.gmra.mrb[0].mxu0 %v354
  %v637 = vpop.f32.mrb[0].mxu0
  %v638 = vadd.f32 0.0, %v637
  %v639 = vpop.f32.mrb[0].mxu0
  %v640 = vpop.f32.mrb[0].mxu0
  %v641 = vadd.f32 0.0, %v640
  %v642 = vpop.f32.mrb[0].mxu0
  %643 = vmatprep.mubr.bf16.mxu0 0
  %644 = vmatmul.mubr.bf16.gmra.mrb[0].mxu0 %v357
  %v645 = vpop.f32.mrb[0].mxu0
  %v646 = vadd.f32 0.0, %v645
  %v647 = vpop.f32.mrb[0].mxu0
  %v648 = vpop.f32.mrb[0].mxu0
  %v649 = vadd.f32 0.0, %v648
  %v650 = vpop.f32.mrb[0].mxu0
  %651 = vdwg.mxu0
  %v652 = vld [vmem:[%s2] sm:$0x1]
  %v654 = vlaneseq
  %v655 = vshrl.u32 %v654, 7
  %v656 = vsub.s32 0, %v655
  %v657 = vrot.slane %v652, %v656
  %v659 = vmul.f32 %v398, %v657
  %v660 = vmul.f32 %v401, %v657
  %v661 = vmul.f32 %v406, %v657
  %v662 = vmul.f32 %v409, %v657
  %v663 = vmul.f32 %v414, %v657
  %v664 = vmul.f32 %v417, %v657
  %v665 = vmul.f32 %v422, %v657
  %v666 = vmul.f32 %v425, %v657
  %v667 = vmul.f32 %v430, %v657
  %v668 = vmul.f32 %v433, %v657
  %v669 = vmul.f32 %v438, %v657
  %v670 = vmul.f32 %v441, %v657
  %v671 = vmul.f32 %v446, %v657
  %v672 = vmul.f32 %v449, %v657
  %v673 = vmul.f32 %v454, %v657
  %v674 = vmul.f32 %v457, %v657
  %v675 = vmul.f32 %v462, %v657
  %v676 = vmul.f32 %v465, %v657
  %v677 = vmul.f32 %v470, %v657
  %v678 = vmul.f32 %v473, %v657
  %v679 = vmul.f32 %v478, %v657
  %v680 = vmul.f32 %v481, %v657
  %v681 = vmul.f32 %v486, %v657
  %v682 = vmul.f32 %v489, %v657
  %v683 = vmul.f32 %v494, %v657
  %v684 = vmul.f32 %v497, %v657
  %v685 = vmul.f32 %v502, %v657
  %v686 = vmul.f32 %v505, %v657
  %v687 = vmul.f32 %v510, %v657
  %v688 = vmul.f32 %v513, %v657
  %v689 = vmul.f32 %v518, %v657
  %v690 = vmul.f32 %v521, %v657
  %v691 = vmul.f32 %v526, %v657
  %v692 = vmul.f32 %v529, %v657
  %v693 = vmul.f32 %v534, %v657
  %v694 = vmul.f32 %v537, %v657
  %v695 = vmul.f32 %v542, %v657
  %v696 = vmul.f32 %v545, %v657
  %v697 = vmul.f32 %v550, %v657
  %v698 = vmul.f32 %v553, %v657
  %v699 = vmul.f32 %v558, %v657
  %v700 = vmul.f32 %v561, %v657
  %v701 = vmul.f32 %v566, %v657
  %v702 = vmul.f32 %v569, %v657
  %v703 = vmul.f32 %v574, %v657
  %v704 = vmul.f32 %v577, %v657
  %v705 = vmul.f32 %v582, %v657
  %v706 = vmul.f32 %v585, %v657
  %v707 = vmul.f32 %v590, %v657
  %v708 = vmul.f32 %v593, %v657
  %v709 = vmul.f32 %v598, %v657
  %v710 = vmul.f32 %v601, %v657
  %v711 = vmul.f32 %v606, %v657
  %v712 = vmul.f32 %v609, %v657
  %v713 = vmul.f32 %v614, %v657
  %v714 = vmul.f32 %v617, %v657
  %v715 = vmul.f32 %v622, %v657
  %v716 = vmul.f32 %v625, %v657
  %v717 = vmul.f32 %v630, %v657
  %v718 = vmul.f32 %v633, %v657
  %v719 = vmul.f32 %v638, %v657
  %v720 = vmul.f32 %v641, %v657
  %v721 = vmul.f32 %v646, %v657
  %v722 = vmul.f32 %v649, %v657
  %v723 = vld [vmem:[%s3] sm:$0x1]
  %v725 = vlaneseq
  %v726 = vshrl.u32 %v725, 7
  %v727 = vsub.s32 0, %v726
  %v728 = vrot.slane %v723, %v727
  %v730 = vadd.f32 %v659, %v728
  %v731 = vadd.f32 %v660, %v728
  %v732 = vadd.f32 %v661, %v728
  %v733 = vadd.f32 %v662, %v728
  %v734 = vadd.f32 %v663, %v728
  %v735 = vadd.f32 %v664, %v728
  %v736 = vadd.f32 %v665, %v728
  %v737 = vadd.f32 %v666, %v728
  %v738 = vadd.f32 %v667, %v728
  %v739 = vadd.f32 %v668, %v728
  %v740 = vadd.f32 %v669, %v728
  %v741 = vadd.f32 %v670, %v728
  %v742 = vadd.f32 %v671, %v728
  %v743 = vadd.f32 %v672, %v728
  %v744 = vadd.f32 %v673, %v728
  %v745 = vadd.f32 %v674, %v728
  %v746 = vadd.f32 %v675, %v728
  %v747 = vadd.f32 %v676, %v728
  %v748 = vadd.f32 %v677, %v728
  %v749 = vadd.f32 %v678, %v728
  %v750 = vadd.f32 %v679, %v728
  %v751 = vadd.f32 %v680, %v728
  %v752 = vadd.f32 %v681, %v728
  %v753 = vadd.f32 %v682, %v728
  %v754 = vadd.f32 %v683, %v728
  %v755 = vadd.f32 %v684, %v728
  %v756 = vadd.f32 %v685, %v728
  %v757 = vadd.f32 %v686, %v728
  %v758 = vadd.f32 %v687, %v728
  %v759 = vadd.f32 %v688, %v728
  %v760 = vadd.f32 %v689, %v728
  %v761 = vadd.f32 %v690, %v728
  %v762 = vadd.f32 %v691, %v728
  %v763 = vadd.f32 %v692, %v728
  %v764 = vadd.f32 %v693, %v728
  %v765 = vadd.f32 %v694, %v728
  %v766 = vadd.f32 %v695, %v728
  %v767 = vadd.f32 %v696, %v728
  %v768 = vadd.f32 %v697, %v728
  %v769 = vadd.f32 %v698, %v728
  %v770 = vadd.f32 %v699, %v728
  %v771 = vadd.f32 %v700, %v728
  %v772 = vadd.f32 %v701, %v728
  %v773 = vadd.f32 %v702, %v728
  %v774 = vadd.f32 %v703, %v728
  %v775 = vadd.f32 %v704, %v728
  %v776 = vadd.f32 %v705, %v728
  %v777 = vadd.f32 %v706, %v728
  %v778 = vadd.f32 %v707, %v728
  %v779 = vadd.f32 %v708, %v728
  %v780 = vadd.f32 %v709, %v728
  %v781 = vadd.f32 %v710, %v728
  %v782 = vadd.f32 %v711, %v728
  %v783 = vadd.f32 %v712, %v728
  %v784 = vadd.f32 %v713, %v728
  %v785 = vadd.f32 %v714, %v728
  %v786 = vadd.f32 %v715, %v728
  %v787 = vadd.f32 %v716, %v728
  %v788 = vadd.f32 %v717, %v728
  %v789 = vadd.f32 %v718, %v728
  %v790 = vadd.f32 %v719, %v728
  %v791 = vadd.f32 %v720, %v728
  %v792 = vadd.f32 %v721, %v728
  %v793 = vadd.f32 %v722, %v728
  %vm794 = vcmask 31744
  %795 = vst.msk [vmem:[%s4] sm:$0xff] %vm794, %v730
  %796 = vst.msk [vmem:[%s4 + $0x8] sm:$0xff] %vm794, %v731
  %797 = vst.msk [vmem:[%s4 + $0x10] sm:$0xff] %vm794, %v732
  %798 = vst.msk [vmem:[%s4 + $0x18] sm:$0xff] %vm794, %v733
  %799 = vst.msk [vmem:[%s4 + $0x20] sm:$0xff] %vm794, %v734
  %800 = vst.msk [vmem:[%s4 + $0x28] sm:$0xff] %vm794, %v735
  %801 = vst.msk [vmem:[%s4 + $0x30] sm:$0xff] %vm794, %v736
  %802 = vst.msk [vmem:[%s4 + $0x38] sm:$0xff] %vm794, %v737
  %803 = vst.msk [vmem:[%s4 + $0x40] sm:$0xff] %vm794, %v738
  %804 = vst.msk [vmem:[%s4 + $0x48] sm:$0xff] %vm794, %v739
  %805 = vst.msk [vmem:[%s4 + $0x50] sm:$0xff] %vm794, %v740
  %806 = vst.msk [vmem:[%s4 + $0x58] sm:$0xff] %vm794, %v741
  %807 = vst.msk [vmem:[%s4 + $0x60] sm:$0xff] %vm794, %v742
  %808 = vst.msk [vmem:[%s4 + $0x68] sm:$0xff] %vm794, %v743
  %809 = vst.msk [vmem:[%s4 + $0x70] sm:$0xff] %vm794, %v744
  %810 = vst.msk [vmem:[%s4 + $0x78] sm:$0xff] %vm794, %v745
  %811 = vst.msk [vmem:[%s4 + $0x80] sm:$0xff] %vm794, %v746
  %812 = vst.msk [vmem:[%s4 + $0x88] sm:$0xff] %vm794, %v747
  %813 = vst.msk [vmem:[%s4 + $0x90] sm:$0xff] %vm794, %v748
  %814 = vst.msk [vmem:[%s4 + $0x98] sm:$0xff] %vm794, %v749
  %815 = vst.msk [vmem:[%s4 + $0xa0] sm:$0xff] %vm794, %v750
  %816 = vst.msk [vmem:[%s4 + $0xa8] sm:$0xff] %vm794, %v751
  %817 = vst.msk [vmem:[%s4 + $0xb0] sm:$0xff] %vm794, %v752
  %818 = vst.msk [vmem:[%s4 + $0xb8] sm:$0xff] %vm794, %v753
  %819 = vst.msk [vmem:[%s4 + $0xc0] sm:$0xff] %vm794, %v754
  %820 = vst.msk [vmem:[%s4 + $0xc8] sm:$0xff] %vm794, %v755
  %821 = vst.msk [vmem:[%s4 + $0xd0] sm:$0xff] %vm794, %v756
  %822 = vst.msk [vmem:[%s4 + $0xd8] sm:$0xff] %vm794, %v757
  %823 = vst.msk [vmem:[%s4 + $0xe0] sm:$0xff] %vm794, %v758
  %824 = vst.msk [vmem:[%s4 + $0xe8] sm:$0xff] %vm794, %v759
  %825 = vst.msk [vmem:[%s4 + $0xf0] sm:$0xff] %vm794, %v760
  %826 = vst.msk [vmem:[%s4 + $0xf8] sm:$0xff] %vm794, %v761
  %827 = vst.msk [vmem:[%s4 + $0x100] sm:$0xff] %vm794, %v762
  %828 = vst.msk [vmem:[%s4 + $0x108] sm:$0xff] %vm794, %v763
  %829 = vst.msk [vmem:[%s4 + $0x110] sm:$0xff] %vm794, %v764
  %830 = vst.msk [vmem:[%s4 + $0x118] sm:$0xff] %vm794, %v765
  %831 = vst.msk [vmem:[%s4 + $0x120] sm:$0xff] %vm794, %v766
  %832 = vst.msk [vmem:[%s4 + $0x128] sm:$0xff] %vm794, %v767
  %833 = vst.msk [vmem:[%s4 + $0x130] sm:$0xff] %vm794, %v768
  %834 = vst.msk [vmem:[%s4 + $0x138] sm:$0xff] %vm794, %v769
  %835 = vst.msk [vmem:[%s4 + $0x140] sm:$0xff] %vm794, %v770
  %836 = vst.msk [vmem:[%s4 + $0x148] sm:$0xff] %vm794, %v771
  %837 = vst.msk [vmem:[%s4 + $0x150] sm:$0xff] %vm794, %v772
  %838 = vst.msk [vmem:[%s4 + $0x158] sm:$0xff] %vm794, %v773
  %839 = vst.msk [vmem:[%s4 + $0x160] sm:$0xff] %vm794, %v774
  %840 = vst.msk [vmem:[%s4 + $0x168] sm:$0xff] %vm794, %v775
  %841 = vst.msk [vmem:[%s4 + $0x170] sm:$0xff] %vm794, %v776
  %842 = vst.msk [vmem:[%s4 + $0x178] sm:$0xff] %vm794, %v777
  %843 = vst.msk [vmem:[%s4 + $0x180] sm:$0xff] %vm794, %v778
  %844 = vst.msk [vmem:[%s4 + $0x188] sm:$0xff] %vm794, %v779
  %845 = vst.msk [vmem:[%s4 + $0x190] sm:$0xff] %vm794, %v780
  %846 = vst.msk [vmem:[%s4 + $0x198] sm:$0xff] %vm794, %v781
  %847 = vst.msk [vmem:[%s4 + $0x1a0] sm:$0xff] %vm794, %v782
  %848 = vst.msk [vmem:[%s4 + $0x1a8] sm:$0xff] %vm794, %v783
  %849 = vst.msk [vmem:[%s4 + $0x1b0] sm:$0xff] %vm794, %v784
  %850 = vst.msk [vmem:[%s4 + $0x1b8] sm:$0xff] %vm794, %v785
  %851 = vst.msk [vmem:[%s4 + $0x1c0] sm:$0xff] %vm794, %v786
  %852 = vst.msk [vmem:[%s4 + $0x1c8] sm:$0xff] %vm794, %v787
  %853 = vst.msk [vmem:[%s4 + $0x1d0] sm:$0xff] %vm794, %v788
  %854 = vst.msk [vmem:[%s4 + $0x1d8] sm:$0xff] %vm794, %v789
  %855 = vst.msk [vmem:[%s4 + $0x1e0] sm:$0xff] %vm794, %v790
  %856 = vst.msk [vmem:[%s4 + $0x1e8] sm:$0xff] %vm794, %v791
  %857 = vst.msk [vmem:[%s4 + $0x1f0] sm:$0xff] %vm794, %v792
  %858 = vst.msk [vmem:[%s4 + $0x1f8] sm:$0xff] %vm794, %v793
  // Predicated region
  $region18: #{unet_forward.39} parent=0 // pred_check
    _
  $region19: #{unet_forward.39} parent=0 // pred_check_branch
    %860 = sbr.rel (0) target = $region21
  $region20: #{unet_forward.39} parent=0 // pred_region
    _
  $region21: #{unet_forward.39} parent=0 // pred_fallthru
    _
  // Predicated region
  $region22: #{unet_forward.39} parent=0 // pred_check
    _
  $region23: #{unet_forward.39} parent=0 // pred_check_branch
    %862 = sbr.rel (0) target = $region25
  $region24: #{unet_forward.39} parent=0 // pred_region
    _
  $region25: #{unet_forward.39} parent=0 // pred_fallthru
    _

</llo_original>
